<compile_context>
chip_gen: v7x
topology: tpu7x:2x2x1
jax: 0.10.0
libtpu: 0.0.40
codegen_flags: <defaults>
</compile_context>

<pallas_src>
import functools

import jax
import jax.numpy as jnp
from jax.experimental import pallas as pl
from jax.experimental.pallas import tpu as pltpu

INPUT_DIM = 2
HIDDEN_DIM = 90
HIDDEN_PAD = 96           # sublane-aligned hidden width (pad rows stay exactly 0)
K_PAD = 8                 # fc1 contraction dim padded 2 -> 8 for the MXU
NB_HIDDEN_LAYERS = 4
OUTPUT_DIM = 1


def _act(v):
    # x + sin(x)^2   (EUP/VPU sine polynomial + elementwise ops, kept in f32)
    # TODO(synk): on v6e/v7x a bf16 activation chain (~2x VALU throughput) is
    # possible but changes numerics; kept in f32 to match the reference.
    return v + jnp.sin(v) ** 2


def mlp_kernel(x_ref, w1_ref, b1_ref, wh_ref, bh_ref, w2_ref, b2_ref, o_ref,
               *, matmul_dtype):
    """Transposed layout: x_ref (K_PAD, tb), activations (HIDDEN_PAD, tb),
    output (OUTPUT_DIM, tb). Batch columns are independent, so batch padding
    never contaminates real columns."""

    def mm(w, h):
        return jnp.dot(w.astype(matmul_dtype), h.astype(matmul_dtype),
                       preferred_element_type=jnp.float32)

    # fc1 on the MXU: (HIDDEN_PAD, K_PAD) @ (K_PAD, tb) + column bias.
    h = _act(mm(w1_ref[...], x_ref[...]) + b1_ref[...])

    # Hidden layers: (HIDDEN_PAD, HIDDEN_PAD) @ (HIDDEN_PAD, tb); the sin
    # polynomial (binding VALU work) now runs on only 96 sublane rows.
    for layer in range(NB_HIDDEN_LAYERS):
        h = _act(mm(wh_ref[layer], h) + bh_ref[layer])

    # fc2 (no activation): lane-dense (1, tb) output block.
    o_ref[...] = (mm(w2_ref[...], h) + b2_ref[...]).astype(o_ref.dtype)


def _pick_batch_tile(B):
    """Lane-dense batch tile (multiple of 128). For large B keep >= 2 grid
    steps so the 'parallel' axis can split across v7x's two TensorCores; cap
    at 1024 rows for VMEM headroom (v5e 16 MiB scoped default, v7x 64 MiB
    physical). Per-step working set at tb=1024 is only ~1-2 MiB."""
    if B <= 128:
        return 128
    half = 128 * pl.cdiv(B, 256)          # ~B/2 rounded up to a 128 multiple
    return int(min(half, 1024))


def mlp_forward(x, params, *, batch_tile=None, matmul_dtype=jnp.float32):
    """x: (B, INPUT_DIM) float32. params are UNPADDED, (in, out) layout.
    Returns (B, OUTPUT_DIM) float32."""
    w1, b1, wh, bh, w2, b2 = params
    B = x.shape[0]
    tb = _pick_batch_tile(B) if batch_tile is None else batch_tile
    assert tb % 128 == 0, "batch_tile must be a multiple of 128 (lane rule)"
    Bp = tb * pl.cdiv(B, tb)              # pad batch to a whole number of tiles
    grid = (Bp // tb,)

    hp = HIDDEN_PAD - HIDDEN_DIM
    kp = K_PAD - INPUT_DIM

    # Transpose + zero-pad everything in the wrapper (cheap, one-time XLA ops).
    x_t = jnp.pad(x.T, ((0, kp), (0, Bp - B)))                       # (K_PAD, Bp)
    w1t = jnp.pad(w1.T, ((0, hp), (0, kp)))                          # (96, 8)
    b1t = jnp.pad(b1.T, ((0, hp), (0, 0)))                           # (96, 1)
    wht = jnp.pad(jnp.transpose(wh, (0, 2, 1)), ((0, 0), (0, hp), (0, hp)))  # (L,96,96)
    bht = jnp.pad(jnp.transpose(bh, (0, 2, 1)), ((0, 0), (0, hp), (0, 0)))   # (L,96,1)
    w2t = jnp.pad(w2.T, ((0, 0), (0, hp)))                           # (1, 96)
    b2t = b2                                                         # (1, 1)

    weight_bytes = 4 * (w1t.size + b1t.size + wht.size + bht.size
                        + w2t.size + b2t.size)
    flops = 2 * Bp * (K_PAD * HIDDEN_PAD
                      + NB_HIDDEN_LAYERS * HIDDEN_PAD * HIDDEN_PAD
                      + HIDDEN_PAD * OUTPUT_DIM)
    transcendentals = Bp * HIDDEN_PAD * (1 + NB_HIDDEN_LAYERS)
    bytes_accessed = 4 * Bp * (K_PAD + OUTPUT_DIM) + weight_bytes

    # Weights / biases are tiny -> full-array blocks resident in VMEM; only the
    # batch (lane) dimension of x / out is tiled over the grid.
    def full(shape):
        return pl.BlockSpec(shape, lambda i: tuple(0 for _ in shape))

    kernel = functools.partial(mlp_kernel, matmul_dtype=matmul_dtype)

    out_t = pl.pallas_call(
        kernel,
        out_shape=jax.ShapeDtypeStruct((OUTPUT_DIM, Bp), jnp.float32),
        grid_spec=pltpu.PrefetchScalarGridSpec(
            num_scalar_prefetch=0,
            grid=grid,
            in_specs=[
                pl.BlockSpec((K_PAD, tb), lambda i: (0, i)),   # x^T (batch-tiled on lanes)
                full(w1t.shape),                               # fc1 W^T
                full(b1t.shape),                               # fc1 b (column)
                full(wht.shape),                               # hidden W^T stack
                full(bht.shape),                               # hidden b columns
                full(w2t.shape),                               # fc2 W^T
                full(b2t.shape),                               # fc2 b
            ],
            out_specs=pl.BlockSpec((OUTPUT_DIM, tb), lambda i: (0, i)),
        ),
        compiler_params=pltpu.CompilerParams(
            # TODO(synk): if "parallel" doesn't shard this axis across v7x's two
            # TensorCores, switch to pltpu.CORE_PARALLEL / explicit core_map.
            dimension_semantics=("parallel",),
            vmem_limit_bytes=32 * 1024 * 1024,
        ),
        cost_estimate=pl.CostEstimate(
            flops=flops,
            transcendentals=transcendentals,
            bytes_accessed=bytes_accessed,
        ),
    )(x_t, w1t, b1t, wht, bht, w2t, b2t)

    return out_t[:, :B].T                                            # (B, OUTPUT_DIM)


def init_params(key):
    """Deterministic init mirroring torch.nn.Linear's U(-1/sqrt(fan_in), ...).
    Unpadded, (in, out) layout."""
    ks = jax.random.split(key, 6)

    def lin(k, fan_in, fan_out):
        kw, kb = jax.random.split(k)
        bound = 1.0 / jnp.sqrt(fan_in)
        w = jax.random.uniform(kw, (fan_in, fan_out), jnp.float32, -bound, bound)
        b = jax.random.uniform(kb, (1, fan_out), jnp.float32, -bound, bound)
        return w, b

    w1, b1 = lin(ks[0], INPUT_DIM, HIDDEN_DIM)
    whs, bhs = [], []
    for l in range(NB_HIDDEN_LAYERS):
        w, b = lin(ks[1 + l], HIDDEN_DIM, HIDDEN_DIM)
        whs.append(w)
        bhs.append(b)
    wh = jnp.stack(whs, axis=0)          # (L, H, H)
    bh = jnp.stack(bhs, axis=0)          # (L, 1, H)
    w2, b2 = lin(ks[5], HIDDEN_DIM, OUTPUT_DIM)
    return w1, b1, wh, bh, w2, b2


def mlp_reference(x, params):
    w1, b1, wh, bh, w2, b2 = params
    h = _act(x @ w1 + b1)
    for l in range(NB_HIDDEN_LAYERS):
        h = _act(h @ wh[l] + bh[l])
    return h @ w2 + b2


if __name__ == "__main__":
    key = jax.random.PRNGKey(0)
    kx1, kx2, kp = jax.random.split(key, 3)
    params = init_params(kp)

    # B=256 exercises the tiled path (grid=(2,), tb=128); B=37 exercises the
    # batch-padding path (padded to one 128-row tile, then sliced back).
    for B, kk in ((256, kx1), (37, kx2)):
        x = jax.random.normal(kk, (B, INPUT_DIM), dtype=jnp.float32)
        out = jax.block_until_ready(mlp_forward(x, params))
        ref = mlp_reference(x, params)
        assert out.shape == (B, OUTPUT_DIM)
        assert jnp.allclose(out, ref, atol=1e-4, rtol=1e-4), f"mismatch vs reference (B={B})"

    print("KERNEL_OK")
</pallas_src>

<mosaic_0001>
module attributes {stable_mosaic.version = 11 : i64} {
  func.func @mlp_kernel(%arg0: i32, %arg1: memref<8x128xf32, #tpu.memory_space<vmem>>, %arg2: memref<96x8xf32, #tpu.memory_space<vmem>>, %arg3: memref<96x1xf32, #tpu.memory_space<vmem>>, %arg4: memref<4x96x96xf32, #tpu.memory_space<vmem>>, %arg5: memref<4x96x1xf32, #tpu.memory_space<vmem>>, %arg6: memref<1x96xf32, #tpu.memory_space<vmem>>, %arg7: memref<1x1xf32, #tpu.memory_space<vmem>>, %arg8: memref<1x128xf32, #tpu.memory_space<vmem>>) attributes {dimension_semantics = [#tpu.dimension_semantics<parallel>], iteration_bounds = array<i64: 2>, scalar_prefetch = 0 : i64, scratch_operands = 0 : i64, tpu.core_type = #tpu.core_type<tc>, window_params = [{transform_indices = @transform_0, window_bounds = array<i64: 8, 128>}, {pipeline_mode = #tpu.pipeline_mode<synchronous>, transform_indices = @transform_1, window_bounds = array<i64: 96, 8>}, {pipeline_mode = #tpu.pipeline_mode<synchronous>, transform_indices = @transform_2, window_bounds = array<i64: 96, 1>}, {pipeline_mode = #tpu.pipeline_mode<synchronous>, transform_indices = @transform_3, window_bounds = array<i64: 4, 96, 96>}, {pipeline_mode = #tpu.pipeline_mode<synchronous>, transform_indices = @transform_4, window_bounds = array<i64: 4, 96, 1>}, {pipeline_mode = #tpu.pipeline_mode<synchronous>, transform_indices = @transform_5, window_bounds = array<i64: 1, 96>}, {pipeline_mode = #tpu.pipeline_mode<synchronous>, transform_indices = @transform_6, window_bounds = array<i64: 1, 1>}, {transform_indices = @transform_7, window_bounds = array<i64: 1, 128>}]} {
    %c0 = arith.constant 0 : index
    %c0_0 = arith.constant 0 : index
    %0 = vector.load %arg2[%c0, %c0_0] : memref<96x8xf32, #tpu.memory_space<vmem>>, vector<96x8xf32>
    %c0_1 = arith.constant 0 : index
    %c0_2 = arith.constant 0 : index
    %1 = vector.load %arg1[%c0_1, %c0_2] : memref<8x128xf32, #tpu.memory_space<vmem>>, vector<8x128xf32>
    %cst = arith.constant dense<0.000000e+00> : vector<96x128xf32>
    %2 = tpu.matmul %0, %1, %cst {dimension_numbers = #tpu.dot_dimension_numbers<[1], [0], [0], [1], [0, 0, 1, 1], [], []>} : vector<96x8xf32>, vector<8x128xf32>, vector<96x128xf32> -> vector<96x128xf32>
    %c0_3 = arith.constant 0 : index
    %c0_4 = arith.constant 0 : index
    %3 = vector.load %arg3[%c0_3, %c0_4] : memref<96x1xf32, #tpu.memory_space<vmem>>, vector<96x1xf32>
    %4 = vector.broadcast %3 : vector<96x1xf32> to vector<96x128xf32>
    %5 = arith.addf %2, %4 : vector<96x128xf32>
    %6 = math.sin %5 : vector<96x128xf32>
    %7 = arith.mulf %6, %6 : vector<96x128xf32>
    %8 = arith.addf %5, %7 : vector<96x128xf32>
    %c0_5 = arith.constant 0 : index
    %c0_6 = arith.constant 0 : index
    %c0_7 = arith.constant 0 : index
    %9 = vector.load %arg4[%c0_5, %c0_6, %c0_7] : memref<4x96x96xf32, #tpu.memory_space<vmem>>, vector<1x96x96xf32>
    %10 = vector.shape_cast %9 : vector<1x96x96xf32> to vector<96x96xf32>
    %cst_8 = arith.constant dense<0.000000e+00> : vector<96x128xf32>
    %11 = tpu.matmul %10, %8, %cst_8 {dimension_numbers = #tpu.dot_dimension_numbers<[1], [0], [0], [1], [0, 0, 1, 1], [], []>} : vector<96x96xf32>, vector<96x128xf32>, vector<96x128xf32> -> vector<96x128xf32>
    %c0_9 = arith.constant 0 : index
    %c0_10 = arith.constant 0 : index
    %c0_11 = arith.constant 0 : index
    %12 = vector.load %arg5[%c0_9, %c0_10, %c0_11] : memref<4x96x1xf32, #tpu.memory_space<vmem>>, vector<1x96x1xf32>
    %13 = vector.shape_cast %12 : vector<1x96x1xf32> to vector<96x1xf32>
    %14 = vector.broadcast %13 : vector<96x1xf32> to vector<96x128xf32>
    %15 = arith.addf %11, %14 : vector<96x128xf32>
    %16 = math.sin %15 : vector<96x128xf32>
    %17 = arith.mulf %16, %16 : vector<96x128xf32>
    %18 = arith.addf %15, %17 : vector<96x128xf32>
    %c1 = arith.constant 1 : index
    %c0_12 = arith.constant 0 : index
    %c0_13 = arith.constant 0 : index
    %19 = vector.load %arg4[%c1, %c0_12, %c0_13] : memref<4x96x96xf32, #tpu.memory_space<vmem>>, vector<1x96x96xf32>
    %20 = vector.shape_cast %19 : vector<1x96x96xf32> to vector<96x96xf32>
    %cst_14 = arith.constant dense<0.000000e+00> : vector<96x128xf32>
    %21 = tpu.matmul %20, %18, %cst_14 {dimension_numbers = #tpu.dot_dimension_numbers<[1], [0], [0], [1], [0, 0, 1, 1], [], []>} : vector<96x96xf32>, vector<96x128xf32>, vector<96x128xf32> -> vector<96x128xf32>
    %c1_15 = arith.constant 1 : index
    %c0_16 = arith.constant 0 : index
    %c0_17 = arith.constant 0 : index
    %22 = vector.load %arg5[%c1_15, %c0_16, %c0_17] : memref<4x96x1xf32, #tpu.memory_space<vmem>>, vector<1x96x1xf32>
    %23 = vector.shape_cast %22 : vector<1x96x1xf32> to vector<96x1xf32>
    %24 = vector.broadcast %23 : vector<96x1xf32> to vector<96x128xf32>
    %25 = arith.addf %21, %24 : vector<96x128xf32>
    %26 = math.sin %25 : vector<96x128xf32>
    %27 = arith.mulf %26, %26 : vector<96x128xf32>
    %28 = arith.addf %25, %27 : vector<96x128xf32>
    %c2 = arith.constant 2 : index
    %c0_18 = arith.constant 0 : index
    %c0_19 = arith.constant 0 : index
    %29 = vector.load %arg4[%c2, %c0_18, %c0_19] : memref<4x96x96xf32, #tpu.memory_space<vmem>>, vector<1x96x96xf32>
    %30 = vector.shape_cast %29 : vector<1x96x96xf32> to vector<96x96xf32>
    %cst_20 = arith.constant dense<0.000000e+00> : vector<96x128xf32>
    %31 = tpu.matmul %30, %28, %cst_20 {dimension_numbers = #tpu.dot_dimension_numbers<[1], [0], [0], [1], [0, 0, 1, 1], [], []>} : vector<96x96xf32>, vector<96x128xf32>, vector<96x128xf32> -> vector<96x128xf32>
    %c2_21 = arith.constant 2 : index
    %c0_22 = arith.constant 0 : index
    %c0_23 = arith.constant 0 : index
    %32 = vector.load %arg5[%c2_21, %c0_22, %c0_23] : memref<4x96x1xf32, #tpu.memory_space<vmem>>, vector<1x96x1xf32>
    %33 = vector.shape_cast %32 : vector<1x96x1xf32> to vector<96x1xf32>
    %34 = vector.broadcast %33 : vector<96x1xf32> to vector<96x128xf32>
    %35 = arith.addf %31, %34 : vector<96x128xf32>
    %36 = math.sin %35 : vector<96x128xf32>
    %37 = arith.mulf %36, %36 : vector<96x128xf32>
    %38 = arith.addf %35, %37 : vector<96x128xf32>
    %c3 = arith.constant 3 : index
    %c0_24 = arith.constant 0 : index
    %c0_25 = arith.constant 0 : index
    %39 = vector.load %arg4[%c3, %c0_24, %c0_25] : memref<4x96x96xf32, #tpu.memory_space<vmem>>, vector<1x96x96xf32>
    %40 = vector.shape_cast %39 : vector<1x96x96xf32> to vector<96x96xf32>
    %cst_26 = arith.constant dense<0.000000e+00> : vector<96x128xf32>
    %41 = tpu.matmul %40, %38, %cst_26 {dimension_numbers = #tpu.dot_dimension_numbers<[1], [0], [0], [1], [0, 0, 1, 1], [], []>} : vector<96x96xf32>, vector<96x128xf32>, vector<96x128xf32> -> vector<96x128xf32>
    %c3_27 = arith.constant 3 : index
    %c0_28 = arith.constant 0 : index
    %c0_29 = arith.constant 0 : index
    %42 = vector.load %arg5[%c3_27, %c0_28, %c0_29] : memref<4x96x1xf32, #tpu.memory_space<vmem>>, vector<1x96x1xf32>
    %43 = vector.shape_cast %42 : vector<1x96x1xf32> to vector<96x1xf32>
    %44 = vector.broadcast %43 : vector<96x1xf32> to vector<96x128xf32>
    %45 = arith.addf %41, %44 : vector<96x128xf32>
    %46 = math.sin %45 : vector<96x128xf32>
    %47 = arith.mulf %46, %46 : vector<96x128xf32>
    %48 = arith.addf %45, %47 : vector<96x128xf32>
    %c0_30 = arith.constant 0 : index
    %c0_31 = arith.constant 0 : index
    %49 = vector.load %arg6[%c0_30, %c0_31] : memref<1x96xf32, #tpu.memory_space<vmem>>, vector<1x96xf32>
    %cst_32 = arith.constant dense<0.000000e+00> : vector<1x128xf32>
    %50 = tpu.matmul %49, %48, %cst_32 {dimension_numbers = #tpu.dot_dimension_numbers<[1], [0], [0], [1], [0, 0, 1, 1], [], []>} : vector<1x96xf32>, vector<96x128xf32>, vector<1x128xf32> -> vector<1x128xf32>
    %c0_33 = arith.constant 0 : index
    %c0_34 = arith.constant 0 : index
    %51 = vector.load %arg7[%c0_33, %c0_34] : memref<1x1xf32, #tpu.memory_space<vmem>>, vector<1x1xf32>
    %52 = vector.broadcast %51 : vector<1x1xf32> to vector<1x128xf32>
    %53 = arith.addf %50, %52 : vector<1x128xf32>
    %c0_35 = arith.constant 0 : index
    %c0_36 = arith.constant 0 : index
    %54 = vector.load %arg8[%c0_35, %c0_36] : memref<1x128xf32, #tpu.memory_space<vmem>>, vector<1x128xf32>
    tpu.vector_store %arg8[%c0_35, %c0_36], %53 {strides = array<i32>} : memref<1x128xf32, #tpu.memory_space<vmem>>, vector<1x128xf32>,
    return
  }
  func.func @transform_0(%arg0: i32) -> (i32, i32) {
    %c0_i32 = arith.constant 0 : i32
    %c0_i32_0 = arith.constant 0 : i32
    return %c0_i32, %arg0 : i32, i32
  }
  func.func @transform_1(%arg0: i32) -> (i32, i32) {
    %c0_i32 = arith.constant 0 : i32
    %c0_i32_0 = arith.constant 0 : i32
    %c0_i32_1 = arith.constant 0 : i32
    return %c0_i32, %c0_i32_0 : i32, i32
  }
  func.func @transform_2(%arg0: i32) -> (i32, i32) {
    %c0_i32 = arith.constant 0 : i32
    %c0_i32_0 = arith.constant 0 : i32
    %c0_i32_1 = arith.constant 0 : i32
    return %c0_i32, %c0_i32_0 : i32, i32
  }
  func.func @transform_3(%arg0: i32) -> (i32, i32, i32) {
    %c0_i32 = arith.constant 0 : i32
    %c0_i32_0 = arith.constant 0 : i32
    %c0_i32_1 = arith.constant 0 : i32
    %c0_i32_2 = arith.constant 0 : i32
    return %c0_i32, %c0_i32_0, %c0_i32_1 : i32, i32, i32
  }
  func.func @transform_4(%arg0: i32) -> (i32, i32, i32) {
    %c0_i32 = arith.constant 0 : i32
    %c0_i32_0 = arith.constant 0 : i32
    %c0_i32_1 = arith.constant 0 : i32
    %c0_i32_2 = arith.constant 0 : i32
    return %c0_i32, %c0_i32_0, %c0_i32_1 : i32, i32, i32
  }
  func.func @transform_5(%arg0: i32) -> (i32, i32) {
    %c0_i32 = arith.constant 0 : i32
    %c0_i32_0 = arith.constant 0 : i32
    %c0_i32_1 = arith.constant 0 : i32
    return %c0_i32, %c0_i32_0 : i32, i32
  }
  func.func @transform_6(%arg0: i32) -> (i32, i32) {
    %c0_i32 = arith.constant 0 : i32
    %c0_i32_0 = arith.constant 0 : i32
    %c0_i32_1 = arith.constant 0 : i32
    return %c0_i32, %c0_i32_0 : i32, i32
  }
  func.func @transform_7(%arg0: i32) -> (i32, i32) {
    %c0_i32 = arith.constant 0 : i32
    %c0_i32_0 = arith.constant 0 : i32
    return %c0_i32, %arg0 : i32, i32
  }
}

</mosaic_0001>

<llo_original>
// kernel: tpu_custom_call.1
$region0: #{tpu_custom_call.1}
  #allocation0 [shape = 'u32[]', space=smem, size = 0x4, offset = 0x4, fixed_abs, tag = 'smem constant byte address 0x4 - core index']
  #allocation1 [shape = 'u32[144,128]{1,0:T(1,128)}', space=vmem, size = 0x12000, scoped, tag = 'internal scratch']
  #allocation2 [shape = 'f32[1,1]{1,0:T(1,128)S(1)}', space=vmem, size = 0x200, scoped, tag = 'scoped memory for tpu_custom_call.1']
  %s0 = inlined_call_operand.vmem [shape: f32[8,256], index: 0, kind: input, shape index: {}]
  %s1 = inlined_call_operand.vmem [shape: f32[96,8], index: 1, kind: input, shape index: {}]
  %s2 = inlined_call_operand.vmem [shape: f32[96,1], index: 2, kind: input, shape index: {}]
  %s3 = inlined_call_operand.vmem [shape: f32[4,96,96], index: 3, kind: input, shape index: {}]
  %s4 = inlined_call_operand.vmem [shape: f32[4,96,1], index: 4, kind: input, shape index: {}]
  %s5 = inlined_call_operand.vmem [shape: f32[1,96], index: 5, kind: input, shape index: {}]
  %s6 = inlined_call_operand.<no memory space> [shape: f32[1,1], index: 6, kind: input, shape index: {}]
  %s7 = inlined_call_operand.hbm [shape: f32[1,256], index: 7, kind: output, shape index: {}]
  %s8 = sld [smem:[#allocation0]]
  $region61: #{tpu_custom_call.1} parent=0
    _
  %s10 = ssub.s32 1, %s8
  %s11 = scalar_select 0, %s10, %s8
  %v12 = vstv %s6
  %13 = vst [vmem:[#allocation2] sm:$0x1] %v12
  $region1: #{tpu_custom_call.1} parent=0
    #allocation3 [shape = 'u8[1024]{0}', space=vmem, size = 0x400, scoped, tag = 'output window, operand 0']
    #allocation4 [shape = 's32[2]{0}', space=sflag, size = 0x8, scoped, tag = 'scoped memory for tpu_custom_call.1']
    %14 = vsyncpa [#allocation4], 0
    %s15 = scalar_lea.sflag [#allocation4], 1
    %16 = vsyncpa %s15, 0
    loop: start=0, step=1, limit=4
    $region2: #{tpu_custom_call.1} parent=1 // loop_pre_header
      _
    $region3: #{tpu_custom_call.1} parent=1 // loop_header
      %s18 = sphi 0, %s22
      %p19 = scmp.ge.s32.totalorder %s18, 4
      %s28 = sphi 0, %s30
      %s31 = sphi 0, %s28
      %s32 = sphi 0, %s31
      %s48 = sphi 0, %s32
      %s52 = sphi 0, %s52
      %s54 = sphi 0, %s52
      %s55 = sphi 0, %s54
      %s69 = sphi 0, %s55
      %s73 = sphi 0, %s73
      %s75 = sphi 0, %s73
      %s76 = sphi 0, %s75
      %s90 = sphi 0, %s76
      %s94 = sphi 0, %s94
      %s96 = sphi 0, %s94
      %s97 = sphi 0, %s96
      %s111 = sphi 0, %s97
      %s115 = sphi 0, %s115
      %s117 = sphi 0, %s115
      %s118 = sphi 0, %s117
      %s132 = sphi 0, %s118
      %s136 = sphi 0, %s136
      %s138 = sphi 0, %s136
      %s139 = sphi 0, %s138
      %s153 = sphi 0, %s139
      %s157 = sphi 0, %s157
      %s159 = sphi 0, %s157
      %s160 = sphi 0, %s159
      %s174 = sphi 0, %s160
      %s180 = sphi 0, %s182
      %s183 = sphi 0, %s180
      %s184 = sphi 0, %s183
      %s200 = sphi 0, %s184
    $region4: #{tpu_custom_call.1} parent=1 // loop_header_branch
      %21 = sbr.rel (%p19) target = $region8
    $region5: #{tpu_custom_call.1} parent=1 // loop_body
      %s23 = ssub.s32 %s18, 1
      %s24 = ssub.s32 %s18, 2
      %s25 = sadd.s32 %s18, 1
      %s26 = ssub.s32 %s18, %s25
      %p27 = scmp.eq.s32.totalorder %s26, 0
      %s29 = sadd.s32 %s28, 1
      %s30 = scalar_select %p27, %s28, %s29
      %p33 = pneg %p27
      %p34 = scmp.eq.s32.totalorder %s18, 1
      %p35 = por %p33, %p34
      %p36 = scmp.ne.s32.totalorder %s28, %s31
      %p37 = scmp.eq.s32.totalorder %s18, 0
      %p38 = por %p36, %p37
      %p39 = scmp.ne.s32.totalorder %s28, %s31
      %p40 = scmp.eq.s32.totalorder %s23, 1
      %p41 = por %p39, %p40
      %p42 = scmp.ne.s32.totalorder %s31, %s32
      %p43 = scmp.eq.s32.totalorder %s23, 0
      %p44 = por %p42, %p43
      %p45 = scmp.ne.s32.totalorder %s31, %s32
      %p46 = scmp.eq.s32.totalorder %s24, 1
      %p47 = por %p45, %p46
      %p49 = scmp.ne.s32.totalorder %s32, %s48
      %p50 = scmp.eq.s32.totalorder %s24, 0
      %p51 = por %p49, %p50
      %s53 = sadd.s32 %s52, 1
      %p56 = scmp.eq.s32.totalorder %s18, 1
      %p57 = scmp.ne.s32.totalorder %s52, %s54
      %p58 = scmp.eq.s32.totalorder %s18, 0
      %p59 = por %p57, %p58
      %p60 = scmp.ne.s32.totalorder %s52, %s54
      %p61 = scmp.eq.s32.totalorder %s23, 1
      %p62 = por %p60, %p61
      %p63 = scmp.ne.s32.totalorder %s54, %s55
      %p64 = scmp.eq.s32.totalorder %s23, 0
      %p65 = por %p63, %p64
      %p66 = scmp.ne.s32.totalorder %s54, %s55
      %p67 = scmp.eq.s32.totalorder %s24, 1
      %p68 = por %p66, %p67
      %p70 = scmp.ne.s32.totalorder %s55, %s69
      %p71 = scmp.eq.s32.totalorder %s24, 0
      %p72 = por %p70, %p71
      %s74 = sadd.s32 %s73, 1
      %p77 = scmp.eq.s32.totalorder %s18, 1
      %p78 = scmp.ne.s32.totalorder %s73, %s75
      %p79 = scmp.eq.s32.totalorder %s18, 0
      %p80 = por %p78, %p79
      %p81 = scmp.ne.s32.totalorder %s73, %s75
      %p82 = scmp.eq.s32.totalorder %s23, 1
      %p83 = por %p81, %p82
      %p84 = scmp.ne.s32.totalorder %s75, %s76
      %p85 = scmp.eq.s32.totalorder %s23, 0
      %p86 = por %p84, %p85
      %p87 = scmp.ne.s32.totalorder %s75, %s76
      %p88 = scmp.eq.s32.totalorder %s24, 1
      %p89 = por %p87, %p88
      %p91 = scmp.ne.s32.totalorder %s76, %s90
      %p92 = scmp.eq.s32.totalorder %s24, 0
      %p93 = por %p91, %p92
      %s95 = sadd.s32 %s94, 1
      %p98 = scmp.eq.s32.totalorder %s18, 1
      %p99 = scmp.ne.s32.totalorder %s94, %s96
      %p100 = scmp.eq.s32.totalorder %s18, 0
      %p101 = por %p99, %p100
      %p102 = scmp.ne.s32.totalorder %s94, %s96
      %p103 = scmp.eq.s32.totalorder %s23, 1
      %p104 = por %p102, %p103
      %p105 = scmp.ne.s32.totalorder %s96, %s97
      %p106 = scmp.eq.s32.totalorder %s23, 0
      %p107 = por %p105, %p106
      %p108 = scmp.ne.s32.totalorder %s96, %s97
      %p109 = scmp.eq.s32.totalorder %s24, 1
      %p110 = por %p108, %p109
      %p112 = scmp.ne.s32.totalorder %s97, %s111
      %p113 = scmp.eq.s32.totalorder %s24, 0
      %p114 = por %p112, %p113
      %s116 = sadd.s32 %s115, 1
      %p119 = scmp.eq.s32.totalorder %s18, 1
      %p120 = scmp.ne.s32.totalorder %s115, %s117
      %p121 = scmp.eq.s32.totalorder %s18, 0
      %p122 = por %p120, %p121
      %p123 = scmp.ne.s32.totalorder %s115, %s117
      %p124 = scmp.eq.s32.totalorder %s23, 1
      %p125 = por %p123, %p124
      %p126 = scmp.ne.s32.totalorder %s117, %s118
      %p127 = scmp.eq.s32.totalorder %s23, 0
      %p128 = por %p126, %p127
      %p129 = scmp.ne.s32.totalorder %s117, %s118
      %p130 = scmp.eq.s32.totalorder %s24, 1
      %p131 = por %p129, %p130
      %p133 = scmp.ne.s32.totalorder %s118, %s132
      %p134 = scmp.eq.s32.totalorder %s24, 0
      %p135 = por %p133, %p134
      %s137 = sadd.s32 %s136, 1
      %p140 = scmp.eq.s32.totalorder %s18, 1
      %p141 = scmp.ne.s32.totalorder %s136, %s138
      %p142 = scmp.eq.s32.totalorder %s18, 0
      %p143 = por %p141, %p142
      %p144 = scmp.ne.s32.totalorder %s136, %s138
      %p145 = scmp.eq.s32.totalorder %s23, 1
      %p146 = por %p144, %p145
      %p147 = scmp.ne.s32.totalorder %s138, %s139
      %p148 = scmp.eq.s32.totalorder %s23, 0
      %p149 = por %p147, %p148
      %p150 = scmp.ne.s32.totalorder %s138, %s139
      %p151 = scmp.eq.s32.totalorder %s24, 1
      %p152 = por %p150, %p151
      %p154 = scmp.ne.s32.totalorder %s139, %s153
      %p155 = scmp.eq.s32.totalorder %s24, 0
      %p156 = por %p154, %p155
      %s158 = sadd.s32 %s157, 1
      %p161 = scmp.eq.s32.totalorder %s18, 1
      %p162 = scmp.ne.s32.totalorder %s157, %s159
      %p163 = scmp.eq.s32.totalorder %s18, 0
      %p164 = por %p162, %p163
      %p165 = scmp.ne.s32.totalorder %s157, %s159
      %p166 = scmp.eq.s32.totalorder %s23, 1
      %p167 = por %p165, %p166
      %p168 = scmp.ne.s32.totalorder %s159, %s160
      %p169 = scmp.eq.s32.totalorder %s23, 0
      %p170 = por %p168, %p169
      %p171 = scmp.ne.s32.totalorder %s159, %s160
      %p172 = scmp.eq.s32.totalorder %s24, 1
      %p173 = por %p171, %p172
      %p175 = scmp.ne.s32.totalorder %s160, %s174
      %p176 = scmp.eq.s32.totalorder %s24, 0
      %p177 = por %p175, %p176
      %s178 = ssub.s32 %s18, %s25
      %p179 = scmp.eq.s32.totalorder %s178, 0
      %s181 = sadd.s32 %s180, 1
      %s182 = scalar_select %p179, %s180, %s181
      %p185 = pneg %p179
      %p186 = scmp.eq.s32.totalorder %s18, 1
      %p187 = por %p185, %p186
      %p188 = scmp.ne.s32.totalorder %s180, %s183
      %p189 = scmp.eq.s32.totalorder %s18, 0
      %p190 = por %p188, %p189
      %p191 = scmp.ne.s32.totalorder %s180, %s183
      %p192 = scmp.eq.s32.totalorder %s23, 1
      %p193 = por %p191, %p192
      %p194 = scmp.ne.s32.totalorder %s183, %s184
      %p195 = scmp.eq.s32.totalorder %s23, 0
      %p196 = por %p194, %p195
      %p197 = scmp.ne.s32.totalorder %s183, %s184
      %p198 = scmp.eq.s32.totalorder %s24, 1
      %p199 = por %p197, %p198
      %p201 = scmp.ne.s32.totalorder %s184, %s200
      %p202 = scmp.eq.s32.totalorder %s24, 0
      %p203 = por %p201, %p202
      %p204 = scmp.le.s32.totalorder 1, %s18
      %p205 = scmp.lt.s32.totalorder %s18, 3
      %p206 = pnand %p204, %p205
      %p207 = pneg %p206
      // Predicated region
      $region9: #{tpu_custom_call.1} parent=5 // pred_check
        _
      $region10: #{tpu_custom_call.1} parent=5 // pred_check_branch
        %209 = sbr.rel (%p206) target = $region12
      $region11: #{tpu_custom_call.1} parent=5 // pred_region
        %s210 = ssub.s32 %s18, 1
        // Predicated region
        $region13: #{tpu_custom_call.1} parent=11 // pred_check
          %p211 = pneg %p65
        $region14: #{tpu_custom_call.1} parent=11 // pred_check_branch
          %213 = sbr.rel (%p211) target = $region16
        $region15: #{tpu_custom_call.1} parent=11 // pred_region
          _
        $region16: #{tpu_custom_call.1} parent=11 // pred_fallthru
          _
        // Predicated region
        $region17: #{tpu_custom_call.1} parent=11 // pred_check
          %p214 = pneg %p86
        $region18: #{tpu_custom_call.1} parent=11 // pred_check_branch
          %216 = sbr.rel (%p214) target = $region20
        $region19: #{tpu_custom_call.1} parent=11 // pred_region
          _
        $region20: #{tpu_custom_call.1} parent=11 // pred_fallthru
          _
        // Predicated region
        $region21: #{tpu_custom_call.1} parent=11 // pred_check
          %p217 = pneg %p107
        $region22: #{tpu_custom_call.1} parent=11 // pred_check_branch
          %219 = sbr.rel (%p217) target = $region24
        $region23: #{tpu_custom_call.1} parent=11 // pred_region
          _
        $region24: #{tpu_custom_call.1} parent=11 // pred_fallthru
          _
        // Predicated region
        $region25: #{tpu_custom_call.1} parent=11 // pred_check
          %p220 = pneg %p128
        $region26: #{tpu_custom_call.1} parent=11 // pred_check_branch
          %222 = sbr.rel (%p220) target = $region28
        $region27: #{tpu_custom_call.1} parent=11 // pred_region
          _
        $region28: #{tpu_custom_call.1} parent=11 // pred_fallthru
          _
        // Predicated region
        $region29: #{tpu_custom_call.1} parent=11 // pred_check
          %p223 = pneg %p149
        $region30: #{tpu_custom_call.1} parent=11 // pred_check_branch
          %225 = sbr.rel (%p223) target = $region32
        $region31: #{tpu_custom_call.1} parent=11 // pred_region
          _
        $region32: #{tpu_custom_call.1} parent=11 // pred_fallthru
          _
        // Predicated region
        $region33: #{tpu_custom_call.1} parent=11 // pred_check
          %p226 = pneg %p170
        $region34: #{tpu_custom_call.1} parent=11 // pred_check_branch
          %228 = sbr.rel (%p226) target = $region36
        $region35: #{tpu_custom_call.1} parent=11 // pred_region
          _
        $region36: #{tpu_custom_call.1} parent=11 // pred_fallthru
          _
      $region12: #{tpu_custom_call.1} parent=5 // pred_fallthru
        _
      %p229 = scmp.lt.s32.totalorder %s18, 2
      // Predicated region
      $region37: #{tpu_custom_call.1} parent=5 // pred_check
        %p230 = pneg %p229
      $region38: #{tpu_custom_call.1} parent=5 // pred_check_branch
        %232 = sbr.rel (%p230) target = $region40
      $region39: #{tpu_custom_call.1} parent=5 // pred_region
        // Predicated region
        $region41: #{tpu_custom_call.1} parent=39 // pred_check
          %p233 = pneg %p38
        $region42: #{tpu_custom_call.1} parent=39 // pred_check_branch
          %235 = sbr.rel (%p233) target = $region44
        $region43: #{tpu_custom_call.1} parent=39 // pred_region
          %p236 = scmp.lt.s32.totalorder %s18, 1
          %s237 = scalar_select %p236, %s18, 1
          %s238 = smul.addr %s237, 8
          %s239 = scalar_lea.vmem %s0, %s238
        $region44: #{tpu_custom_call.1} parent=39 // pred_fallthru
          _
      $region40: #{tpu_custom_call.1} parent=5 // pred_fallthru
        _
      %p240 = scmp.le.s32.totalorder 1, %s18
      %p241 = scmp.lt.s32.totalorder %s18, 3
      %p242 = pnand %p240, %p241
      %p243 = pneg %p242
      // Predicated region
      $region45: #{tpu_custom_call.1} parent=5 // pred_check
        _
      $region46: #{tpu_custom_call.1} parent=5 // pred_check_branch
        %245 = sbr.rel (%p242) target = $region48
      $region47: #{tpu_custom_call.1} parent=5 // pred_region
        %s246 = ssub.s32 %s18, 1
        %p247 = scmp.lt.s32.totalorder %s23, 1
        %s248 = scalar_select %p247, %s23, 1
        %s249 = smul.addr %s248, 8
        %s250 = scalar_lea.vmem %s0, %s249
        %p251 = pneg %p44
        %p252 = pneg %p41
        %p253 = pneg %p65
        %p254 = pneg %p62
        %p255 = pneg %p86
        %p256 = pneg %p83
        %p257 = pneg %p107
        %p258 = pneg %p104
        %p259 = pneg %p128
        %p260 = pneg %p125
        %p261 = pneg %p149
        %p262 = pneg %p146
        %p263 = pneg %p170
        %p264 = pneg %p167
        %p265 = pneg %p196
        %p266 = pneg %p193
        %s267 = sand.u32 %s183, 1
        %s268 = scalar_lea.sflag [#allocation4], %s267
        %s269 = sand.u32 %s183, 1
        %s270 = scalar_lea.vmem [#allocation3], %s269
        %p271 = scmp.lt.s32.totalorder %s23, 1
        %s272 = scalar_select %p271, %s23, 1
        %s273 = smul.addr %s272, 8
        %s274 = scalar_lea.vmem %s0, %s273
        %v275 = vld [vmem:[%s1] sm:$0xff]
        %v276 = vld [vmem:[%s1 + $0x8] sm:$0xff]
        %v277 = vld [vmem:[%s1 + $0x10] sm:$0xff]
        %v278 = vld [vmem:[%s1 + $0x18] sm:$0xff]
        %v279 = vld [vmem:[%s1 + $0x20] sm:$0xff]
        %v280 = vld [vmem:[%s1 + $0x28] sm:$0xff]
        %v281 = vld [vmem:[%s1 + $0x30] sm:$0xff]
        %v282 = vld [vmem:[%s1 + $0x38] sm:$0xff]
        %v283 = vld [vmem:[%s1 + $0x40] sm:$0xff]
        %v284 = vld [vmem:[%s1 + $0x48] sm:$0xff]
        %v285 = vld [vmem:[%s1 + $0x50] sm:$0xff]
        %v286 = vld [vmem:[%s1 + $0x58] sm:$0xff]
        %v287 = vld [vmem:[%s274] sm:$0xff]
        %v288 = vld [vmem:[%s2] sm:$0xff]
        %v289 = vld [vmem:[%s2 + $0x8] sm:$0xff]
        %v290 = vld [vmem:[%s2 + $0x10] sm:$0xff]
        %v291 = vld [vmem:[%s2 + $0x18] sm:$0xff]
        %v292 = vld [vmem:[%s2 + $0x20] sm:$0xff]
        %v293 = vld [vmem:[%s2 + $0x28] sm:$0xff]
        %v294 = vld [vmem:[%s2 + $0x30] sm:$0xff]
        %v295 = vld [vmem:[%s2 + $0x38] sm:$0xff]
        %v296 = vld [vmem:[%s2 + $0x40] sm:$0xff]
        %v297 = vld [vmem:[%s2 + $0x48] sm:$0xff]
        %v298 = vld [vmem:[%s2 + $0x50] sm:$0xff]
        %v299 = vld [vmem:[%s2 + $0x58] sm:$0xff]
        %301 = vset.pattern.permute.xlu0 0
        %302 = vperm.xlu0 %301, %v288
        %v303 = vpop.permute.xlu0 %302
        %306 = vset.pattern.permute.xlu0 0
        %307 = vperm.xlu0 %306, %v289
        %v308 = vpop.permute.xlu0 %307
        %311 = vset.pattern.permute.xlu0 0
        %312 = vperm.xlu0 %311, %v290
        %v313 = vpop.permute.xlu0 %312
        %316 = vset.pattern.permute.xlu0 0
        %317 = vperm.xlu0 %316, %v291
        %v318 = vpop.permute.xlu0 %317
        %321 = vset.pattern.permute.xlu0 0
        %322 = vperm.xlu0 %321, %v292
        %v323 = vpop.permute.xlu0 %322
        %326 = vset.pattern.permute.xlu0 0
        %327 = vperm.xlu0 %326, %v293
        %v328 = vpop.permute.xlu0 %327
        %331 = vset.pattern.permute.xlu0 0
        %332 = vperm.xlu0 %331, %v294
        %v333 = vpop.permute.xlu0 %332
        %336 = vset.pattern.permute.xlu0 0
        %337 = vperm.xlu0 %336, %v295
        %v338 = vpop.permute.xlu0 %337
        %341 = vset.pattern.permute.xlu0 0
        %342 = vperm.xlu0 %341, %v296
        %v343 = vpop.permute.xlu0 %342
        %346 = vset.pattern.permute.xlu0 0
        %347 = vperm.xlu0 %346, %v297
        %v348 = vpop.permute.xlu0 %347
        %351 = vset.pattern.permute.xlu0 0
        %352 = vperm.xlu0 %351, %v298
        %v353 = vpop.permute.xlu0 %352
        %356 = vset.pattern.permute.xlu0 0
        %357 = vperm.xlu0 %356, %v299
        %v358 = vpop.permute.xlu0 %357
        %vm360 = vcmask 64512
        %v362 = vsel %vm360, %v275, 0
        %v365 = vsel %vm360, %v276, 0
        %v368 = vsel %vm360, %v277, 0
        %v371 = vsel %vm360, %v278, 0
        %v374 = vsel %vm360, %v279, 0
        %v377 = vsel %vm360, %v280, 0
        %v380 = vsel %vm360, %v281, 0
        %v383 = vsel %vm360, %v282, 0
        %v386 = vsel %vm360, %v283, 0
        %v389 = vsel %vm360, %v284, 0
        %v392 = vsel %vm360, %v285, 0
        %v395 = vsel %vm360, %v286, 0
        %397 = vmatprep.subr.mxu0 0.0
        %398 = vmatpush1.msra.mxu0 %v287
        %399 = vmatprep.subr.mxu0 0.0
        %400 = vmatpush1.msra.mxu0 0.0
        %401 = vmatprep.subr.mxu0 0.0
        %402 = vmatpush1.msra.mxu0 0.0
        %403 = vmatprep.subr.mxu0 0.0
        %404 = vmatpush1.msra.mxu0 0.0
        %405 = vmatprep.subr.mxu0 0.0
        %406 = vmatpush1.msra.mxu0 0.0
        %407 = vmatprep.subr.mxu0 0.0
        %408 = vmatpush1.msra.mxu0 0.0
        %409 = vmatprep.subr.mxu0 0.0
        %410 = vmatpush1.msra.mxu0 0.0
        %411 = vmatprep.subr.mxu0 0.0
        %412 = vmatpush1.msra.mxu0 0.0
        %413 = vmatprep.subr.mxu0 0.0
        %414 = vmatpush1.msra.mxu0 0.0
        %415 = vmatprep.subr.mxu0 0.0
        %416 = vmatpush1.msra.mxu0 0.0
        %417 = vmatprep.subr.mxu0 0.0
        %418 = vmatpush1.msra.mxu0 0.0
        %419 = vmatprep.subr.mxu0 0.0
        %420 = vmatpush1.msra.mxu0 0.0
        %421 = vmatprep.subr.mxu0 0.0
        %422 = vmatpush1.msra.mxu0 0.0
        %423 = vmatprep.subr.mxu0 0.0
        %424 = vmatpush1.msra.mxu0 0.0
        %425 = vmatprep.subr.mxu0 0.0
        %426 = vmatpush1.msra.mxu0 0.0
        %427 = vmatprep.subr.mxu0 0.0
        %428 = vmatpush1.msra.mxu0 0.0
        %429 = vmatprep.subr.mxu0 0.0
        %430 = vmatpush1.msra.mxu0 0.0
        %431 = vmatprep.subr.mxu0 0.0
        %432 = vmatpush1.msra.mxu0 0.0
        %433 = vmatprep.subr.mxu0 0.0
        %434 = vmatpush1.msra.mxu0 0.0
        %435 = vmatprep.subr.mxu0 0.0
        %436 = vmatpush1.msra.mxu0 0.0
        %437 = vmatprep.subr.mxu0 0.0
        %438 = vmatpush1.msra.mxu0 0.0
        %439 = vmatprep.subr.mxu0 0.0
        %440 = vmatpush1.msra.mxu0 0.0
        %441 = vmatprep.subr.mxu0 0.0
        %442 = vmatpush1.msra.mxu0 0.0
        %443 = vmatprep.subr.mxu0 0.0
        %444 = vmatpush1.msra.mxu0 0.0
        %445 = vmatprep.subr.mxu0 0.0
        %446 = vmatpush1.msra.mxu0 0.0
        %447 = vmatprep.subr.mxu0 0.0
        %448 = vmatpush1.msra.mxu0 0.0
        %449 = vmatprep.subr.mxu0 0.0
        %450 = vmatpush1.msra.mxu0 0.0
        %451 = vmatprep.subr.mxu0 0.0
        %452 = vmatpush1.msra.mxu0 0.0
        %453 = vmatprep.subr.mxu0 0.0
        %454 = vmatpush1.msra.mxu0 0.0
        %455 = vmatprep.subr.mxu0 0.0
        %456 = vmatpush1.msra.mxu0 0.0
        %457 = vmatprep.subr.mxu0 0.0
        %458 = vmatpush1.msra.mxu0 0.0
        %459 = vmatprep.subr.mxu0 0.0
        %460 = vmatpush1.msra.mxu0 0.0
        %461 = vmatprep.mubr.f32.mxu0 0.0
        %462 = vmatmul.mubr.f32.gmra.mrb[0].mxu0 %v362
        %v463 = vpop.f32.mrb[0].mxu0
        %v464 = vadd.f32 %v303, %v463
        %v465 = vpop.f32.mrb[0].mxu0
        %466 = vmatprep.mubr.f32.mxu0 0.0
        %467 = vmatmul.mubr.f32.gmra.mrb[0].mxu0 %v365
        %v468 = vpop.f32.mrb[0].mxu0
        %v469 = vadd.f32 %v308, %v468
        %v470 = vpop.f32.mrb[0].mxu0
        %471 = vmatprep.mubr.f32.mxu0 0.0
        %472 = vmatmul.mubr.f32.gmra.mrb[0].mxu0 %v368
        %v473 = vpop.f32.mrb[0].mxu0
        %v474 = vadd.f32 %v313, %v473
        %v475 = vpop.f32.mrb[0].mxu0
        %476 = vmatprep.mubr.f32.mxu0 0.0
        %477 = vmatmul.mubr.f32.gmra.mrb[0].mxu0 %v371
        %v478 = vpop.f32.mrb[0].mxu0
        %v479 = vadd.f32 %v318, %v478
        %v480 = vpop.f32.mrb[0].mxu0
        %481 = vmatprep.mubr.f32.mxu0 0.0
        %482 = vmatmul.mubr.f32.gmra.mrb[0].mxu0 %v374
        %v483 = vpop.f32.mrb[0].mxu0
        %v484 = vadd.f32 %v323, %v483
        %v485 = vpop.f32.mrb[0].mxu0
        %486 = vmatprep.mubr.f32.mxu0 0.0
        %487 = vmatmul.mubr.f32.gmra.mrb[0].mxu0 %v377
        %v488 = vpop.f32.mrb[0].mxu0
        %v489 = vadd.f32 %v328, %v488
        %v490 = vpop.f32.mrb[0].mxu0
        %491 = vmatprep.mubr.f32.mxu0 0.0
        %492 = vmatmul.mubr.f32.gmra.mrb[0].mxu0 %v380
        %v493 = vpop.f32.mrb[0].mxu0
        %v494 = vadd.f32 %v333, %v493
        %v495 = vpop.f32.mrb[0].mxu0
        %496 = vmatprep.mubr.f32.mxu0 0.0
        %497 = vmatmul.mubr.f32.gmra.mrb[0].mxu0 %v383
        %v498 = vpop.f32.mrb[0].mxu0
        %v499 = vadd.f32 %v338, %v498
        %v500 = vpop.f32.mrb[0].mxu0
        %501 = vmatprep.mubr.f32.mxu0 0.0
        %502 = vmatmul.mubr.f32.gmra.mrb[0].mxu0 %v386
        %v503 = vpop.f32.mrb[0].mxu0
        %v504 = vadd.f32 %v343, %v503
        %v505 = vpop.f32.mrb[0].mxu0
        %506 = vmatprep.mubr.f32.mxu0 0.0
        %507 = vmatmul.mubr.f32.gmra.mrb[0].mxu0 %v389
        %v508 = vpop.f32.mrb[0].mxu0
        %v509 = vadd.f32 %v348, %v508
        %v510 = vpop.f32.mrb[0].mxu0
        %511 = vmatprep.mubr.f32.mxu0 0.0
        %512 = vmatmul.mubr.f32.gmra.mrb[0].mxu0 %v392
        %v513 = vpop.f32.mrb[0].mxu0
        %v514 = vadd.f32 %v353, %v513
        %v515 = vpop.f32.mrb[0].mxu0
        %516 = vmatprep.mubr.f32.mxu0 0.0
        %517 = vmatmul.mubr.f32.gmra.mrb[0].mxu0 %v395
        %v518 = vpop.f32.mrb[0].mxu0
        %v519 = vadd.f32 %v358, %v518
        %v520 = vpop.f32.mrb[0].mxu0
        %521 = vdwg.mxu0
        %v522 = vand.u32 2147483647, %v464
        %vm523 = vcmp.le.f32.partialorder %v522, 0.7853982
        %vm524 = vcmp.lt.s32.totalorder %v464, 0
        %v525 = vand.u32 %v464, 2139095040
        %v526 = vshrl.u32 %v525, 23
        %v527 = vsub.s32 %v526, 127
        %v528 = vand.u32 2147483647, %v464
        %v529 = vand.u32 %v528, 8388607
        %v530 = vor.u32 %v529, 8388608
        %v531 = vsub.s32 0, %v530
        %v532 = vadd.s32 %v527, 1
        %vm533 = vcmp.gt.s32.totalorder %v532, 0
        %v534 = vsel %vm533, %v532, 0
        %v535 = vshrl.u32 %v534, 5
        %v536 = vand.u32 %v534, 31
        %v537 = vsub.s32 32, %v536
        %v538 = vshrl.u32 683565275, %v537
        %v539 = vshll.u32 683565275, %v536
        %v540 = vshrl.u32 2475754826, %v537
        %v541 = vor.u32 %v539, %v540
        %v542 = vshll.u32 2475754826, %v536
        %v543 = vshrl.u32 2131351028, %v537
        %v544 = vor.u32 %v542, %v543
        %v545 = vshll.u32 2131351028, %v536
        %v546 = vshrl.u32 2102212464, %v537
        %v547 = vor.u32 %v545, %v546
        %v548 = vshll.u32 2102212464, %v536
        %v549 = vshrl.u32 920167782, %v537
        %v550 = vor.u32 %v548, %v549
        %v551 = vshll.u32 920167782, %v536
        %v552 = vshrl.u32 1326507024, %v537
        %v553 = vor.u32 %v551, %v552
        %vm554 = vcmp.lt.s32.totalorder %v535, 1
        %vm555 = vcmp.lt.s32.totalorder %v535, 2
        %vm556 = vcmp.lt.s32.totalorder %v535, 3
        %vm557 = vcmp.lt.s32.totalorder %v535, 4
        %v558 = vsel %vm554, %v538, %v541
        %v559 = vsel %vm557, %v547, 2102212464
        %v560 = vsel %vm556, %v544, %v559
        %v561 = vsel %vm555, %v558, %v560
        %v562 = vsel %vm554, %v541, %v544
        %v563 = vsel %vm557, %v550, 920167782
        %v564 = vsel %vm556, %v547, %v563
        %v565 = vsel %vm555, %v562, %v564
        %v566 = vsel %vm554, %v544, %v547
        %v567 = vsel %vm557, %v553, 1326507024
        %v568 = vsel %vm556, %v550, %v567
        %v569 = vsel %vm555, %v566, %v568
        %v570 = vshll.u32 %v530, 8
        %v571 = vmul.u32.u64.compose %v570, %v569
        %v572 = vextract.low.u32 %v571
        %v573 = vextract.high.u32 %v571
        %v574 = vmul.u32.u64.compose %v570, %v565
        %v575 = vextract.low.u32 %v574
        %v576 = vextract.high.u32 %v574
        %v577 = vmul.u32 %v570, %v561
        %v578 = vadd.s32 %v573, %v575
        %vm579 = vc.u32 %v573, %v575
        %v580 = vadd.s32 %v576, 1
        %v581 = vsel %vm579, %v580, %v576
        %v582 = vadd.s32 %v577, %v581
        %v583 = vadd.s32 %v582, 536870912
        %v584 = vshrl.u32 %v583, 30
        %v585 = vshll.u32 %v584, 30
        %v586 = vsub.s32 %v582, %v585
        %vm587 = vcmp.lt.s32.totalorder %v586, 0
        %v588 = vsub.s32 0, %v586
        %v589 = vsel %vm587, %v588, %v586
        %v590 = vclz %v589
        %v591 = vsub.s32 %v590, 2
        %vm592 = vcmp.gt.s32.totalorder 0, %v591
        %v593 = vsel %vm592, 0, %v591
        %v594 = vsub.s32 32, %v593
        %v595 = vshll.u32 %v586, %v593
        %v596 = vshrl.u32 %v578, %v594
        %v597 = vor.u32 %v595, %v596
        %v598 = vsub.s32 4294967266, %v593
        %v599 = vadd.s32 %v598, 127
        %v600 = vshll.u32 %v599, 23
        %v601 = vor.u32 4788187, %v600
        %v602 = vand.u32 2147483647, %v601
        %v604 = vcvt.s32.f32 %v597
        %v605 = vmul.f32 %v604, %v602
        %v606 = vxor.u32 %v605, 2147483648
        %v607 = vsel %vm524, %v606, %v605
        %v608 = vsub.s32 4, %v584
        %v609 = vsel %vm524, %v608, %v584
        %v610 = vsel %vm523, %v464, %v607
        %v611 = vsel %vm523, 0, %v609
        %v612 = vcosq.f32.pop %v610
        %v613 = vsinq.f32.pop %v610
        %vm614 = vweird.f32 %v464
        %v615 = vadd.s32 %v611, 3
        %v616 = vand.u32 %v615, 3
        %vm617 = vcmp.lt.s32.totalorder %v616, 2
        %vm618 = vcmp.eq.s32.totalorder %v616, 0
        %v619 = vxor.u32 %v613, 2147483648
        %v620 = vsel %vm618, %v612, %v619
        %vm621 = vcmp.eq.s32.totalorder %v616, 2
        %v622 = vxor.u32 %v612, 2147483648
        %v623 = vsel %vm621, %v622, %v613
        %v624 = vsel %vm617, %v620, %v623
        %v625 = vsel %vm614, nan, %v624
        %v626 = vand.u32 2147483647, %v469
        %vm627 = vcmp.le.f32.partialorder %v626, 0.7853982
        %vm628 = vcmp.lt.s32.totalorder %v469, 0
        %v629 = vand.u32 %v469, 2139095040
        %v630 = vshrl.u32 %v629, 23
        %v631 = vsub.s32 %v630, 127
        %v632 = vand.u32 2147483647, %v469
        %v633 = vand.u32 %v632, 8388607
        %v634 = vor.u32 %v633, 8388608
        %v635 = vsub.s32 0, %v634
        %v636 = vadd.s32 %v631, 1
        %vm637 = vcmp.gt.s32.totalorder %v636, 0
        %v638 = vsel %vm637, %v636, 0
        %v639 = vshrl.u32 %v638, 5
        %v640 = vand.u32 %v638, 31
        %v641 = vsub.s32 32, %v640
        %v642 = vshrl.u32 683565275, %v641
        %v643 = vshll.u32 683565275, %v640
        %v644 = vshrl.u32 2475754826, %v641
        %v645 = vor.u32 %v643, %v644
        %v646 = vshll.u32 2475754826, %v640
        %v647 = vshrl.u32 2131351028, %v641
        %v648 = vor.u32 %v646, %v647
        %v649 = vshll.u32 2131351028, %v640
        %v650 = vshrl.u32 2102212464, %v641
        %v651 = vor.u32 %v649, %v650
        %v652 = vshll.u32 2102212464, %v640
        %v653 = vshrl.u32 920167782, %v641
        %v654 = vor.u32 %v652, %v653
        %v655 = vshll.u32 920167782, %v640
        %v656 = vshrl.u32 1326507024, %v641
        %v657 = vor.u32 %v655, %v656
        %vm658 = vcmp.lt.s32.totalorder %v639, 1
        %vm659 = vcmp.lt.s32.totalorder %v639, 2
        %vm660 = vcmp.lt.s32.totalorder %v639, 3
        %vm661 = vcmp.lt.s32.totalorder %v639, 4
        %v662 = vsel %vm658, %v642, %v645
        %v663 = vsel %vm661, %v651, 2102212464
        %v664 = vsel %vm660, %v648, %v663
        %v665 = vsel %vm659, %v662, %v664
        %v666 = vsel %vm658, %v645, %v648
        %v667 = vsel %vm661, %v654, 920167782
        %v668 = vsel %vm660, %v651, %v667
        %v669 = vsel %vm659, %v666, %v668
        %v670 = vsel %vm658, %v648, %v651
        %v671 = vsel %vm661, %v657, 1326507024
        %v672 = vsel %vm660, %v654, %v671
        %v673 = vsel %vm659, %v670, %v672
        %v674 = vshll.u32 %v634, 8
        %v675 = vmul.u32.u64.compose %v674, %v673
        %v676 = vextract.low.u32 %v675
        %v677 = vextract.high.u32 %v675
        %v678 = vmul.u32.u64.compose %v674, %v669
        %v679 = vextract.low.u32 %v678
        %v680 = vextract.high.u32 %v678
        %v681 = vmul.u32 %v674, %v665
        %v682 = vadd.s32 %v677, %v679
        %vm683 = vc.u32 %v677, %v679
        %v684 = vadd.s32 %v680, 1
        %v685 = vsel %vm683, %v684, %v680
        %v686 = vadd.s32 %v681, %v685
        %v687 = vadd.s32 %v686, 536870912
        %v688 = vshrl.u32 %v687, 30
        %v689 = vshll.u32 %v688, 30
        %v690 = vsub.s32 %v686, %v689
        %vm691 = vcmp.lt.s32.totalorder %v690, 0
        %v692 = vsub.s32 0, %v690
        %v693 = vsel %vm691, %v692, %v690
        %v694 = vclz %v693
        %v695 = vsub.s32 %v694, 2
        %vm696 = vcmp.gt.s32.totalorder 0, %v695
        %v697 = vsel %vm696, 0, %v695
        %v698 = vsub.s32 32, %v697
        %v699 = vshll.u32 %v690, %v697
        %v700 = vshrl.u32 %v682, %v698
        %v701 = vor.u32 %v699, %v700
        %v702 = vsub.s32 4294967266, %v697
        %v703 = vadd.s32 %v702, 127
        %v704 = vshll.u32 %v703, 23
        %v705 = vor.u32 4788187, %v704
        %v706 = vand.u32 2147483647, %v705
        %v708 = vcvt.s32.f32 %v701
        %v709 = vmul.f32 %v708, %v706
        %v710 = vxor.u32 %v709, 2147483648
        %v711 = vsel %vm628, %v710, %v709
        %v712 = vsub.s32 4, %v688
        %v713 = vsel %vm628, %v712, %v688
        %v714 = vsel %vm627, %v469, %v711
        %v715 = vsel %vm627, 0, %v713
        %v716 = vcosq.f32.pop %v714
        %v717 = vsinq.f32.pop %v714
        %vm718 = vweird.f32 %v469
        %v719 = vadd.s32 %v715, 3
        %v720 = vand.u32 %v719, 3
        %vm721 = vcmp.lt.s32.totalorder %v720, 2
        %vm722 = vcmp.eq.s32.totalorder %v720, 0
        %v723 = vxor.u32 %v717, 2147483648
        %v724 = vsel %vm722, %v716, %v723
        %vm725 = vcmp.eq.s32.totalorder %v720, 2
        %v726 = vxor.u32 %v716, 2147483648
        %v727 = vsel %vm725, %v726, %v717
        %v728 = vsel %vm721, %v724, %v727
        %v729 = vsel %vm718, nan, %v728
        %v730 = vand.u32 2147483647, %v474
        %vm731 = vcmp.le.f32.partialorder %v730, 0.7853982
        %vm732 = vcmp.lt.s32.totalorder %v474, 0
        %v733 = vand.u32 %v474, 2139095040
        %v734 = vshrl.u32 %v733, 23
        %v735 = vsub.s32 %v734, 127
        %v736 = vand.u32 2147483647, %v474
        %v737 = vand.u32 %v736, 8388607
        %v738 = vor.u32 %v737, 8388608
        %v739 = vsub.s32 0, %v738
        %v740 = vadd.s32 %v735, 1
        %vm741 = vcmp.gt.s32.totalorder %v740, 0
        %v742 = vsel %vm741, %v740, 0
        %v743 = vshrl.u32 %v742, 5
        %v744 = vand.u32 %v742, 31
        %v745 = vsub.s32 32, %v744
        %v746 = vshrl.u32 683565275, %v745
        %v747 = vshll.u32 683565275, %v744
        %v748 = vshrl.u32 2475754826, %v745
        %v749 = vor.u32 %v747, %v748
        %v750 = vshll.u32 2475754826, %v744
        %v751 = vshrl.u32 2131351028, %v745
        %v752 = vor.u32 %v750, %v751
        %v753 = vshll.u32 2131351028, %v744
        %v754 = vshrl.u32 2102212464, %v745
        %v755 = vor.u32 %v753, %v754
        %v756 = vshll.u32 2102212464, %v744
        %v757 = vshrl.u32 920167782, %v745
        %v758 = vor.u32 %v756, %v757
        %v759 = vshll.u32 920167782, %v744
        %v760 = vshrl.u32 1326507024, %v745
        %v761 = vor.u32 %v759, %v760
        %vm762 = vcmp.lt.s32.totalorder %v743, 1
        %vm763 = vcmp.lt.s32.totalorder %v743, 2
        %vm764 = vcmp.lt.s32.totalorder %v743, 3
        %vm765 = vcmp.lt.s32.totalorder %v743, 4
        %v766 = vsel %vm762, %v746, %v749
        %v767 = vsel %vm765, %v755, 2102212464
        %v768 = vsel %vm764, %v752, %v767
        %v769 = vsel %vm763, %v766, %v768
        %v770 = vsel %vm762, %v749, %v752
        %v771 = vsel %vm765, %v758, 920167782
        %v772 = vsel %vm764, %v755, %v771
        %v773 = vsel %vm763, %v770, %v772
        %v774 = vsel %vm762, %v752, %v755
        %v775 = vsel %vm765, %v761, 1326507024
        %v776 = vsel %vm764, %v758, %v775
        %v777 = vsel %vm763, %v774, %v776
        %v778 = vshll.u32 %v738, 8
        %v779 = vmul.u32.u64.compose %v778, %v777
        %v780 = vextract.low.u32 %v779
        %v781 = vextract.high.u32 %v779
        %v782 = vmul.u32.u64.compose %v778, %v773
        %v783 = vextract.low.u32 %v782
        %v784 = vextract.high.u32 %v782
        %v785 = vmul.u32 %v778, %v769
        %v786 = vadd.s32 %v781, %v783
        %vm787 = vc.u32 %v781, %v783
        %v788 = vadd.s32 %v784, 1
        %v789 = vsel %vm787, %v788, %v784
        %v790 = vadd.s32 %v785, %v789
        %v791 = vadd.s32 %v790, 536870912
        %v792 = vshrl.u32 %v791, 30
        %v793 = vshll.u32 %v792, 30
        %v794 = vsub.s32 %v790, %v793
        %vm795 = vcmp.lt.s32.totalorder %v794, 0
        %v796 = vsub.s32 0, %v794
        %v797 = vsel %vm795, %v796, %v794
        %v798 = vclz %v797
        %v799 = vsub.s32 %v798, 2
        %vm800 = vcmp.gt.s32.totalorder 0, %v799
        %v801 = vsel %vm800, 0, %v799
        %v802 = vsub.s32 32, %v801
        %v803 = vshll.u32 %v794, %v801
        %v804 = vshrl.u32 %v786, %v802
        %v805 = vor.u32 %v803, %v804
        %v806 = vsub.s32 4294967266, %v801
        %v807 = vadd.s32 %v806, 127
        %v808 = vshll.u32 %v807, 23
        %v809 = vor.u32 4788187, %v808
        %v810 = vand.u32 2147483647, %v809
        %v812 = vcvt.s32.f32 %v805
        %v813 = vmul.f32 %v812, %v810
        %v814 = vxor.u32 %v813, 2147483648
        %v815 = vsel %vm732, %v814, %v813
        %v816 = vsub.s32 4, %v792
        %v817 = vsel %vm732, %v816, %v792
        %v818 = vsel %vm731, %v474, %v815
        %v819 = vsel %vm731, 0, %v817
        %v820 = vcosq.f32.pop %v818
        %v821 = vsinq.f32.pop %v818
        %vm822 = vweird.f32 %v474
        %v823 = vadd.s32 %v819, 3
        %v824 = vand.u32 %v823, 3
        %vm825 = vcmp.lt.s32.totalorder %v824, 2
        %vm826 = vcmp.eq.s32.totalorder %v824, 0
        %v827 = vxor.u32 %v821, 2147483648
        %v828 = vsel %vm826, %v820, %v827
        %vm829 = vcmp.eq.s32.totalorder %v824, 2
        %v830 = vxor.u32 %v820, 2147483648
        %v831 = vsel %vm829, %v830, %v821
        %v832 = vsel %vm825, %v828, %v831
        %v833 = vsel %vm822, nan, %v832
        %v834 = vand.u32 2147483647, %v479
        %vm835 = vcmp.le.f32.partialorder %v834, 0.7853982
        %vm836 = vcmp.lt.s32.totalorder %v479, 0
        %v837 = vand.u32 %v479, 2139095040
        %v838 = vshrl.u32 %v837, 23
        %v839 = vsub.s32 %v838, 127
        %v840 = vand.u32 2147483647, %v479
        %v841 = vand.u32 %v840, 8388607
        %v842 = vor.u32 %v841, 8388608
        %v843 = vsub.s32 0, %v842
        %v844 = vadd.s32 %v839, 1
        %vm845 = vcmp.gt.s32.totalorder %v844, 0
        %v846 = vsel %vm845, %v844, 0
        %v847 = vshrl.u32 %v846, 5
        %v848 = vand.u32 %v846, 31
        %v849 = vsub.s32 32, %v848
        %v850 = vshrl.u32 683565275, %v849
        %v851 = vshll.u32 683565275, %v848
        %v852 = vshrl.u32 2475754826, %v849
        %v853 = vor.u32 %v851, %v852
        %v854 = vshll.u32 2475754826, %v848
        %v855 = vshrl.u32 2131351028, %v849
        %v856 = vor.u32 %v854, %v855
        %v857 = vshll.u32 2131351028, %v848
        %v858 = vshrl.u32 2102212464, %v849
        %v859 = vor.u32 %v857, %v858
        %v860 = vshll.u32 2102212464, %v848
        %v861 = vshrl.u32 920167782, %v849
        %v862 = vor.u32 %v860, %v861
        %v863 = vshll.u32 920167782, %v848
        %v864 = vshrl.u32 1326507024, %v849
        %v865 = vor.u32 %v863, %v864
        %vm866 = vcmp.lt.s32.totalorder %v847, 1
        %vm867 = vcmp.lt.s32.totalorder %v847, 2
        %vm868 = vcmp.lt.s32.totalorder %v847, 3
        %vm869 = vcmp.lt.s32.totalorder %v847, 4
        %v870 = vsel %vm866, %v850, %v853
        %v871 = vsel %vm869, %v859, 2102212464
        %v872 = vsel %vm868, %v856, %v871
        %v873 = vsel %vm867, %v870, %v872
        %v874 = vsel %vm866, %v853, %v856
        %v875 = vsel %vm869, %v862, 920167782
        %v876 = vsel %vm868, %v859, %v875
        %v877 = vsel %vm867, %v874, %v876
        %v878 = vsel %vm866, %v856, %v859
        %v879 = vsel %vm869, %v865, 1326507024
        %v880 = vsel %vm868, %v862, %v879
        %v881 = vsel %vm867, %v878, %v880
        %v882 = vshll.u32 %v842, 8
        %v883 = vmul.u32.u64.compose %v882, %v881
        %v884 = vextract.low.u32 %v883
        %v885 = vextract.high.u32 %v883
        %v886 = vmul.u32.u64.compose %v882, %v877
        %v887 = vextract.low.u32 %v886
        %v888 = vextract.high.u32 %v886
        %v889 = vmul.u32 %v882, %v873
        %v890 = vadd.s32 %v885, %v887
        %vm891 = vc.u32 %v885, %v887
        %v892 = vadd.s32 %v888, 1
        %v893 = vsel %vm891, %v892, %v888
        %v894 = vadd.s32 %v889, %v893
        %v895 = vadd.s32 %v894, 536870912
        %v896 = vshrl.u32 %v895, 30
        %v897 = vshll.u32 %v896, 30
        %v898 = vsub.s32 %v894, %v897
        %vm899 = vcmp.lt.s32.totalorder %v898, 0
        %v900 = vsub.s32 0, %v898
        %v901 = vsel %vm899, %v900, %v898
        %v902 = vclz %v901
        %v903 = vsub.s32 %v902, 2
        %vm904 = vcmp.gt.s32.totalorder 0, %v903
        %v905 = vsel %vm904, 0, %v903
        %v906 = vsub.s32 32, %v905
        %v907 = vshll.u32 %v898, %v905
        %v908 = vshrl.u32 %v890, %v906
        %v909 = vor.u32 %v907, %v908
        %v910 = vsub.s32 4294967266, %v905
        %v911 = vadd.s32 %v910, 127
        %v912 = vshll.u32 %v911, 23
        %v913 = vor.u32 4788187, %v912
        %v914 = vand.u32 2147483647, %v913
        %v916 = vcvt.s32.f32 %v909
        %v917 = vmul.f32 %v916, %v914
        %v918 = vxor.u32 %v917, 2147483648
        %v919 = vsel %vm836, %v918, %v917
        %v920 = vsub.s32 4, %v896
        %v921 = vsel %vm836, %v920, %v896
        %v922 = vsel %vm835, %v479, %v919
        %v923 = vsel %vm835, 0, %v921
        %v924 = vcosq.f32.pop %v922
        %v925 = vsinq.f32.pop %v922
        %vm926 = vweird.f32 %v479
        %v927 = vadd.s32 %v923, 3
        %v928 = vand.u32 %v927, 3
        %vm929 = vcmp.lt.s32.totalorder %v928, 2
        %vm930 = vcmp.eq.s32.totalorder %v928, 0
        %v931 = vxor.u32 %v925, 2147483648
        %v932 = vsel %vm930, %v924, %v931
        %vm933 = vcmp.eq.s32.totalorder %v928, 2
        %v934 = vxor.u32 %v924, 2147483648
        %v935 = vsel %vm933, %v934, %v925
        %v936 = vsel %vm929, %v932, %v935
        %v937 = vsel %vm926, nan, %v936
        %v938 = vand.u32 2147483647, %v484
        %vm939 = vcmp.le.f32.partialorder %v938, 0.7853982
        %vm940 = vcmp.lt.s32.totalorder %v484, 0
        %v941 = vand.u32 %v484, 2139095040
        %v942 = vshrl.u32 %v941, 23
        %v943 = vsub.s32 %v942, 127
        %v944 = vand.u32 2147483647, %v484
        %v945 = vand.u32 %v944, 8388607
        %v946 = vor.u32 %v945, 8388608
        %v947 = vsub.s32 0, %v946
        %v948 = vadd.s32 %v943, 1
        %vm949 = vcmp.gt.s32.totalorder %v948, 0
        %v950 = vsel %vm949, %v948, 0
        %v951 = vshrl.u32 %v950, 5
        %v952 = vand.u32 %v950, 31
        %v953 = vsub.s32 32, %v952
        %v954 = vshrl.u32 683565275, %v953
        %v955 = vshll.u32 683565275, %v952
        %v956 = vshrl.u32 2475754826, %v953
        %v957 = vor.u32 %v955, %v956
        %v958 = vshll.u32 2475754826, %v952
        %v959 = vshrl.u32 2131351028, %v953
        %v960 = vor.u32 %v958, %v959
        %v961 = vshll.u32 2131351028, %v952
        %v962 = vshrl.u32 2102212464, %v953
        %v963 = vor.u32 %v961, %v962
        %v964 = vshll.u32 2102212464, %v952
        %v965 = vshrl.u32 920167782, %v953
        %v966 = vor.u32 %v964, %v965
        %v967 = vshll.u32 920167782, %v952
        %v968 = vshrl.u32 1326507024, %v953
        %v969 = vor.u32 %v967, %v968
        %vm970 = vcmp.lt.s32.totalorder %v951, 1
        %vm971 = vcmp.lt.s32.totalorder %v951, 2
        %vm972 = vcmp.lt.s32.totalorder %v951, 3
        %vm973 = vcmp.lt.s32.totalorder %v951, 4
        %v974 = vsel %vm970, %v954, %v957
        %v975 = vsel %vm973, %v963, 2102212464
        %v976 = vsel %vm972, %v960, %v975
        %v977 = vsel %vm971, %v974, %v976
        %v978 = vsel %vm970, %v957, %v960
        %v979 = vsel %vm973, %v966, 920167782
        %v980 = vsel %vm972, %v963, %v979
        %v981 = vsel %vm971, %v978, %v980
        %v982 = vsel %vm970, %v960, %v963
        %v983 = vsel %vm973, %v969, 1326507024
        %v984 = vsel %vm972, %v966, %v983
        %v985 = vsel %vm971, %v982, %v984
        %v986 = vshll.u32 %v946, 8
        %v987 = vmul.u32.u64.compose %v986, %v985
        %v988 = vextract.low.u32 %v987
        %v989 = vextract.high.u32 %v987
        %v990 = vmul.u32.u64.compose %v986, %v981
        %v991 = vextract.low.u32 %v990
        %v992 = vextract.high.u32 %v990
        %v993 = vmul.u32 %v986, %v977
        %v994 = vadd.s32 %v989, %v991
        %vm995 = vc.u32 %v989, %v991
        %v996 = vadd.s32 %v992, 1
        %v997 = vsel %vm995, %v996, %v992
        %v998 = vadd.s32 %v993, %v997
        %v999 = vadd.s32 %v998, 536870912
        %v1000 = vshrl.u32 %v999, 30
        %v1001 = vshll.u32 %v1000, 30
        %v1002 = vsub.s32 %v998, %v1001
        %vm1003 = vcmp.lt.s32.totalorder %v1002, 0
        %v1004 = vsub.s32 0, %v1002
        %v1005 = vsel %vm1003, %v1004, %v1002
        %v1006 = vclz %v1005
        %v1007 = vsub.s32 %v1006, 2
        %vm1008 = vcmp.gt.s32.totalorder 0, %v1007
        %v1009 = vsel %vm1008, 0, %v1007
        %v1010 = vsub.s32 32, %v1009
        %v1011 = vshll.u32 %v1002, %v1009
        %v1012 = vshrl.u32 %v994, %v1010
        %v1013 = vor.u32 %v1011, %v1012
        %v1014 = vsub.s32 4294967266, %v1009
        %v1015 = vadd.s32 %v1014, 127
        %v1016 = vshll.u32 %v1015, 23
        %v1017 = vor.u32 4788187, %v1016
        %v1018 = vand.u32 2147483647, %v1017
        %v1020 = vcvt.s32.f32 %v1013
        %v1021 = vmul.f32 %v1020, %v1018
        %v1022 = vxor.u32 %v1021, 2147483648
        %v1023 = vsel %vm940, %v1022, %v1021
        %v1024 = vsub.s32 4, %v1000
        %v1025 = vsel %vm940, %v1024, %v1000
        %v1026 = vsel %vm939, %v484, %v1023
        %v1027 = vsel %vm939, 0, %v1025
        %v1028 = vcosq.f32.pop %v1026
        %v1029 = vsinq.f32.pop %v1026
        %vm1030 = vweird.f32 %v484
        %v1031 = vadd.s32 %v1027, 3
        %v1032 = vand.u32 %v1031, 3
        %vm1033 = vcmp.lt.s32.totalorder %v1032, 2
        %vm1034 = vcmp.eq.s32.totalorder %v1032, 0
        %v1035 = vxor.u32 %v1029, 2147483648
        %v1036 = vsel %vm1034, %v1028, %v1035
        %vm1037 = vcmp.eq.s32.totalorder %v1032, 2
        %v1038 = vxor.u32 %v1028, 2147483648
        %v1039 = vsel %vm1037, %v1038, %v1029
        %v1040 = vsel %vm1033, %v1036, %v1039
        %v1041 = vsel %vm1030, nan, %v1040
        %v1042 = vand.u32 2147483647, %v489
        %vm1043 = vcmp.le.f32.partialorder %v1042, 0.7853982
        %vm1044 = vcmp.lt.s32.totalorder %v489, 0
        %v1045 = vand.u32 %v489, 2139095040
        %v1046 = vshrl.u32 %v1045, 23
        %v1047 = vsub.s32 %v1046, 127
        %v1048 = vand.u32 2147483647, %v489
        %v1049 = vand.u32 %v1048, 8388607
        %v1050 = vor.u32 %v1049, 8388608
        %v1051 = vsub.s32 0, %v1050
        %v1052 = vadd.s32 %v1047, 1
        %vm1053 = vcmp.gt.s32.totalorder %v1052, 0
        %v1054 = vsel %vm1053, %v1052, 0
        %v1055 = vshrl.u32 %v1054, 5
        %v1056 = vand.u32 %v1054, 31
        %v1057 = vsub.s32 32, %v1056
        %v1058 = vshrl.u32 683565275, %v1057
        %v1059 = vshll.u32 683565275, %v1056
        %v1060 = vshrl.u32 2475754826, %v1057
        %v1061 = vor.u32 %v1059, %v1060
        %v1062 = vshll.u32 2475754826, %v1056
        %v1063 = vshrl.u32 2131351028, %v1057
        %v1064 = vor.u32 %v1062, %v1063
        %v1065 = vshll.u32 2131351028, %v1056
        %v1066 = vshrl.u32 2102212464, %v1057
        %v1067 = vor.u32 %v1065, %v1066
        %v1068 = vshll.u32 2102212464, %v1056
        %v1069 = vshrl.u32 920167782, %v1057
        %v1070 = vor.u32 %v1068, %v1069
        %v1071 = vshll.u32 920167782, %v1056
        %v1072 = vshrl.u32 1326507024, %v1057
        %v1073 = vor.u32 %v1071, %v1072
        %vm1074 = vcmp.lt.s32.totalorder %v1055, 1
        %vm1075 = vcmp.lt.s32.totalorder %v1055, 2
        %vm1076 = vcmp.lt.s32.totalorder %v1055, 3
        %vm1077 = vcmp.lt.s32.totalorder %v1055, 4
        %v1078 = vsel %vm1074, %v1058, %v1061
        %v1079 = vsel %vm1077, %v1067, 2102212464
        %v1080 = vsel %vm1076, %v1064, %v1079
        %v1081 = vsel %vm1075, %v1078, %v1080
        %v1082 = vsel %vm1074, %v1061, %v1064
        %v1083 = vsel %vm1077, %v1070, 920167782
        %v1084 = vsel %vm1076, %v1067, %v1083
        %v1085 = vsel %vm1075, %v1082, %v1084
        %v1086 = vsel %vm1074, %v1064, %v1067
        %v1087 = vsel %vm1077, %v1073, 1326507024
        %v1088 = vsel %vm1076, %v1070, %v1087
        %v1089 = vsel %vm1075, %v1086, %v1088
        %v1090 = vshll.u32 %v1050, 8
        %v1091 = vmul.u32.u64.compose %v1090, %v1089
        %v1092 = vextract.low.u32 %v1091
        %v1093 = vextract.high.u32 %v1091
        %v1094 = vmul.u32.u64.compose %v1090, %v1085
        %v1095 = vextract.low.u32 %v1094
        %v1096 = vextract.high.u32 %v1094
        %v1097 = vmul.u32 %v1090, %v1081
        %v1098 = vadd.s32 %v1093, %v1095
        %vm1099 = vc.u32 %v1093, %v1095
        %v1100 = vadd.s32 %v1096, 1
        %v1101 = vsel %vm1099, %v1100, %v1096
        %v1102 = vadd.s32 %v1097, %v1101
        %v1103 = vadd.s32 %v1102, 536870912
        %v1104 = vshrl.u32 %v1103, 30
        %v1105 = vshll.u32 %v1104, 30
        %v1106 = vsub.s32 %v1102, %v1105
        %vm1107 = vcmp.lt.s32.totalorder %v1106, 0
        %v1108 = vsub.s32 0, %v1106
        %v1109 = vsel %vm1107, %v1108, %v1106
        %v1110 = vclz %v1109
        %v1111 = vsub.s32 %v1110, 2
        %vm1112 = vcmp.gt.s32.totalorder 0, %v1111
        %v1113 = vsel %vm1112, 0, %v1111
        %v1114 = vsub.s32 32, %v1113
        %v1115 = vshll.u32 %v1106, %v1113
        %v1116 = vshrl.u32 %v1098, %v1114
        %v1117 = vor.u32 %v1115, %v1116
        %v1118 = vsub.s32 4294967266, %v1113
        %v1119 = vadd.s32 %v1118, 127
        %v1120 = vshll.u32 %v1119, 23
        %v1121 = vor.u32 4788187, %v1120
        %v1122 = vand.u32 2147483647, %v1121
        %v1124 = vcvt.s32.f32 %v1117
        %v1125 = vmul.f32 %v1124, %v1122
        %v1126 = vxor.u32 %v1125, 2147483648
        %v1127 = vsel %vm1044, %v1126, %v1125
        %v1128 = vsub.s32 4, %v1104
        %v1129 = vsel %vm1044, %v1128, %v1104
        %v1130 = vsel %vm1043, %v489, %v1127
        %v1131 = vsel %vm1043, 0, %v1129
        %v1132 = vcosq.f32.pop %v1130
        %v1133 = vsinq.f32.pop %v1130
        %vm1134 = vweird.f32 %v489
        %v1135 = vadd.s32 %v1131, 3
        %v1136 = vand.u32 %v1135, 3
        %vm1137 = vcmp.lt.s32.totalorder %v1136, 2
        %vm1138 = vcmp.eq.s32.totalorder %v1136, 0
        %v1139 = vxor.u32 %v1133, 2147483648
        %v1140 = vsel %vm1138, %v1132, %v1139
        %vm1141 = vcmp.eq.s32.totalorder %v1136, 2
        %v1142 = vxor.u32 %v1132, 2147483648
        %v1143 = vsel %vm1141, %v1142, %v1133
        %v1144 = vsel %vm1137, %v1140, %v1143
        %v1145 = vsel %vm1134, nan, %v1144
        %v1146 = vand.u32 2147483647, %v494
        %vm1147 = vcmp.le.f32.partialorder %v1146, 0.7853982
        %vm1148 = vcmp.lt.s32.totalorder %v494, 0
        %v1149 = vand.u32 %v494, 2139095040
        %v1150 = vshrl.u32 %v1149, 23
        %v1151 = vsub.s32 %v1150, 127
        %v1152 = vand.u32 2147483647, %v494
        %v1153 = vand.u32 %v1152, 8388607
        %v1154 = vor.u32 %v1153, 8388608
        %v1155 = vsub.s32 0, %v1154
        %v1156 = vadd.s32 %v1151, 1
        %vm1157 = vcmp.gt.s32.totalorder %v1156, 0
        %v1158 = vsel %vm1157, %v1156, 0
        %v1159 = vshrl.u32 %v1158, 5
        %v1160 = vand.u32 %v1158, 31
        %v1161 = vsub.s32 32, %v1160
        %v1162 = vshrl.u32 683565275, %v1161
        %v1163 = vshll.u32 683565275, %v1160
        %v1164 = vshrl.u32 2475754826, %v1161
        %v1165 = vor.u32 %v1163, %v1164
        %v1166 = vshll.u32 2475754826, %v1160
        %v1167 = vshrl.u32 2131351028, %v1161
        %v1168 = vor.u32 %v1166, %v1167
        %v1169 = vshll.u32 2131351028, %v1160
        %v1170 = vshrl.u32 2102212464, %v1161
        %v1171 = vor.u32 %v1169, %v1170
        %v1172 = vshll.u32 2102212464, %v1160
        %v1173 = vshrl.u32 920167782, %v1161
        %v1174 = vor.u32 %v1172, %v1173
        %v1175 = vshll.u32 920167782, %v1160
        %v1176 = vshrl.u32 1326507024, %v1161
        %v1177 = vor.u32 %v1175, %v1176
        %vm1178 = vcmp.lt.s32.totalorder %v1159, 1
        %vm1179 = vcmp.lt.s32.totalorder %v1159, 2
        %vm1180 = vcmp.lt.s32.totalorder %v1159, 3
        %vm1181 = vcmp.lt.s32.totalorder %v1159, 4
        %v1182 = vsel %vm1178, %v1162, %v1165
        %v1183 = vsel %vm1181, %v1171, 2102212464
        %v1184 = vsel %vm1180, %v1168, %v1183
        %v1185 = vsel %vm1179, %v1182, %v1184
        %v1186 = vsel %vm1178, %v1165, %v1168
        %v1187 = vsel %vm1181, %v1174, 920167782
        %v1188 = vsel %vm1180, %v1171, %v1187
        %v1189 = vsel %vm1179, %v1186, %v1188
        %v1190 = vsel %vm1178, %v1168, %v1171
        %v1191 = vsel %vm1181, %v1177, 1326507024
        %v1192 = vsel %vm1180, %v1174, %v1191
        %v1193 = vsel %vm1179, %v1190, %v1192
        %v1194 = vshll.u32 %v1154, 8
        %v1195 = vmul.u32.u64.compose %v1194, %v1193
        %v1196 = vextract.low.u32 %v1195
        %v1197 = vextract.high.u32 %v1195
        %v1198 = vmul.u32.u64.compose %v1194, %v1189
        %v1199 = vextract.low.u32 %v1198
        %v1200 = vextract.high.u32 %v1198
        %v1201 = vmul.u32 %v1194, %v1185
        %v1202 = vadd.s32 %v1197, %v1199
        %vm1203 = vc.u32 %v1197, %v1199
        %v1204 = vadd.s32 %v1200, 1
        %v1205 = vsel %vm1203, %v1204, %v1200
        %v1206 = vadd.s32 %v1201, %v1205
        %v1207 = vadd.s32 %v1206, 536870912
        %v1208 = vshrl.u32 %v1207, 30
        %v1209 = vshll.u32 %v1208, 30
        %v1210 = vsub.s32 %v1206, %v1209
        %vm1211 = vcmp.lt.s32.totalorder %v1210, 0
        %v1212 = vsub.s32 0, %v1210
        %v1213 = vsel %vm1211, %v1212, %v1210
        %v1214 = vclz %v1213
        %v1215 = vsub.s32 %v1214, 2
        %vm1216 = vcmp.gt.s32.totalorder 0, %v1215
        %v1217 = vsel %vm1216, 0, %v1215
        %v1218 = vsub.s32 32, %v1217
        %v1219 = vshll.u32 %v1210, %v1217
        %v1220 = vshrl.u32 %v1202, %v1218
        %v1221 = vor.u32 %v1219, %v1220
        %v1222 = vsub.s32 4294967266, %v1217
        %v1223 = vadd.s32 %v1222, 127
        %v1224 = vshll.u32 %v1223, 23
        %v1225 = vor.u32 4788187, %v1224
        %v1226 = vand.u32 2147483647, %v1225
        %v1228 = vcvt.s32.f32 %v1221
        %v1229 = vmul.f32 %v1228, %v1226
        %v1230 = vxor.u32 %v1229, 2147483648
        %v1231 = vsel %vm1148, %v1230, %v1229
        %v1232 = vsub.s32 4, %v1208
        %v1233 = vsel %vm1148, %v1232, %v1208
        %v1234 = vsel %vm1147, %v494, %v1231
        %v1235 = vsel %vm1147, 0, %v1233
        %v1236 = vcosq.f32.pop %v1234
        %v1237 = vsinq.f32.pop %v1234
        %vm1238 = vweird.f32 %v494
        %v1239 = vadd.s32 %v1235, 3
        %v1240 = vand.u32 %v1239, 3
        %vm1241 = vcmp.lt.s32.totalorder %v1240, 2
        %vm1242 = vcmp.eq.s32.totalorder %v1240, 0
        %v1243 = vxor.u32 %v1237, 2147483648
        %v1244 = vsel %vm1242, %v1236, %v1243
        %vm1245 = vcmp.eq.s32.totalorder %v1240, 2
        %v1246 = vxor.u32 %v1236, 2147483648
        %v1247 = vsel %vm1245, %v1246, %v1237
        %v1248 = vsel %vm1241, %v1244, %v1247
        %v1249 = vsel %vm1238, nan, %v1248
        %v1250 = vand.u32 2147483647, %v499
        %vm1251 = vcmp.le.f32.partialorder %v1250, 0.7853982
        %vm1252 = vcmp.lt.s32.totalorder %v499, 0
        %v1253 = vand.u32 %v499, 2139095040
        %v1254 = vshrl.u32 %v1253, 23
        %v1255 = vsub.s32 %v1254, 127
        %v1256 = vand.u32 2147483647, %v499
        %v1257 = vand.u32 %v1256, 8388607
        %v1258 = vor.u32 %v1257, 8388608
        %v1259 = vsub.s32 0, %v1258
        %v1260 = vadd.s32 %v1255, 1
        %vm1261 = vcmp.gt.s32.totalorder %v1260, 0
        %v1262 = vsel %vm1261, %v1260, 0
        %v1263 = vshrl.u32 %v1262, 5
        %v1264 = vand.u32 %v1262, 31
        %v1265 = vsub.s32 32, %v1264
        %v1266 = vshrl.u32 683565275, %v1265
        %v1267 = vshll.u32 683565275, %v1264
        %v1268 = vshrl.u32 2475754826, %v1265
        %v1269 = vor.u32 %v1267, %v1268
        %v1270 = vshll.u32 2475754826, %v1264
        %v1271 = vshrl.u32 2131351028, %v1265
        %v1272 = vor.u32 %v1270, %v1271
        %v1273 = vshll.u32 2131351028, %v1264
        %v1274 = vshrl.u32 2102212464, %v1265
        %v1275 = vor.u32 %v1273, %v1274
        %v1276 = vshll.u32 2102212464, %v1264
        %v1277 = vshrl.u32 920167782, %v1265
        %v1278 = vor.u32 %v1276, %v1277
        %v1279 = vshll.u32 920167782, %v1264
        %v1280 = vshrl.u32 1326507024, %v1265
        %v1281 = vor.u32 %v1279, %v1280
        %vm1282 = vcmp.lt.s32.totalorder %v1263, 1
        %vm1283 = vcmp.lt.s32.totalorder %v1263, 2
        %vm1284 = vcmp.lt.s32.totalorder %v1263, 3
        %vm1285 = vcmp.lt.s32.totalorder %v1263, 4
        %v1286 = vsel %vm1282, %v1266, %v1269
        %v1287 = vsel %vm1285, %v1275, 2102212464
        %v1288 = vsel %vm1284, %v1272, %v1287
        %v1289 = vsel %vm1283, %v1286, %v1288
        %v1290 = vsel %vm1282, %v1269, %v1272
        %v1291 = vsel %vm1285, %v1278, 920167782
        %v1292 = vsel %vm1284, %v1275, %v1291
        %v1293 = vsel %vm1283, %v1290, %v1292
        %v1294 = vsel %vm1282, %v1272, %v1275
        %v1295 = vsel %vm1285, %v1281, 1326507024
        %v1296 = vsel %vm1284, %v1278, %v1295
        %v1297 = vsel %vm1283, %v1294, %v1296
        %v1298 = vshll.u32 %v1258, 8
        %v1299 = vmul.u32.u64.compose %v1298, %v1297
        %v1300 = vextract.low.u32 %v1299
        %v1301 = vextract.high.u32 %v1299
        %v1302 = vmul.u32.u64.compose %v1298, %v1293
        %v1303 = vextract.low.u32 %v1302
        %v1304 = vextract.high.u32 %v1302
        %v1305 = vmul.u32 %v1298, %v1289
        %v1306 = vadd.s32 %v1301, %v1303
        %vm1307 = vc.u32 %v1301, %v1303
        %v1308 = vadd.s32 %v1304, 1
        %v1309 = vsel %vm1307, %v1308, %v1304
        %v1310 = vadd.s32 %v1305, %v1309
        %v1311 = vadd.s32 %v1310, 536870912
        %v1312 = vshrl.u32 %v1311, 30
        %v1313 = vshll.u32 %v1312, 30
        %v1314 = vsub.s32 %v1310, %v1313
        %vm1315 = vcmp.lt.s32.totalorder %v1314, 0
        %v1316 = vsub.s32 0, %v1314
        %v1317 = vsel %vm1315, %v1316, %v1314
        %v1318 = vclz %v1317
        %v1319 = vsub.s32 %v1318, 2
        %vm1320 = vcmp.gt.s32.totalorder 0, %v1319
        %v1321 = vsel %vm1320, 0, %v1319
        %v1322 = vsub.s32 32, %v1321
        %v1323 = vshll.u32 %v1314, %v1321
        %v1324 = vshrl.u32 %v1306, %v1322
        %v1325 = vor.u32 %v1323, %v1324
        %v1326 = vsub.s32 4294967266, %v1321
        %v1327 = vadd.s32 %v1326, 127
        %v1328 = vshll.u32 %v1327, 23
        %v1329 = vor.u32 4788187, %v1328
        %v1330 = vand.u32 2147483647, %v1329
        %v1332 = vcvt.s32.f32 %v1325
        %v1333 = vmul.f32 %v1332, %v1330
        %v1334 = vxor.u32 %v1333, 2147483648
        %v1335 = vsel %vm1252, %v1334, %v1333
        %v1336 = vsub.s32 4, %v1312
        %v1337 = vsel %vm1252, %v1336, %v1312
        %v1338 = vsel %vm1251, %v499, %v1335
        %v1339 = vsel %vm1251, 0, %v1337
        %v1340 = vcosq.f32.pop %v1338
        %v1341 = vsinq.f32.pop %v1338
        %vm1342 = vweird.f32 %v499
        %v1343 = vadd.s32 %v1339, 3
        %v1344 = vand.u32 %v1343, 3
        %vm1345 = vcmp.lt.s32.totalorder %v1344, 2
        %vm1346 = vcmp.eq.s32.totalorder %v1344, 0
        %v1347 = vxor.u32 %v1341, 2147483648
        %v1348 = vsel %vm1346, %v1340, %v1347
        %vm1349 = vcmp.eq.s32.totalorder %v1344, 2
        %v1350 = vxor.u32 %v1340, 2147483648
        %v1351 = vsel %vm1349, %v1350, %v1341
        %v1352 = vsel %vm1345, %v1348, %v1351
        %v1353 = vsel %vm1342, nan, %v1352
        %v1354 = vand.u32 2147483647, %v504
        %vm1355 = vcmp.le.f32.partialorder %v1354, 0.7853982
        %vm1356 = vcmp.lt.s32.totalorder %v504, 0
        %v1357 = vand.u32 %v504, 2139095040
        %v1358 = vshrl.u32 %v1357, 23
        %v1359 = vsub.s32 %v1358, 127
        %v1360 = vand.u32 2147483647, %v504
        %v1361 = vand.u32 %v1360, 8388607
        %v1362 = vor.u32 %v1361, 8388608
        %v1363 = vsub.s32 0, %v1362
        %v1364 = vadd.s32 %v1359, 1
        %vm1365 = vcmp.gt.s32.totalorder %v1364, 0
        %v1366 = vsel %vm1365, %v1364, 0
        %v1367 = vshrl.u32 %v1366, 5
        %v1368 = vand.u32 %v1366, 31
        %v1369 = vsub.s32 32, %v1368
        %v1370 = vshrl.u32 683565275, %v1369
        %v1371 = vshll.u32 683565275, %v1368
        %v1372 = vshrl.u32 2475754826, %v1369
        %v1373 = vor.u32 %v1371, %v1372
        %v1374 = vshll.u32 2475754826, %v1368
        %v1375 = vshrl.u32 2131351028, %v1369
        %v1376 = vor.u32 %v1374, %v1375
        %v1377 = vshll.u32 2131351028, %v1368
        %v1378 = vshrl.u32 2102212464, %v1369
        %v1379 = vor.u32 %v1377, %v1378
        %v1380 = vshll.u32 2102212464, %v1368
        %v1381 = vshrl.u32 920167782, %v1369
        %v1382 = vor.u32 %v1380, %v1381
        %v1383 = vshll.u32 920167782, %v1368
        %v1384 = vshrl.u32 1326507024, %v1369
        %v1385 = vor.u32 %v1383, %v1384
        %vm1386 = vcmp.lt.s32.totalorder %v1367, 1
        %vm1387 = vcmp.lt.s32.totalorder %v1367, 2
        %vm1388 = vcmp.lt.s32.totalorder %v1367, 3
        %vm1389 = vcmp.lt.s32.totalorder %v1367, 4
        %v1390 = vsel %vm1386, %v1370, %v1373
        %v1391 = vsel %vm1389, %v1379, 2102212464
        %v1392 = vsel %vm1388, %v1376, %v1391
        %v1393 = vsel %vm1387, %v1390, %v1392
        %v1394 = vsel %vm1386, %v1373, %v1376
        %v1395 = vsel %vm1389, %v1382, 920167782
        %v1396 = vsel %vm1388, %v1379, %v1395
        %v1397 = vsel %vm1387, %v1394, %v1396
        %v1398 = vsel %vm1386, %v1376, %v1379
        %v1399 = vsel %vm1389, %v1385, 1326507024
        %v1400 = vsel %vm1388, %v1382, %v1399
        %v1401 = vsel %vm1387, %v1398, %v1400
        %v1402 = vshll.u32 %v1362, 8
        %v1403 = vmul.u32.u64.compose %v1402, %v1401
        %v1404 = vextract.low.u32 %v1403
        %v1405 = vextract.high.u32 %v1403
        %v1406 = vmul.u32.u64.compose %v1402, %v1397
        %v1407 = vextract.low.u32 %v1406
        %v1408 = vextract.high.u32 %v1406
        %v1409 = vmul.u32 %v1402, %v1393
        %v1410 = vadd.s32 %v1405, %v1407
        %vm1411 = vc.u32 %v1405, %v1407
        %v1412 = vadd.s32 %v1408, 1
        %v1413 = vsel %vm1411, %v1412, %v1408
        %v1414 = vadd.s32 %v1409, %v1413
        %v1415 = vadd.s32 %v1414, 536870912
        %v1416 = vshrl.u32 %v1415, 30
        %v1417 = vshll.u32 %v1416, 30
        %v1418 = vsub.s32 %v1414, %v1417
        %vm1419 = vcmp.lt.s32.totalorder %v1418, 0
        %v1420 = vsub.s32 0, %v1418
        %v1421 = vsel %vm1419, %v1420, %v1418
        %v1422 = vclz %v1421
        %v1423 = vsub.s32 %v1422, 2
        %vm1424 = vcmp.gt.s32.totalorder 0, %v1423
        %v1425 = vsel %vm1424, 0, %v1423
        %v1426 = vsub.s32 32, %v1425
        %v1427 = vshll.u32 %v1418, %v1425
        %v1428 = vshrl.u32 %v1410, %v1426
        %v1429 = vor.u32 %v1427, %v1428
        %v1430 = vsub.s32 4294967266, %v1425
        %v1431 = vadd.s32 %v1430, 127
        %v1432 = vshll.u32 %v1431, 23
        %v1433 = vor.u32 4788187, %v1432
        %v1434 = vand.u32 2147483647, %v1433
        %v1436 = vcvt.s32.f32 %v1429
        %v1437 = vmul.f32 %v1436, %v1434
        %v1438 = vxor.u32 %v1437, 2147483648
        %v1439 = vsel %vm1356, %v1438, %v1437
        %v1440 = vsub.s32 4, %v1416
        %v1441 = vsel %vm1356, %v1440, %v1416
        %v1442 = vsel %vm1355, %v504, %v1439
        %v1443 = vsel %vm1355, 0, %v1441
        %v1444 = vcosq.f32.pop %v1442
        %v1445 = vsinq.f32.pop %v1442
        %vm1446 = vweird.f32 %v504
        %v1447 = vadd.s32 %v1443, 3
        %v1448 = vand.u32 %v1447, 3
        %vm1449 = vcmp.lt.s32.totalorder %v1448, 2
        %vm1450 = vcmp.eq.s32.totalorder %v1448, 0
        %v1451 = vxor.u32 %v1445, 2147483648
        %v1452 = vsel %vm1450, %v1444, %v1451
        %vm1453 = vcmp.eq.s32.totalorder %v1448, 2
        %v1454 = vxor.u32 %v1444, 2147483648
        %v1455 = vsel %vm1453, %v1454, %v1445
        %v1456 = vsel %vm1449, %v1452, %v1455
        %v1457 = vsel %vm1446, nan, %v1456
        %v1458 = vand.u32 2147483647, %v509
        %vm1459 = vcmp.le.f32.partialorder %v1458, 0.7853982
        %vm1460 = vcmp.lt.s32.totalorder %v509, 0
        %v1461 = vand.u32 %v509, 2139095040
        %v1462 = vshrl.u32 %v1461, 23
        %v1463 = vsub.s32 %v1462, 127
        %v1464 = vand.u32 2147483647, %v509
        %v1465 = vand.u32 %v1464, 8388607
        %v1466 = vor.u32 %v1465, 8388608
        %v1467 = vsub.s32 0, %v1466
        %v1468 = vadd.s32 %v1463, 1
        %vm1469 = vcmp.gt.s32.totalorder %v1468, 0
        %v1470 = vsel %vm1469, %v1468, 0
        %v1471 = vshrl.u32 %v1470, 5
        %v1472 = vand.u32 %v1470, 31
        %v1473 = vsub.s32 32, %v1472
        %v1474 = vshrl.u32 683565275, %v1473
        %v1475 = vshll.u32 683565275, %v1472
        %v1476 = vshrl.u32 2475754826, %v1473
        %v1477 = vor.u32 %v1475, %v1476
        %v1478 = vshll.u32 2475754826, %v1472
        %v1479 = vshrl.u32 2131351028, %v1473
        %v1480 = vor.u32 %v1478, %v1479
        %v1481 = vshll.u32 2131351028, %v1472
        %v1482 = vshrl.u32 2102212464, %v1473
        %v1483 = vor.u32 %v1481, %v1482
        %v1484 = vshll.u32 2102212464, %v1472
        %v1485 = vshrl.u32 920167782, %v1473
        %v1486 = vor.u32 %v1484, %v1485
        %v1487 = vshll.u32 920167782, %v1472
        %v1488 = vshrl.u32 1326507024, %v1473
        %v1489 = vor.u32 %v1487, %v1488
        %vm1490 = vcmp.lt.s32.totalorder %v1471, 1
        %vm1491 = vcmp.lt.s32.totalorder %v1471, 2
        %vm1492 = vcmp.lt.s32.totalorder %v1471, 3
        %vm1493 = vcmp.lt.s32.totalorder %v1471, 4
        %v1494 = vsel %vm1490, %v1474, %v1477
        %v1495 = vsel %vm1493, %v1483, 2102212464
        %v1496 = vsel %vm1492, %v1480, %v1495
        %v1497 = vsel %vm1491, %v1494, %v1496
        %v1498 = vsel %vm1490, %v1477, %v1480
        %v1499 = vsel %vm1493, %v1486, 920167782
        %v1500 = vsel %vm1492, %v1483, %v1499
        %v1501 = vsel %vm1491, %v1498, %v1500
        %v1502 = vsel %vm1490, %v1480, %v1483
        %v1503 = vsel %vm1493, %v1489, 1326507024
        %v1504 = vsel %vm1492, %v1486, %v1503
        %v1505 = vsel %vm1491, %v1502, %v1504
        %v1506 = vshll.u32 %v1466, 8
        %v1507 = vmul.u32.u64.compose %v1506, %v1505
        %v1508 = vextract.low.u32 %v1507
        %v1509 = vextract.high.u32 %v1507
        %v1510 = vmul.u32.u64.compose %v1506, %v1501
        %v1511 = vextract.low.u32 %v1510
        %v1512 = vextract.high.u32 %v1510
        %v1513 = vmul.u32 %v1506, %v1497
        %v1514 = vadd.s32 %v1509, %v1511
        %vm1515 = vc.u32 %v1509, %v1511
        %v1516 = vadd.s32 %v1512, 1
        %v1517 = vsel %vm1515, %v1516, %v1512
        %v1518 = vadd.s32 %v1513, %v1517
        %v1519 = vadd.s32 %v1518, 536870912
        %v1520 = vshrl.u32 %v1519, 30
        %v1521 = vshll.u32 %v1520, 30
        %v1522 = vsub.s32 %v1518, %v1521
        %vm1523 = vcmp.lt.s32.totalorder %v1522, 0
        %v1524 = vsub.s32 0, %v1522
        %v1525 = vsel %vm1523, %v1524, %v1522
        %v1526 = vclz %v1525
        %v1527 = vsub.s32 %v1526, 2
        %vm1528 = vcmp.gt.s32.totalorder 0, %v1527
        %v1529 = vsel %vm1528, 0, %v1527
        %v1530 = vsub.s32 32, %v1529
        %v1531 = vshll.u32 %v1522, %v1529
        %v1532 = vshrl.u32 %v1514, %v1530
        %v1533 = vor.u32 %v1531, %v1532
        %v1534 = vsub.s32 4294967266, %v1529
        %v1535 = vadd.s32 %v1534, 127
        %v1536 = vshll.u32 %v1535, 23
        %v1537 = vor.u32 4788187, %v1536
        %v1538 = vand.u32 2147483647, %v1537
        %v1540 = vcvt.s32.f32 %v1533
        %v1541 = vmul.f32 %v1540, %v1538
        %v1542 = vxor.u32 %v1541, 2147483648
        %v1543 = vsel %vm1460, %v1542, %v1541
        %v1544 = vsub.s32 4, %v1520
        %v1545 = vsel %vm1460, %v1544, %v1520
        %v1546 = vsel %vm1459, %v509, %v1543
        %v1547 = vsel %vm1459, 0, %v1545
        %v1548 = vcosq.f32.pop %v1546
        %v1549 = vsinq.f32.pop %v1546
        %vm1550 = vweird.f32 %v509
        %v1551 = vadd.s32 %v1547, 3
        %v1552 = vand.u32 %v1551, 3
        %vm1553 = vcmp.lt.s32.totalorder %v1552, 2
        %vm1554 = vcmp.eq.s32.totalorder %v1552, 0
        %v1555 = vxor.u32 %v1549, 2147483648
        %v1556 = vsel %vm1554, %v1548, %v1555
        %vm1557 = vcmp.eq.s32.totalorder %v1552, 2
        %v1558 = vxor.u32 %v1548, 2147483648
        %v1559 = vsel %vm1557, %v1558, %v1549
        %v1560 = vsel %vm1553, %v1556, %v1559
        %v1561 = vsel %vm1550, nan, %v1560
        %v1562 = vand.u32 2147483647, %v514
        %vm1563 = vcmp.le.f32.partialorder %v1562, 0.7853982
        %vm1564 = vcmp.lt.s32.totalorder %v514, 0
        %v1565 = vand.u32 %v514, 2139095040
        %v1566 = vshrl.u32 %v1565, 23
        %v1567 = vsub.s32 %v1566, 127
        %v1568 = vand.u32 2147483647, %v514
        %v1569 = vand.u32 %v1568, 8388607
        %v1570 = vor.u32 %v1569, 8388608
        %v1571 = vsub.s32 0, %v1570
        %v1572 = vadd.s32 %v1567, 1
        %vm1573 = vcmp.gt.s32.totalorder %v1572, 0
        %v1574 = vsel %vm1573, %v1572, 0
        %v1575 = vshrl.u32 %v1574, 5
        %v1576 = vand.u32 %v1574, 31
        %v1577 = vsub.s32 32, %v1576
        %v1578 = vshrl.u32 683565275, %v1577
        %v1579 = vshll.u32 683565275, %v1576
        %v1580 = vshrl.u32 2475754826, %v1577
        %v1581 = vor.u32 %v1579, %v1580
        %v1582 = vshll.u32 2475754826, %v1576
        %v1583 = vshrl.u32 2131351028, %v1577
        %v1584 = vor.u32 %v1582, %v1583
        %v1585 = vshll.u32 2131351028, %v1576
        %v1586 = vshrl.u32 2102212464, %v1577
        %v1587 = vor.u32 %v1585, %v1586
        %v1588 = vshll.u32 2102212464, %v1576
        %v1589 = vshrl.u32 920167782, %v1577
        %v1590 = vor.u32 %v1588, %v1589
        %v1591 = vshll.u32 920167782, %v1576
        %v1592 = vshrl.u32 1326507024, %v1577
        %v1593 = vor.u32 %v1591, %v1592
        %vm1594 = vcmp.lt.s32.totalorder %v1575, 1
        %vm1595 = vcmp.lt.s32.totalorder %v1575, 2
        %vm1596 = vcmp.lt.s32.totalorder %v1575, 3
        %vm1597 = vcmp.lt.s32.totalorder %v1575, 4
        %v1598 = vsel %vm1594, %v1578, %v1581
        %v1599 = vsel %vm1597, %v1587, 2102212464
        %v1600 = vsel %vm1596, %v1584, %v1599
        %v1601 = vsel %vm1595, %v1598, %v1600
        %v1602 = vsel %vm1594, %v1581, %v1584
        %v1603 = vsel %vm1597, %v1590, 920167782
        %v1604 = vsel %vm1596, %v1587, %v1603
        %v1605 = vsel %vm1595, %v1602, %v1604
        %v1606 = vsel %vm1594, %v1584, %v1587
        %v1607 = vsel %vm1597, %v1593, 1326507024
        %v1608 = vsel %vm1596, %v1590, %v1607
        %v1609 = vsel %vm1595, %v1606, %v1608
        %v1610 = vshll.u32 %v1570, 8
        %v1611 = vmul.u32.u64.compose %v1610, %v1609
        %v1612 = vextract.low.u32 %v1611
        %v1613 = vextract.high.u32 %v1611
        %v1614 = vmul.u32.u64.compose %v1610, %v1605
        %v1615 = vextract.low.u32 %v1614
        %v1616 = vextract.high.u32 %v1614
        %v1617 = vmul.u32 %v1610, %v1601
        %v1618 = vadd.s32 %v1613, %v1615
        %vm1619 = vc.u32 %v1613, %v1615
        %v1620 = vadd.s32 %v1616, 1
        %v1621 = vsel %vm1619, %v1620, %v1616
        %v1622 = vadd.s32 %v1617, %v1621
        %v1623 = vadd.s32 %v1622, 536870912
        %v1624 = vshrl.u32 %v1623, 30
        %v1625 = vshll.u32 %v1624, 30
        %v1626 = vsub.s32 %v1622, %v1625
        %vm1627 = vcmp.lt.s32.totalorder %v1626, 0
        %v1628 = vsub.s32 0, %v1626
        %v1629 = vsel %vm1627, %v1628, %v1626
        %v1630 = vclz %v1629
        %v1631 = vsub.s32 %v1630, 2
        %vm1632 = vcmp.gt.s32.totalorder 0, %v1631
        %v1633 = vsel %vm1632, 0, %v1631
        %v1634 = vsub.s32 32, %v1633
        %v1635 = vshll.u32 %v1626, %v1633
        %v1636 = vshrl.u32 %v1618, %v1634
        %v1637 = vor.u32 %v1635, %v1636
        %v1638 = vsub.s32 4294967266, %v1633
        %v1639 = vadd.s32 %v1638, 127
        %v1640 = vshll.u32 %v1639, 23
        %v1641 = vor.u32 4788187, %v1640
        %v1642 = vand.u32 2147483647, %v1641
        %v1644 = vcvt.s32.f32 %v1637
        %v1645 = vmul.f32 %v1644, %v1642
        %v1646 = vxor.u32 %v1645, 2147483648
        %v1647 = vsel %vm1564, %v1646, %v1645
        %v1648 = vsub.s32 4, %v1624
        %v1649 = vsel %vm1564, %v1648, %v1624
        %v1650 = vsel %vm1563, %v514, %v1647
        %v1651 = vsel %vm1563, 0, %v1649
        %v1652 = vcosq.f32.pop %v1650
        %v1653 = vsinq.f32.pop %v1650
        %vm1654 = vweird.f32 %v514
        %v1655 = vadd.s32 %v1651, 3
        %v1656 = vand.u32 %v1655, 3
        %vm1657 = vcmp.lt.s32.totalorder %v1656, 2
        %vm1658 = vcmp.eq.s32.totalorder %v1656, 0
        %v1659 = vxor.u32 %v1653, 2147483648
        %v1660 = vsel %vm1658, %v1652, %v1659
        %vm1661 = vcmp.eq.s32.totalorder %v1656, 2
        %v1662 = vxor.u32 %v1652, 2147483648
        %v1663 = vsel %vm1661, %v1662, %v1653
        %v1664 = vsel %vm1657, %v1660, %v1663
        %v1665 = vsel %vm1654, nan, %v1664
        %v1666 = vand.u32 2147483647, %v519
        %vm1667 = vcmp.le.f32.partialorder %v1666, 0.7853982
        %vm1668 = vcmp.lt.s32.totalorder %v519, 0
        %v1669 = vand.u32 %v519, 2139095040
        %v1670 = vshrl.u32 %v1669, 23
        %v1671 = vsub.s32 %v1670, 127
        %v1672 = vand.u32 2147483647, %v519
        %v1673 = vand.u32 %v1672, 8388607
        %v1674 = vor.u32 %v1673, 8388608
        %v1675 = vsub.s32 0, %v1674
        %v1676 = vadd.s32 %v1671, 1
        %vm1677 = vcmp.gt.s32.totalorder %v1676, 0
        %v1678 = vsel %vm1677, %v1676, 0
        %v1679 = vshrl.u32 %v1678, 5
        %v1680 = vand.u32 %v1678, 31
        %v1681 = vsub.s32 32, %v1680
        %v1682 = vshrl.u32 683565275, %v1681
        %v1683 = vshll.u32 683565275, %v1680
        %v1684 = vshrl.u32 2475754826, %v1681
        %v1685 = vor.u32 %v1683, %v1684
        %v1686 = vshll.u32 2475754826, %v1680
        %v1687 = vshrl.u32 2131351028, %v1681
        %v1688 = vor.u32 %v1686, %v1687
        %v1689 = vshll.u32 2131351028, %v1680
        %v1690 = vshrl.u32 2102212464, %v1681
        %v1691 = vor.u32 %v1689, %v1690
        %v1692 = vshll.u32 2102212464, %v1680
        %v1693 = vshrl.u32 920167782, %v1681
        %v1694 = vor.u32 %v1692, %v1693
        %v1695 = vshll.u32 920167782, %v1680
        %v1696 = vshrl.u32 1326507024, %v1681
        %v1697 = vor.u32 %v1695, %v1696
        %vm1698 = vcmp.lt.s32.totalorder %v1679, 1
        %vm1699 = vcmp.lt.s32.totalorder %v1679, 2
        %vm1700 = vcmp.lt.s32.totalorder %v1679, 3
        %vm1701 = vcmp.lt.s32.totalorder %v1679, 4
        %v1702 = vsel %vm1698, %v1682, %v1685
        %v1703 = vsel %vm1701, %v1691, 2102212464
        %v1704 = vsel %vm1700, %v1688, %v1703
        %v1705 = vsel %vm1699, %v1702, %v1704
        %v1706 = vsel %vm1698, %v1685, %v1688
        %v1707 = vsel %vm1701, %v1694, 920167782
        %v1708 = vsel %vm1700, %v1691, %v1707
        %v1709 = vsel %vm1699, %v1706, %v1708
        %v1710 = vsel %vm1698, %v1688, %v1691
        %v1711 = vsel %vm1701, %v1697, 1326507024
        %v1712 = vsel %vm1700, %v1694, %v1711
        %v1713 = vsel %vm1699, %v1710, %v1712
        %v1714 = vshll.u32 %v1674, 8
        %v1715 = vmul.u32.u64.compose %v1714, %v1713
        %v1716 = vextract.low.u32 %v1715
        %v1717 = vextract.high.u32 %v1715
        %v1718 = vmul.u32.u64.compose %v1714, %v1709
        %v1719 = vextract.low.u32 %v1718
        %v1720 = vextract.high.u32 %v1718
        %v1721 = vmul.u32 %v1714, %v1705
        %v1722 = vadd.s32 %v1717, %v1719
        %vm1723 = vc.u32 %v1717, %v1719
        %v1724 = vadd.s32 %v1720, 1
        %v1725 = vsel %vm1723, %v1724, %v1720
        %v1726 = vadd.s32 %v1721, %v1725
        %v1727 = vadd.s32 %v1726, 536870912
        %v1728 = vshrl.u32 %v1727, 30
        %v1729 = vshll.u32 %v1728, 30
        %v1730 = vsub.s32 %v1726, %v1729
        %vm1731 = vcmp.lt.s32.totalorder %v1730, 0
        %v1732 = vsub.s32 0, %v1730
        %v1733 = vsel %vm1731, %v1732, %v1730
        %v1734 = vclz %v1733
        %v1735 = vsub.s32 %v1734, 2
        %vm1736 = vcmp.gt.s32.totalorder 0, %v1735
        %v1737 = vsel %vm1736, 0, %v1735
        %v1738 = vsub.s32 32, %v1737
        %v1739 = vshll.u32 %v1730, %v1737
        %v1740 = vshrl.u32 %v1722, %v1738
        %v1741 = vor.u32 %v1739, %v1740
        %v1742 = vsub.s32 4294967266, %v1737
        %v1743 = vadd.s32 %v1742, 127
        %v1744 = vshll.u32 %v1743, 23
        %v1745 = vor.u32 4788187, %v1744
        %v1746 = vand.u32 2147483647, %v1745
        %v1748 = vcvt.s32.f32 %v1741
        %v1749 = vmul.f32 %v1748, %v1746
        %v1750 = vxor.u32 %v1749, 2147483648
        %v1751 = vsel %vm1668, %v1750, %v1749
        %v1752 = vsub.s32 4, %v1728
        %v1753 = vsel %vm1668, %v1752, %v1728
        %v1754 = vsel %vm1667, %v519, %v1751
        %v1755 = vsel %vm1667, 0, %v1753
        %v1756 = vcosq.f32.pop %v1754
        %v1757 = vsinq.f32.pop %v1754
        %vm1758 = vweird.f32 %v519
        %v1759 = vadd.s32 %v1755, 3
        %v1760 = vand.u32 %v1759, 3
        %vm1761 = vcmp.lt.s32.totalorder %v1760, 2
        %vm1762 = vcmp.eq.s32.totalorder %v1760, 0
        %v1763 = vxor.u32 %v1757, 2147483648
        %v1764 = vsel %vm1762, %v1756, %v1763
        %vm1765 = vcmp.eq.s32.totalorder %v1760, 2
        %v1766 = vxor.u32 %v1756, 2147483648
        %v1767 = vsel %vm1765, %v1766, %v1757
        %v1768 = vsel %vm1761, %v1764, %v1767
        %v1769 = vsel %vm1758, nan, %v1768
        %v1770 = vmul.f32 %v625, %v625
        %v1771 = vmul.f32 %v729, %v729
        %v1772 = vmul.f32 %v833, %v833
        %v1773 = vmul.f32 %v937, %v937
        %v1774 = vmul.f32 %v1041, %v1041
        %v1775 = vmul.f32 %v1145, %v1145
        %v1776 = vmul.f32 %v1249, %v1249
        %v1777 = vmul.f32 %v1353, %v1353
        %v1778 = vmul.f32 %v1457, %v1457
        %v1779 = vmul.f32 %v1561, %v1561
        %v1780 = vmul.f32 %v1665, %v1665
        %v1781 = vmul.f32 %v1769, %v1769
        %v1782 = vadd.f32 %v464, %v1770
        %v1783 = vadd.f32 %v469, %v1771
        %v1784 = vadd.f32 %v474, %v1772
        %v1785 = vadd.f32 %v479, %v1773
        %v1786 = vadd.f32 %v484, %v1774
        %v1787 = vadd.f32 %v489, %v1775
        %v1788 = vadd.f32 %v494, %v1776
        %v1789 = vadd.f32 %v499, %v1777
        %v1790 = vadd.f32 %v504, %v1778
        %v1791 = vadd.f32 %v509, %v1779
        %v1792 = vadd.f32 %v514, %v1780
        %v1793 = vadd.f32 %v519, %v1781
        %v1794 = vld [vmem:[%s3] sm:$0xff]
        %v1795 = vld [vmem:[%s3 + $0x8] sm:$0xff]
        %v1796 = vld [vmem:[%s3 + $0x10] sm:$0xff]
        %v1797 = vld [vmem:[%s3 + $0x18] sm:$0xff]
        %v1798 = vld [vmem:[%s3 + $0x20] sm:$0xff]
        %v1799 = vld [vmem:[%s3 + $0x28] sm:$0xff]
        %v1800 = vld [vmem:[%s3 + $0x30] sm:$0xff]
        %v1801 = vld [vmem:[%s3 + $0x38] sm:$0xff]
        %v1802 = vld [vmem:[%s3 + $0x40] sm:$0xff]
        %v1803 = vld [vmem:[%s3 + $0x48] sm:$0xff]
        %v1804 = vld [vmem:[%s3 + $0x50] sm:$0xff]
        %v1805 = vld [vmem:[%s3 + $0x58] sm:$0xff]
        %v1806 = vld [vmem:[%s4] sm:$0xff]
        %v1807 = vld [vmem:[%s4 + $0x8] sm:$0xff]
        %v1808 = vld [vmem:[%s4 + $0x10] sm:$0xff]
        %v1809 = vld [vmem:[%s4 + $0x18] sm:$0xff]
        %v1810 = vld [vmem:[%s4 + $0x20] sm:$0xff]
        %v1811 = vld [vmem:[%s4 + $0x28] sm:$0xff]
        %v1812 = vld [vmem:[%s4 + $0x30] sm:$0xff]
        %v1813 = vld [vmem:[%s4 + $0x38] sm:$0xff]
        %v1814 = vld [vmem:[%s4 + $0x40] sm:$0xff]
        %v1815 = vld [vmem:[%s4 + $0x48] sm:$0xff]
        %v1816 = vld [vmem:[%s4 + $0x50] sm:$0xff]
        %v1817 = vld [vmem:[%s4 + $0x58] sm:$0xff]
        %1819 = vset.pattern.permute.xlu0 0
        %1820 = vperm.xlu0 %1819, %v1806
        %v1821 = vpop.permute.xlu0 %1820
        %1824 = vset.pattern.permute.xlu0 0
        %1825 = vperm.xlu0 %1824, %v1807
        %v1826 = vpop.permute.xlu0 %1825
        %1829 = vset.pattern.permute.xlu0 0
        %1830 = vperm.xlu0 %1829, %v1808
        %v1831 = vpop.permute.xlu0 %1830
        %1834 = vset.pattern.permute.xlu0 0
        %1835 = vperm.xlu0 %1834, %v1809
        %v1836 = vpop.permute.xlu0 %1835
        %1839 = vset.pattern.permute.xlu0 0
        %1840 = vperm.xlu0 %1839, %v1810
        %v1841 = vpop.permute.xlu0 %1840
        %1844 = vset.pattern.permute.xlu0 0
        %1845 = vperm.xlu0 %1844, %v1811
        %v1846 = vpop.permute.xlu0 %1845
        %1849 = vset.pattern.permute.xlu0 0
        %1850 = vperm.xlu0 %1849, %v1812
        %v1851 = vpop.permute.xlu0 %1850
        %1854 = vset.pattern.permute.xlu0 0
        %1855 = vperm.xlu0 %1854, %v1813
        %v1856 = vpop.permute.xlu0 %1855
        %1859 = vset.pattern.permute.xlu0 0
        %1860 = vperm.xlu0 %1859, %v1814
        %v1861 = vpop.permute.xlu0 %1860
        %1864 = vset.pattern.permute.xlu0 0
        %1865 = vperm.xlu0 %1864, %v1815
        %v1866 = vpop.permute.xlu0 %1865
        %1869 = vset.pattern.permute.xlu0 0
        %1870 = vperm.xlu0 %1869, %v1816
        %v1871 = vpop.permute.xlu0 %1870
        %1874 = vset.pattern.permute.xlu0 0
        %1875 = vperm.xlu0 %1874, %v1817
        %v1876 = vpop.permute.xlu0 %1875
        %vm1878 = vcmask 785408
        %v1880 = vsel %vm1878, %v1794, 0
        %v1883 = vsel %vm1878, %v1795, 0
        %v1886 = vsel %vm1878, %v1796, 0
        %v1889 = vsel %vm1878, %v1797, 0
        %v1892 = vsel %vm1878, %v1798, 0
        %v1895 = vsel %vm1878, %v1799, 0
        %v1898 = vsel %vm1878, %v1800, 0
        %v1901 = vsel %vm1878, %v1801, 0
        %v1904 = vsel %vm1878, %v1802, 0
        %v1907 = vsel %vm1878, %v1803, 0
        %v1910 = vsel %vm1878, %v1804, 0
        %v1913 = vsel %vm1878, %v1805, 0
        %1915 = vmatprep.subr.mxu0 0.0
        %1916 = vmatpush1.msra.mxu0 %v1782
        %1917 = vmatprep.subr.mxu0 0.0
        %1918 = vmatpush1.msra.mxu0 %v1783
        %1919 = vmatprep.subr.mxu0 0.0
        %1920 = vmatpush1.msra.mxu0 %v1784
        %1921 = vmatprep.subr.mxu0 0.0
        %1922 = vmatpush1.msra.mxu0 %v1785
        %1923 = vmatprep.subr.mxu0 0.0
        %1924 = vmatpush1.msra.mxu0 %v1786
        %1925 = vmatprep.subr.mxu0 0.0
        %1926 = vmatpush1.msra.mxu0 %v1787
        %1927 = vmatprep.subr.mxu0 0.0
        %1928 = vmatpush1.msra.mxu0 %v1788
        %1929 = vmatprep.subr.mxu0 0.0
        %1930 = vmatpush1.msra.mxu0 %v1789
        %1931 = vmatprep.subr.mxu0 0.0
        %1932 = vmatpush1.msra.mxu0 %v1790
        %1933 = vmatprep.subr.mxu0 0.0
        %1934 = vmatpush1.msra.mxu0 %v1791
        %1935 = vmatprep.subr.mxu0 0.0
        %1936 = vmatpush1.msra.mxu0 %v1792
        %1937 = vmatprep.subr.mxu0 0.0
        %1938 = vmatpush1.msra.mxu0 %v1793
        %1939 = vmatprep.subr.mxu0 0.0
        %1940 = vmatpush1.msra.mxu0 0.0
        %1941 = vmatprep.subr.mxu0 0.0
        %1942 = vmatpush1.msra.mxu0 0.0
        %1943 = vmatprep.subr.mxu0 0.0
        %1944 = vmatpush1.msra.mxu0 0.0
        %1945 = vmatprep.subr.mxu0 0.0
        %1946 = vmatpush1.msra.mxu0 0.0
        %1947 = vmatprep.subr.mxu0 0.0
        %1948 = vmatpush1.msra.mxu0 0.0
        %1949 = vmatprep.subr.mxu0 0.0
        %1950 = vmatpush1.msra.mxu0 0.0
        %1951 = vmatprep.subr.mxu0 0.0
        %1952 = vmatpush1.msra.mxu0 0.0
        %1953 = vmatprep.subr.mxu0 0.0
        %1954 = vmatpush1.msra.mxu0 0.0
        %1955 = vmatprep.subr.mxu0 0.0
        %1956 = vmatpush1.msra.mxu0 0.0
        %1957 = vmatprep.subr.mxu0 0.0
        %1958 = vmatpush1.msra.mxu0 0.0
        %1959 = vmatprep.subr.mxu0 0.0
        %1960 = vmatpush1.msra.mxu0 0.0
        %1961 = vmatprep.subr.mxu0 0.0
        %1962 = vmatpush1.msra.mxu0 0.0
        %1963 = vmatprep.subr.mxu0 0.0
        %1964 = vmatpush1.msra.mxu0 0.0
        %1965 = vmatprep.subr.mxu0 0.0
        %1966 = vmatpush1.msra.mxu0 0.0
        %1967 = vmatprep.subr.mxu0 0.0
        %1968 = vmatpush1.msra.mxu0 0.0
        %1969 = vmatprep.subr.mxu0 0.0
        %1970 = vmatpush1.msra.mxu0 0.0
        %1971 = vmatprep.subr.mxu0 0.0
        %1972 = vmatpush1.msra.mxu0 0.0
        %1973 = vmatprep.subr.mxu0 0.0
        %1974 = vmatpush1.msra.mxu0 0.0
        %1975 = vmatprep.subr.mxu0 0.0
        %1976 = vmatpush1.msra.mxu0 0.0
        %1977 = vmatprep.subr.mxu0 0.0
        %1978 = vmatpush1.msra.mxu0 0.0
        %1979 = vmatprep.mubr.f32.mxu0 0.0
        %1980 = vmatmul.mubr.f32.gmra.mrb[0].mxu0 %v1880
        %v1981 = vpop.f32.mrb[0].mxu0
        %v1982 = vadd.f32 %v1821, %v1981
        %v1983 = vpop.f32.mrb[0].mxu0
        %1984 = vmatprep.mubr.f32.mxu0 0.0
        %1985 = vmatmul.mubr.f32.gmra.mrb[0].mxu0 %v1883
        %v1986 = vpop.f32.mrb[0].mxu0
        %v1987 = vadd.f32 %v1826, %v1986
        %v1988 = vpop.f32.mrb[0].mxu0
        %1989 = vmatprep.mubr.f32.mxu0 0.0
        %1990 = vmatmul.mubr.f32.gmra.mrb[0].mxu0 %v1886
        %v1991 = vpop.f32.mrb[0].mxu0
        %v1992 = vadd.f32 %v1831, %v1991
        %v1993 = vpop.f32.mrb[0].mxu0
        %1994 = vmatprep.mubr.f32.mxu0 0.0
        %1995 = vmatmul.mubr.f32.gmra.mrb[0].mxu0 %v1889
        %v1996 = vpop.f32.mrb[0].mxu0
        %v1997 = vadd.f32 %v1836, %v1996
        %v1998 = vpop.f32.mrb[0].mxu0
        %1999 = vmatprep.mubr.f32.mxu0 0.0
        %2000 = vmatmul.mubr.f32.gmra.mrb[0].mxu0 %v1892
        %v2001 = vpop.f32.mrb[0].mxu0
        %v2002 = vadd.f32 %v1841, %v2001
        %v2003 = vpop.f32.mrb[0].mxu0
        %2004 = vmatprep.mubr.f32.mxu0 0.0
        %2005 = vmatmul.mubr.f32.gmra.mrb[0].mxu0 %v1895
        %v2006 = vpop.f32.mrb[0].mxu0
        %v2007 = vadd.f32 %v1846, %v2006
        %v2008 = vpop.f32.mrb[0].mxu0
        %2009 = vmatprep.mubr.f32.mxu0 0.0
        %2010 = vmatmul.mubr.f32.gmra.mrb[0].mxu0 %v1898
        %v2011 = vpop.f32.mrb[0].mxu0
        %v2012 = vadd.f32 %v1851, %v2011
        %v2013 = vpop.f32.mrb[0].mxu0
        %2014 = vmatprep.mubr.f32.mxu0 0.0
        %2015 = vmatmul.mubr.f32.gmra.mrb[0].mxu0 %v1901
        %v2016 = vpop.f32.mrb[0].mxu0
        %v2017 = vadd.f32 %v1856, %v2016
        %v2018 = vpop.f32.mrb[0].mxu0
        %2019 = vmatprep.mubr.f32.mxu0 0.0
        %2020 = vmatmul.mubr.f32.gmra.mrb[0].mxu0 %v1904
        %v2021 = vpop.f32.mrb[0].mxu0
        %v2022 = vadd.f32 %v1861, %v2021
        %v2023 = vpop.f32.mrb[0].mxu0
        %2024 = vmatprep.mubr.f32.mxu0 0.0
        %2025 = vmatmul.mubr.f32.gmra.mrb[0].mxu0 %v1907
        %v2026 = vpop.f32.mrb[0].mxu0
        %v2027 = vadd.f32 %v1866, %v2026
        %v2028 = vpop.f32.mrb[0].mxu0
        %2029 = vmatprep.mubr.f32.mxu0 0.0
        %2030 = vmatmul.mubr.f32.gmra.mrb[0].mxu0 %v1910
        %v2031 = vpop.f32.mrb[0].mxu0
        %v2032 = vadd.f32 %v1871, %v2031
        %v2033 = vpop.f32.mrb[0].mxu0
        %2034 = vmatprep.mubr.f32.mxu0 0.0
        %2035 = vmatmul.mubr.f32.gmra.mrb[0].mxu0 %v1913
        %v2036 = vpop.f32.mrb[0].mxu0
        %v2037 = vadd.f32 %v1876, %v2036
        %v2038 = vpop.f32.mrb[0].mxu0
        %2039 = vdwg.mxu0
        %v2040 = vand.u32 2147483647, %v1982
        %vm2041 = vcmp.le.f32.partialorder %v2040, 0.7853982
        %vm2042 = vcmp.lt.s32.totalorder %v1982, 0
        %v2043 = vand.u32 %v1982, 2139095040
        %v2044 = vshrl.u32 %v2043, 23
        %v2045 = vsub.s32 %v2044, 127
        %v2046 = vand.u32 2147483647, %v1982
        %v2047 = vand.u32 %v2046, 8388607
        %v2048 = vor.u32 %v2047, 8388608
        %v2049 = vsub.s32 0, %v2048
        %v2050 = vadd.s32 %v2045, 1
        %vm2051 = vcmp.gt.s32.totalorder %v2050, 0
        %v2052 = vsel %vm2051, %v2050, 0
        %v2053 = vshrl.u32 %v2052, 5
        %v2054 = vand.u32 %v2052, 31
        %v2055 = vsub.s32 32, %v2054
        %v2056 = vshrl.u32 683565275, %v2055
        %v2057 = vshll.u32 683565275, %v2054
        %v2058 = vshrl.u32 2475754826, %v2055
        %v2059 = vor.u32 %v2057, %v2058
        %v2060 = vshll.u32 2475754826, %v2054
        %v2061 = vshrl.u32 2131351028, %v2055
        %v2062 = vor.u32 %v2060, %v2061
        %v2063 = vshll.u32 2131351028, %v2054
        %v2064 = vshrl.u32 2102212464, %v2055
        %v2065 = vor.u32 %v2063, %v2064
        %v2066 = vshll.u32 2102212464, %v2054
        %v2067 = vshrl.u32 920167782, %v2055
        %v2068 = vor.u32 %v2066, %v2067
        %v2069 = vshll.u32 920167782, %v2054
        %v2070 = vshrl.u32 1326507024, %v2055
        %v2071 = vor.u32 %v2069, %v2070
        %vm2072 = vcmp.lt.s32.totalorder %v2053, 1
        %vm2073 = vcmp.lt.s32.totalorder %v2053, 2
        %vm2074 = vcmp.lt.s32.totalorder %v2053, 3
        %vm2075 = vcmp.lt.s32.totalorder %v2053, 4
        %v2076 = vsel %vm2072, %v2056, %v2059
        %v2077 = vsel %vm2075, %v2065, 2102212464
        %v2078 = vsel %vm2074, %v2062, %v2077
        %v2079 = vsel %vm2073, %v2076, %v2078
        %v2080 = vsel %vm2072, %v2059, %v2062
        %v2081 = vsel %vm2075, %v2068, 920167782
        %v2082 = vsel %vm2074, %v2065, %v2081
        %v2083 = vsel %vm2073, %v2080, %v2082
        %v2084 = vsel %vm2072, %v2062, %v2065
        %v2085 = vsel %vm2075, %v2071, 1326507024
        %v2086 = vsel %vm2074, %v2068, %v2085
        %v2087 = vsel %vm2073, %v2084, %v2086
        %v2088 = vshll.u32 %v2048, 8
        %v2089 = vmul.u32.u64.compose %v2088, %v2087
        %v2090 = vextract.low.u32 %v2089
        %v2091 = vextract.high.u32 %v2089
        %v2092 = vmul.u32.u64.compose %v2088, %v2083
        %v2093 = vextract.low.u32 %v2092
        %v2094 = vextract.high.u32 %v2092
        %v2095 = vmul.u32 %v2088, %v2079
        %v2096 = vadd.s32 %v2091, %v2093
        %vm2097 = vc.u32 %v2091, %v2093
        %v2098 = vadd.s32 %v2094, 1
        %v2099 = vsel %vm2097, %v2098, %v2094
        %v2100 = vadd.s32 %v2095, %v2099
        %v2101 = vadd.s32 %v2100, 536870912
        %v2102 = vshrl.u32 %v2101, 30
        %v2103 = vshll.u32 %v2102, 30
        %v2104 = vsub.s32 %v2100, %v2103
        %vm2105 = vcmp.lt.s32.totalorder %v2104, 0
        %v2106 = vsub.s32 0, %v2104
        %v2107 = vsel %vm2105, %v2106, %v2104
        %v2108 = vclz %v2107
        %v2109 = vsub.s32 %v2108, 2
        %vm2110 = vcmp.gt.s32.totalorder 0, %v2109
        %v2111 = vsel %vm2110, 0, %v2109
        %v2112 = vsub.s32 32, %v2111
        %v2113 = vshll.u32 %v2104, %v2111
        %v2114 = vshrl.u32 %v2096, %v2112
        %v2115 = vor.u32 %v2113, %v2114
        %v2116 = vsub.s32 4294967266, %v2111
        %v2117 = vadd.s32 %v2116, 127
        %v2118 = vshll.u32 %v2117, 23
        %v2119 = vor.u32 4788187, %v2118
        %v2120 = vand.u32 2147483647, %v2119
        %v2122 = vcvt.s32.f32 %v2115
        %v2123 = vmul.f32 %v2122, %v2120
        %v2124 = vxor.u32 %v2123, 2147483648
        %v2125 = vsel %vm2042, %v2124, %v2123
        %v2126 = vsub.s32 4, %v2102
        %v2127 = vsel %vm2042, %v2126, %v2102
        %v2128 = vsel %vm2041, %v1982, %v2125
        %v2129 = vsel %vm2041, 0, %v2127
        %v2130 = vcosq.f32.pop %v2128
        %v2131 = vsinq.f32.pop %v2128
        %vm2132 = vweird.f32 %v1982
        %v2133 = vadd.s32 %v2129, 3
        %v2134 = vand.u32 %v2133, 3
        %vm2135 = vcmp.lt.s32.totalorder %v2134, 2
        %vm2136 = vcmp.eq.s32.totalorder %v2134, 0
        %v2137 = vxor.u32 %v2131, 2147483648
        %v2138 = vsel %vm2136, %v2130, %v2137
        %vm2139 = vcmp.eq.s32.totalorder %v2134, 2
        %v2140 = vxor.u32 %v2130, 2147483648
        %v2141 = vsel %vm2139, %v2140, %v2131
        %v2142 = vsel %vm2135, %v2138, %v2141
        %v2143 = vsel %vm2132, nan, %v2142
        %v2144 = vand.u32 2147483647, %v1987
        %vm2145 = vcmp.le.f32.partialorder %v2144, 0.7853982
        %vm2146 = vcmp.lt.s32.totalorder %v1987, 0
        %v2147 = vand.u32 %v1987, 2139095040
        %v2148 = vshrl.u32 %v2147, 23
        %v2149 = vsub.s32 %v2148, 127
        %v2150 = vand.u32 2147483647, %v1987
        %v2151 = vand.u32 %v2150, 8388607
        %v2152 = vor.u32 %v2151, 8388608
        %v2153 = vsub.s32 0, %v2152
        %v2154 = vadd.s32 %v2149, 1
        %vm2155 = vcmp.gt.s32.totalorder %v2154, 0
        %v2156 = vsel %vm2155, %v2154, 0
        %v2157 = vshrl.u32 %v2156, 5
        %v2158 = vand.u32 %v2156, 31
        %v2159 = vsub.s32 32, %v2158
        %v2160 = vshrl.u32 683565275, %v2159
        %v2161 = vshll.u32 683565275, %v2158
        %v2162 = vshrl.u32 2475754826, %v2159
        %v2163 = vor.u32 %v2161, %v2162
        %v2164 = vshll.u32 2475754826, %v2158
        %v2165 = vshrl.u32 2131351028, %v2159
        %v2166 = vor.u32 %v2164, %v2165
        %v2167 = vshll.u32 2131351028, %v2158
        %v2168 = vshrl.u32 2102212464, %v2159
        %v2169 = vor.u32 %v2167, %v2168
        %v2170 = vshll.u32 2102212464, %v2158
        %v2171 = vshrl.u32 920167782, %v2159
        %v2172 = vor.u32 %v2170, %v2171
        %v2173 = vshll.u32 920167782, %v2158
        %v2174 = vshrl.u32 1326507024, %v2159
        %v2175 = vor.u32 %v2173, %v2174
        %vm2176 = vcmp.lt.s32.totalorder %v2157, 1
        %vm2177 = vcmp.lt.s32.totalorder %v2157, 2
        %vm2178 = vcmp.lt.s32.totalorder %v2157, 3
        %vm2179 = vcmp.lt.s32.totalorder %v2157, 4
        %v2180 = vsel %vm2176, %v2160, %v2163
        %v2181 = vsel %vm2179, %v2169, 2102212464
        %v2182 = vsel %vm2178, %v2166, %v2181
        %v2183 = vsel %vm2177, %v2180, %v2182
        %v2184 = vsel %vm2176, %v2163, %v2166
        %v2185 = vsel %vm2179, %v2172, 920167782
        %v2186 = vsel %vm2178, %v2169, %v2185
        %v2187 = vsel %vm2177, %v2184, %v2186
        %v2188 = vsel %vm2176, %v2166, %v2169
        %v2189 = vsel %vm2179, %v2175, 1326507024
        %v2190 = vsel %vm2178, %v2172, %v2189
        %v2191 = vsel %vm2177, %v2188, %v2190
        %v2192 = vshll.u32 %v2152, 8
        %v2193 = vmul.u32.u64.compose %v2192, %v2191
        %v2194 = vextract.low.u32 %v2193
        %v2195 = vextract.high.u32 %v2193
        %v2196 = vmul.u32.u64.compose %v2192, %v2187
        %v2197 = vextract.low.u32 %v2196
        %v2198 = vextract.high.u32 %v2196
        %v2199 = vmul.u32 %v2192, %v2183
        %v2200 = vadd.s32 %v2195, %v2197
        %vm2201 = vc.u32 %v2195, %v2197
        %v2202 = vadd.s32 %v2198, 1
        %v2203 = vsel %vm2201, %v2202, %v2198
        %v2204 = vadd.s32 %v2199, %v2203
        %v2205 = vadd.s32 %v2204, 536870912
        %v2206 = vshrl.u32 %v2205, 30
        %v2207 = vshll.u32 %v2206, 30
        %v2208 = vsub.s32 %v2204, %v2207
        %vm2209 = vcmp.lt.s32.totalorder %v2208, 0
        %v2210 = vsub.s32 0, %v2208
        %v2211 = vsel %vm2209, %v2210, %v2208
        %v2212 = vclz %v2211
        %v2213 = vsub.s32 %v2212, 2
        %vm2214 = vcmp.gt.s32.totalorder 0, %v2213
        %v2215 = vsel %vm2214, 0, %v2213
        %v2216 = vsub.s32 32, %v2215
        %v2217 = vshll.u32 %v2208, %v2215
        %v2218 = vshrl.u32 %v2200, %v2216
        %v2219 = vor.u32 %v2217, %v2218
        %v2220 = vsub.s32 4294967266, %v2215
        %v2221 = vadd.s32 %v2220, 127
        %v2222 = vshll.u32 %v2221, 23
        %v2223 = vor.u32 4788187, %v2222
        %v2224 = vand.u32 2147483647, %v2223
        %v2226 = vcvt.s32.f32 %v2219
        %v2227 = vmul.f32 %v2226, %v2224
        %v2228 = vxor.u32 %v2227, 2147483648
        %v2229 = vsel %vm2146, %v2228, %v2227
        %v2230 = vsub.s32 4, %v2206
        %v2231 = vsel %vm2146, %v2230, %v2206
        %v2232 = vsel %vm2145, %v1987, %v2229
        %v2233 = vsel %vm2145, 0, %v2231
        %v2234 = vcosq.f32.pop %v2232
        %v2235 = vsinq.f32.pop %v2232
        %vm2236 = vweird.f32 %v1987
        %v2237 = vadd.s32 %v2233, 3
        %v2238 = vand.u32 %v2237, 3
        %vm2239 = vcmp.lt.s32.totalorder %v2238, 2
        %vm2240 = vcmp.eq.s32.totalorder %v2238, 0
        %v2241 = vxor.u32 %v2235, 2147483648
        %v2242 = vsel %vm2240, %v2234, %v2241
        %vm2243 = vcmp.eq.s32.totalorder %v2238, 2
        %v2244 = vxor.u32 %v2234, 2147483648
        %v2245 = vsel %vm2243, %v2244, %v2235
        %v2246 = vsel %vm2239, %v2242, %v2245
        %v2247 = vsel %vm2236, nan, %v2246
        %v2248 = vand.u32 2147483647, %v1992
        %vm2249 = vcmp.le.f32.partialorder %v2248, 0.7853982
        %vm2250 = vcmp.lt.s32.totalorder %v1992, 0
        %v2251 = vand.u32 %v1992, 2139095040
        %v2252 = vshrl.u32 %v2251, 23
        %v2253 = vsub.s32 %v2252, 127
        %v2254 = vand.u32 2147483647, %v1992
        %v2255 = vand.u32 %v2254, 8388607
        %v2256 = vor.u32 %v2255, 8388608
        %v2257 = vsub.s32 0, %v2256
        %v2258 = vadd.s32 %v2253, 1
        %vm2259 = vcmp.gt.s32.totalorder %v2258, 0
        %v2260 = vsel %vm2259, %v2258, 0
        %v2261 = vshrl.u32 %v2260, 5
        %v2262 = vand.u32 %v2260, 31
        %v2263 = vsub.s32 32, %v2262
        %v2264 = vshrl.u32 683565275, %v2263
        %v2265 = vshll.u32 683565275, %v2262
        %v2266 = vshrl.u32 2475754826, %v2263
        %v2267 = vor.u32 %v2265, %v2266
        %v2268 = vshll.u32 2475754826, %v2262
        %v2269 = vshrl.u32 2131351028, %v2263
        %v2270 = vor.u32 %v2268, %v2269
        %v2271 = vshll.u32 2131351028, %v2262
        %v2272 = vshrl.u32 2102212464, %v2263
        %v2273 = vor.u32 %v2271, %v2272
        %v2274 = vshll.u32 2102212464, %v2262
        %v2275 = vshrl.u32 920167782, %v2263
        %v2276 = vor.u32 %v2274, %v2275
        %v2277 = vshll.u32 920167782, %v2262
        %v2278 = vshrl.u32 1326507024, %v2263
        %v2279 = vor.u32 %v2277, %v2278
        %vm2280 = vcmp.lt.s32.totalorder %v2261, 1
        %vm2281 = vcmp.lt.s32.totalorder %v2261, 2
        %vm2282 = vcmp.lt.s32.totalorder %v2261, 3
        %vm2283 = vcmp.lt.s32.totalorder %v2261, 4
        %v2284 = vsel %vm2280, %v2264, %v2267
        %v2285 = vsel %vm2283, %v2273, 2102212464
        %v2286 = vsel %vm2282, %v2270, %v2285
        %v2287 = vsel %vm2281, %v2284, %v2286
        %v2288 = vsel %vm2280, %v2267, %v2270
        %v2289 = vsel %vm2283, %v2276, 920167782
        %v2290 = vsel %vm2282, %v2273, %v2289
        %v2291 = vsel %vm2281, %v2288, %v2290
        %v2292 = vsel %vm2280, %v2270, %v2273
        %v2293 = vsel %vm2283, %v2279, 1326507024
        %v2294 = vsel %vm2282, %v2276, %v2293
        %v2295 = vsel %vm2281, %v2292, %v2294
        %v2296 = vshll.u32 %v2256, 8
        %v2297 = vmul.u32.u64.compose %v2296, %v2295
        %v2298 = vextract.low.u32 %v2297
        %v2299 = vextract.high.u32 %v2297
        %v2300 = vmul.u32.u64.compose %v2296, %v2291
        %v2301 = vextract.low.u32 %v2300
        %v2302 = vextract.high.u32 %v2300
        %v2303 = vmul.u32 %v2296, %v2287
        %v2304 = vadd.s32 %v2299, %v2301
        %vm2305 = vc.u32 %v2299, %v2301
        %v2306 = vadd.s32 %v2302, 1
        %v2307 = vsel %vm2305, %v2306, %v2302
        %v2308 = vadd.s32 %v2303, %v2307
        %v2309 = vadd.s32 %v2308, 536870912
        %v2310 = vshrl.u32 %v2309, 30
        %v2311 = vshll.u32 %v2310, 30
        %v2312 = vsub.s32 %v2308, %v2311
        %vm2313 = vcmp.lt.s32.totalorder %v2312, 0
        %v2314 = vsub.s32 0, %v2312
        %v2315 = vsel %vm2313, %v2314, %v2312
        %v2316 = vclz %v2315
        %v2317 = vsub.s32 %v2316, 2
        %vm2318 = vcmp.gt.s32.totalorder 0, %v2317
        %v2319 = vsel %vm2318, 0, %v2317
        %v2320 = vsub.s32 32, %v2319
        %v2321 = vshll.u32 %v2312, %v2319
        %v2322 = vshrl.u32 %v2304, %v2320
        %v2323 = vor.u32 %v2321, %v2322
        %v2324 = vsub.s32 4294967266, %v2319
        %v2325 = vadd.s32 %v2324, 127
        %v2326 = vshll.u32 %v2325, 23
        %v2327 = vor.u32 4788187, %v2326
        %v2328 = vand.u32 2147483647, %v2327
        %v2330 = vcvt.s32.f32 %v2323
        %v2331 = vmul.f32 %v2330, %v2328
        %v2332 = vxor.u32 %v2331, 2147483648
        %v2333 = vsel %vm2250, %v2332, %v2331
        %v2334 = vsub.s32 4, %v2310
        %v2335 = vsel %vm2250, %v2334, %v2310
        %v2336 = vsel %vm2249, %v1992, %v2333
        %v2337 = vsel %vm2249, 0, %v2335
        %v2338 = vcosq.f32.pop %v2336
        %v2339 = vsinq.f32.pop %v2336
        %vm2340 = vweird.f32 %v1992
        %v2341 = vadd.s32 %v2337, 3
        %v2342 = vand.u32 %v2341, 3
        %vm2343 = vcmp.lt.s32.totalorder %v2342, 2
        %vm2344 = vcmp.eq.s32.totalorder %v2342, 0
        %v2345 = vxor.u32 %v2339, 2147483648
        %v2346 = vsel %vm2344, %v2338, %v2345
        %vm2347 = vcmp.eq.s32.totalorder %v2342, 2
        %v2348 = vxor.u32 %v2338, 2147483648
        %v2349 = vsel %vm2347, %v2348, %v2339
        %v2350 = vsel %vm2343, %v2346, %v2349
        %v2351 = vsel %vm2340, nan, %v2350
        %v2352 = vand.u32 2147483647, %v1997
        %vm2353 = vcmp.le.f32.partialorder %v2352, 0.7853982
        %vm2354 = vcmp.lt.s32.totalorder %v1997, 0
        %v2355 = vand.u32 %v1997, 2139095040
        %v2356 = vshrl.u32 %v2355, 23
        %v2357 = vsub.s32 %v2356, 127
        %v2358 = vand.u32 2147483647, %v1997
        %v2359 = vand.u32 %v2358, 8388607
        %v2360 = vor.u32 %v2359, 8388608
        %v2361 = vsub.s32 0, %v2360
        %v2362 = vadd.s32 %v2357, 1
        %vm2363 = vcmp.gt.s32.totalorder %v2362, 0
        %v2364 = vsel %vm2363, %v2362, 0
        %v2365 = vshrl.u32 %v2364, 5
        %v2366 = vand.u32 %v2364, 31
        %v2367 = vsub.s32 32, %v2366
        %v2368 = vshrl.u32 683565275, %v2367
        %v2369 = vshll.u32 683565275, %v2366
        %v2370 = vshrl.u32 2475754826, %v2367
        %v2371 = vor.u32 %v2369, %v2370
        %v2372 = vshll.u32 2475754826, %v2366
        %v2373 = vshrl.u32 2131351028, %v2367
        %v2374 = vor.u32 %v2372, %v2373
        %v2375 = vshll.u32 2131351028, %v2366
        %v2376 = vshrl.u32 2102212464, %v2367
        %v2377 = vor.u32 %v2375, %v2376
        %v2378 = vshll.u32 2102212464, %v2366
        %v2379 = vshrl.u32 920167782, %v2367
        %v2380 = vor.u32 %v2378, %v2379
        %v2381 = vshll.u32 920167782, %v2366
        %v2382 = vshrl.u32 1326507024, %v2367
        %v2383 = vor.u32 %v2381, %v2382
        %vm2384 = vcmp.lt.s32.totalorder %v2365, 1
        %vm2385 = vcmp.lt.s32.totalorder %v2365, 2
        %vm2386 = vcmp.lt.s32.totalorder %v2365, 3
        %vm2387 = vcmp.lt.s32.totalorder %v2365, 4
        %v2388 = vsel %vm2384, %v2368, %v2371
        %v2389 = vsel %vm2387, %v2377, 2102212464
        %v2390 = vsel %vm2386, %v2374, %v2389
        %v2391 = vsel %vm2385, %v2388, %v2390
        %v2392 = vsel %vm2384, %v2371, %v2374
        %v2393 = vsel %vm2387, %v2380, 920167782
        %v2394 = vsel %vm2386, %v2377, %v2393
        %v2395 = vsel %vm2385, %v2392, %v2394
        %v2396 = vsel %vm2384, %v2374, %v2377
        %v2397 = vsel %vm2387, %v2383, 1326507024
        %v2398 = vsel %vm2386, %v2380, %v2397
        %v2399 = vsel %vm2385, %v2396, %v2398
        %v2400 = vshll.u32 %v2360, 8
        %v2401 = vmul.u32.u64.compose %v2400, %v2399
        %v2402 = vextract.low.u32 %v2401
        %v2403 = vextract.high.u32 %v2401
        %v2404 = vmul.u32.u64.compose %v2400, %v2395
        %v2405 = vextract.low.u32 %v2404
        %v2406 = vextract.high.u32 %v2404
        %v2407 = vmul.u32 %v2400, %v2391
        %v2408 = vadd.s32 %v2403, %v2405
        %vm2409 = vc.u32 %v2403, %v2405
        %v2410 = vadd.s32 %v2406, 1
        %v2411 = vsel %vm2409, %v2410, %v2406
        %v2412 = vadd.s32 %v2407, %v2411
        %v2413 = vadd.s32 %v2412, 536870912
        %v2414 = vshrl.u32 %v2413, 30
        %v2415 = vshll.u32 %v2414, 30
        %v2416 = vsub.s32 %v2412, %v2415
        %vm2417 = vcmp.lt.s32.totalorder %v2416, 0
        %v2418 = vsub.s32 0, %v2416
        %v2419 = vsel %vm2417, %v2418, %v2416
        %v2420 = vclz %v2419
        %v2421 = vsub.s32 %v2420, 2
        %vm2422 = vcmp.gt.s32.totalorder 0, %v2421
        %v2423 = vsel %vm2422, 0, %v2421
        %v2424 = vsub.s32 32, %v2423
        %v2425 = vshll.u32 %v2416, %v2423
        %v2426 = vshrl.u32 %v2408, %v2424
        %v2427 = vor.u32 %v2425, %v2426
        %v2428 = vsub.s32 4294967266, %v2423
        %v2429 = vadd.s32 %v2428, 127
        %v2430 = vshll.u32 %v2429, 23
        %v2431 = vor.u32 4788187, %v2430
        %v2432 = vand.u32 2147483647, %v2431
        %v2434 = vcvt.s32.f32 %v2427
        %v2435 = vmul.f32 %v2434, %v2432
        %v2436 = vxor.u32 %v2435, 2147483648
        %v2437 = vsel %vm2354, %v2436, %v2435
        %v2438 = vsub.s32 4, %v2414
        %v2439 = vsel %vm2354, %v2438, %v2414
        %v2440 = vsel %vm2353, %v1997, %v2437
        %v2441 = vsel %vm2353, 0, %v2439
        %v2442 = vcosq.f32.pop %v2440
        %v2443 = vsinq.f32.pop %v2440
        %vm2444 = vweird.f32 %v1997
        %v2445 = vadd.s32 %v2441, 3
        %v2446 = vand.u32 %v2445, 3
        %vm2447 = vcmp.lt.s32.totalorder %v2446, 2
        %vm2448 = vcmp.eq.s32.totalorder %v2446, 0
        %v2449 = vxor.u32 %v2443, 2147483648
        %v2450 = vsel %vm2448, %v2442, %v2449
        %vm2451 = vcmp.eq.s32.totalorder %v2446, 2
        %v2452 = vxor.u32 %v2442, 2147483648
        %v2453 = vsel %vm2451, %v2452, %v2443
        %v2454 = vsel %vm2447, %v2450, %v2453
        %v2455 = vsel %vm2444, nan, %v2454
        %v2456 = vand.u32 2147483647, %v2002
        %vm2457 = vcmp.le.f32.partialorder %v2456, 0.7853982
        %vm2458 = vcmp.lt.s32.totalorder %v2002, 0
        %v2459 = vand.u32 %v2002, 2139095040
        %v2460 = vshrl.u32 %v2459, 23
        %v2461 = vsub.s32 %v2460, 127
        %v2462 = vand.u32 2147483647, %v2002
        %v2463 = vand.u32 %v2462, 8388607
        %v2464 = vor.u32 %v2463, 8388608
        %v2465 = vsub.s32 0, %v2464
        %v2466 = vadd.s32 %v2461, 1
        %vm2467 = vcmp.gt.s32.totalorder %v2466, 0
        %v2468 = vsel %vm2467, %v2466, 0
        %v2469 = vshrl.u32 %v2468, 5
        %v2470 = vand.u32 %v2468, 31
        %v2471 = vsub.s32 32, %v2470
        %v2472 = vshrl.u32 683565275, %v2471
        %v2473 = vshll.u32 683565275, %v2470
        %v2474 = vshrl.u32 2475754826, %v2471
        %v2475 = vor.u32 %v2473, %v2474
        %v2476 = vshll.u32 2475754826, %v2470
        %v2477 = vshrl.u32 2131351028, %v2471
        %v2478 = vor.u32 %v2476, %v2477
        %v2479 = vshll.u32 2131351028, %v2470
        %v2480 = vshrl.u32 2102212464, %v2471
        %v2481 = vor.u32 %v2479, %v2480
        %v2482 = vshll.u32 2102212464, %v2470
        %v2483 = vshrl.u32 920167782, %v2471
        %v2484 = vor.u32 %v2482, %v2483
        %v2485 = vshll.u32 920167782, %v2470
        %v2486 = vshrl.u32 1326507024, %v2471
        %v2487 = vor.u32 %v2485, %v2486
        %vm2488 = vcmp.lt.s32.totalorder %v2469, 1
        %vm2489 = vcmp.lt.s32.totalorder %v2469, 2
        %vm2490 = vcmp.lt.s32.totalorder %v2469, 3
        %vm2491 = vcmp.lt.s32.totalorder %v2469, 4
        %v2492 = vsel %vm2488, %v2472, %v2475
        %v2493 = vsel %vm2491, %v2481, 2102212464
        %v2494 = vsel %vm2490, %v2478, %v2493
        %v2495 = vsel %vm2489, %v2492, %v2494
        %v2496 = vsel %vm2488, %v2475, %v2478
        %v2497 = vsel %vm2491, %v2484, 920167782
        %v2498 = vsel %vm2490, %v2481, %v2497
        %v2499 = vsel %vm2489, %v2496, %v2498
        %v2500 = vsel %vm2488, %v2478, %v2481
        %v2501 = vsel %vm2491, %v2487, 1326507024
        %v2502 = vsel %vm2490, %v2484, %v2501
        %v2503 = vsel %vm2489, %v2500, %v2502
        %v2504 = vshll.u32 %v2464, 8
        %v2505 = vmul.u32.u64.compose %v2504, %v2503
        %v2506 = vextract.low.u32 %v2505
        %v2507 = vextract.high.u32 %v2505
        %v2508 = vmul.u32.u64.compose %v2504, %v2499
        %v2509 = vextract.low.u32 %v2508
        %v2510 = vextract.high.u32 %v2508
        %v2511 = vmul.u32 %v2504, %v2495
        %v2512 = vadd.s32 %v2507, %v2509
        %vm2513 = vc.u32 %v2507, %v2509
        %v2514 = vadd.s32 %v2510, 1
        %v2515 = vsel %vm2513, %v2514, %v2510
        %v2516 = vadd.s32 %v2511, %v2515
        %v2517 = vadd.s32 %v2516, 536870912
        %v2518 = vshrl.u32 %v2517, 30
        %v2519 = vshll.u32 %v2518, 30
        %v2520 = vsub.s32 %v2516, %v2519
        %vm2521 = vcmp.lt.s32.totalorder %v2520, 0
        %v2522 = vsub.s32 0, %v2520
        %v2523 = vsel %vm2521, %v2522, %v2520
        %v2524 = vclz %v2523
        %v2525 = vsub.s32 %v2524, 2
        %vm2526 = vcmp.gt.s32.totalorder 0, %v2525
        %v2527 = vsel %vm2526, 0, %v2525
        %v2528 = vsub.s32 32, %v2527
        %v2529 = vshll.u32 %v2520, %v2527
        %v2530 = vshrl.u32 %v2512, %v2528
        %v2531 = vor.u32 %v2529, %v2530
        %v2532 = vsub.s32 4294967266, %v2527
        %v2533 = vadd.s32 %v2532, 127
        %v2534 = vshll.u32 %v2533, 23
        %v2535 = vor.u32 4788187, %v2534
        %v2536 = vand.u32 2147483647, %v2535
        %v2538 = vcvt.s32.f32 %v2531
        %v2539 = vmul.f32 %v2538, %v2536
        %v2540 = vxor.u32 %v2539, 2147483648
        %v2541 = vsel %vm2458, %v2540, %v2539
        %v2542 = vsub.s32 4, %v2518
        %v2543 = vsel %vm2458, %v2542, %v2518
        %v2544 = vsel %vm2457, %v2002, %v2541
        %v2545 = vsel %vm2457, 0, %v2543
        %v2546 = vcosq.f32.pop %v2544
        %v2547 = vsinq.f32.pop %v2544
        %vm2548 = vweird.f32 %v2002
        %v2549 = vadd.s32 %v2545, 3
        %v2550 = vand.u32 %v2549, 3
        %vm2551 = vcmp.lt.s32.totalorder %v2550, 2
        %vm2552 = vcmp.eq.s32.totalorder %v2550, 0
        %v2553 = vxor.u32 %v2547, 2147483648
        %v2554 = vsel %vm2552, %v2546, %v2553
        %vm2555 = vcmp.eq.s32.totalorder %v2550, 2
        %v2556 = vxor.u32 %v2546, 2147483648
        %v2557 = vsel %vm2555, %v2556, %v2547
        %v2558 = vsel %vm2551, %v2554, %v2557
        %v2559 = vsel %vm2548, nan, %v2558
        %v2560 = vand.u32 2147483647, %v2007
        %vm2561 = vcmp.le.f32.partialorder %v2560, 0.7853982
        %vm2562 = vcmp.lt.s32.totalorder %v2007, 0
        %v2563 = vand.u32 %v2007, 2139095040
        %v2564 = vshrl.u32 %v2563, 23
        %v2565 = vsub.s32 %v2564, 127
        %v2566 = vand.u32 2147483647, %v2007
        %v2567 = vand.u32 %v2566, 8388607
        %v2568 = vor.u32 %v2567, 8388608
        %v2569 = vsub.s32 0, %v2568
        %v2570 = vadd.s32 %v2565, 1
        %vm2571 = vcmp.gt.s32.totalorder %v2570, 0
        %v2572 = vsel %vm2571, %v2570, 0
        %v2573 = vshrl.u32 %v2572, 5
        %v2574 = vand.u32 %v2572, 31
        %v2575 = vsub.s32 32, %v2574
        %v2576 = vshrl.u32 683565275, %v2575
        %v2577 = vshll.u32 683565275, %v2574
        %v2578 = vshrl.u32 2475754826, %v2575
        %v2579 = vor.u32 %v2577, %v2578
        %v2580 = vshll.u32 2475754826, %v2574
        %v2581 = vshrl.u32 2131351028, %v2575
        %v2582 = vor.u32 %v2580, %v2581
        %v2583 = vshll.u32 2131351028, %v2574
        %v2584 = vshrl.u32 2102212464, %v2575
        %v2585 = vor.u32 %v2583, %v2584
        %v2586 = vshll.u32 2102212464, %v2574
        %v2587 = vshrl.u32 920167782, %v2575
        %v2588 = vor.u32 %v2586, %v2587
        %v2589 = vshll.u32 920167782, %v2574
        %v2590 = vshrl.u32 1326507024, %v2575
        %v2591 = vor.u32 %v2589, %v2590
        %vm2592 = vcmp.lt.s32.totalorder %v2573, 1
        %vm2593 = vcmp.lt.s32.totalorder %v2573, 2
        %vm2594 = vcmp.lt.s32.totalorder %v2573, 3
        %vm2595 = vcmp.lt.s32.totalorder %v2573, 4
        %v2596 = vsel %vm2592, %v2576, %v2579
        %v2597 = vsel %vm2595, %v2585, 2102212464
        %v2598 = vsel %vm2594, %v2582, %v2597
        %v2599 = vsel %vm2593, %v2596, %v2598
        %v2600 = vsel %vm2592, %v2579, %v2582
        %v2601 = vsel %vm2595, %v2588, 920167782
        %v2602 = vsel %vm2594, %v2585, %v2601
        %v2603 = vsel %vm2593, %v2600, %v2602
        %v2604 = vsel %vm2592, %v2582, %v2585
        %v2605 = vsel %vm2595, %v2591, 1326507024
        %v2606 = vsel %vm2594, %v2588, %v2605
        %v2607 = vsel %vm2593, %v2604, %v2606
        %v2608 = vshll.u32 %v2568, 8
        %v2609 = vmul.u32.u64.compose %v2608, %v2607
        %v2610 = vextract.low.u32 %v2609
        %v2611 = vextract.high.u32 %v2609
        %v2612 = vmul.u32.u64.compose %v2608, %v2603
        %v2613 = vextract.low.u32 %v2612
        %v2614 = vextract.high.u32 %v2612
        %v2615 = vmul.u32 %v2608, %v2599
        %v2616 = vadd.s32 %v2611, %v2613
        %vm2617 = vc.u32 %v2611, %v2613
        %v2618 = vadd.s32 %v2614, 1
        %v2619 = vsel %vm2617, %v2618, %v2614
        %v2620 = vadd.s32 %v2615, %v2619
        %v2621 = vadd.s32 %v2620, 536870912
        %v2622 = vshrl.u32 %v2621, 30
        %v2623 = vshll.u32 %v2622, 30
        %v2624 = vsub.s32 %v2620, %v2623
        %vm2625 = vcmp.lt.s32.totalorder %v2624, 0
        %v2626 = vsub.s32 0, %v2624
        %v2627 = vsel %vm2625, %v2626, %v2624
        %v2628 = vclz %v2627
        %v2629 = vsub.s32 %v2628, 2
        %vm2630 = vcmp.gt.s32.totalorder 0, %v2629
        %v2631 = vsel %vm2630, 0, %v2629
        %v2632 = vsub.s32 32, %v2631
        %v2633 = vshll.u32 %v2624, %v2631
        %v2634 = vshrl.u32 %v2616, %v2632
        %v2635 = vor.u32 %v2633, %v2634
        %v2636 = vsub.s32 4294967266, %v2631
        %v2637 = vadd.s32 %v2636, 127
        %v2638 = vshll.u32 %v2637, 23
        %v2639 = vor.u32 4788187, %v2638
        %v2640 = vand.u32 2147483647, %v2639
        %v2642 = vcvt.s32.f32 %v2635
        %v2643 = vmul.f32 %v2642, %v2640
        %v2644 = vxor.u32 %v2643, 2147483648
        %v2645 = vsel %vm2562, %v2644, %v2643
        %v2646 = vsub.s32 4, %v2622
        %v2647 = vsel %vm2562, %v2646, %v2622
        %v2648 = vsel %vm2561, %v2007, %v2645
        %v2649 = vsel %vm2561, 0, %v2647
        %v2650 = vcosq.f32.pop %v2648
        %v2651 = vsinq.f32.pop %v2648
        %vm2652 = vweird.f32 %v2007
        %v2653 = vadd.s32 %v2649, 3
        %v2654 = vand.u32 %v2653, 3
        %vm2655 = vcmp.lt.s32.totalorder %v2654, 2
        %vm2656 = vcmp.eq.s32.totalorder %v2654, 0
        %v2657 = vxor.u32 %v2651, 2147483648
        %v2658 = vsel %vm2656, %v2650, %v2657
        %vm2659 = vcmp.eq.s32.totalorder %v2654, 2
        %v2660 = vxor.u32 %v2650, 2147483648
        %v2661 = vsel %vm2659, %v2660, %v2651
        %v2662 = vsel %vm2655, %v2658, %v2661
        %v2663 = vsel %vm2652, nan, %v2662
        %v2664 = vand.u32 2147483647, %v2012
        %vm2665 = vcmp.le.f32.partialorder %v2664, 0.7853982
        %vm2666 = vcmp.lt.s32.totalorder %v2012, 0
        %v2667 = vand.u32 %v2012, 2139095040
        %v2668 = vshrl.u32 %v2667, 23
        %v2669 = vsub.s32 %v2668, 127
        %v2670 = vand.u32 2147483647, %v2012
        %v2671 = vand.u32 %v2670, 8388607
        %v2672 = vor.u32 %v2671, 8388608
        %v2673 = vsub.s32 0, %v2672
        %v2674 = vadd.s32 %v2669, 1
        %vm2675 = vcmp.gt.s32.totalorder %v2674, 0
        %v2676 = vsel %vm2675, %v2674, 0
        %v2677 = vshrl.u32 %v2676, 5
        %v2678 = vand.u32 %v2676, 31
        %v2679 = vsub.s32 32, %v2678
        %v2680 = vshrl.u32 683565275, %v2679
        %v2681 = vshll.u32 683565275, %v2678
        %v2682 = vshrl.u32 2475754826, %v2679
        %v2683 = vor.u32 %v2681, %v2682
        %v2684 = vshll.u32 2475754826, %v2678
        %v2685 = vshrl.u32 2131351028, %v2679
        %v2686 = vor.u32 %v2684, %v2685
        %v2687 = vshll.u32 2131351028, %v2678
        %v2688 = vshrl.u32 2102212464, %v2679
        %v2689 = vor.u32 %v2687, %v2688
        %v2690 = vshll.u32 2102212464, %v2678
        %v2691 = vshrl.u32 920167782, %v2679
        %v2692 = vor.u32 %v2690, %v2691
        %v2693 = vshll.u32 920167782, %v2678
        %v2694 = vshrl.u32 1326507024, %v2679
        %v2695 = vor.u32 %v2693, %v2694
        %vm2696 = vcmp.lt.s32.totalorder %v2677, 1
        %vm2697 = vcmp.lt.s32.totalorder %v2677, 2
        %vm2698 = vcmp.lt.s32.totalorder %v2677, 3
        %vm2699 = vcmp.lt.s32.totalorder %v2677, 4
        %v2700 = vsel %vm2696, %v2680, %v2683
        %v2701 = vsel %vm2699, %v2689, 2102212464
        %v2702 = vsel %vm2698, %v2686, %v2701
        %v2703 = vsel %vm2697, %v2700, %v2702
        %v2704 = vsel %vm2696, %v2683, %v2686
        %v2705 = vsel %vm2699, %v2692, 920167782
        %v2706 = vsel %vm2698, %v2689, %v2705
        %v2707 = vsel %vm2697, %v2704, %v2706
        %v2708 = vsel %vm2696, %v2686, %v2689
        %v2709 = vsel %vm2699, %v2695, 1326507024
        %v2710 = vsel %vm2698, %v2692, %v2709
        %v2711 = vsel %vm2697, %v2708, %v2710
        %v2712 = vshll.u32 %v2672, 8
        %v2713 = vmul.u32.u64.compose %v2712, %v2711
        %v2714 = vextract.low.u32 %v2713
        %v2715 = vextract.high.u32 %v2713
        %v2716 = vmul.u32.u64.compose %v2712, %v2707
        %v2717 = vextract.low.u32 %v2716
        %v2718 = vextract.high.u32 %v2716
        %v2719 = vmul.u32 %v2712, %v2703
        %v2720 = vadd.s32 %v2715, %v2717
        %vm2721 = vc.u32 %v2715, %v2717
        %v2722 = vadd.s32 %v2718, 1
        %v2723 = vsel %vm2721, %v2722, %v2718
        %v2724 = vadd.s32 %v2719, %v2723
        %v2725 = vadd.s32 %v2724, 536870912
        %v2726 = vshrl.u32 %v2725, 30
        %v2727 = vshll.u32 %v2726, 30
        %v2728 = vsub.s32 %v2724, %v2727
        %vm2729 = vcmp.lt.s32.totalorder %v2728, 0
        %v2730 = vsub.s32 0, %v2728
        %v2731 = vsel %vm2729, %v2730, %v2728
        %v2732 = vclz %v2731
        %v2733 = vsub.s32 %v2732, 2
        %vm2734 = vcmp.gt.s32.totalorder 0, %v2733
        %v2735 = vsel %vm2734, 0, %v2733
        %v2736 = vsub.s32 32, %v2735
        %v2737 = vshll.u32 %v2728, %v2735
        %v2738 = vshrl.u32 %v2720, %v2736
        %v2739 = vor.u32 %v2737, %v2738
        %v2740 = vsub.s32 4294967266, %v2735
        %v2741 = vadd.s32 %v2740, 127
        %v2742 = vshll.u32 %v2741, 23
        %v2743 = vor.u32 4788187, %v2742
        %v2744 = vand.u32 2147483647, %v2743
        %v2746 = vcvt.s32.f32 %v2739
        %v2747 = vmul.f32 %v2746, %v2744
        %v2748 = vxor.u32 %v2747, 2147483648
        %v2749 = vsel %vm2666, %v2748, %v2747
        %v2750 = vsub.s32 4, %v2726
        %v2751 = vsel %vm2666, %v2750, %v2726
        %v2752 = vsel %vm2665, %v2012, %v2749
        %v2753 = vsel %vm2665, 0, %v2751
        %v2754 = vcosq.f32.pop %v2752
        %v2755 = vsinq.f32.pop %v2752
        %vm2756 = vweird.f32 %v2012
        %v2757 = vadd.s32 %v2753, 3
        %v2758 = vand.u32 %v2757, 3
        %vm2759 = vcmp.lt.s32.totalorder %v2758, 2
        %vm2760 = vcmp.eq.s32.totalorder %v2758, 0
        %v2761 = vxor.u32 %v2755, 2147483648
        %v2762 = vsel %vm2760, %v2754, %v2761
        %vm2763 = vcmp.eq.s32.totalorder %v2758, 2
        %v2764 = vxor.u32 %v2754, 2147483648
        %v2765 = vsel %vm2763, %v2764, %v2755
        %v2766 = vsel %vm2759, %v2762, %v2765
        %v2767 = vsel %vm2756, nan, %v2766
        %v2768 = vand.u32 2147483647, %v2017
        %vm2769 = vcmp.le.f32.partialorder %v2768, 0.7853982
        %vm2770 = vcmp.lt.s32.totalorder %v2017, 0
        %v2771 = vand.u32 %v2017, 2139095040
        %v2772 = vshrl.u32 %v2771, 23
        %v2773 = vsub.s32 %v2772, 127
        %v2774 = vand.u32 2147483647, %v2017
        %v2775 = vand.u32 %v2774, 8388607
        %v2776 = vor.u32 %v2775, 8388608
        %v2777 = vsub.s32 0, %v2776
        %v2778 = vadd.s32 %v2773, 1
        %vm2779 = vcmp.gt.s32.totalorder %v2778, 0
        %v2780 = vsel %vm2779, %v2778, 0
        %v2781 = vshrl.u32 %v2780, 5
        %v2782 = vand.u32 %v2780, 31
        %v2783 = vsub.s32 32, %v2782
        %v2784 = vshrl.u32 683565275, %v2783
        %v2785 = vshll.u32 683565275, %v2782
        %v2786 = vshrl.u32 2475754826, %v2783
        %v2787 = vor.u32 %v2785, %v2786
        %v2788 = vshll.u32 2475754826, %v2782
        %v2789 = vshrl.u32 2131351028, %v2783
        %v2790 = vor.u32 %v2788, %v2789
        %v2791 = vshll.u32 2131351028, %v2782
        %v2792 = vshrl.u32 2102212464, %v2783
        %v2793 = vor.u32 %v2791, %v2792
        %v2794 = vshll.u32 2102212464, %v2782
        %v2795 = vshrl.u32 920167782, %v2783
        %v2796 = vor.u32 %v2794, %v2795
        %v2797 = vshll.u32 920167782, %v2782
        %v2798 = vshrl.u32 1326507024, %v2783
        %v2799 = vor.u32 %v2797, %v2798
        %vm2800 = vcmp.lt.s32.totalorder %v2781, 1
        %vm2801 = vcmp.lt.s32.totalorder %v2781, 2
        %vm2802 = vcmp.lt.s32.totalorder %v2781, 3
        %vm2803 = vcmp.lt.s32.totalorder %v2781, 4
        %v2804 = vsel %vm2800, %v2784, %v2787
        %v2805 = vsel %vm2803, %v2793, 2102212464
        %v2806 = vsel %vm2802, %v2790, %v2805
        %v2807 = vsel %vm2801, %v2804, %v2806
        %v2808 = vsel %vm2800, %v2787, %v2790
        %v2809 = vsel %vm2803, %v2796, 920167782
        %v2810 = vsel %vm2802, %v2793, %v2809
        %v2811 = vsel %vm2801, %v2808, %v2810
        %v2812 = vsel %vm2800, %v2790, %v2793
        %v2813 = vsel %vm2803, %v2799, 1326507024
        %v2814 = vsel %vm2802, %v2796, %v2813
        %v2815 = vsel %vm2801, %v2812, %v2814
        %v2816 = vshll.u32 %v2776, 8
        %v2817 = vmul.u32.u64.compose %v2816, %v2815
        %v2818 = vextract.low.u32 %v2817
        %v2819 = vextract.high.u32 %v2817
        %v2820 = vmul.u32.u64.compose %v2816, %v2811
        %v2821 = vextract.low.u32 %v2820
        %v2822 = vextract.high.u32 %v2820
        %v2823 = vmul.u32 %v2816, %v2807
        %v2824 = vadd.s32 %v2819, %v2821
        %vm2825 = vc.u32 %v2819, %v2821
        %v2826 = vadd.s32 %v2822, 1
        %v2827 = vsel %vm2825, %v2826, %v2822
        %v2828 = vadd.s32 %v2823, %v2827
        %v2829 = vadd.s32 %v2828, 536870912
        %v2830 = vshrl.u32 %v2829, 30
        %v2831 = vshll.u32 %v2830, 30
        %v2832 = vsub.s32 %v2828, %v2831
        %vm2833 = vcmp.lt.s32.totalorder %v2832, 0
        %v2834 = vsub.s32 0, %v2832
        %v2835 = vsel %vm2833, %v2834, %v2832
        %v2836 = vclz %v2835
        %v2837 = vsub.s32 %v2836, 2
        %vm2838 = vcmp.gt.s32.totalorder 0, %v2837
        %v2839 = vsel %vm2838, 0, %v2837
        %v2840 = vsub.s32 32, %v2839
        %v2841 = vshll.u32 %v2832, %v2839
        %v2842 = vshrl.u32 %v2824, %v2840
        %v2843 = vor.u32 %v2841, %v2842
        %v2844 = vsub.s32 4294967266, %v2839
        %v2845 = vadd.s32 %v2844, 127
        %v2846 = vshll.u32 %v2845, 23
        %v2847 = vor.u32 4788187, %v2846
        %v2848 = vand.u32 2147483647, %v2847
        %v2850 = vcvt.s32.f32 %v2843
        %v2851 = vmul.f32 %v2850, %v2848
        %v2852 = vxor.u32 %v2851, 2147483648
        %v2853 = vsel %vm2770, %v2852, %v2851
        %v2854 = vsub.s32 4, %v2830
        %v2855 = vsel %vm2770, %v2854, %v2830
        %v2856 = vsel %vm2769, %v2017, %v2853
        %v2857 = vsel %vm2769, 0, %v2855
        %v2858 = vcosq.f32.pop %v2856
        %v2859 = vsinq.f32.pop %v2856
        %vm2860 = vweird.f32 %v2017
        %v2861 = vadd.s32 %v2857, 3
        %v2862 = vand.u32 %v2861, 3
        %vm2863 = vcmp.lt.s32.totalorder %v2862, 2
        %vm2864 = vcmp.eq.s32.totalorder %v2862, 0
        %v2865 = vxor.u32 %v2859, 2147483648
        %v2866 = vsel %vm2864, %v2858, %v2865
        %vm2867 = vcmp.eq.s32.totalorder %v2862, 2
        %v2868 = vxor.u32 %v2858, 2147483648
        %v2869 = vsel %vm2867, %v2868, %v2859
        %v2870 = vsel %vm2863, %v2866, %v2869
        %v2871 = vsel %vm2860, nan, %v2870
        %v2872 = vand.u32 2147483647, %v2022
        %vm2873 = vcmp.le.f32.partialorder %v2872, 0.7853982
        %vm2874 = vcmp.lt.s32.totalorder %v2022, 0
        %v2875 = vand.u32 %v2022, 2139095040
        %v2876 = vshrl.u32 %v2875, 23
        %v2877 = vsub.s32 %v2876, 127
        %v2878 = vand.u32 2147483647, %v2022
        %v2879 = vand.u32 %v2878, 8388607
        %v2880 = vor.u32 %v2879, 8388608
        %v2881 = vsub.s32 0, %v2880
        %v2882 = vadd.s32 %v2877, 1
        %vm2883 = vcmp.gt.s32.totalorder %v2882, 0
        %v2884 = vsel %vm2883, %v2882, 0
        %v2885 = vshrl.u32 %v2884, 5
        %v2886 = vand.u32 %v2884, 31
        %v2887 = vsub.s32 32, %v2886
        %v2888 = vshrl.u32 683565275, %v2887
        %v2889 = vshll.u32 683565275, %v2886
        %v2890 = vshrl.u32 2475754826, %v2887
        %v2891 = vor.u32 %v2889, %v2890
        %v2892 = vshll.u32 2475754826, %v2886
        %v2893 = vshrl.u32 2131351028, %v2887
        %v2894 = vor.u32 %v2892, %v2893
        %v2895 = vshll.u32 2131351028, %v2886
        %v2896 = vshrl.u32 2102212464, %v2887
        %v2897 = vor.u32 %v2895, %v2896
        %v2898 = vshll.u32 2102212464, %v2886
        %v2899 = vshrl.u32 920167782, %v2887
        %v2900 = vor.u32 %v2898, %v2899
        %v2901 = vshll.u32 920167782, %v2886
        %v2902 = vshrl.u32 1326507024, %v2887
        %v2903 = vor.u32 %v2901, %v2902
        %vm2904 = vcmp.lt.s32.totalorder %v2885, 1
        %vm2905 = vcmp.lt.s32.totalorder %v2885, 2
        %vm2906 = vcmp.lt.s32.totalorder %v2885, 3
        %vm2907 = vcmp.lt.s32.totalorder %v2885, 4
        %v2908 = vsel %vm2904, %v2888, %v2891
        %v2909 = vsel %vm2907, %v2897, 2102212464
        %v2910 = vsel %vm2906, %v2894, %v2909
        %v2911 = vsel %vm2905, %v2908, %v2910
        %v2912 = vsel %vm2904, %v2891, %v2894
        %v2913 = vsel %vm2907, %v2900, 920167782
        %v2914 = vsel %vm2906, %v2897, %v2913
        %v2915 = vsel %vm2905, %v2912, %v2914
        %v2916 = vsel %vm2904, %v2894, %v2897
        %v2917 = vsel %vm2907, %v2903, 1326507024
        %v2918 = vsel %vm2906, %v2900, %v2917
        %v2919 = vsel %vm2905, %v2916, %v2918
        %v2920 = vshll.u32 %v2880, 8
        %v2921 = vmul.u32.u64.compose %v2920, %v2919
        %v2922 = vextract.low.u32 %v2921
        %v2923 = vextract.high.u32 %v2921
        %v2924 = vmul.u32.u64.compose %v2920, %v2915
        %v2925 = vextract.low.u32 %v2924
        %v2926 = vextract.high.u32 %v2924
        %v2927 = vmul.u32 %v2920, %v2911
        %v2928 = vadd.s32 %v2923, %v2925
        %vm2929 = vc.u32 %v2923, %v2925
        %v2930 = vadd.s32 %v2926, 1
        %v2931 = vsel %vm2929, %v2930, %v2926
        %v2932 = vadd.s32 %v2927, %v2931
        %v2933 = vadd.s32 %v2932, 536870912
        %v2934 = vshrl.u32 %v2933, 30
        %v2935 = vshll.u32 %v2934, 30
        %v2936 = vsub.s32 %v2932, %v2935
        %vm2937 = vcmp.lt.s32.totalorder %v2936, 0
        %v2938 = vsub.s32 0, %v2936
        %v2939 = vsel %vm2937, %v2938, %v2936
        %v2940 = vclz %v2939
        %v2941 = vsub.s32 %v2940, 2
        %vm2942 = vcmp.gt.s32.totalorder 0, %v2941
        %v2943 = vsel %vm2942, 0, %v2941
        %v2944 = vsub.s32 32, %v2943
        %v2945 = vshll.u32 %v2936, %v2943
        %v2946 = vshrl.u32 %v2928, %v2944
        %v2947 = vor.u32 %v2945, %v2946
        %v2948 = vsub.s32 4294967266, %v2943
        %v2949 = vadd.s32 %v2948, 127
        %v2950 = vshll.u32 %v2949, 23
        %v2951 = vor.u32 4788187, %v2950
        %v2952 = vand.u32 2147483647, %v2951
        %v2954 = vcvt.s32.f32 %v2947
        %v2955 = vmul.f32 %v2954, %v2952
        %v2956 = vxor.u32 %v2955, 2147483648
        %v2957 = vsel %vm2874, %v2956, %v2955
        %v2958 = vsub.s32 4, %v2934
        %v2959 = vsel %vm2874, %v2958, %v2934
        %v2960 = vsel %vm2873, %v2022, %v2957
        %v2961 = vsel %vm2873, 0, %v2959
        %v2962 = vcosq.f32.pop %v2960
        %v2963 = vsinq.f32.pop %v2960
        %vm2964 = vweird.f32 %v2022
        %v2965 = vadd.s32 %v2961, 3
        %v2966 = vand.u32 %v2965, 3
        %vm2967 = vcmp.lt.s32.totalorder %v2966, 2
        %vm2968 = vcmp.eq.s32.totalorder %v2966, 0
        %v2969 = vxor.u32 %v2963, 2147483648
        %v2970 = vsel %vm2968, %v2962, %v2969
        %vm2971 = vcmp.eq.s32.totalorder %v2966, 2
        %v2972 = vxor.u32 %v2962, 2147483648
        %v2973 = vsel %vm2971, %v2972, %v2963
        %v2974 = vsel %vm2967, %v2970, %v2973
        %v2975 = vsel %vm2964, nan, %v2974
        %v2976 = vand.u32 2147483647, %v2027
        %vm2977 = vcmp.le.f32.partialorder %v2976, 0.7853982
        %vm2978 = vcmp.lt.s32.totalorder %v2027, 0
        %v2979 = vand.u32 %v2027, 2139095040
        %v2980 = vshrl.u32 %v2979, 23
        %v2981 = vsub.s32 %v2980, 127
        %v2982 = vand.u32 2147483647, %v2027
        %v2983 = vand.u32 %v2982, 8388607
        %v2984 = vor.u32 %v2983, 8388608
        %v2985 = vsub.s32 0, %v2984
        %v2986 = vadd.s32 %v2981, 1
        %vm2987 = vcmp.gt.s32.totalorder %v2986, 0
        %v2988 = vsel %vm2987, %v2986, 0
        %v2989 = vshrl.u32 %v2988, 5
        %v2990 = vand.u32 %v2988, 31
        %v2991 = vsub.s32 32, %v2990
        %v2992 = vshrl.u32 683565275, %v2991
        %v2993 = vshll.u32 683565275, %v2990
        %v2994 = vshrl.u32 2475754826, %v2991
        %v2995 = vor.u32 %v2993, %v2994
        %v2996 = vshll.u32 2475754826, %v2990
        %v2997 = vshrl.u32 2131351028, %v2991
        %v2998 = vor.u32 %v2996, %v2997
        %v2999 = vshll.u32 2131351028, %v2990
        %v3000 = vshrl.u32 2102212464, %v2991
        %v3001 = vor.u32 %v2999, %v3000
        %v3002 = vshll.u32 2102212464, %v2990
        %v3003 = vshrl.u32 920167782, %v2991
        %v3004 = vor.u32 %v3002, %v3003
        %v3005 = vshll.u32 920167782, %v2990
        %v3006 = vshrl.u32 1326507024, %v2991
        %v3007 = vor.u32 %v3005, %v3006
        %vm3008 = vcmp.lt.s32.totalorder %v2989, 1
        %vm3009 = vcmp.lt.s32.totalorder %v2989, 2
        %vm3010 = vcmp.lt.s32.totalorder %v2989, 3
        %vm3011 = vcmp.lt.s32.totalorder %v2989, 4
        %v3012 = vsel %vm3008, %v2992, %v2995
        %v3013 = vsel %vm3011, %v3001, 2102212464
        %v3014 = vsel %vm3010, %v2998, %v3013
        %v3015 = vsel %vm3009, %v3012, %v3014
        %v3016 = vsel %vm3008, %v2995, %v2998
        %v3017 = vsel %vm3011, %v3004, 920167782
        %v3018 = vsel %vm3010, %v3001, %v3017
        %v3019 = vsel %vm3009, %v3016, %v3018
        %v3020 = vsel %vm3008, %v2998, %v3001
        %v3021 = vsel %vm3011, %v3007, 1326507024
        %v3022 = vsel %vm3010, %v3004, %v3021
        %v3023 = vsel %vm3009, %v3020, %v3022
        %v3024 = vshll.u32 %v2984, 8
        %v3025 = vmul.u32.u64.compose %v3024, %v3023
        %v3026 = vextract.low.u32 %v3025
        %v3027 = vextract.high.u32 %v3025
        %v3028 = vmul.u32.u64.compose %v3024, %v3019
        %v3029 = vextract.low.u32 %v3028
        %v3030 = vextract.high.u32 %v3028
        %v3031 = vmul.u32 %v3024, %v3015
        %v3032 = vadd.s32 %v3027, %v3029
        %vm3033 = vc.u32 %v3027, %v3029
        %v3034 = vadd.s32 %v3030, 1
        %v3035 = vsel %vm3033, %v3034, %v3030
        %v3036 = vadd.s32 %v3031, %v3035
        %v3037 = vadd.s32 %v3036, 536870912
        %v3038 = vshrl.u32 %v3037, 30
        %v3039 = vshll.u32 %v3038, 30
        %v3040 = vsub.s32 %v3036, %v3039
        %vm3041 = vcmp.lt.s32.totalorder %v3040, 0
        %v3042 = vsub.s32 0, %v3040
        %v3043 = vsel %vm3041, %v3042, %v3040
        %v3044 = vclz %v3043
        %v3045 = vsub.s32 %v3044, 2
        %vm3046 = vcmp.gt.s32.totalorder 0, %v3045
        %v3047 = vsel %vm3046, 0, %v3045
        %v3048 = vsub.s32 32, %v3047
        %v3049 = vshll.u32 %v3040, %v3047
        %v3050 = vshrl.u32 %v3032, %v3048
        %v3051 = vor.u32 %v3049, %v3050
        %v3052 = vsub.s32 4294967266, %v3047
        %v3053 = vadd.s32 %v3052, 127
        %v3054 = vshll.u32 %v3053, 23
        %v3055 = vor.u32 4788187, %v3054
        %v3056 = vand.u32 2147483647, %v3055
        %v3058 = vcvt.s32.f32 %v3051
        %v3059 = vmul.f32 %v3058, %v3056
        %v3060 = vxor.u32 %v3059, 2147483648
        %v3061 = vsel %vm2978, %v3060, %v3059
        %v3062 = vsub.s32 4, %v3038
        %v3063 = vsel %vm2978, %v3062, %v3038
        %v3064 = vsel %vm2977, %v2027, %v3061
        %v3065 = vsel %vm2977, 0, %v3063
        %v3066 = vcosq.f32.pop %v3064
        %v3067 = vsinq.f32.pop %v3064
        %vm3068 = vweird.f32 %v2027
        %v3069 = vadd.s32 %v3065, 3
        %v3070 = vand.u32 %v3069, 3
        %vm3071 = vcmp.lt.s32.totalorder %v3070, 2
        %vm3072 = vcmp.eq.s32.totalorder %v3070, 0
        %v3073 = vxor.u32 %v3067, 2147483648
        %v3074 = vsel %vm3072, %v3066, %v3073
        %vm3075 = vcmp.eq.s32.totalorder %v3070, 2
        %v3076 = vxor.u32 %v3066, 2147483648
        %v3077 = vsel %vm3075, %v3076, %v3067
        %v3078 = vsel %vm3071, %v3074, %v3077
        %v3079 = vsel %vm3068, nan, %v3078
        %v3080 = vand.u32 2147483647, %v2032
        %vm3081 = vcmp.le.f32.partialorder %v3080, 0.7853982
        %vm3082 = vcmp.lt.s32.totalorder %v2032, 0
        %v3083 = vand.u32 %v2032, 2139095040
        %v3084 = vshrl.u32 %v3083, 23
        %v3085 = vsub.s32 %v3084, 127
        %v3086 = vand.u32 2147483647, %v2032
        %v3087 = vand.u32 %v3086, 8388607
        %v3088 = vor.u32 %v3087, 8388608
        %v3089 = vsub.s32 0, %v3088
        %v3090 = vadd.s32 %v3085, 1
        %vm3091 = vcmp.gt.s32.totalorder %v3090, 0
        %v3092 = vsel %vm3091, %v3090, 0
        %v3093 = vshrl.u32 %v3092, 5
        %v3094 = vand.u32 %v3092, 31
        %v3095 = vsub.s32 32, %v3094
        %v3096 = vshrl.u32 683565275, %v3095
        %v3097 = vshll.u32 683565275, %v3094
        %v3098 = vshrl.u32 2475754826, %v3095
        %v3099 = vor.u32 %v3097, %v3098
        %v3100 = vshll.u32 2475754826, %v3094
        %v3101 = vshrl.u32 2131351028, %v3095
        %v3102 = vor.u32 %v3100, %v3101
        %v3103 = vshll.u32 2131351028, %v3094
        %v3104 = vshrl.u32 2102212464, %v3095
        %v3105 = vor.u32 %v3103, %v3104
        %v3106 = vshll.u32 2102212464, %v3094
        %v3107 = vshrl.u32 920167782, %v3095
        %v3108 = vor.u32 %v3106, %v3107
        %v3109 = vshll.u32 920167782, %v3094
        %v3110 = vshrl.u32 1326507024, %v3095
        %v3111 = vor.u32 %v3109, %v3110
        %vm3112 = vcmp.lt.s32.totalorder %v3093, 1
        %vm3113 = vcmp.lt.s32.totalorder %v3093, 2
        %vm3114 = vcmp.lt.s32.totalorder %v3093, 3
        %vm3115 = vcmp.lt.s32.totalorder %v3093, 4
        %v3116 = vsel %vm3112, %v3096, %v3099
        %v3117 = vsel %vm3115, %v3105, 2102212464
        %v3118 = vsel %vm3114, %v3102, %v3117
        %v3119 = vsel %vm3113, %v3116, %v3118
        %v3120 = vsel %vm3112, %v3099, %v3102
        %v3121 = vsel %vm3115, %v3108, 920167782
        %v3122 = vsel %vm3114, %v3105, %v3121
        %v3123 = vsel %vm3113, %v3120, %v3122
        %v3124 = vsel %vm3112, %v3102, %v3105
        %v3125 = vsel %vm3115, %v3111, 1326507024
        %v3126 = vsel %vm3114, %v3108, %v3125
        %v3127 = vsel %vm3113, %v3124, %v3126
        %v3128 = vshll.u32 %v3088, 8
        %v3129 = vmul.u32.u64.compose %v3128, %v3127
        %v3130 = vextract.low.u32 %v3129
        %v3131 = vextract.high.u32 %v3129
        %v3132 = vmul.u32.u64.compose %v3128, %v3123
        %v3133 = vextract.low.u32 %v3132
        %v3134 = vextract.high.u32 %v3132
        %v3135 = vmul.u32 %v3128, %v3119
        %v3136 = vadd.s32 %v3131, %v3133
        %vm3137 = vc.u32 %v3131, %v3133
        %v3138 = vadd.s32 %v3134, 1
        %v3139 = vsel %vm3137, %v3138, %v3134
        %v3140 = vadd.s32 %v3135, %v3139
        %v3141 = vadd.s32 %v3140, 536870912
        %v3142 = vshrl.u32 %v3141, 30
        %v3143 = vshll.u32 %v3142, 30
        %v3144 = vsub.s32 %v3140, %v3143
        %vm3145 = vcmp.lt.s32.totalorder %v3144, 0
        %v3146 = vsub.s32 0, %v3144
        %v3147 = vsel %vm3145, %v3146, %v3144
        %v3148 = vclz %v3147
        %v3149 = vsub.s32 %v3148, 2
        %vm3150 = vcmp.gt.s32.totalorder 0, %v3149
        %v3151 = vsel %vm3150, 0, %v3149
        %v3152 = vsub.s32 32, %v3151
        %v3153 = vshll.u32 %v3144, %v3151
        %v3154 = vshrl.u32 %v3136, %v3152
        %v3155 = vor.u32 %v3153, %v3154
        %v3156 = vsub.s32 4294967266, %v3151
        %v3157 = vadd.s32 %v3156, 127
        %v3158 = vshll.u32 %v3157, 23
        %v3159 = vor.u32 4788187, %v3158
        %v3160 = vand.u32 2147483647, %v3159
        %v3162 = vcvt.s32.f32 %v3155
        %v3163 = vmul.f32 %v3162, %v3160
        %v3164 = vxor.u32 %v3163, 2147483648
        %v3165 = vsel %vm3082, %v3164, %v3163
        %v3166 = vsub.s32 4, %v3142
        %v3167 = vsel %vm3082, %v3166, %v3142
        %v3168 = vsel %vm3081, %v2032, %v3165
        %v3169 = vsel %vm3081, 0, %v3167
        %v3170 = vcosq.f32.pop %v3168
        %v3171 = vsinq.f32.pop %v3168
        %vm3172 = vweird.f32 %v2032
        %v3173 = vadd.s32 %v3169, 3
        %v3174 = vand.u32 %v3173, 3
        %vm3175 = vcmp.lt.s32.totalorder %v3174, 2
        %vm3176 = vcmp.eq.s32.totalorder %v3174, 0
        %v3177 = vxor.u32 %v3171, 2147483648
        %v3178 = vsel %vm3176, %v3170, %v3177
        %vm3179 = vcmp.eq.s32.totalorder %v3174, 2
        %v3180 = vxor.u32 %v3170, 2147483648
        %v3181 = vsel %vm3179, %v3180, %v3171
        %v3182 = vsel %vm3175, %v3178, %v3181
        %v3183 = vsel %vm3172, nan, %v3182
        %v3184 = vand.u32 2147483647, %v2037
        %vm3185 = vcmp.le.f32.partialorder %v3184, 0.7853982
        %vm3186 = vcmp.lt.s32.totalorder %v2037, 0
        %v3187 = vand.u32 %v2037, 2139095040
        %v3188 = vshrl.u32 %v3187, 23
        %v3189 = vsub.s32 %v3188, 127
        %v3190 = vand.u32 2147483647, %v2037
        %v3191 = vand.u32 %v3190, 8388607
        %v3192 = vor.u32 %v3191, 8388608
        %v3193 = vsub.s32 0, %v3192
        %v3194 = vadd.s32 %v3189, 1
        %vm3195 = vcmp.gt.s32.totalorder %v3194, 0
        %v3196 = vsel %vm3195, %v3194, 0
        %v3197 = vshrl.u32 %v3196, 5
        %v3198 = vand.u32 %v3196, 31
        %v3199 = vsub.s32 32, %v3198
        %v3200 = vshrl.u32 683565275, %v3199
        %v3201 = vshll.u32 683565275, %v3198
        %v3202 = vshrl.u32 2475754826, %v3199
        %v3203 = vor.u32 %v3201, %v3202
        %v3204 = vshll.u32 2475754826, %v3198
        %v3205 = vshrl.u32 2131351028, %v3199
        %v3206 = vor.u32 %v3204, %v3205
        %v3207 = vshll.u32 2131351028, %v3198
        %v3208 = vshrl.u32 2102212464, %v3199
        %v3209 = vor.u32 %v3207, %v3208
        %v3210 = vshll.u32 2102212464, %v3198
        %v3211 = vshrl.u32 920167782, %v3199
        %v3212 = vor.u32 %v3210, %v3211
        %v3213 = vshll.u32 920167782, %v3198
        %v3214 = vshrl.u32 1326507024, %v3199
        %v3215 = vor.u32 %v3213, %v3214
        %vm3216 = vcmp.lt.s32.totalorder %v3197, 1
        %vm3217 = vcmp.lt.s32.totalorder %v3197, 2
        %vm3218 = vcmp.lt.s32.totalorder %v3197, 3
        %vm3219 = vcmp.lt.s32.totalorder %v3197, 4
        %v3220 = vsel %vm3216, %v3200, %v3203
        %v3221 = vsel %vm3219, %v3209, 2102212464
        %v3222 = vsel %vm3218, %v3206, %v3221
        %v3223 = vsel %vm3217, %v3220, %v3222
        %v3224 = vsel %vm3216, %v3203, %v3206
        %v3225 = vsel %vm3219, %v3212, 920167782
        %v3226 = vsel %vm3218, %v3209, %v3225
        %v3227 = vsel %vm3217, %v3224, %v3226
        %v3228 = vsel %vm3216, %v3206, %v3209
        %v3229 = vsel %vm3219, %v3215, 1326507024
        %v3230 = vsel %vm3218, %v3212, %v3229
        %v3231 = vsel %vm3217, %v3228, %v3230
        %v3232 = vshll.u32 %v3192, 8
        %v3233 = vmul.u32.u64.compose %v3232, %v3231
        %v3234 = vextract.low.u32 %v3233
        %v3235 = vextract.high.u32 %v3233
        %v3236 = vmul.u32.u64.compose %v3232, %v3227
        %v3237 = vextract.low.u32 %v3236
        %v3238 = vextract.high.u32 %v3236
        %v3239 = vmul.u32 %v3232, %v3223
        %v3240 = vadd.s32 %v3235, %v3237
        %vm3241 = vc.u32 %v3235, %v3237
        %v3242 = vadd.s32 %v3238, 1
        %v3243 = vsel %vm3241, %v3242, %v3238
        %v3244 = vadd.s32 %v3239, %v3243
        %v3245 = vadd.s32 %v3244, 536870912
        %v3246 = vshrl.u32 %v3245, 30
        %v3247 = vshll.u32 %v3246, 30
        %v3248 = vsub.s32 %v3244, %v3247
        %vm3249 = vcmp.lt.s32.totalorder %v3248, 0
        %v3250 = vsub.s32 0, %v3248
        %v3251 = vsel %vm3249, %v3250, %v3248
        %v3252 = vclz %v3251
        %v3253 = vsub.s32 %v3252, 2
        %vm3254 = vcmp.gt.s32.totalorder 0, %v3253
        %v3255 = vsel %vm3254, 0, %v3253
        %v3256 = vsub.s32 32, %v3255
        %v3257 = vshll.u32 %v3248, %v3255
        %v3258 = vshrl.u32 %v3240, %v3256
        %v3259 = vor.u32 %v3257, %v3258
        %v3260 = vsub.s32 4294967266, %v3255
        %v3261 = vadd.s32 %v3260, 127
        %v3262 = vshll.u32 %v3261, 23
        %v3263 = vor.u32 4788187, %v3262
        %v3264 = vand.u32 2147483647, %v3263
        %v3266 = vcvt.s32.f32 %v3259
        %v3267 = vmul.f32 %v3266, %v3264
        %v3268 = vxor.u32 %v3267, 2147483648
        %v3269 = vsel %vm3186, %v3268, %v3267
        %v3270 = vsub.s32 4, %v3246
        %v3271 = vsel %vm3186, %v3270, %v3246
        %v3272 = vsel %vm3185, %v2037, %v3269
        %v3273 = vsel %vm3185, 0, %v3271
        %v3274 = vcosq.f32.pop %v3272
        %v3275 = vsinq.f32.pop %v3272
        %vm3276 = vweird.f32 %v2037
        %v3277 = vadd.s32 %v3273, 3
        %v3278 = vand.u32 %v3277, 3
        %vm3279 = vcmp.lt.s32.totalorder %v3278, 2
        %vm3280 = vcmp.eq.s32.totalorder %v3278, 0
        %v3281 = vxor.u32 %v3275, 2147483648
        %v3282 = vsel %vm3280, %v3274, %v3281
        %vm3283 = vcmp.eq.s32.totalorder %v3278, 2
        %v3284 = vxor.u32 %v3274, 2147483648
        %v3285 = vsel %vm3283, %v3284, %v3275
        %v3286 = vsel %vm3279, %v3282, %v3285
        %v3287 = vsel %vm3276, nan, %v3286
        %v3288 = vmul.f32 %v2143, %v2143
        %v3289 = vmul.f32 %v2247, %v2247
        %v3290 = vmul.f32 %v2351, %v2351
        %v3291 = vmul.f32 %v2455, %v2455
        %v3292 = vmul.f32 %v2559, %v2559
        %v3293 = vmul.f32 %v2663, %v2663
        %v3294 = vmul.f32 %v2767, %v2767
        %v3295 = vmul.f32 %v2871, %v2871
        %v3296 = vmul.f32 %v2975, %v2975
        %v3297 = vmul.f32 %v3079, %v3079
        %v3298 = vmul.f32 %v3183, %v3183
        %v3299 = vmul.f32 %v3287, %v3287
        %v3300 = vadd.f32 %v1982, %v3288
        %v3301 = vadd.f32 %v1987, %v3289
        %v3302 = vadd.f32 %v1992, %v3290
        %v3303 = vadd.f32 %v1997, %v3291
        %v3304 = vadd.f32 %v2002, %v3292
        %v3305 = vadd.f32 %v2007, %v3293
        %v3306 = vadd.f32 %v2012, %v3294
        %v3307 = vadd.f32 %v2017, %v3295
        %v3308 = vadd.f32 %v2022, %v3296
        %v3309 = vadd.f32 %v2027, %v3297
        %v3310 = vadd.f32 %v2032, %v3298
        %v3311 = vadd.f32 %v2037, %v3299
        %s3312 = scalar_lea.vmem %s3, 96
        %v3313 = vld [vmem:[%s3312] sm:$0xff]
        %v3314 = vld [vmem:[%s3312 + $0x8] sm:$0xff]
        %v3315 = vld [vmem:[%s3312 + $0x10] sm:$0xff]
        %v3316 = vld [vmem:[%s3312 + $0x18] sm:$0xff]
        %v3317 = vld [vmem:[%s3312 + $0x20] sm:$0xff]
        %v3318 = vld [vmem:[%s3312 + $0x28] sm:$0xff]
        %v3319 = vld [vmem:[%s3312 + $0x30] sm:$0xff]
        %v3320 = vld [vmem:[%s3312 + $0x38] sm:$0xff]
        %v3321 = vld [vmem:[%s3312 + $0x40] sm:$0xff]
        %v3322 = vld [vmem:[%s3312 + $0x48] sm:$0xff]
        %v3323 = vld [vmem:[%s3312 + $0x50] sm:$0xff]
        %v3324 = vld [vmem:[%s3312 + $0x58] sm:$0xff]
        %s3325 = scalar_lea.vmem %s4, 96
        %v3326 = vld [vmem:[%s3325] sm:$0xff]
        %v3327 = vld [vmem:[%s3325 + $0x8] sm:$0xff]
        %v3328 = vld [vmem:[%s3325 + $0x10] sm:$0xff]
        %v3329 = vld [vmem:[%s3325 + $0x18] sm:$0xff]
        %v3330 = vld [vmem:[%s3325 + $0x20] sm:$0xff]
        %v3331 = vld [vmem:[%s3325 + $0x28] sm:$0xff]
        %v3332 = vld [vmem:[%s3325 + $0x30] sm:$0xff]
        %v3333 = vld [vmem:[%s3325 + $0x38] sm:$0xff]
        %v3334 = vld [vmem:[%s3325 + $0x40] sm:$0xff]
        %v3335 = vld [vmem:[%s3325 + $0x48] sm:$0xff]
        %v3336 = vld [vmem:[%s3325 + $0x50] sm:$0xff]
        %v3337 = vld [vmem:[%s3325 + $0x58] sm:$0xff]
        %3339 = vset.pattern.permute.xlu0 0
        %3340 = vperm.xlu0 %3339, %v3326
        %v3341 = vpop.permute.xlu0 %3340
        %3344 = vset.pattern.permute.xlu0 0
        %3345 = vperm.xlu0 %3344, %v3327
        %v3346 = vpop.permute.xlu0 %3345
        %3349 = vset.pattern.permute.xlu0 0
        %3350 = vperm.xlu0 %3349, %v3328
        %v3351 = vpop.permute.xlu0 %3350
        %3354 = vset.pattern.permute.xlu0 0
        %3355 = vperm.xlu0 %3354, %v3329
        %v3356 = vpop.permute.xlu0 %3355
        %3359 = vset.pattern.permute.xlu0 0
        %3360 = vperm.xlu0 %3359, %v3330
        %v3361 = vpop.permute.xlu0 %3360
        %3364 = vset.pattern.permute.xlu0 0
        %3365 = vperm.xlu0 %3364, %v3331
        %v3366 = vpop.permute.xlu0 %3365
        %3369 = vset.pattern.permute.xlu0 0
        %3370 = vperm.xlu0 %3369, %v3332
        %v3371 = vpop.permute.xlu0 %3370
        %3374 = vset.pattern.permute.xlu0 0
        %3375 = vperm.xlu0 %3374, %v3333
        %v3376 = vpop.permute.xlu0 %3375
        %3379 = vset.pattern.permute.xlu0 0
        %3380 = vperm.xlu0 %3379, %v3334
        %v3381 = vpop.permute.xlu0 %3380
        %3384 = vset.pattern.permute.xlu0 0
        %3385 = vperm.xlu0 %3384, %v3335
        %v3386 = vpop.permute.xlu0 %3385
        %3389 = vset.pattern.permute.xlu0 0
        %3390 = vperm.xlu0 %3389, %v3336
        %v3391 = vpop.permute.xlu0 %3390
        %3394 = vset.pattern.permute.xlu0 0
        %3395 = vperm.xlu0 %3394, %v3337
        %v3396 = vpop.permute.xlu0 %3395
        %v3399 = vsel %vm1878, %v3313, 0
        %v3402 = vsel %vm1878, %v3314, 0
        %v3405 = vsel %vm1878, %v3315, 0
        %v3408 = vsel %vm1878, %v3316, 0
        %v3411 = vsel %vm1878, %v3317, 0
        %v3414 = vsel %vm1878, %v3318, 0
        %v3417 = vsel %vm1878, %v3319, 0
        %v3420 = vsel %vm1878, %v3320, 0
        %v3423 = vsel %vm1878, %v3321, 0
        %v3426 = vsel %vm1878, %v3322, 0
        %v3429 = vsel %vm1878, %v3323, 0
        %v3432 = vsel %vm1878, %v3324, 0
        %3434 = vmatprep.subr.mxu0 0.0
        %3435 = vmatpush1.msra.mxu0 %v3300
        %3436 = vmatprep.subr.mxu0 0.0
        %3437 = vmatpush1.msra.mxu0 %v3301
        %3438 = vmatprep.subr.mxu0 0.0
        %3439 = vmatpush1.msra.mxu0 %v3302
        %3440 = vmatprep.subr.mxu0 0.0
        %3441 = vmatpush1.msra.mxu0 %v3303
        %3442 = vmatprep.subr.mxu0 0.0
        %3443 = vmatpush1.msra.mxu0 %v3304
        %3444 = vmatprep.subr.mxu0 0.0
        %3445 = vmatpush1.msra.mxu0 %v3305
        %3446 = vmatprep.subr.mxu0 0.0
        %3447 = vmatpush1.msra.mxu0 %v3306
        %3448 = vmatprep.subr.mxu0 0.0
        %3449 = vmatpush1.msra.mxu0 %v3307
        %3450 = vmatprep.subr.mxu0 0.0
        %3451 = vmatpush1.msra.mxu0 %v3308
        %3452 = vmatprep.subr.mxu0 0.0
        %3453 = vmatpush1.msra.mxu0 %v3309
        %3454 = vmatprep.subr.mxu0 0.0
        %3455 = vmatpush1.msra.mxu0 %v3310
        %3456 = vmatprep.subr.mxu0 0.0
        %3457 = vmatpush1.msra.mxu0 %v3311
        %3458 = vmatprep.subr.mxu0 0.0
        %3459 = vmatpush1.msra.mxu0 0.0
        %3460 = vmatprep.subr.mxu0 0.0
        %3461 = vmatpush1.msra.mxu0 0.0
        %3462 = vmatprep.subr.mxu0 0.0
        %3463 = vmatpush1.msra.mxu0 0.0
        %3464 = vmatprep.subr.mxu0 0.0
        %3465 = vmatpush1.msra.mxu0 0.0
        %3466 = vmatprep.subr.mxu0 0.0
        %3467 = vmatpush1.msra.mxu0 0.0
        %3468 = vmatprep.subr.mxu0 0.0
        %3469 = vmatpush1.msra.mxu0 0.0
        %3470 = vmatprep.subr.mxu0 0.0
        %3471 = vmatpush1.msra.mxu0 0.0
        %3472 = vmatprep.subr.mxu0 0.0
        %3473 = vmatpush1.msra.mxu0 0.0
        %3474 = vmatprep.subr.mxu0 0.0
        %3475 = vmatpush1.msra.mxu0 0.0
        %3476 = vmatprep.subr.mxu0 0.0
        %3477 = vmatpush1.msra.mxu0 0.0
        %3478 = vmatprep.subr.mxu0 0.0
        %3479 = vmatpush1.msra.mxu0 0.0
        %3480 = vmatprep.subr.mxu0 0.0
        %3481 = vmatpush1.msra.mxu0 0.0
        %3482 = vmatprep.subr.mxu0 0.0
        %3483 = vmatpush1.msra.mxu0 0.0
        %3484 = vmatprep.subr.mxu0 0.0
        %3485 = vmatpush1.msra.mxu0 0.0
        %3486 = vmatprep.subr.mxu0 0.0
        %3487 = vmatpush1.msra.mxu0 0.0
        %3488 = vmatprep.subr.mxu0 0.0
        %3489 = vmatpush1.msra.mxu0 0.0
        %3490 = vmatprep.subr.mxu0 0.0
        %3491 = vmatpush1.msra.mxu0 0.0
        %3492 = vmatprep.subr.mxu0 0.0
        %3493 = vmatpush1.msra.mxu0 0.0
        %3494 = vmatprep.subr.mxu0 0.0
        %3495 = vmatpush1.msra.mxu0 0.0
        %3496 = vmatprep.subr.mxu0 0.0
        %3497 = vmatpush1.msra.mxu0 0.0
        %3498 = vmatprep.mubr.f32.mxu0 0.0
        %3499 = vmatmul.mubr.f32.gmra.mrb[0].mxu0 %v3399
        %v3500 = vpop.f32.mrb[0].mxu0
        %v3501 = vadd.f32 %v3341, %v3500
        %v3502 = vpop.f32.mrb[0].mxu0
        %3503 = vmatprep.mubr.f32.mxu0 0.0
        %3504 = vmatmul.mubr.f32.gmra.mrb[0].mxu0 %v3402
        %v3505 = vpop.f32.mrb[0].mxu0
        %v3506 = vadd.f32 %v3346, %v3505
        %v3507 = vpop.f32.mrb[0].mxu0
        %3508 = vmatprep.mubr.f32.mxu0 0.0
        %3509 = vmatmul.mubr.f32.gmra.mrb[0].mxu0 %v3405
        %v3510 = vpop.f32.mrb[0].mxu0
        %v3511 = vadd.f32 %v3351, %v3510
        %v3512 = vpop.f32.mrb[0].mxu0
        %3513 = vmatprep.mubr.f32.mxu0 0.0
        %3514 = vmatmul.mubr.f32.gmra.mrb[0].mxu0 %v3408
        %v3515 = vpop.f32.mrb[0].mxu0
        %v3516 = vadd.f32 %v3356, %v3515
        %v3517 = vpop.f32.mrb[0].mxu0
        %3518 = vmatprep.mubr.f32.mxu0 0.0
        %3519 = vmatmul.mubr.f32.gmra.mrb[0].mxu0 %v3411
        %v3520 = vpop.f32.mrb[0].mxu0
        %v3521 = vadd.f32 %v3361, %v3520
        %v3522 = vpop.f32.mrb[0].mxu0
        %3523 = vmatprep.mubr.f32.mxu0 0.0
        %3524 = vmatmul.mubr.f32.gmra.mrb[0].mxu0 %v3414
        %v3525 = vpop.f32.mrb[0].mxu0
        %v3526 = vadd.f32 %v3366, %v3525
        %v3527 = vpop.f32.mrb[0].mxu0
        %3528 = vmatprep.mubr.f32.mxu0 0.0
        %3529 = vmatmul.mubr.f32.gmra.mrb[0].mxu0 %v3417
        %v3530 = vpop.f32.mrb[0].mxu0
        %v3531 = vadd.f32 %v3371, %v3530
        %v3532 = vpop.f32.mrb[0].mxu0
        %3533 = vmatprep.mubr.f32.mxu0 0.0
        %3534 = vmatmul.mubr.f32.gmra.mrb[0].mxu0 %v3420
        %v3535 = vpop.f32.mrb[0].mxu0
        %v3536 = vadd.f32 %v3376, %v3535
        %v3537 = vpop.f32.mrb[0].mxu0
        %3538 = vmatprep.mubr.f32.mxu0 0.0
        %3539 = vmatmul.mubr.f32.gmra.mrb[0].mxu0 %v3423
        %v3540 = vpop.f32.mrb[0].mxu0
        %v3541 = vadd.f32 %v3381, %v3540
        %v3542 = vpop.f32.mrb[0].mxu0
        %3543 = vmatprep.mubr.f32.mxu0 0.0
        %3544 = vmatmul.mubr.f32.gmra.mrb[0].mxu0 %v3426
        %v3545 = vpop.f32.mrb[0].mxu0
        %v3546 = vadd.f32 %v3386, %v3545
        %v3547 = vpop.f32.mrb[0].mxu0
        %3548 = vmatprep.mubr.f32.mxu0 0.0
        %3549 = vmatmul.mubr.f32.gmra.mrb[0].mxu0 %v3429
        %v3550 = vpop.f32.mrb[0].mxu0
        %v3551 = vadd.f32 %v3391, %v3550
        %v3552 = vpop.f32.mrb[0].mxu0
        %3553 = vmatprep.mubr.f32.mxu0 0.0
        %3554 = vmatmul.mubr.f32.gmra.mrb[0].mxu0 %v3432
        %v3555 = vpop.f32.mrb[0].mxu0
        %v3556 = vadd.f32 %v3396, %v3555
        %v3557 = vpop.f32.mrb[0].mxu0
        %3558 = vdwg.mxu0
        %v3559 = vand.u32 2147483647, %v3501
        %vm3560 = vcmp.le.f32.partialorder %v3559, 0.7853982
        %vm3561 = vcmp.lt.s32.totalorder %v3501, 0
        %v3562 = vand.u32 %v3501, 2139095040
        %v3563 = vshrl.u32 %v3562, 23
        %v3564 = vsub.s32 %v3563, 127
        %v3565 = vand.u32 2147483647, %v3501
        %v3566 = vand.u32 %v3565, 8388607
        %v3567 = vor.u32 %v3566, 8388608
        %v3568 = vsub.s32 0, %v3567
        %v3569 = vadd.s32 %v3564, 1
        %vm3570 = vcmp.gt.s32.totalorder %v3569, 0
        %v3571 = vsel %vm3570, %v3569, 0
        %v3572 = vshrl.u32 %v3571, 5
        %v3573 = vand.u32 %v3571, 31
        %v3574 = vsub.s32 32, %v3573
        %v3575 = vshrl.u32 683565275, %v3574
        %v3576 = vshll.u32 683565275, %v3573
        %v3577 = vshrl.u32 2475754826, %v3574
        %v3578 = vor.u32 %v3576, %v3577
        %v3579 = vshll.u32 2475754826, %v3573
        %v3580 = vshrl.u32 2131351028, %v3574
        %v3581 = vor.u32 %v3579, %v3580
        %v3582 = vshll.u32 2131351028, %v3573
        %v3583 = vshrl.u32 2102212464, %v3574
        %v3584 = vor.u32 %v3582, %v3583
        %v3585 = vshll.u32 2102212464, %v3573
        %v3586 = vshrl.u32 920167782, %v3574
        %v3587 = vor.u32 %v3585, %v3586
        %v3588 = vshll.u32 920167782, %v3573
        %v3589 = vshrl.u32 1326507024, %v3574
        %v3590 = vor.u32 %v3588, %v3589
        %vm3591 = vcmp.lt.s32.totalorder %v3572, 1
        %vm3592 = vcmp.lt.s32.totalorder %v3572, 2
        %vm3593 = vcmp.lt.s32.totalorder %v3572, 3
        %vm3594 = vcmp.lt.s32.totalorder %v3572, 4
        %v3595 = vsel %vm3591, %v3575, %v3578
        %v3596 = vsel %vm3594, %v3584, 2102212464
        %v3597 = vsel %vm3593, %v3581, %v3596
        %v3598 = vsel %vm3592, %v3595, %v3597
        %v3599 = vsel %vm3591, %v3578, %v3581
        %v3600 = vsel %vm3594, %v3587, 920167782
        %v3601 = vsel %vm3593, %v3584, %v3600
        %v3602 = vsel %vm3592, %v3599, %v3601
        %v3603 = vsel %vm3591, %v3581, %v3584
        %v3604 = vsel %vm3594, %v3590, 1326507024
        %v3605 = vsel %vm3593, %v3587, %v3604
        %v3606 = vsel %vm3592, %v3603, %v3605
        %v3607 = vshll.u32 %v3567, 8
        %v3608 = vmul.u32.u64.compose %v3607, %v3606
        %v3609 = vextract.low.u32 %v3608
        %v3610 = vextract.high.u32 %v3608
        %v3611 = vmul.u32.u64.compose %v3607, %v3602
        %v3612 = vextract.low.u32 %v3611
        %v3613 = vextract.high.u32 %v3611
        %v3614 = vmul.u32 %v3607, %v3598
        %v3615 = vadd.s32 %v3610, %v3612
        %vm3616 = vc.u32 %v3610, %v3612
        %v3617 = vadd.s32 %v3613, 1
        %v3618 = vsel %vm3616, %v3617, %v3613
        %v3619 = vadd.s32 %v3614, %v3618
        %v3620 = vadd.s32 %v3619, 536870912
        %v3621 = vshrl.u32 %v3620, 30
        %v3622 = vshll.u32 %v3621, 30
        %v3623 = vsub.s32 %v3619, %v3622
        %vm3624 = vcmp.lt.s32.totalorder %v3623, 0
        %v3625 = vsub.s32 0, %v3623
        %v3626 = vsel %vm3624, %v3625, %v3623
        %v3627 = vclz %v3626
        %v3628 = vsub.s32 %v3627, 2
        %vm3629 = vcmp.gt.s32.totalorder 0, %v3628
        %v3630 = vsel %vm3629, 0, %v3628
        %v3631 = vsub.s32 32, %v3630
        %v3632 = vshll.u32 %v3623, %v3630
        %v3633 = vshrl.u32 %v3615, %v3631
        %v3634 = vor.u32 %v3632, %v3633
        %v3635 = vsub.s32 4294967266, %v3630
        %v3636 = vadd.s32 %v3635, 127
        %v3637 = vshll.u32 %v3636, 23
        %v3638 = vor.u32 4788187, %v3637
        %v3639 = vand.u32 2147483647, %v3638
        %v3641 = vcvt.s32.f32 %v3634
        %v3642 = vmul.f32 %v3641, %v3639
        %v3643 = vxor.u32 %v3642, 2147483648
        %v3644 = vsel %vm3561, %v3643, %v3642
        %v3645 = vsub.s32 4, %v3621
        %v3646 = vsel %vm3561, %v3645, %v3621
        %v3647 = vsel %vm3560, %v3501, %v3644
        %v3648 = vsel %vm3560, 0, %v3646
        %v3649 = vcosq.f32.pop %v3647
        %v3650 = vsinq.f32.pop %v3647
        %vm3651 = vweird.f32 %v3501
        %v3652 = vadd.s32 %v3648, 3
        %v3653 = vand.u32 %v3652, 3
        %vm3654 = vcmp.lt.s32.totalorder %v3653, 2
        %vm3655 = vcmp.eq.s32.totalorder %v3653, 0
        %v3656 = vxor.u32 %v3650, 2147483648
        %v3657 = vsel %vm3655, %v3649, %v3656
        %vm3658 = vcmp.eq.s32.totalorder %v3653, 2
        %v3659 = vxor.u32 %v3649, 2147483648
        %v3660 = vsel %vm3658, %v3659, %v3650
        %v3661 = vsel %vm3654, %v3657, %v3660
        %v3662 = vsel %vm3651, nan, %v3661
        %v3663 = vand.u32 2147483647, %v3506
        %vm3664 = vcmp.le.f32.partialorder %v3663, 0.7853982
        %vm3665 = vcmp.lt.s32.totalorder %v3506, 0
        %v3666 = vand.u32 %v3506, 2139095040
        %v3667 = vshrl.u32 %v3666, 23
        %v3668 = vsub.s32 %v3667, 127
        %v3669 = vand.u32 2147483647, %v3506
        %v3670 = vand.u32 %v3669, 8388607
        %v3671 = vor.u32 %v3670, 8388608
        %v3672 = vsub.s32 0, %v3671
        %v3673 = vadd.s32 %v3668, 1
        %vm3674 = vcmp.gt.s32.totalorder %v3673, 0
        %v3675 = vsel %vm3674, %v3673, 0
        %v3676 = vshrl.u32 %v3675, 5
        %v3677 = vand.u32 %v3675, 31
        %v3678 = vsub.s32 32, %v3677
        %v3679 = vshrl.u32 683565275, %v3678
        %v3680 = vshll.u32 683565275, %v3677
        %v3681 = vshrl.u32 2475754826, %v3678
        %v3682 = vor.u32 %v3680, %v3681
        %v3683 = vshll.u32 2475754826, %v3677
        %v3684 = vshrl.u32 2131351028, %v3678
        %v3685 = vor.u32 %v3683, %v3684
        %v3686 = vshll.u32 2131351028, %v3677
        %v3687 = vshrl.u32 2102212464, %v3678
        %v3688 = vor.u32 %v3686, %v3687
        %v3689 = vshll.u32 2102212464, %v3677
        %v3690 = vshrl.u32 920167782, %v3678
        %v3691 = vor.u32 %v3689, %v3690
        %v3692 = vshll.u32 920167782, %v3677
        %v3693 = vshrl.u32 1326507024, %v3678
        %v3694 = vor.u32 %v3692, %v3693
        %vm3695 = vcmp.lt.s32.totalorder %v3676, 1
        %vm3696 = vcmp.lt.s32.totalorder %v3676, 2
        %vm3697 = vcmp.lt.s32.totalorder %v3676, 3
        %vm3698 = vcmp.lt.s32.totalorder %v3676, 4
        %v3699 = vsel %vm3695, %v3679, %v3682
        %v3700 = vsel %vm3698, %v3688, 2102212464
        %v3701 = vsel %vm3697, %v3685, %v3700
        %v3702 = vsel %vm3696, %v3699, %v3701
        %v3703 = vsel %vm3695, %v3682, %v3685
        %v3704 = vsel %vm3698, %v3691, 920167782
        %v3705 = vsel %vm3697, %v3688, %v3704
        %v3706 = vsel %vm3696, %v3703, %v3705
        %v3707 = vsel %vm3695, %v3685, %v3688
        %v3708 = vsel %vm3698, %v3694, 1326507024
        %v3709 = vsel %vm3697, %v3691, %v3708
        %v3710 = vsel %vm3696, %v3707, %v3709
        %v3711 = vshll.u32 %v3671, 8
        %v3712 = vmul.u32.u64.compose %v3711, %v3710
        %v3713 = vextract.low.u32 %v3712
        %v3714 = vextract.high.u32 %v3712
        %v3715 = vmul.u32.u64.compose %v3711, %v3706
        %v3716 = vextract.low.u32 %v3715
        %v3717 = vextract.high.u32 %v3715
        %v3718 = vmul.u32 %v3711, %v3702
        %v3719 = vadd.s32 %v3714, %v3716
        %vm3720 = vc.u32 %v3714, %v3716
        %v3721 = vadd.s32 %v3717, 1
        %v3722 = vsel %vm3720, %v3721, %v3717
        %v3723 = vadd.s32 %v3718, %v3722
        %v3724 = vadd.s32 %v3723, 536870912
        %v3725 = vshrl.u32 %v3724, 30
        %v3726 = vshll.u32 %v3725, 30
        %v3727 = vsub.s32 %v3723, %v3726
        %vm3728 = vcmp.lt.s32.totalorder %v3727, 0
        %v3729 = vsub.s32 0, %v3727
        %v3730 = vsel %vm3728, %v3729, %v3727
        %v3731 = vclz %v3730
        %v3732 = vsub.s32 %v3731, 2
        %vm3733 = vcmp.gt.s32.totalorder 0, %v3732
        %v3734 = vsel %vm3733, 0, %v3732
        %v3735 = vsub.s32 32, %v3734
        %v3736 = vshll.u32 %v3727, %v3734
        %v3737 = vshrl.u32 %v3719, %v3735
        %v3738 = vor.u32 %v3736, %v3737
        %v3739 = vsub.s32 4294967266, %v3734
        %v3740 = vadd.s32 %v3739, 127
        %v3741 = vshll.u32 %v3740, 23
        %v3742 = vor.u32 4788187, %v3741
        %v3743 = vand.u32 2147483647, %v3742
        %v3745 = vcvt.s32.f32 %v3738
        %v3746 = vmul.f32 %v3745, %v3743
        %v3747 = vxor.u32 %v3746, 2147483648
        %v3748 = vsel %vm3665, %v3747, %v3746
        %v3749 = vsub.s32 4, %v3725
        %v3750 = vsel %vm3665, %v3749, %v3725
        %v3751 = vsel %vm3664, %v3506, %v3748
        %v3752 = vsel %vm3664, 0, %v3750
        %v3753 = vcosq.f32.pop %v3751
        %v3754 = vsinq.f32.pop %v3751
        %vm3755 = vweird.f32 %v3506
        %v3756 = vadd.s32 %v3752, 3
        %v3757 = vand.u32 %v3756, 3
        %vm3758 = vcmp.lt.s32.totalorder %v3757, 2
        %vm3759 = vcmp.eq.s32.totalorder %v3757, 0
        %v3760 = vxor.u32 %v3754, 2147483648
        %v3761 = vsel %vm3759, %v3753, %v3760
        %vm3762 = vcmp.eq.s32.totalorder %v3757, 2
        %v3763 = vxor.u32 %v3753, 2147483648
        %v3764 = vsel %vm3762, %v3763, %v3754
        %v3765 = vsel %vm3758, %v3761, %v3764
        %v3766 = vsel %vm3755, nan, %v3765
        %v3767 = vand.u32 2147483647, %v3511
        %vm3768 = vcmp.le.f32.partialorder %v3767, 0.7853982
        %vm3769 = vcmp.lt.s32.totalorder %v3511, 0
        %v3770 = vand.u32 %v3511, 2139095040
        %v3771 = vshrl.u32 %v3770, 23
        %v3772 = vsub.s32 %v3771, 127
        %v3773 = vand.u32 2147483647, %v3511
        %v3774 = vand.u32 %v3773, 8388607
        %v3775 = vor.u32 %v3774, 8388608
        %v3776 = vsub.s32 0, %v3775
        %v3777 = vadd.s32 %v3772, 1
        %vm3778 = vcmp.gt.s32.totalorder %v3777, 0
        %v3779 = vsel %vm3778, %v3777, 0
        %v3780 = vshrl.u32 %v3779, 5
        %v3781 = vand.u32 %v3779, 31
        %v3782 = vsub.s32 32, %v3781
        %v3783 = vshrl.u32 683565275, %v3782
        %v3784 = vshll.u32 683565275, %v3781
        %v3785 = vshrl.u32 2475754826, %v3782
        %v3786 = vor.u32 %v3784, %v3785
        %v3787 = vshll.u32 2475754826, %v3781
        %v3788 = vshrl.u32 2131351028, %v3782
        %v3789 = vor.u32 %v3787, %v3788
        %v3790 = vshll.u32 2131351028, %v3781
        %v3791 = vshrl.u32 2102212464, %v3782
        %v3792 = vor.u32 %v3790, %v3791
        %v3793 = vshll.u32 2102212464, %v3781
        %v3794 = vshrl.u32 920167782, %v3782
        %v3795 = vor.u32 %v3793, %v3794
        %v3796 = vshll.u32 920167782, %v3781
        %v3797 = vshrl.u32 1326507024, %v3782
        %v3798 = vor.u32 %v3796, %v3797
        %vm3799 = vcmp.lt.s32.totalorder %v3780, 1
        %vm3800 = vcmp.lt.s32.totalorder %v3780, 2
        %vm3801 = vcmp.lt.s32.totalorder %v3780, 3
        %vm3802 = vcmp.lt.s32.totalorder %v3780, 4
        %v3803 = vsel %vm3799, %v3783, %v3786
        %v3804 = vsel %vm3802, %v3792, 2102212464
        %v3805 = vsel %vm3801, %v3789, %v3804
        %v3806 = vsel %vm3800, %v3803, %v3805
        %v3807 = vsel %vm3799, %v3786, %v3789
        %v3808 = vsel %vm3802, %v3795, 920167782
        %v3809 = vsel %vm3801, %v3792, %v3808
        %v3810 = vsel %vm3800, %v3807, %v3809
        %v3811 = vsel %vm3799, %v3789, %v3792
        %v3812 = vsel %vm3802, %v3798, 1326507024
        %v3813 = vsel %vm3801, %v3795, %v3812
        %v3814 = vsel %vm3800, %v3811, %v3813
        %v3815 = vshll.u32 %v3775, 8
        %v3816 = vmul.u32.u64.compose %v3815, %v3814
        %v3817 = vextract.low.u32 %v3816
        %v3818 = vextract.high.u32 %v3816
        %v3819 = vmul.u32.u64.compose %v3815, %v3810
        %v3820 = vextract.low.u32 %v3819
        %v3821 = vextract.high.u32 %v3819
        %v3822 = vmul.u32 %v3815, %v3806
        %v3823 = vadd.s32 %v3818, %v3820
        %vm3824 = vc.u32 %v3818, %v3820
        %v3825 = vadd.s32 %v3821, 1
        %v3826 = vsel %vm3824, %v3825, %v3821
        %v3827 = vadd.s32 %v3822, %v3826
        %v3828 = vadd.s32 %v3827, 536870912
        %v3829 = vshrl.u32 %v3828, 30
        %v3830 = vshll.u32 %v3829, 30
        %v3831 = vsub.s32 %v3827, %v3830
        %vm3832 = vcmp.lt.s32.totalorder %v3831, 0
        %v3833 = vsub.s32 0, %v3831
        %v3834 = vsel %vm3832, %v3833, %v3831
        %v3835 = vclz %v3834
        %v3836 = vsub.s32 %v3835, 2
        %vm3837 = vcmp.gt.s32.totalorder 0, %v3836
        %v3838 = vsel %vm3837, 0, %v3836
        %v3839 = vsub.s32 32, %v3838
        %v3840 = vshll.u32 %v3831, %v3838
        %v3841 = vshrl.u32 %v3823, %v3839
        %v3842 = vor.u32 %v3840, %v3841
        %v3843 = vsub.s32 4294967266, %v3838
        %v3844 = vadd.s32 %v3843, 127
        %v3845 = vshll.u32 %v3844, 23
        %v3846 = vor.u32 4788187, %v3845
        %v3847 = vand.u32 2147483647, %v3846
        %v3849 = vcvt.s32.f32 %v3842
        %v3850 = vmul.f32 %v3849, %v3847
        %v3851 = vxor.u32 %v3850, 2147483648
        %v3852 = vsel %vm3769, %v3851, %v3850
        %v3853 = vsub.s32 4, %v3829
        %v3854 = vsel %vm3769, %v3853, %v3829
        %v3855 = vsel %vm3768, %v3511, %v3852
        %v3856 = vsel %vm3768, 0, %v3854
        %v3857 = vcosq.f32.pop %v3855
        %v3858 = vsinq.f32.pop %v3855
        %vm3859 = vweird.f32 %v3511
        %v3860 = vadd.s32 %v3856, 3
        %v3861 = vand.u32 %v3860, 3
        %vm3862 = vcmp.lt.s32.totalorder %v3861, 2
        %vm3863 = vcmp.eq.s32.totalorder %v3861, 0
        %v3864 = vxor.u32 %v3858, 2147483648
        %v3865 = vsel %vm3863, %v3857, %v3864
        %vm3866 = vcmp.eq.s32.totalorder %v3861, 2
        %v3867 = vxor.u32 %v3857, 2147483648
        %v3868 = vsel %vm3866, %v3867, %v3858
        %v3869 = vsel %vm3862, %v3865, %v3868
        %v3870 = vsel %vm3859, nan, %v3869
        %v3871 = vand.u32 2147483647, %v3516
        %vm3872 = vcmp.le.f32.partialorder %v3871, 0.7853982
        %vm3873 = vcmp.lt.s32.totalorder %v3516, 0
        %v3874 = vand.u32 %v3516, 2139095040
        %v3875 = vshrl.u32 %v3874, 23
        %v3876 = vsub.s32 %v3875, 127
        %v3877 = vand.u32 2147483647, %v3516
        %v3878 = vand.u32 %v3877, 8388607
        %v3879 = vor.u32 %v3878, 8388608
        %v3880 = vsub.s32 0, %v3879
        %v3881 = vadd.s32 %v3876, 1
        %vm3882 = vcmp.gt.s32.totalorder %v3881, 0
        %v3883 = vsel %vm3882, %v3881, 0
        %v3884 = vshrl.u32 %v3883, 5
        %v3885 = vand.u32 %v3883, 31
        %v3886 = vsub.s32 32, %v3885
        %v3887 = vshrl.u32 683565275, %v3886
        %v3888 = vshll.u32 683565275, %v3885
        %v3889 = vshrl.u32 2475754826, %v3886
        %v3890 = vor.u32 %v3888, %v3889
        %v3891 = vshll.u32 2475754826, %v3885
        %v3892 = vshrl.u32 2131351028, %v3886
        %v3893 = vor.u32 %v3891, %v3892
        %v3894 = vshll.u32 2131351028, %v3885
        %v3895 = vshrl.u32 2102212464, %v3886
        %v3896 = vor.u32 %v3894, %v3895
        %v3897 = vshll.u32 2102212464, %v3885
        %v3898 = vshrl.u32 920167782, %v3886
        %v3899 = vor.u32 %v3897, %v3898
        %v3900 = vshll.u32 920167782, %v3885
        %v3901 = vshrl.u32 1326507024, %v3886
        %v3902 = vor.u32 %v3900, %v3901
        %vm3903 = vcmp.lt.s32.totalorder %v3884, 1
        %vm3904 = vcmp.lt.s32.totalorder %v3884, 2
        %vm3905 = vcmp.lt.s32.totalorder %v3884, 3
        %vm3906 = vcmp.lt.s32.totalorder %v3884, 4
        %v3907 = vsel %vm3903, %v3887, %v3890
        %v3908 = vsel %vm3906, %v3896, 2102212464
        %v3909 = vsel %vm3905, %v3893, %v3908
        %v3910 = vsel %vm3904, %v3907, %v3909
        %v3911 = vsel %vm3903, %v3890, %v3893
        %v3912 = vsel %vm3906, %v3899, 920167782
        %v3913 = vsel %vm3905, %v3896, %v3912
        %v3914 = vsel %vm3904, %v3911, %v3913
        %v3915 = vsel %vm3903, %v3893, %v3896
        %v3916 = vsel %vm3906, %v3902, 1326507024
        %v3917 = vsel %vm3905, %v3899, %v3916
        %v3918 = vsel %vm3904, %v3915, %v3917
        %v3919 = vshll.u32 %v3879, 8
        %v3920 = vmul.u32.u64.compose %v3919, %v3918
        %v3921 = vextract.low.u32 %v3920
        %v3922 = vextract.high.u32 %v3920
        %v3923 = vmul.u32.u64.compose %v3919, %v3914
        %v3924 = vextract.low.u32 %v3923
        %v3925 = vextract.high.u32 %v3923
        %v3926 = vmul.u32 %v3919, %v3910
        %v3927 = vadd.s32 %v3922, %v3924
        %vm3928 = vc.u32 %v3922, %v3924
        %v3929 = vadd.s32 %v3925, 1
        %v3930 = vsel %vm3928, %v3929, %v3925
        %v3931 = vadd.s32 %v3926, %v3930
        %v3932 = vadd.s32 %v3931, 536870912
        %v3933 = vshrl.u32 %v3932, 30
        %v3934 = vshll.u32 %v3933, 30
        %v3935 = vsub.s32 %v3931, %v3934
        %vm3936 = vcmp.lt.s32.totalorder %v3935, 0
        %v3937 = vsub.s32 0, %v3935
        %v3938 = vsel %vm3936, %v3937, %v3935
        %v3939 = vclz %v3938
        %v3940 = vsub.s32 %v3939, 2
        %vm3941 = vcmp.gt.s32.totalorder 0, %v3940
        %v3942 = vsel %vm3941, 0, %v3940
        %v3943 = vsub.s32 32, %v3942
        %v3944 = vshll.u32 %v3935, %v3942
        %v3945 = vshrl.u32 %v3927, %v3943
        %v3946 = vor.u32 %v3944, %v3945
        %v3947 = vsub.s32 4294967266, %v3942
        %v3948 = vadd.s32 %v3947, 127
        %v3949 = vshll.u32 %v3948, 23
        %v3950 = vor.u32 4788187, %v3949
        %v3951 = vand.u32 2147483647, %v3950
        %v3953 = vcvt.s32.f32 %v3946
        %v3954 = vmul.f32 %v3953, %v3951
        %v3955 = vxor.u32 %v3954, 2147483648
        %v3956 = vsel %vm3873, %v3955, %v3954
        %v3957 = vsub.s32 4, %v3933
        %v3958 = vsel %vm3873, %v3957, %v3933
        %v3959 = vsel %vm3872, %v3516, %v3956
        %v3960 = vsel %vm3872, 0, %v3958
        %v3961 = vcosq.f32.pop %v3959
        %v3962 = vsinq.f32.pop %v3959
        %vm3963 = vweird.f32 %v3516
        %v3964 = vadd.s32 %v3960, 3
        %v3965 = vand.u32 %v3964, 3
        %vm3966 = vcmp.lt.s32.totalorder %v3965, 2
        %vm3967 = vcmp.eq.s32.totalorder %v3965, 0
        %v3968 = vxor.u32 %v3962, 2147483648
        %v3969 = vsel %vm3967, %v3961, %v3968
        %vm3970 = vcmp.eq.s32.totalorder %v3965, 2
        %v3971 = vxor.u32 %v3961, 2147483648
        %v3972 = vsel %vm3970, %v3971, %v3962
        %v3973 = vsel %vm3966, %v3969, %v3972
        %v3974 = vsel %vm3963, nan, %v3973
        %v3975 = vand.u32 2147483647, %v3521
        %vm3976 = vcmp.le.f32.partialorder %v3975, 0.7853982
        %vm3977 = vcmp.lt.s32.totalorder %v3521, 0
        %v3978 = vand.u32 %v3521, 2139095040
        %v3979 = vshrl.u32 %v3978, 23
        %v3980 = vsub.s32 %v3979, 127
        %v3981 = vand.u32 2147483647, %v3521
        %v3982 = vand.u32 %v3981, 8388607
        %v3983 = vor.u32 %v3982, 8388608
        %v3984 = vsub.s32 0, %v3983
        %v3985 = vadd.s32 %v3980, 1
        %vm3986 = vcmp.gt.s32.totalorder %v3985, 0
        %v3987 = vsel %vm3986, %v3985, 0
        %v3988 = vshrl.u32 %v3987, 5
        %v3989 = vand.u32 %v3987, 31
        %v3990 = vsub.s32 32, %v3989
        %v3991 = vshrl.u32 683565275, %v3990
        %v3992 = vshll.u32 683565275, %v3989
        %v3993 = vshrl.u32 2475754826, %v3990
        %v3994 = vor.u32 %v3992, %v3993
        %v3995 = vshll.u32 2475754826, %v3989
        %v3996 = vshrl.u32 2131351028, %v3990
        %v3997 = vor.u32 %v3995, %v3996
        %v3998 = vshll.u32 2131351028, %v3989
        %v3999 = vshrl.u32 2102212464, %v3990
        %v4000 = vor.u32 %v3998, %v3999
        %v4001 = vshll.u32 2102212464, %v3989
        %v4002 = vshrl.u32 920167782, %v3990
        %v4003 = vor.u32 %v4001, %v4002
        %v4004 = vshll.u32 920167782, %v3989
        %v4005 = vshrl.u32 1326507024, %v3990
        %v4006 = vor.u32 %v4004, %v4005
        %vm4007 = vcmp.lt.s32.totalorder %v3988, 1
        %vm4008 = vcmp.lt.s32.totalorder %v3988, 2
        %vm4009 = vcmp.lt.s32.totalorder %v3988, 3
        %vm4010 = vcmp.lt.s32.totalorder %v3988, 4
        %v4011 = vsel %vm4007, %v3991, %v3994
        %v4012 = vsel %vm4010, %v4000, 2102212464
        %v4013 = vsel %vm4009, %v3997, %v4012
        %v4014 = vsel %vm4008, %v4011, %v4013
        %v4015 = vsel %vm4007, %v3994, %v3997
        %v4016 = vsel %vm4010, %v4003, 920167782
        %v4017 = vsel %vm4009, %v4000, %v4016
        %v4018 = vsel %vm4008, %v4015, %v4017
        %v4019 = vsel %vm4007, %v3997, %v4000
        %v4020 = vsel %vm4010, %v4006, 1326507024
        %v4021 = vsel %vm4009, %v4003, %v4020
        %v4022 = vsel %vm4008, %v4019, %v4021
        %v4023 = vshll.u32 %v3983, 8
        %v4024 = vmul.u32.u64.compose %v4023, %v4022
        %v4025 = vextract.low.u32 %v4024
        %v4026 = vextract.high.u32 %v4024
        %v4027 = vmul.u32.u64.compose %v4023, %v4018
        %v4028 = vextract.low.u32 %v4027
        %v4029 = vextract.high.u32 %v4027
        %v4030 = vmul.u32 %v4023, %v4014
        %v4031 = vadd.s32 %v4026, %v4028
        %vm4032 = vc.u32 %v4026, %v4028
        %v4033 = vadd.s32 %v4029, 1
        %v4034 = vsel %vm4032, %v4033, %v4029
        %v4035 = vadd.s32 %v4030, %v4034
        %v4036 = vadd.s32 %v4035, 536870912
        %v4037 = vshrl.u32 %v4036, 30
        %v4038 = vshll.u32 %v4037, 30
        %v4039 = vsub.s32 %v4035, %v4038
        %vm4040 = vcmp.lt.s32.totalorder %v4039, 0
        %v4041 = vsub.s32 0, %v4039
        %v4042 = vsel %vm4040, %v4041, %v4039
        %v4043 = vclz %v4042
        %v4044 = vsub.s32 %v4043, 2
        %vm4045 = vcmp.gt.s32.totalorder 0, %v4044
        %v4046 = vsel %vm4045, 0, %v4044
        %v4047 = vsub.s32 32, %v4046
        %v4048 = vshll.u32 %v4039, %v4046
        %v4049 = vshrl.u32 %v4031, %v4047
        %v4050 = vor.u32 %v4048, %v4049
        %v4051 = vsub.s32 4294967266, %v4046
        %v4052 = vadd.s32 %v4051, 127
        %v4053 = vshll.u32 %v4052, 23
        %v4054 = vor.u32 4788187, %v4053
        %v4055 = vand.u32 2147483647, %v4054
        %v4057 = vcvt.s32.f32 %v4050
        %v4058 = vmul.f32 %v4057, %v4055
        %v4059 = vxor.u32 %v4058, 2147483648
        %v4060 = vsel %vm3977, %v4059, %v4058
        %v4061 = vsub.s32 4, %v4037
        %v4062 = vsel %vm3977, %v4061, %v4037
        %v4063 = vsel %vm3976, %v3521, %v4060
        %v4064 = vsel %vm3976, 0, %v4062
        %v4065 = vcosq.f32.pop %v4063
        %v4066 = vsinq.f32.pop %v4063
        %vm4067 = vweird.f32 %v3521
        %v4068 = vadd.s32 %v4064, 3
        %v4069 = vand.u32 %v4068, 3
        %vm4070 = vcmp.lt.s32.totalorder %v4069, 2
        %vm4071 = vcmp.eq.s32.totalorder %v4069, 0
        %v4072 = vxor.u32 %v4066, 2147483648
        %v4073 = vsel %vm4071, %v4065, %v4072
        %vm4074 = vcmp.eq.s32.totalorder %v4069, 2
        %v4075 = vxor.u32 %v4065, 2147483648
        %v4076 = vsel %vm4074, %v4075, %v4066
        %v4077 = vsel %vm4070, %v4073, %v4076
        %v4078 = vsel %vm4067, nan, %v4077
        %v4079 = vand.u32 2147483647, %v3526
        %vm4080 = vcmp.le.f32.partialorder %v4079, 0.7853982
        %vm4081 = vcmp.lt.s32.totalorder %v3526, 0
        %v4082 = vand.u32 %v3526, 2139095040
        %v4083 = vshrl.u32 %v4082, 23
        %v4084 = vsub.s32 %v4083, 127
        %v4085 = vand.u32 2147483647, %v3526
        %v4086 = vand.u32 %v4085, 8388607
        %v4087 = vor.u32 %v4086, 8388608
        %v4088 = vsub.s32 0, %v4087
        %v4089 = vadd.s32 %v4084, 1
        %vm4090 = vcmp.gt.s32.totalorder %v4089, 0
        %v4091 = vsel %vm4090, %v4089, 0
        %v4092 = vshrl.u32 %v4091, 5
        %v4093 = vand.u32 %v4091, 31
        %v4094 = vsub.s32 32, %v4093
        %v4095 = vshrl.u32 683565275, %v4094
        %v4096 = vshll.u32 683565275, %v4093
        %v4097 = vshrl.u32 2475754826, %v4094
        %v4098 = vor.u32 %v4096, %v4097
        %v4099 = vshll.u32 2475754826, %v4093
        %v4100 = vshrl.u32 2131351028, %v4094
        %v4101 = vor.u32 %v4099, %v4100
        %v4102 = vshll.u32 2131351028, %v4093
        %v4103 = vshrl.u32 2102212464, %v4094
        %v4104 = vor.u32 %v4102, %v4103
        %v4105 = vshll.u32 2102212464, %v4093
        %v4106 = vshrl.u32 920167782, %v4094
        %v4107 = vor.u32 %v4105, %v4106
        %v4108 = vshll.u32 920167782, %v4093
        %v4109 = vshrl.u32 1326507024, %v4094
        %v4110 = vor.u32 %v4108, %v4109
        %vm4111 = vcmp.lt.s32.totalorder %v4092, 1
        %vm4112 = vcmp.lt.s32.totalorder %v4092, 2
        %vm4113 = vcmp.lt.s32.totalorder %v4092, 3
        %vm4114 = vcmp.lt.s32.totalorder %v4092, 4
        %v4115 = vsel %vm4111, %v4095, %v4098
        %v4116 = vsel %vm4114, %v4104, 2102212464
        %v4117 = vsel %vm4113, %v4101, %v4116
        %v4118 = vsel %vm4112, %v4115, %v4117
        %v4119 = vsel %vm4111, %v4098, %v4101
        %v4120 = vsel %vm4114, %v4107, 920167782
        %v4121 = vsel %vm4113, %v4104, %v4120
        %v4122 = vsel %vm4112, %v4119, %v4121
        %v4123 = vsel %vm4111, %v4101, %v4104
        %v4124 = vsel %vm4114, %v4110, 1326507024
        %v4125 = vsel %vm4113, %v4107, %v4124
        %v4126 = vsel %vm4112, %v4123, %v4125
        %v4127 = vshll.u32 %v4087, 8
        %v4128 = vmul.u32.u64.compose %v4127, %v4126
        %v4129 = vextract.low.u32 %v4128
        %v4130 = vextract.high.u32 %v4128
        %v4131 = vmul.u32.u64.compose %v4127, %v4122
        %v4132 = vextract.low.u32 %v4131
        %v4133 = vextract.high.u32 %v4131
        %v4134 = vmul.u32 %v4127, %v4118
        %v4135 = vadd.s32 %v4130, %v4132
        %vm4136 = vc.u32 %v4130, %v4132
        %v4137 = vadd.s32 %v4133, 1
        %v4138 = vsel %vm4136, %v4137, %v4133
        %v4139 = vadd.s32 %v4134, %v4138
        %v4140 = vadd.s32 %v4139, 536870912
        %v4141 = vshrl.u32 %v4140, 30
        %v4142 = vshll.u32 %v4141, 30
        %v4143 = vsub.s32 %v4139, %v4142
        %vm4144 = vcmp.lt.s32.totalorder %v4143, 0
        %v4145 = vsub.s32 0, %v4143
        %v4146 = vsel %vm4144, %v4145, %v4143
        %v4147 = vclz %v4146
        %v4148 = vsub.s32 %v4147, 2
        %vm4149 = vcmp.gt.s32.totalorder 0, %v4148
        %v4150 = vsel %vm4149, 0, %v4148
        %v4151 = vsub.s32 32, %v4150
        %v4152 = vshll.u32 %v4143, %v4150
        %v4153 = vshrl.u32 %v4135, %v4151
        %v4154 = vor.u32 %v4152, %v4153
        %v4155 = vsub.s32 4294967266, %v4150
        %v4156 = vadd.s32 %v4155, 127
        %v4157 = vshll.u32 %v4156, 23
        %v4158 = vor.u32 4788187, %v4157
        %v4159 = vand.u32 2147483647, %v4158
        %v4161 = vcvt.s32.f32 %v4154
        %v4162 = vmul.f32 %v4161, %v4159
        %v4163 = vxor.u32 %v4162, 2147483648
        %v4164 = vsel %vm4081, %v4163, %v4162
        %v4165 = vsub.s32 4, %v4141
        %v4166 = vsel %vm4081, %v4165, %v4141
        %v4167 = vsel %vm4080, %v3526, %v4164
        %v4168 = vsel %vm4080, 0, %v4166
        %v4169 = vcosq.f32.pop %v4167
        %v4170 = vsinq.f32.pop %v4167
        %vm4171 = vweird.f32 %v3526
        %v4172 = vadd.s32 %v4168, 3
        %v4173 = vand.u32 %v4172, 3
        %vm4174 = vcmp.lt.s32.totalorder %v4173, 2
        %vm4175 = vcmp.eq.s32.totalorder %v4173, 0
        %v4176 = vxor.u32 %v4170, 2147483648
        %v4177 = vsel %vm4175, %v4169, %v4176
        %vm4178 = vcmp.eq.s32.totalorder %v4173, 2
        %v4179 = vxor.u32 %v4169, 2147483648
        %v4180 = vsel %vm4178, %v4179, %v4170
        %v4181 = vsel %vm4174, %v4177, %v4180
        %v4182 = vsel %vm4171, nan, %v4181
        %v4183 = vand.u32 2147483647, %v3531
        %vm4184 = vcmp.le.f32.partialorder %v4183, 0.7853982
        %vm4185 = vcmp.lt.s32.totalorder %v3531, 0
        %v4186 = vand.u32 %v3531, 2139095040
        %v4187 = vshrl.u32 %v4186, 23
        %v4188 = vsub.s32 %v4187, 127
        %v4189 = vand.u32 2147483647, %v3531
        %v4190 = vand.u32 %v4189, 8388607
        %v4191 = vor.u32 %v4190, 8388608
        %v4192 = vsub.s32 0, %v4191
        %v4193 = vadd.s32 %v4188, 1
        %vm4194 = vcmp.gt.s32.totalorder %v4193, 0
        %v4195 = vsel %vm4194, %v4193, 0
        %v4196 = vshrl.u32 %v4195, 5
        %v4197 = vand.u32 %v4195, 31
        %v4198 = vsub.s32 32, %v4197
        %v4199 = vshrl.u32 683565275, %v4198
        %v4200 = vshll.u32 683565275, %v4197
        %v4201 = vshrl.u32 2475754826, %v4198
        %v4202 = vor.u32 %v4200, %v4201
        %v4203 = vshll.u32 2475754826, %v4197
        %v4204 = vshrl.u32 2131351028, %v4198
        %v4205 = vor.u32 %v4203, %v4204
        %v4206 = vshll.u32 2131351028, %v4197
        %v4207 = vshrl.u32 2102212464, %v4198
        %v4208 = vor.u32 %v4206, %v4207
        %v4209 = vshll.u32 2102212464, %v4197
        %v4210 = vshrl.u32 920167782, %v4198
        %v4211 = vor.u32 %v4209, %v4210
        %v4212 = vshll.u32 920167782, %v4197
        %v4213 = vshrl.u32 1326507024, %v4198
        %v4214 = vor.u32 %v4212, %v4213
        %vm4215 = vcmp.lt.s32.totalorder %v4196, 1
        %vm4216 = vcmp.lt.s32.totalorder %v4196, 2
        %vm4217 = vcmp.lt.s32.totalorder %v4196, 3
        %vm4218 = vcmp.lt.s32.totalorder %v4196, 4
        %v4219 = vsel %vm4215, %v4199, %v4202
        %v4220 = vsel %vm4218, %v4208, 2102212464
        %v4221 = vsel %vm4217, %v4205, %v4220
        %v4222 = vsel %vm4216, %v4219, %v4221
        %v4223 = vsel %vm4215, %v4202, %v4205
        %v4224 = vsel %vm4218, %v4211, 920167782
        %v4225 = vsel %vm4217, %v4208, %v4224
        %v4226 = vsel %vm4216, %v4223, %v4225
        %v4227 = vsel %vm4215, %v4205, %v4208
        %v4228 = vsel %vm4218, %v4214, 1326507024
        %v4229 = vsel %vm4217, %v4211, %v4228
        %v4230 = vsel %vm4216, %v4227, %v4229
        %v4231 = vshll.u32 %v4191, 8
        %v4232 = vmul.u32.u64.compose %v4231, %v4230
        %v4233 = vextract.low.u32 %v4232
        %v4234 = vextract.high.u32 %v4232
        %v4235 = vmul.u32.u64.compose %v4231, %v4226
        %v4236 = vextract.low.u32 %v4235
        %v4237 = vextract.high.u32 %v4235
        %v4238 = vmul.u32 %v4231, %v4222
        %v4239 = vadd.s32 %v4234, %v4236
        %vm4240 = vc.u32 %v4234, %v4236
        %v4241 = vadd.s32 %v4237, 1
        %v4242 = vsel %vm4240, %v4241, %v4237
        %v4243 = vadd.s32 %v4238, %v4242
        %v4244 = vadd.s32 %v4243, 536870912
        %v4245 = vshrl.u32 %v4244, 30
        %v4246 = vshll.u32 %v4245, 30
        %v4247 = vsub.s32 %v4243, %v4246
        %vm4248 = vcmp.lt.s32.totalorder %v4247, 0
        %v4249 = vsub.s32 0, %v4247
        %v4250 = vsel %vm4248, %v4249, %v4247
        %v4251 = vclz %v4250
        %v4252 = vsub.s32 %v4251, 2
        %vm4253 = vcmp.gt.s32.totalorder 0, %v4252
        %v4254 = vsel %vm4253, 0, %v4252
        %v4255 = vsub.s32 32, %v4254
        %v4256 = vshll.u32 %v4247, %v4254
        %v4257 = vshrl.u32 %v4239, %v4255
        %v4258 = vor.u32 %v4256, %v4257
        %v4259 = vsub.s32 4294967266, %v4254
        %v4260 = vadd.s32 %v4259, 127
        %v4261 = vshll.u32 %v4260, 23
        %v4262 = vor.u32 4788187, %v4261
        %v4263 = vand.u32 2147483647, %v4262
        %v4265 = vcvt.s32.f32 %v4258
        %v4266 = vmul.f32 %v4265, %v4263
        %v4267 = vxor.u32 %v4266, 2147483648
        %v4268 = vsel %vm4185, %v4267, %v4266
        %v4269 = vsub.s32 4, %v4245
        %v4270 = vsel %vm4185, %v4269, %v4245
        %v4271 = vsel %vm4184, %v3531, %v4268
        %v4272 = vsel %vm4184, 0, %v4270
        %v4273 = vcosq.f32.pop %v4271
        %v4274 = vsinq.f32.pop %v4271
        %vm4275 = vweird.f32 %v3531
        %v4276 = vadd.s32 %v4272, 3
        %v4277 = vand.u32 %v4276, 3
        %vm4278 = vcmp.lt.s32.totalorder %v4277, 2
        %vm4279 = vcmp.eq.s32.totalorder %v4277, 0
        %v4280 = vxor.u32 %v4274, 2147483648
        %v4281 = vsel %vm4279, %v4273, %v4280
        %vm4282 = vcmp.eq.s32.totalorder %v4277, 2
        %v4283 = vxor.u32 %v4273, 2147483648
        %v4284 = vsel %vm4282, %v4283, %v4274
        %v4285 = vsel %vm4278, %v4281, %v4284
        %v4286 = vsel %vm4275, nan, %v4285
        %v4287 = vand.u32 2147483647, %v3536
        %vm4288 = vcmp.le.f32.partialorder %v4287, 0.7853982
        %vm4289 = vcmp.lt.s32.totalorder %v3536, 0
        %v4290 = vand.u32 %v3536, 2139095040
        %v4291 = vshrl.u32 %v4290, 23
        %v4292 = vsub.s32 %v4291, 127
        %v4293 = vand.u32 2147483647, %v3536
        %v4294 = vand.u32 %v4293, 8388607
        %v4295 = vor.u32 %v4294, 8388608
        %v4296 = vsub.s32 0, %v4295
        %v4297 = vadd.s32 %v4292, 1
        %vm4298 = vcmp.gt.s32.totalorder %v4297, 0
        %v4299 = vsel %vm4298, %v4297, 0
        %v4300 = vshrl.u32 %v4299, 5
        %v4301 = vand.u32 %v4299, 31
        %v4302 = vsub.s32 32, %v4301
        %v4303 = vshrl.u32 683565275, %v4302
        %v4304 = vshll.u32 683565275, %v4301
        %v4305 = vshrl.u32 2475754826, %v4302
        %v4306 = vor.u32 %v4304, %v4305
        %v4307 = vshll.u32 2475754826, %v4301
        %v4308 = vshrl.u32 2131351028, %v4302
        %v4309 = vor.u32 %v4307, %v4308
        %v4310 = vshll.u32 2131351028, %v4301
        %v4311 = vshrl.u32 2102212464, %v4302
        %v4312 = vor.u32 %v4310, %v4311
        %v4313 = vshll.u32 2102212464, %v4301
        %v4314 = vshrl.u32 920167782, %v4302
        %v4315 = vor.u32 %v4313, %v4314
        %v4316 = vshll.u32 920167782, %v4301
        %v4317 = vshrl.u32 1326507024, %v4302
        %v4318 = vor.u32 %v4316, %v4317
        %vm4319 = vcmp.lt.s32.totalorder %v4300, 1
        %vm4320 = vcmp.lt.s32.totalorder %v4300, 2
        %vm4321 = vcmp.lt.s32.totalorder %v4300, 3
        %vm4322 = vcmp.lt.s32.totalorder %v4300, 4
        %v4323 = vsel %vm4319, %v4303, %v4306
        %v4324 = vsel %vm4322, %v4312, 2102212464
        %v4325 = vsel %vm4321, %v4309, %v4324
        %v4326 = vsel %vm4320, %v4323, %v4325
        %v4327 = vsel %vm4319, %v4306, %v4309
        %v4328 = vsel %vm4322, %v4315, 920167782
        %v4329 = vsel %vm4321, %v4312, %v4328
        %v4330 = vsel %vm4320, %v4327, %v4329
        %v4331 = vsel %vm4319, %v4309, %v4312
        %v4332 = vsel %vm4322, %v4318, 1326507024
        %v4333 = vsel %vm4321, %v4315, %v4332
        %v4334 = vsel %vm4320, %v4331, %v4333
        %v4335 = vshll.u32 %v4295, 8
        %v4336 = vmul.u32.u64.compose %v4335, %v4334
        %v4337 = vextract.low.u32 %v4336
        %v4338 = vextract.high.u32 %v4336
        %v4339 = vmul.u32.u64.compose %v4335, %v4330
        %v4340 = vextract.low.u32 %v4339
        %v4341 = vextract.high.u32 %v4339
        %v4342 = vmul.u32 %v4335, %v4326
        %v4343 = vadd.s32 %v4338, %v4340
        %vm4344 = vc.u32 %v4338, %v4340
        %v4345 = vadd.s32 %v4341, 1
        %v4346 = vsel %vm4344, %v4345, %v4341
        %v4347 = vadd.s32 %v4342, %v4346
        %v4348 = vadd.s32 %v4347, 536870912
        %v4349 = vshrl.u32 %v4348, 30
        %v4350 = vshll.u32 %v4349, 30
        %v4351 = vsub.s32 %v4347, %v4350
        %vm4352 = vcmp.lt.s32.totalorder %v4351, 0
        %v4353 = vsub.s32 0, %v4351
        %v4354 = vsel %vm4352, %v4353, %v4351
        %v4355 = vclz %v4354
        %v4356 = vsub.s32 %v4355, 2
        %vm4357 = vcmp.gt.s32.totalorder 0, %v4356
        %v4358 = vsel %vm4357, 0, %v4356
        %v4359 = vsub.s32 32, %v4358
        %v4360 = vshll.u32 %v4351, %v4358
        %v4361 = vshrl.u32 %v4343, %v4359
        %v4362 = vor.u32 %v4360, %v4361
        %v4363 = vsub.s32 4294967266, %v4358
        %v4364 = vadd.s32 %v4363, 127
        %v4365 = vshll.u32 %v4364, 23
        %v4366 = vor.u32 4788187, %v4365
        %v4367 = vand.u32 2147483647, %v4366
        %v4369 = vcvt.s32.f32 %v4362
        %v4370 = vmul.f32 %v4369, %v4367
        %v4371 = vxor.u32 %v4370, 2147483648
        %v4372 = vsel %vm4289, %v4371, %v4370
        %v4373 = vsub.s32 4, %v4349
        %v4374 = vsel %vm4289, %v4373, %v4349
        %v4375 = vsel %vm4288, %v3536, %v4372
        %v4376 = vsel %vm4288, 0, %v4374
        %v4377 = vcosq.f32.pop %v4375
        %v4378 = vsinq.f32.pop %v4375
        %vm4379 = vweird.f32 %v3536
        %v4380 = vadd.s32 %v4376, 3
        %v4381 = vand.u32 %v4380, 3
        %vm4382 = vcmp.lt.s32.totalorder %v4381, 2
        %vm4383 = vcmp.eq.s32.totalorder %v4381, 0
        %v4384 = vxor.u32 %v4378, 2147483648
        %v4385 = vsel %vm4383, %v4377, %v4384
        %vm4386 = vcmp.eq.s32.totalorder %v4381, 2
        %v4387 = vxor.u32 %v4377, 2147483648
        %v4388 = vsel %vm4386, %v4387, %v4378
        %v4389 = vsel %vm4382, %v4385, %v4388
        %v4390 = vsel %vm4379, nan, %v4389
        %v4391 = vand.u32 2147483647, %v3541
        %vm4392 = vcmp.le.f32.partialorder %v4391, 0.7853982
        %vm4393 = vcmp.lt.s32.totalorder %v3541, 0
        %v4394 = vand.u32 %v3541, 2139095040
        %v4395 = vshrl.u32 %v4394, 23
        %v4396 = vsub.s32 %v4395, 127
        %v4397 = vand.u32 2147483647, %v3541
        %v4398 = vand.u32 %v4397, 8388607
        %v4399 = vor.u32 %v4398, 8388608
        %v4400 = vsub.s32 0, %v4399
        %v4401 = vadd.s32 %v4396, 1
        %vm4402 = vcmp.gt.s32.totalorder %v4401, 0
        %v4403 = vsel %vm4402, %v4401, 0
        %v4404 = vshrl.u32 %v4403, 5
        %v4405 = vand.u32 %v4403, 31
        %v4406 = vsub.s32 32, %v4405
        %v4407 = vshrl.u32 683565275, %v4406
        %v4408 = vshll.u32 683565275, %v4405
        %v4409 = vshrl.u32 2475754826, %v4406
        %v4410 = vor.u32 %v4408, %v4409
        %v4411 = vshll.u32 2475754826, %v4405
        %v4412 = vshrl.u32 2131351028, %v4406
        %v4413 = vor.u32 %v4411, %v4412
        %v4414 = vshll.u32 2131351028, %v4405
        %v4415 = vshrl.u32 2102212464, %v4406
        %v4416 = vor.u32 %v4414, %v4415
        %v4417 = vshll.u32 2102212464, %v4405
        %v4418 = vshrl.u32 920167782, %v4406
        %v4419 = vor.u32 %v4417, %v4418
        %v4420 = vshll.u32 920167782, %v4405
        %v4421 = vshrl.u32 1326507024, %v4406
        %v4422 = vor.u32 %v4420, %v4421
        %vm4423 = vcmp.lt.s32.totalorder %v4404, 1
        %vm4424 = vcmp.lt.s32.totalorder %v4404, 2
        %vm4425 = vcmp.lt.s32.totalorder %v4404, 3
        %vm4426 = vcmp.lt.s32.totalorder %v4404, 4
        %v4427 = vsel %vm4423, %v4407, %v4410
        %v4428 = vsel %vm4426, %v4416, 2102212464
        %v4429 = vsel %vm4425, %v4413, %v4428
        %v4430 = vsel %vm4424, %v4427, %v4429
        %v4431 = vsel %vm4423, %v4410, %v4413
        %v4432 = vsel %vm4426, %v4419, 920167782
        %v4433 = vsel %vm4425, %v4416, %v4432
        %v4434 = vsel %vm4424, %v4431, %v4433
        %v4435 = vsel %vm4423, %v4413, %v4416
        %v4436 = vsel %vm4426, %v4422, 1326507024
        %v4437 = vsel %vm4425, %v4419, %v4436
        %v4438 = vsel %vm4424, %v4435, %v4437
        %v4439 = vshll.u32 %v4399, 8
        %v4440 = vmul.u32.u64.compose %v4439, %v4438
        %v4441 = vextract.low.u32 %v4440
        %v4442 = vextract.high.u32 %v4440
        %v4443 = vmul.u32.u64.compose %v4439, %v4434
        %v4444 = vextract.low.u32 %v4443
        %v4445 = vextract.high.u32 %v4443
        %v4446 = vmul.u32 %v4439, %v4430
        %v4447 = vadd.s32 %v4442, %v4444
        %vm4448 = vc.u32 %v4442, %v4444
        %v4449 = vadd.s32 %v4445, 1
        %v4450 = vsel %vm4448, %v4449, %v4445
        %v4451 = vadd.s32 %v4446, %v4450
        %v4452 = vadd.s32 %v4451, 536870912
        %v4453 = vshrl.u32 %v4452, 30
        %v4454 = vshll.u32 %v4453, 30
        %v4455 = vsub.s32 %v4451, %v4454
        %vm4456 = vcmp.lt.s32.totalorder %v4455, 0
        %v4457 = vsub.s32 0, %v4455
        %v4458 = vsel %vm4456, %v4457, %v4455
        %v4459 = vclz %v4458
        %v4460 = vsub.s32 %v4459, 2
        %vm4461 = vcmp.gt.s32.totalorder 0, %v4460
        %v4462 = vsel %vm4461, 0, %v4460
        %v4463 = vsub.s32 32, %v4462
        %v4464 = vshll.u32 %v4455, %v4462
        %v4465 = vshrl.u32 %v4447, %v4463
        %v4466 = vor.u32 %v4464, %v4465
        %v4467 = vsub.s32 4294967266, %v4462
        %v4468 = vadd.s32 %v4467, 127
        %v4469 = vshll.u32 %v4468, 23
        %v4470 = vor.u32 4788187, %v4469
        %v4471 = vand.u32 2147483647, %v4470
        %v4473 = vcvt.s32.f32 %v4466
        %v4474 = vmul.f32 %v4473, %v4471
        %v4475 = vxor.u32 %v4474, 2147483648
        %v4476 = vsel %vm4393, %v4475, %v4474
        %v4477 = vsub.s32 4, %v4453
        %v4478 = vsel %vm4393, %v4477, %v4453
        %v4479 = vsel %vm4392, %v3541, %v4476
        %v4480 = vsel %vm4392, 0, %v4478
        %v4481 = vcosq.f32.pop %v4479
        %v4482 = vsinq.f32.pop %v4479
        %vm4483 = vweird.f32 %v3541
        %v4484 = vadd.s32 %v4480, 3
        %v4485 = vand.u32 %v4484, 3
        %vm4486 = vcmp.lt.s32.totalorder %v4485, 2
        %vm4487 = vcmp.eq.s32.totalorder %v4485, 0
        %v4488 = vxor.u32 %v4482, 2147483648
        %v4489 = vsel %vm4487, %v4481, %v4488
        %vm4490 = vcmp.eq.s32.totalorder %v4485, 2
        %v4491 = vxor.u32 %v4481, 2147483648
        %v4492 = vsel %vm4490, %v4491, %v4482
        %v4493 = vsel %vm4486, %v4489, %v4492
        %v4494 = vsel %vm4483, nan, %v4493
        %v4495 = vand.u32 2147483647, %v3546
        %vm4496 = vcmp.le.f32.partialorder %v4495, 0.7853982
        %vm4497 = vcmp.lt.s32.totalorder %v3546, 0
        %v4498 = vand.u32 %v3546, 2139095040
        %v4499 = vshrl.u32 %v4498, 23
        %v4500 = vsub.s32 %v4499, 127
        %v4501 = vand.u32 2147483647, %v3546
        %v4502 = vand.u32 %v4501, 8388607
        %v4503 = vor.u32 %v4502, 8388608
        %v4504 = vsub.s32 0, %v4503
        %v4505 = vadd.s32 %v4500, 1
        %vm4506 = vcmp.gt.s32.totalorder %v4505, 0
        %v4507 = vsel %vm4506, %v4505, 0
        %v4508 = vshrl.u32 %v4507, 5
        %v4509 = vand.u32 %v4507, 31
        %v4510 = vsub.s32 32, %v4509
        %v4511 = vshrl.u32 683565275, %v4510
        %v4512 = vshll.u32 683565275, %v4509
        %v4513 = vshrl.u32 2475754826, %v4510
        %v4514 = vor.u32 %v4512, %v4513
        %v4515 = vshll.u32 2475754826, %v4509
        %v4516 = vshrl.u32 2131351028, %v4510
        %v4517 = vor.u32 %v4515, %v4516
        %v4518 = vshll.u32 2131351028, %v4509
        %v4519 = vshrl.u32 2102212464, %v4510
        %v4520 = vor.u32 %v4518, %v4519
        %v4521 = vshll.u32 2102212464, %v4509
        %v4522 = vshrl.u32 920167782, %v4510
        %v4523 = vor.u32 %v4521, %v4522
        %v4524 = vshll.u32 920167782, %v4509
        %v4525 = vshrl.u32 1326507024, %v4510
        %v4526 = vor.u32 %v4524, %v4525
        %vm4527 = vcmp.lt.s32.totalorder %v4508, 1
        %vm4528 = vcmp.lt.s32.totalorder %v4508, 2
        %vm4529 = vcmp.lt.s32.totalorder %v4508, 3
        %vm4530 = vcmp.lt.s32.totalorder %v4508, 4
        %v4531 = vsel %vm4527, %v4511, %v4514
        %v4532 = vsel %vm4530, %v4520, 2102212464
        %v4533 = vsel %vm4529, %v4517, %v4532
        %v4534 = vsel %vm4528, %v4531, %v4533
        %v4535 = vsel %vm4527, %v4514, %v4517
        %v4536 = vsel %vm4530, %v4523, 920167782
        %v4537 = vsel %vm4529, %v4520, %v4536
        %v4538 = vsel %vm4528, %v4535, %v4537
        %v4539 = vsel %vm4527, %v4517, %v4520
        %v4540 = vsel %vm4530, %v4526, 1326507024
        %v4541 = vsel %vm4529, %v4523, %v4540
        %v4542 = vsel %vm4528, %v4539, %v4541
        %v4543 = vshll.u32 %v4503, 8
        %v4544 = vmul.u32.u64.compose %v4543, %v4542
        %v4545 = vextract.low.u32 %v4544
        %v4546 = vextract.high.u32 %v4544
        %v4547 = vmul.u32.u64.compose %v4543, %v4538
        %v4548 = vextract.low.u32 %v4547
        %v4549 = vextract.high.u32 %v4547
        %v4550 = vmul.u32 %v4543, %v4534
        %v4551 = vadd.s32 %v4546, %v4548
        %vm4552 = vc.u32 %v4546, %v4548
        %v4553 = vadd.s32 %v4549, 1
        %v4554 = vsel %vm4552, %v4553, %v4549
        %v4555 = vadd.s32 %v4550, %v4554
        %v4556 = vadd.s32 %v4555, 536870912
        %v4557 = vshrl.u32 %v4556, 30
        %v4558 = vshll.u32 %v4557, 30
        %v4559 = vsub.s32 %v4555, %v4558
        %vm4560 = vcmp.lt.s32.totalorder %v4559, 0
        %v4561 = vsub.s32 0, %v4559
        %v4562 = vsel %vm4560, %v4561, %v4559
        %v4563 = vclz %v4562
        %v4564 = vsub.s32 %v4563, 2
        %vm4565 = vcmp.gt.s32.totalorder 0, %v4564
        %v4566 = vsel %vm4565, 0, %v4564
        %v4567 = vsub.s32 32, %v4566
        %v4568 = vshll.u32 %v4559, %v4566
        %v4569 = vshrl.u32 %v4551, %v4567
        %v4570 = vor.u32 %v4568, %v4569
        %v4571 = vsub.s32 4294967266, %v4566
        %v4572 = vadd.s32 %v4571, 127
        %v4573 = vshll.u32 %v4572, 23
        %v4574 = vor.u32 4788187, %v4573
        %v4575 = vand.u32 2147483647, %v4574
        %v4577 = vcvt.s32.f32 %v4570
        %v4578 = vmul.f32 %v4577, %v4575
        %v4579 = vxor.u32 %v4578, 2147483648
        %v4580 = vsel %vm4497, %v4579, %v4578
        %v4581 = vsub.s32 4, %v4557
        %v4582 = vsel %vm4497, %v4581, %v4557
        %v4583 = vsel %vm4496, %v3546, %v4580
        %v4584 = vsel %vm4496, 0, %v4582
        %v4585 = vcosq.f32.pop %v4583
        %v4586 = vsinq.f32.pop %v4583
        %vm4587 = vweird.f32 %v3546
        %v4588 = vadd.s32 %v4584, 3
        %v4589 = vand.u32 %v4588, 3
        %vm4590 = vcmp.lt.s32.totalorder %v4589, 2
        %vm4591 = vcmp.eq.s32.totalorder %v4589, 0
        %v4592 = vxor.u32 %v4586, 2147483648
        %v4593 = vsel %vm4591, %v4585, %v4592
        %vm4594 = vcmp.eq.s32.totalorder %v4589, 2
        %v4595 = vxor.u32 %v4585, 2147483648
        %v4596 = vsel %vm4594, %v4595, %v4586
        %v4597 = vsel %vm4590, %v4593, %v4596
        %v4598 = vsel %vm4587, nan, %v4597
        %v4599 = vand.u32 2147483647, %v3551
        %vm4600 = vcmp.le.f32.partialorder %v4599, 0.7853982
        %vm4601 = vcmp.lt.s32.totalorder %v3551, 0
        %v4602 = vand.u32 %v3551, 2139095040
        %v4603 = vshrl.u32 %v4602, 23
        %v4604 = vsub.s32 %v4603, 127
        %v4605 = vand.u32 2147483647, %v3551
        %v4606 = vand.u32 %v4605, 8388607
        %v4607 = vor.u32 %v4606, 8388608
        %v4608 = vsub.s32 0, %v4607
        %v4609 = vadd.s32 %v4604, 1
        %vm4610 = vcmp.gt.s32.totalorder %v4609, 0
        %v4611 = vsel %vm4610, %v4609, 0
        %v4612 = vshrl.u32 %v4611, 5
        %v4613 = vand.u32 %v4611, 31
        %v4614 = vsub.s32 32, %v4613
        %v4615 = vshrl.u32 683565275, %v4614
        %v4616 = vshll.u32 683565275, %v4613
        %v4617 = vshrl.u32 2475754826, %v4614
        %v4618 = vor.u32 %v4616, %v4617
        %v4619 = vshll.u32 2475754826, %v4613
        %v4620 = vshrl.u32 2131351028, %v4614
        %v4621 = vor.u32 %v4619, %v4620
        %v4622 = vshll.u32 2131351028, %v4613
        %v4623 = vshrl.u32 2102212464, %v4614
        %v4624 = vor.u32 %v4622, %v4623
        %v4625 = vshll.u32 2102212464, %v4613
        %v4626 = vshrl.u32 920167782, %v4614
        %v4627 = vor.u32 %v4625, %v4626
        %v4628 = vshll.u32 920167782, %v4613
        %v4629 = vshrl.u32 1326507024, %v4614
        %v4630 = vor.u32 %v4628, %v4629
        %vm4631 = vcmp.lt.s32.totalorder %v4612, 1
        %vm4632 = vcmp.lt.s32.totalorder %v4612, 2
        %vm4633 = vcmp.lt.s32.totalorder %v4612, 3
        %vm4634 = vcmp.lt.s32.totalorder %v4612, 4
        %v4635 = vsel %vm4631, %v4615, %v4618
        %v4636 = vsel %vm4634, %v4624, 2102212464
        %v4637 = vsel %vm4633, %v4621, %v4636
        %v4638 = vsel %vm4632, %v4635, %v4637
        %v4639 = vsel %vm4631, %v4618, %v4621
        %v4640 = vsel %vm4634, %v4627, 920167782
        %v4641 = vsel %vm4633, %v4624, %v4640
        %v4642 = vsel %vm4632, %v4639, %v4641
        %v4643 = vsel %vm4631, %v4621, %v4624
        %v4644 = vsel %vm4634, %v4630, 1326507024
        %v4645 = vsel %vm4633, %v4627, %v4644
        %v4646 = vsel %vm4632, %v4643, %v4645
        %v4647 = vshll.u32 %v4607, 8
        %v4648 = vmul.u32.u64.compose %v4647, %v4646
        %v4649 = vextract.low.u32 %v4648
        %v4650 = vextract.high.u32 %v4648
        %v4651 = vmul.u32.u64.compose %v4647, %v4642
        %v4652 = vextract.low.u32 %v4651
        %v4653 = vextract.high.u32 %v4651
        %v4654 = vmul.u32 %v4647, %v4638
        %v4655 = vadd.s32 %v4650, %v4652
        %vm4656 = vc.u32 %v4650, %v4652
        %v4657 = vadd.s32 %v4653, 1
        %v4658 = vsel %vm4656, %v4657, %v4653
        %v4659 = vadd.s32 %v4654, %v4658
        %v4660 = vadd.s32 %v4659, 536870912
        %v4661 = vshrl.u32 %v4660, 30
        %v4662 = vshll.u32 %v4661, 30
        %v4663 = vsub.s32 %v4659, %v4662
        %vm4664 = vcmp.lt.s32.totalorder %v4663, 0
        %v4665 = vsub.s32 0, %v4663
        %v4666 = vsel %vm4664, %v4665, %v4663
        %v4667 = vclz %v4666
        %v4668 = vsub.s32 %v4667, 2
        %vm4669 = vcmp.gt.s32.totalorder 0, %v4668
        %v4670 = vsel %vm4669, 0, %v4668
        %v4671 = vsub.s32 32, %v4670
        %v4672 = vshll.u32 %v4663, %v4670
        %v4673 = vshrl.u32 %v4655, %v4671
        %v4674 = vor.u32 %v4672, %v4673
        %v4675 = vsub.s32 4294967266, %v4670
        %v4676 = vadd.s32 %v4675, 127
        %v4677 = vshll.u32 %v4676, 23
        %v4678 = vor.u32 4788187, %v4677
        %v4679 = vand.u32 2147483647, %v4678
        %v4681 = vcvt.s32.f32 %v4674
        %v4682 = vmul.f32 %v4681, %v4679
        %v4683 = vxor.u32 %v4682, 2147483648
        %v4684 = vsel %vm4601, %v4683, %v4682
        %v4685 = vsub.s32 4, %v4661
        %v4686 = vsel %vm4601, %v4685, %v4661
        %v4687 = vsel %vm4600, %v3551, %v4684
        %v4688 = vsel %vm4600, 0, %v4686
        %v4689 = vcosq.f32.pop %v4687
        %v4690 = vsinq.f32.pop %v4687
        %vm4691 = vweird.f32 %v3551
        %v4692 = vadd.s32 %v4688, 3
        %v4693 = vand.u32 %v4692, 3
        %vm4694 = vcmp.lt.s32.totalorder %v4693, 2
        %vm4695 = vcmp.eq.s32.totalorder %v4693, 0
        %v4696 = vxor.u32 %v4690, 2147483648
        %v4697 = vsel %vm4695, %v4689, %v4696
        %vm4698 = vcmp.eq.s32.totalorder %v4693, 2
        %v4699 = vxor.u32 %v4689, 2147483648
        %v4700 = vsel %vm4698, %v4699, %v4690
        %v4701 = vsel %vm4694, %v4697, %v4700
        %v4702 = vsel %vm4691, nan, %v4701
        %v4703 = vand.u32 2147483647, %v3556
        %vm4704 = vcmp.le.f32.partialorder %v4703, 0.7853982
        %vm4705 = vcmp.lt.s32.totalorder %v3556, 0
        %v4706 = vand.u32 %v3556, 2139095040
        %v4707 = vshrl.u32 %v4706, 23
        %v4708 = vsub.s32 %v4707, 127
        %v4709 = vand.u32 2147483647, %v3556
        %v4710 = vand.u32 %v4709, 8388607
        %v4711 = vor.u32 %v4710, 8388608
        %v4712 = vsub.s32 0, %v4711
        %v4713 = vadd.s32 %v4708, 1
        %vm4714 = vcmp.gt.s32.totalorder %v4713, 0
        %v4715 = vsel %vm4714, %v4713, 0
        %v4716 = vshrl.u32 %v4715, 5
        %v4717 = vand.u32 %v4715, 31
        %v4718 = vsub.s32 32, %v4717
        %v4719 = vshrl.u32 683565275, %v4718
        %v4720 = vshll.u32 683565275, %v4717
        %v4721 = vshrl.u32 2475754826, %v4718
        %v4722 = vor.u32 %v4720, %v4721
        %v4723 = vshll.u32 2475754826, %v4717
        %v4724 = vshrl.u32 2131351028, %v4718
        %v4725 = vor.u32 %v4723, %v4724
        %v4726 = vshll.u32 2131351028, %v4717
        %v4727 = vshrl.u32 2102212464, %v4718
        %v4728 = vor.u32 %v4726, %v4727
        %v4729 = vshll.u32 2102212464, %v4717
        %v4730 = vshrl.u32 920167782, %v4718
        %v4731 = vor.u32 %v4729, %v4730
        %v4732 = vshll.u32 920167782, %v4717
        %v4733 = vshrl.u32 1326507024, %v4718
        %v4734 = vor.u32 %v4732, %v4733
        %vm4735 = vcmp.lt.s32.totalorder %v4716, 1
        %vm4736 = vcmp.lt.s32.totalorder %v4716, 2
        %vm4737 = vcmp.lt.s32.totalorder %v4716, 3
        %vm4738 = vcmp.lt.s32.totalorder %v4716, 4
        %v4739 = vsel %vm4735, %v4719, %v4722
        %v4740 = vsel %vm4738, %v4728, 2102212464
        %v4741 = vsel %vm4737, %v4725, %v4740
        %v4742 = vsel %vm4736, %v4739, %v4741
        %v4743 = vsel %vm4735, %v4722, %v4725
        %v4744 = vsel %vm4738, %v4731, 920167782
        %v4745 = vsel %vm4737, %v4728, %v4744
        %v4746 = vsel %vm4736, %v4743, %v4745
        %v4747 = vsel %vm4735, %v4725, %v4728
        %v4748 = vsel %vm4738, %v4734, 1326507024
        %v4749 = vsel %vm4737, %v4731, %v4748
        %v4750 = vsel %vm4736, %v4747, %v4749
        %v4751 = vshll.u32 %v4711, 8
        %v4752 = vmul.u32.u64.compose %v4751, %v4750
        %v4753 = vextract.low.u32 %v4752
        %v4754 = vextract.high.u32 %v4752
        %v4755 = vmul.u32.u64.compose %v4751, %v4746
        %v4756 = vextract.low.u32 %v4755
        %v4757 = vextract.high.u32 %v4755
        %v4758 = vmul.u32 %v4751, %v4742
        %v4759 = vadd.s32 %v4754, %v4756
        %vm4760 = vc.u32 %v4754, %v4756
        %v4761 = vadd.s32 %v4757, 1
        %v4762 = vsel %vm4760, %v4761, %v4757
        %v4763 = vadd.s32 %v4758, %v4762
        %v4764 = vadd.s32 %v4763, 536870912
        %v4765 = vshrl.u32 %v4764, 30
        %v4766 = vshll.u32 %v4765, 30
        %v4767 = vsub.s32 %v4763, %v4766
        %vm4768 = vcmp.lt.s32.totalorder %v4767, 0
        %v4769 = vsub.s32 0, %v4767
        %v4770 = vsel %vm4768, %v4769, %v4767
        %v4771 = vclz %v4770
        %v4772 = vsub.s32 %v4771, 2
        %vm4773 = vcmp.gt.s32.totalorder 0, %v4772
        %v4774 = vsel %vm4773, 0, %v4772
        %v4775 = vsub.s32 32, %v4774
        %v4776 = vshll.u32 %v4767, %v4774
        %v4777 = vshrl.u32 %v4759, %v4775
        %v4778 = vor.u32 %v4776, %v4777
        %v4779 = vsub.s32 4294967266, %v4774
        %v4780 = vadd.s32 %v4779, 127
        %v4781 = vshll.u32 %v4780, 23
        %v4782 = vor.u32 4788187, %v4781
        %v4783 = vand.u32 2147483647, %v4782
        %v4785 = vcvt.s32.f32 %v4778
        %v4786 = vmul.f32 %v4785, %v4783
        %v4787 = vxor.u32 %v4786, 2147483648
        %v4788 = vsel %vm4705, %v4787, %v4786
        %v4789 = vsub.s32 4, %v4765
        %v4790 = vsel %vm4705, %v4789, %v4765
        %v4791 = vsel %vm4704, %v3556, %v4788
        %v4792 = vsel %vm4704, 0, %v4790
        %v4793 = vcosq.f32.pop %v4791
        %v4794 = vsinq.f32.pop %v4791
        %vm4795 = vweird.f32 %v3556
        %v4796 = vadd.s32 %v4792, 3
        %v4797 = vand.u32 %v4796, 3
        %vm4798 = vcmp.lt.s32.totalorder %v4797, 2
        %vm4799 = vcmp.eq.s32.totalorder %v4797, 0
        %v4800 = vxor.u32 %v4794, 2147483648
        %v4801 = vsel %vm4799, %v4793, %v4800
        %vm4802 = vcmp.eq.s32.totalorder %v4797, 2
        %v4803 = vxor.u32 %v4793, 2147483648
        %v4804 = vsel %vm4802, %v4803, %v4794
        %v4805 = vsel %vm4798, %v4801, %v4804
        %v4806 = vsel %vm4795, nan, %v4805
        %v4807 = vmul.f32 %v3662, %v3662
        %v4808 = vmul.f32 %v3766, %v3766
        %v4809 = vmul.f32 %v3870, %v3870
        %v4810 = vmul.f32 %v3974, %v3974
        %v4811 = vmul.f32 %v4078, %v4078
        %v4812 = vmul.f32 %v4182, %v4182
        %v4813 = vmul.f32 %v4286, %v4286
        %v4814 = vmul.f32 %v4390, %v4390
        %v4815 = vmul.f32 %v4494, %v4494
        %v4816 = vmul.f32 %v4598, %v4598
        %v4817 = vmul.f32 %v4702, %v4702
        %v4818 = vmul.f32 %v4806, %v4806
        %v4819 = vadd.f32 %v3501, %v4807
        %v4820 = vadd.f32 %v3506, %v4808
        %v4821 = vadd.f32 %v3511, %v4809
        %v4822 = vadd.f32 %v3516, %v4810
        %v4823 = vadd.f32 %v3521, %v4811
        %v4824 = vadd.f32 %v3526, %v4812
        %v4825 = vadd.f32 %v3531, %v4813
        %v4826 = vadd.f32 %v3536, %v4814
        %v4827 = vadd.f32 %v3541, %v4815
        %v4828 = vadd.f32 %v3546, %v4816
        %v4829 = vadd.f32 %v3551, %v4817
        %v4830 = vadd.f32 %v3556, %v4818
        %s4831 = scalar_lea.vmem %s3, 192
        %v4832 = vld [vmem:[%s4831] sm:$0xff]
        %v4833 = vld [vmem:[%s4831 + $0x8] sm:$0xff]
        %v4834 = vld [vmem:[%s4831 + $0x10] sm:$0xff]
        %v4835 = vld [vmem:[%s4831 + $0x18] sm:$0xff]
        %v4836 = vld [vmem:[%s4831 + $0x20] sm:$0xff]
        %v4837 = vld [vmem:[%s4831 + $0x28] sm:$0xff]
        %v4838 = vld [vmem:[%s4831 + $0x30] sm:$0xff]
        %v4839 = vld [vmem:[%s4831 + $0x38] sm:$0xff]
        %v4840 = vld [vmem:[%s4831 + $0x40] sm:$0xff]
        %v4841 = vld [vmem:[%s4831 + $0x48] sm:$0xff]
        %v4842 = vld [vmem:[%s4831 + $0x50] sm:$0xff]
        %v4843 = vld [vmem:[%s4831 + $0x58] sm:$0xff]
        %s4844 = scalar_lea.vmem %s4, 192
        %v4845 = vld [vmem:[%s4844] sm:$0xff]
        %v4846 = vld [vmem:[%s4844 + $0x8] sm:$0xff]
        %v4847 = vld [vmem:[%s4844 + $0x10] sm:$0xff]
        %v4848 = vld [vmem:[%s4844 + $0x18] sm:$0xff]
        %v4849 = vld [vmem:[%s4844 + $0x20] sm:$0xff]
        %v4850 = vld [vmem:[%s4844 + $0x28] sm:$0xff]
        %v4851 = vld [vmem:[%s4844 + $0x30] sm:$0xff]
        %v4852 = vld [vmem:[%s4844 + $0x38] sm:$0xff]
        %v4853 = vld [vmem:[%s4844 + $0x40] sm:$0xff]
        %v4854 = vld [vmem:[%s4844 + $0x48] sm:$0xff]
        %v4855 = vld [vmem:[%s4844 + $0x50] sm:$0xff]
        %v4856 = vld [vmem:[%s4844 + $0x58] sm:$0xff]
        %4858 = vset.pattern.permute.xlu0 0
        %4859 = vperm.xlu0 %4858, %v4845
        %v4860 = vpop.permute.xlu0 %4859
        %4863 = vset.pattern.permute.xlu0 0
        %4864 = vperm.xlu0 %4863, %v4846
        %v4865 = vpop.permute.xlu0 %4864
        %4868 = vset.pattern.permute.xlu0 0
        %4869 = vperm.xlu0 %4868, %v4847
        %v4870 = vpop.permute.xlu0 %4869
        %4873 = vset.pattern.permute.xlu0 0
        %4874 = vperm.xlu0 %4873, %v4848
        %v4875 = vpop.permute.xlu0 %4874
        %4878 = vset.pattern.permute.xlu0 0
        %4879 = vperm.xlu0 %4878, %v4849
        %v4880 = vpop.permute.xlu0 %4879
        %4883 = vset.pattern.permute.xlu0 0
        %4884 = vperm.xlu0 %4883, %v4850
        %v4885 = vpop.permute.xlu0 %4884
        %4888 = vset.pattern.permute.xlu0 0
        %4889 = vperm.xlu0 %4888, %v4851
        %v4890 = vpop.permute.xlu0 %4889
        %4893 = vset.pattern.permute.xlu0 0
        %4894 = vperm.xlu0 %4893, %v4852
        %v4895 = vpop.permute.xlu0 %4894
        %4898 = vset.pattern.permute.xlu0 0
        %4899 = vperm.xlu0 %4898, %v4853
        %v4900 = vpop.permute.xlu0 %4899
        %4903 = vset.pattern.permute.xlu0 0
        %4904 = vperm.xlu0 %4903, %v4854
        %v4905 = vpop.permute.xlu0 %4904
        %4908 = vset.pattern.permute.xlu0 0
        %4909 = vperm.xlu0 %4908, %v4855
        %v4910 = vpop.permute.xlu0 %4909
        %4913 = vset.pattern.permute.xlu0 0
        %4914 = vperm.xlu0 %4913, %v4856
        %v4915 = vpop.permute.xlu0 %4914
        %v4918 = vsel %vm1878, %v4832, 0
        %v4921 = vsel %vm1878, %v4833, 0
        %v4924 = vsel %vm1878, %v4834, 0
        %v4927 = vsel %vm1878, %v4835, 0
        %v4930 = vsel %vm1878, %v4836, 0
        %v4933 = vsel %vm1878, %v4837, 0
        %v4936 = vsel %vm1878, %v4838, 0
        %v4939 = vsel %vm1878, %v4839, 0
        %v4942 = vsel %vm1878, %v4840, 0
        %v4945 = vsel %vm1878, %v4841, 0
        %v4948 = vsel %vm1878, %v4842, 0
        %v4951 = vsel %vm1878, %v4843, 0
        %4953 = vmatprep.subr.mxu0 0.0
        %4954 = vmatpush1.msra.mxu0 %v4819
        %4955 = vmatprep.subr.mxu0 0.0
        %4956 = vmatpush1.msra.mxu0 %v4820
        %4957 = vmatprep.subr.mxu0 0.0
        %4958 = vmatpush1.msra.mxu0 %v4821
        %4959 = vmatprep.subr.mxu0 0.0
        %4960 = vmatpush1.msra.mxu0 %v4822
        %4961 = vmatprep.subr.mxu0 0.0
        %4962 = vmatpush1.msra.mxu0 %v4823
        %4963 = vmatprep.subr.mxu0 0.0
        %4964 = vmatpush1.msra.mxu0 %v4824
        %4965 = vmatprep.subr.mxu0 0.0
        %4966 = vmatpush1.msra.mxu0 %v4825
        %4967 = vmatprep.subr.mxu0 0.0
        %4968 = vmatpush1.msra.mxu0 %v4826
        %4969 = vmatprep.subr.mxu0 0.0
        %4970 = vmatpush1.msra.mxu0 %v4827
        %4971 = vmatprep.subr.mxu0 0.0
        %4972 = vmatpush1.msra.mxu0 %v4828
        %4973 = vmatprep.subr.mxu0 0.0
        %4974 = vmatpush1.msra.mxu0 %v4829
        %4975 = vmatprep.subr.mxu0 0.0
        %4976 = vmatpush1.msra.mxu0 %v4830
        %4977 = vmatprep.subr.mxu0 0.0
        %4978 = vmatpush1.msra.mxu0 0.0
        %4979 = vmatprep.subr.mxu0 0.0
        %4980 = vmatpush1.msra.mxu0 0.0
        %4981 = vmatprep.subr.mxu0 0.0
        %4982 = vmatpush1.msra.mxu0 0.0
        %4983 = vmatprep.subr.mxu0 0.0
        %4984 = vmatpush1.msra.mxu0 0.0
        %4985 = vmatprep.subr.mxu0 0.0
        %4986 = vmatpush1.msra.mxu0 0.0
        %4987 = vmatprep.subr.mxu0 0.0
        %4988 = vmatpush1.msra.mxu0 0.0
        %4989 = vmatprep.subr.mxu0 0.0
        %4990 = vmatpush1.msra.mxu0 0.0
        %4991 = vmatprep.subr.mxu0 0.0
        %4992 = vmatpush1.msra.mxu0 0.0
        %4993 = vmatprep.subr.mxu0 0.0
        %4994 = vmatpush1.msra.mxu0 0.0
        %4995 = vmatprep.subr.mxu0 0.0
        %4996 = vmatpush1.msra.mxu0 0.0
        %4997 = vmatprep.subr.mxu0 0.0
        %4998 = vmatpush1.msra.mxu0 0.0
        %4999 = vmatprep.subr.mxu0 0.0
        %5000 = vmatpush1.msra.mxu0 0.0
        %5001 = vmatprep.subr.mxu0 0.0
        %5002 = vmatpush1.msra.mxu0 0.0
        %5003 = vmatprep.subr.mxu0 0.0
        %5004 = vmatpush1.msra.mxu0 0.0
        %5005 = vmatprep.subr.mxu0 0.0
        %5006 = vmatpush1.msra.mxu0 0.0
        %5007 = vmatprep.subr.mxu0 0.0
        %5008 = vmatpush1.msra.mxu0 0.0
        %5009 = vmatprep.subr.mxu0 0.0
        %5010 = vmatpush1.msra.mxu0 0.0
        %5011 = vmatprep.subr.mxu0 0.0
        %5012 = vmatpush1.msra.mxu0 0.0
        %5013 = vmatprep.subr.mxu0 0.0
        %5014 = vmatpush1.msra.mxu0 0.0
        %5015 = vmatprep.subr.mxu0 0.0
        %5016 = vmatpush1.msra.mxu0 0.0
        %5017 = vmatprep.mubr.f32.mxu0 0.0
        %5018 = vmatmul.mubr.f32.gmra.mrb[0].mxu0 %v4918
        %v5019 = vpop.f32.mrb[0].mxu0
        %v5020 = vadd.f32 %v4860, %v5019
        %v5021 = vpop.f32.mrb[0].mxu0
        %5022 = vmatprep.mubr.f32.mxu0 0.0
        %5023 = vmatmul.mubr.f32.gmra.mrb[0].mxu0 %v4921
        %v5024 = vpop.f32.mrb[0].mxu0
        %v5025 = vadd.f32 %v4865, %v5024
        %v5026 = vpop.f32.mrb[0].mxu0
        %5027 = vmatprep.mubr.f32.mxu0 0.0
        %5028 = vmatmul.mubr.f32.gmra.mrb[0].mxu0 %v4924
        %v5029 = vpop.f32.mrb[0].mxu0
        %v5030 = vadd.f32 %v4870, %v5029
        %v5031 = vpop.f32.mrb[0].mxu0
        %5032 = vmatprep.mubr.f32.mxu0 0.0
        %5033 = vmatmul.mubr.f32.gmra.mrb[0].mxu0 %v4927
        %v5034 = vpop.f32.mrb[0].mxu0
        %v5035 = vadd.f32 %v4875, %v5034
        %v5036 = vpop.f32.mrb[0].mxu0
        %5037 = vmatprep.mubr.f32.mxu0 0.0
        %5038 = vmatmul.mubr.f32.gmra.mrb[0].mxu0 %v4930
        %v5039 = vpop.f32.mrb[0].mxu0
        %v5040 = vadd.f32 %v4880, %v5039
        %v5041 = vpop.f32.mrb[0].mxu0
        %5042 = vmatprep.mubr.f32.mxu0 0.0
        %5043 = vmatmul.mubr.f32.gmra.mrb[0].mxu0 %v4933
        %v5044 = vpop.f32.mrb[0].mxu0
        %v5045 = vadd.f32 %v4885, %v5044
        %v5046 = vpop.f32.mrb[0].mxu0
        %5047 = vmatprep.mubr.f32.mxu0 0.0
        %5048 = vmatmul.mubr.f32.gmra.mrb[0].mxu0 %v4936
        %v5049 = vpop.f32.mrb[0].mxu0
        %v5050 = vadd.f32 %v4890, %v5049
        %v5051 = vpop.f32.mrb[0].mxu0
        %5052 = vmatprep.mubr.f32.mxu0 0.0
        %5053 = vmatmul.mubr.f32.gmra.mrb[0].mxu0 %v4939
        %v5054 = vpop.f32.mrb[0].mxu0
        %v5055 = vadd.f32 %v4895, %v5054
        %v5056 = vpop.f32.mrb[0].mxu0
        %5057 = vmatprep.mubr.f32.mxu0 0.0
        %5058 = vmatmul.mubr.f32.gmra.mrb[0].mxu0 %v4942
        %v5059 = vpop.f32.mrb[0].mxu0
        %v5060 = vadd.f32 %v4900, %v5059
        %v5061 = vpop.f32.mrb[0].mxu0
        %5062 = vmatprep.mubr.f32.mxu0 0.0
        %5063 = vmatmul.mubr.f32.gmra.mrb[0].mxu0 %v4945
        %v5064 = vpop.f32.mrb[0].mxu0
        %v5065 = vadd.f32 %v4905, %v5064
        %v5066 = vpop.f32.mrb[0].mxu0
        %5067 = vmatprep.mubr.f32.mxu0 0.0
        %5068 = vmatmul.mubr.f32.gmra.mrb[0].mxu0 %v4948
        %v5069 = vpop.f32.mrb[0].mxu0
        %v5070 = vadd.f32 %v4910, %v5069
        %v5071 = vpop.f32.mrb[0].mxu0
        %5072 = vmatprep.mubr.f32.mxu0 0.0
        %5073 = vmatmul.mubr.f32.gmra.mrb[0].mxu0 %v4951
        %v5074 = vpop.f32.mrb[0].mxu0
        %v5075 = vadd.f32 %v4915, %v5074
        %v5076 = vpop.f32.mrb[0].mxu0
        %5077 = vdwg.mxu0
        %v5078 = vand.u32 2147483647, %v5020
        %vm5079 = vcmp.le.f32.partialorder %v5078, 0.7853982
        %vm5080 = vcmp.lt.s32.totalorder %v5020, 0
        %v5081 = vand.u32 %v5020, 2139095040
        %v5082 = vshrl.u32 %v5081, 23
        %v5083 = vsub.s32 %v5082, 127
        %v5084 = vand.u32 2147483647, %v5020
        %v5085 = vand.u32 %v5084, 8388607
        %v5086 = vor.u32 %v5085, 8388608
        %v5087 = vsub.s32 0, %v5086
        %v5088 = vadd.s32 %v5083, 1
        %vm5089 = vcmp.gt.s32.totalorder %v5088, 0
        %v5090 = vsel %vm5089, %v5088, 0
        %v5091 = vshrl.u32 %v5090, 5
        %v5092 = vand.u32 %v5090, 31
        %v5093 = vsub.s32 32, %v5092
        %v5094 = vshrl.u32 683565275, %v5093
        %v5095 = vshll.u32 683565275, %v5092
        %v5096 = vshrl.u32 2475754826, %v5093
        %v5097 = vor.u32 %v5095, %v5096
        %v5098 = vshll.u32 2475754826, %v5092
        %v5099 = vshrl.u32 2131351028, %v5093
        %v5100 = vor.u32 %v5098, %v5099
        %v5101 = vshll.u32 2131351028, %v5092
        %v5102 = vshrl.u32 2102212464, %v5093
        %v5103 = vor.u32 %v5101, %v5102
        %v5104 = vshll.u32 2102212464, %v5092
        %v5105 = vshrl.u32 920167782, %v5093
        %v5106 = vor.u32 %v5104, %v5105
        %v5107 = vshll.u32 920167782, %v5092
        %v5108 = vshrl.u32 1326507024, %v5093
        %v5109 = vor.u32 %v5107, %v5108
        %vm5110 = vcmp.lt.s32.totalorder %v5091, 1
        %vm5111 = vcmp.lt.s32.totalorder %v5091, 2
        %vm5112 = vcmp.lt.s32.totalorder %v5091, 3
        %vm5113 = vcmp.lt.s32.totalorder %v5091, 4
        %v5114 = vsel %vm5110, %v5094, %v5097
        %v5115 = vsel %vm5113, %v5103, 2102212464
        %v5116 = vsel %vm5112, %v5100, %v5115
        %v5117 = vsel %vm5111, %v5114, %v5116
        %v5118 = vsel %vm5110, %v5097, %v5100
        %v5119 = vsel %vm5113, %v5106, 920167782
        %v5120 = vsel %vm5112, %v5103, %v5119
        %v5121 = vsel %vm5111, %v5118, %v5120
        %v5122 = vsel %vm5110, %v5100, %v5103
        %v5123 = vsel %vm5113, %v5109, 1326507024
        %v5124 = vsel %vm5112, %v5106, %v5123
        %v5125 = vsel %vm5111, %v5122, %v5124
        %v5126 = vshll.u32 %v5086, 8
        %v5127 = vmul.u32.u64.compose %v5126, %v5125
        %v5128 = vextract.low.u32 %v5127
        %v5129 = vextract.high.u32 %v5127
        %v5130 = vmul.u32.u64.compose %v5126, %v5121
        %v5131 = vextract.low.u32 %v5130
        %v5132 = vextract.high.u32 %v5130
        %v5133 = vmul.u32 %v5126, %v5117
        %v5134 = vadd.s32 %v5129, %v5131
        %vm5135 = vc.u32 %v5129, %v5131
        %v5136 = vadd.s32 %v5132, 1
        %v5137 = vsel %vm5135, %v5136, %v5132
        %v5138 = vadd.s32 %v5133, %v5137
        %v5139 = vadd.s32 %v5138, 536870912
        %v5140 = vshrl.u32 %v5139, 30
        %v5141 = vshll.u32 %v5140, 30
        %v5142 = vsub.s32 %v5138, %v5141
        %vm5143 = vcmp.lt.s32.totalorder %v5142, 0
        %v5144 = vsub.s32 0, %v5142
        %v5145 = vsel %vm5143, %v5144, %v5142
        %v5146 = vclz %v5145
        %v5147 = vsub.s32 %v5146, 2
        %vm5148 = vcmp.gt.s32.totalorder 0, %v5147
        %v5149 = vsel %vm5148, 0, %v5147
        %v5150 = vsub.s32 32, %v5149
        %v5151 = vshll.u32 %v5142, %v5149
        %v5152 = vshrl.u32 %v5134, %v5150
        %v5153 = vor.u32 %v5151, %v5152
        %v5154 = vsub.s32 4294967266, %v5149
        %v5155 = vadd.s32 %v5154, 127
        %v5156 = vshll.u32 %v5155, 23
        %v5157 = vor.u32 4788187, %v5156
        %v5158 = vand.u32 2147483647, %v5157
        %v5160 = vcvt.s32.f32 %v5153
        %v5161 = vmul.f32 %v5160, %v5158
        %v5162 = vxor.u32 %v5161, 2147483648
        %v5163 = vsel %vm5080, %v5162, %v5161
        %v5164 = vsub.s32 4, %v5140
        %v5165 = vsel %vm5080, %v5164, %v5140
        %v5166 = vsel %vm5079, %v5020, %v5163
        %v5167 = vsel %vm5079, 0, %v5165
        %v5168 = vcosq.f32.pop %v5166
        %v5169 = vsinq.f32.pop %v5166
        %vm5170 = vweird.f32 %v5020
        %v5171 = vadd.s32 %v5167, 3
        %v5172 = vand.u32 %v5171, 3
        %vm5173 = vcmp.lt.s32.totalorder %v5172, 2
        %vm5174 = vcmp.eq.s32.totalorder %v5172, 0
        %v5175 = vxor.u32 %v5169, 2147483648
        %v5176 = vsel %vm5174, %v5168, %v5175
        %vm5177 = vcmp.eq.s32.totalorder %v5172, 2
        %v5178 = vxor.u32 %v5168, 2147483648
        %v5179 = vsel %vm5177, %v5178, %v5169
        %v5180 = vsel %vm5173, %v5176, %v5179
        %v5181 = vsel %vm5170, nan, %v5180
        %v5182 = vand.u32 2147483647, %v5025
        %vm5183 = vcmp.le.f32.partialorder %v5182, 0.7853982
        %vm5184 = vcmp.lt.s32.totalorder %v5025, 0
        %v5185 = vand.u32 %v5025, 2139095040
        %v5186 = vshrl.u32 %v5185, 23
        %v5187 = vsub.s32 %v5186, 127
        %v5188 = vand.u32 2147483647, %v5025
        %v5189 = vand.u32 %v5188, 8388607
        %v5190 = vor.u32 %v5189, 8388608
        %v5191 = vsub.s32 0, %v5190
        %v5192 = vadd.s32 %v5187, 1
        %vm5193 = vcmp.gt.s32.totalorder %v5192, 0
        %v5194 = vsel %vm5193, %v5192, 0
        %v5195 = vshrl.u32 %v5194, 5
        %v5196 = vand.u32 %v5194, 31
        %v5197 = vsub.s32 32, %v5196
        %v5198 = vshrl.u32 683565275, %v5197
        %v5199 = vshll.u32 683565275, %v5196
        %v5200 = vshrl.u32 2475754826, %v5197
        %v5201 = vor.u32 %v5199, %v5200
        %v5202 = vshll.u32 2475754826, %v5196
        %v5203 = vshrl.u32 2131351028, %v5197
        %v5204 = vor.u32 %v5202, %v5203
        %v5205 = vshll.u32 2131351028, %v5196
        %v5206 = vshrl.u32 2102212464, %v5197
        %v5207 = vor.u32 %v5205, %v5206
        %v5208 = vshll.u32 2102212464, %v5196
        %v5209 = vshrl.u32 920167782, %v5197
        %v5210 = vor.u32 %v5208, %v5209
        %v5211 = vshll.u32 920167782, %v5196
        %v5212 = vshrl.u32 1326507024, %v5197
        %v5213 = vor.u32 %v5211, %v5212
        %vm5214 = vcmp.lt.s32.totalorder %v5195, 1
        %vm5215 = vcmp.lt.s32.totalorder %v5195, 2
        %vm5216 = vcmp.lt.s32.totalorder %v5195, 3
        %vm5217 = vcmp.lt.s32.totalorder %v5195, 4
        %v5218 = vsel %vm5214, %v5198, %v5201
        %v5219 = vsel %vm5217, %v5207, 2102212464
        %v5220 = vsel %vm5216, %v5204, %v5219
        %v5221 = vsel %vm5215, %v5218, %v5220
        %v5222 = vsel %vm5214, %v5201, %v5204
        %v5223 = vsel %vm5217, %v5210, 920167782
        %v5224 = vsel %vm5216, %v5207, %v5223
        %v5225 = vsel %vm5215, %v5222, %v5224
        %v5226 = vsel %vm5214, %v5204, %v5207
        %v5227 = vsel %vm5217, %v5213, 1326507024
        %v5228 = vsel %vm5216, %v5210, %v5227
        %v5229 = vsel %vm5215, %v5226, %v5228
        %v5230 = vshll.u32 %v5190, 8
        %v5231 = vmul.u32.u64.compose %v5230, %v5229
        %v5232 = vextract.low.u32 %v5231
        %v5233 = vextract.high.u32 %v5231
        %v5234 = vmul.u32.u64.compose %v5230, %v5225
        %v5235 = vextract.low.u32 %v5234
        %v5236 = vextract.high.u32 %v5234
        %v5237 = vmul.u32 %v5230, %v5221
        %v5238 = vadd.s32 %v5233, %v5235
        %vm5239 = vc.u32 %v5233, %v5235
        %v5240 = vadd.s32 %v5236, 1
        %v5241 = vsel %vm5239, %v5240, %v5236
        %v5242 = vadd.s32 %v5237, %v5241
        %v5243 = vadd.s32 %v5242, 536870912
        %v5244 = vshrl.u32 %v5243, 30
        %v5245 = vshll.u32 %v5244, 30
        %v5246 = vsub.s32 %v5242, %v5245
        %vm5247 = vcmp.lt.s32.totalorder %v5246, 0
        %v5248 = vsub.s32 0, %v5246
        %v5249 = vsel %vm5247, %v5248, %v5246
        %v5250 = vclz %v5249
        %v5251 = vsub.s32 %v5250, 2
        %vm5252 = vcmp.gt.s32.totalorder 0, %v5251
        %v5253 = vsel %vm5252, 0, %v5251
        %v5254 = vsub.s32 32, %v5253
        %v5255 = vshll.u32 %v5246, %v5253
        %v5256 = vshrl.u32 %v5238, %v5254
        %v5257 = vor.u32 %v5255, %v5256
        %v5258 = vsub.s32 4294967266, %v5253
        %v5259 = vadd.s32 %v5258, 127
        %v5260 = vshll.u32 %v5259, 23
        %v5261 = vor.u32 4788187, %v5260
        %v5262 = vand.u32 2147483647, %v5261
        %v5264 = vcvt.s32.f32 %v5257
        %v5265 = vmul.f32 %v5264, %v5262
        %v5266 = vxor.u32 %v5265, 2147483648
        %v5267 = vsel %vm5184, %v5266, %v5265
        %v5268 = vsub.s32 4, %v5244
        %v5269 = vsel %vm5184, %v5268, %v5244
        %v5270 = vsel %vm5183, %v5025, %v5267
        %v5271 = vsel %vm5183, 0, %v5269
        %v5272 = vcosq.f32.pop %v5270
        %v5273 = vsinq.f32.pop %v5270
        %vm5274 = vweird.f32 %v5025
        %v5275 = vadd.s32 %v5271, 3
        %v5276 = vand.u32 %v5275, 3
        %vm5277 = vcmp.lt.s32.totalorder %v5276, 2
        %vm5278 = vcmp.eq.s32.totalorder %v5276, 0
        %v5279 = vxor.u32 %v5273, 2147483648
        %v5280 = vsel %vm5278, %v5272, %v5279
        %vm5281 = vcmp.eq.s32.totalorder %v5276, 2
        %v5282 = vxor.u32 %v5272, 2147483648
        %v5283 = vsel %vm5281, %v5282, %v5273
        %v5284 = vsel %vm5277, %v5280, %v5283
        %v5285 = vsel %vm5274, nan, %v5284
        %v5286 = vand.u32 2147483647, %v5030
        %vm5287 = vcmp.le.f32.partialorder %v5286, 0.7853982
        %vm5288 = vcmp.lt.s32.totalorder %v5030, 0
        %v5289 = vand.u32 %v5030, 2139095040
        %v5290 = vshrl.u32 %v5289, 23
        %v5291 = vsub.s32 %v5290, 127
        %v5292 = vand.u32 2147483647, %v5030
        %v5293 = vand.u32 %v5292, 8388607
        %v5294 = vor.u32 %v5293, 8388608
        %v5295 = vsub.s32 0, %v5294
        %v5296 = vadd.s32 %v5291, 1
        %vm5297 = vcmp.gt.s32.totalorder %v5296, 0
        %v5298 = vsel %vm5297, %v5296, 0
        %v5299 = vshrl.u32 %v5298, 5
        %v5300 = vand.u32 %v5298, 31
        %v5301 = vsub.s32 32, %v5300
        %v5302 = vshrl.u32 683565275, %v5301
        %v5303 = vshll.u32 683565275, %v5300
        %v5304 = vshrl.u32 2475754826, %v5301
        %v5305 = vor.u32 %v5303, %v5304
        %v5306 = vshll.u32 2475754826, %v5300
        %v5307 = vshrl.u32 2131351028, %v5301
        %v5308 = vor.u32 %v5306, %v5307
        %v5309 = vshll.u32 2131351028, %v5300
        %v5310 = vshrl.u32 2102212464, %v5301
        %v5311 = vor.u32 %v5309, %v5310
        %v5312 = vshll.u32 2102212464, %v5300
        %v5313 = vshrl.u32 920167782, %v5301
        %v5314 = vor.u32 %v5312, %v5313
        %v5315 = vshll.u32 920167782, %v5300
        %v5316 = vshrl.u32 1326507024, %v5301
        %v5317 = vor.u32 %v5315, %v5316
        %vm5318 = vcmp.lt.s32.totalorder %v5299, 1
        %vm5319 = vcmp.lt.s32.totalorder %v5299, 2
        %vm5320 = vcmp.lt.s32.totalorder %v5299, 3
        %vm5321 = vcmp.lt.s32.totalorder %v5299, 4
        %v5322 = vsel %vm5318, %v5302, %v5305
        %v5323 = vsel %vm5321, %v5311, 2102212464
        %v5324 = vsel %vm5320, %v5308, %v5323
        %v5325 = vsel %vm5319, %v5322, %v5324
        %v5326 = vsel %vm5318, %v5305, %v5308
        %v5327 = vsel %vm5321, %v5314, 920167782
        %v5328 = vsel %vm5320, %v5311, %v5327
        %v5329 = vsel %vm5319, %v5326, %v5328
        %v5330 = vsel %vm5318, %v5308, %v5311
        %v5331 = vsel %vm5321, %v5317, 1326507024
        %v5332 = vsel %vm5320, %v5314, %v5331
        %v5333 = vsel %vm5319, %v5330, %v5332
        %v5334 = vshll.u32 %v5294, 8
        %v5335 = vmul.u32.u64.compose %v5334, %v5333
        %v5336 = vextract.low.u32 %v5335
        %v5337 = vextract.high.u32 %v5335
        %v5338 = vmul.u32.u64.compose %v5334, %v5329
        %v5339 = vextract.low.u32 %v5338
        %v5340 = vextract.high.u32 %v5338
        %v5341 = vmul.u32 %v5334, %v5325
        %v5342 = vadd.s32 %v5337, %v5339
        %vm5343 = vc.u32 %v5337, %v5339
        %v5344 = vadd.s32 %v5340, 1
        %v5345 = vsel %vm5343, %v5344, %v5340
        %v5346 = vadd.s32 %v5341, %v5345
        %v5347 = vadd.s32 %v5346, 536870912
        %v5348 = vshrl.u32 %v5347, 30
        %v5349 = vshll.u32 %v5348, 30
        %v5350 = vsub.s32 %v5346, %v5349
        %vm5351 = vcmp.lt.s32.totalorder %v5350, 0
        %v5352 = vsub.s32 0, %v5350
        %v5353 = vsel %vm5351, %v5352, %v5350
        %v5354 = vclz %v5353
        %v5355 = vsub.s32 %v5354, 2
        %vm5356 = vcmp.gt.s32.totalorder 0, %v5355
        %v5357 = vsel %vm5356, 0, %v5355
        %v5358 = vsub.s32 32, %v5357
        %v5359 = vshll.u32 %v5350, %v5357
        %v5360 = vshrl.u32 %v5342, %v5358
        %v5361 = vor.u32 %v5359, %v5360
        %v5362 = vsub.s32 4294967266, %v5357
        %v5363 = vadd.s32 %v5362, 127
        %v5364 = vshll.u32 %v5363, 23
        %v5365 = vor.u32 4788187, %v5364
        %v5366 = vand.u32 2147483647, %v5365
        %v5368 = vcvt.s32.f32 %v5361
        %v5369 = vmul.f32 %v5368, %v5366
        %v5370 = vxor.u32 %v5369, 2147483648
        %v5371 = vsel %vm5288, %v5370, %v5369
        %v5372 = vsub.s32 4, %v5348
        %v5373 = vsel %vm5288, %v5372, %v5348
        %v5374 = vsel %vm5287, %v5030, %v5371
        %v5375 = vsel %vm5287, 0, %v5373
        %v5376 = vcosq.f32.pop %v5374
        %v5377 = vsinq.f32.pop %v5374
        %vm5378 = vweird.f32 %v5030
        %v5379 = vadd.s32 %v5375, 3
        %v5380 = vand.u32 %v5379, 3
        %vm5381 = vcmp.lt.s32.totalorder %v5380, 2
        %vm5382 = vcmp.eq.s32.totalorder %v5380, 0
        %v5383 = vxor.u32 %v5377, 2147483648
        %v5384 = vsel %vm5382, %v5376, %v5383
        %vm5385 = vcmp.eq.s32.totalorder %v5380, 2
        %v5386 = vxor.u32 %v5376, 2147483648
        %v5387 = vsel %vm5385, %v5386, %v5377
        %v5388 = vsel %vm5381, %v5384, %v5387
        %v5389 = vsel %vm5378, nan, %v5388
        %v5390 = vand.u32 2147483647, %v5035
        %vm5391 = vcmp.le.f32.partialorder %v5390, 0.7853982
        %vm5392 = vcmp.lt.s32.totalorder %v5035, 0
        %v5393 = vand.u32 %v5035, 2139095040
        %v5394 = vshrl.u32 %v5393, 23
        %v5395 = vsub.s32 %v5394, 127
        %v5396 = vand.u32 2147483647, %v5035
        %v5397 = vand.u32 %v5396, 8388607
        %v5398 = vor.u32 %v5397, 8388608
        %v5399 = vsub.s32 0, %v5398
        %v5400 = vadd.s32 %v5395, 1
        %vm5401 = vcmp.gt.s32.totalorder %v5400, 0
        %v5402 = vsel %vm5401, %v5400, 0
        %v5403 = vshrl.u32 %v5402, 5
        %v5404 = vand.u32 %v5402, 31
        %v5405 = vsub.s32 32, %v5404
        %v5406 = vshrl.u32 683565275, %v5405
        %v5407 = vshll.u32 683565275, %v5404
        %v5408 = vshrl.u32 2475754826, %v5405
        %v5409 = vor.u32 %v5407, %v5408
        %v5410 = vshll.u32 2475754826, %v5404
        %v5411 = vshrl.u32 2131351028, %v5405
        %v5412 = vor.u32 %v5410, %v5411
        %v5413 = vshll.u32 2131351028, %v5404
        %v5414 = vshrl.u32 2102212464, %v5405
        %v5415 = vor.u32 %v5413, %v5414
        %v5416 = vshll.u32 2102212464, %v5404
        %v5417 = vshrl.u32 920167782, %v5405
        %v5418 = vor.u32 %v5416, %v5417
        %v5419 = vshll.u32 920167782, %v5404
        %v5420 = vshrl.u32 1326507024, %v5405
        %v5421 = vor.u32 %v5419, %v5420
        %vm5422 = vcmp.lt.s32.totalorder %v5403, 1
        %vm5423 = vcmp.lt.s32.totalorder %v5403, 2
        %vm5424 = vcmp.lt.s32.totalorder %v5403, 3
        %vm5425 = vcmp.lt.s32.totalorder %v5403, 4
        %v5426 = vsel %vm5422, %v5406, %v5409
        %v5427 = vsel %vm5425, %v5415, 2102212464
        %v5428 = vsel %vm5424, %v5412, %v5427
        %v5429 = vsel %vm5423, %v5426, %v5428
        %v5430 = vsel %vm5422, %v5409, %v5412
        %v5431 = vsel %vm5425, %v5418, 920167782
        %v5432 = vsel %vm5424, %v5415, %v5431
        %v5433 = vsel %vm5423, %v5430, %v5432
        %v5434 = vsel %vm5422, %v5412, %v5415
        %v5435 = vsel %vm5425, %v5421, 1326507024
        %v5436 = vsel %vm5424, %v5418, %v5435
        %v5437 = vsel %vm5423, %v5434, %v5436
        %v5438 = vshll.u32 %v5398, 8
        %v5439 = vmul.u32.u64.compose %v5438, %v5437
        %v5440 = vextract.low.u32 %v5439
        %v5441 = vextract.high.u32 %v5439
        %v5442 = vmul.u32.u64.compose %v5438, %v5433
        %v5443 = vextract.low.u32 %v5442
        %v5444 = vextract.high.u32 %v5442
        %v5445 = vmul.u32 %v5438, %v5429
        %v5446 = vadd.s32 %v5441, %v5443
        %vm5447 = vc.u32 %v5441, %v5443
        %v5448 = vadd.s32 %v5444, 1
        %v5449 = vsel %vm5447, %v5448, %v5444
        %v5450 = vadd.s32 %v5445, %v5449
        %v5451 = vadd.s32 %v5450, 536870912
        %v5452 = vshrl.u32 %v5451, 30
        %v5453 = vshll.u32 %v5452, 30
        %v5454 = vsub.s32 %v5450, %v5453
        %vm5455 = vcmp.lt.s32.totalorder %v5454, 0
        %v5456 = vsub.s32 0, %v5454
        %v5457 = vsel %vm5455, %v5456, %v5454
        %v5458 = vclz %v5457
        %v5459 = vsub.s32 %v5458, 2
        %vm5460 = vcmp.gt.s32.totalorder 0, %v5459
        %v5461 = vsel %vm5460, 0, %v5459
        %v5462 = vsub.s32 32, %v5461
        %v5463 = vshll.u32 %v5454, %v5461
        %v5464 = vshrl.u32 %v5446, %v5462
        %v5465 = vor.u32 %v5463, %v5464
        %v5466 = vsub.s32 4294967266, %v5461
        %v5467 = vadd.s32 %v5466, 127
        %v5468 = vshll.u32 %v5467, 23
        %v5469 = vor.u32 4788187, %v5468
        %v5470 = vand.u32 2147483647, %v5469
        %v5472 = vcvt.s32.f32 %v5465
        %v5473 = vmul.f32 %v5472, %v5470
        %v5474 = vxor.u32 %v5473, 2147483648
        %v5475 = vsel %vm5392, %v5474, %v5473
        %v5476 = vsub.s32 4, %v5452
        %v5477 = vsel %vm5392, %v5476, %v5452
        %v5478 = vsel %vm5391, %v5035, %v5475
        %v5479 = vsel %vm5391, 0, %v5477
        %v5480 = vcosq.f32.pop %v5478
        %v5481 = vsinq.f32.pop %v5478
        %vm5482 = vweird.f32 %v5035
        %v5483 = vadd.s32 %v5479, 3
        %v5484 = vand.u32 %v5483, 3
        %vm5485 = vcmp.lt.s32.totalorder %v5484, 2
        %vm5486 = vcmp.eq.s32.totalorder %v5484, 0
        %v5487 = vxor.u32 %v5481, 2147483648
        %v5488 = vsel %vm5486, %v5480, %v5487
        %vm5489 = vcmp.eq.s32.totalorder %v5484, 2
        %v5490 = vxor.u32 %v5480, 2147483648
        %v5491 = vsel %vm5489, %v5490, %v5481
        %v5492 = vsel %vm5485, %v5488, %v5491
        %v5493 = vsel %vm5482, nan, %v5492
        %v5494 = vand.u32 2147483647, %v5040
        %vm5495 = vcmp.le.f32.partialorder %v5494, 0.7853982
        %vm5496 = vcmp.lt.s32.totalorder %v5040, 0
        %v5497 = vand.u32 %v5040, 2139095040
        %v5498 = vshrl.u32 %v5497, 23
        %v5499 = vsub.s32 %v5498, 127
        %v5500 = vand.u32 2147483647, %v5040
        %v5501 = vand.u32 %v5500, 8388607
        %v5502 = vor.u32 %v5501, 8388608
        %v5503 = vsub.s32 0, %v5502
        %v5504 = vadd.s32 %v5499, 1
        %vm5505 = vcmp.gt.s32.totalorder %v5504, 0
        %v5506 = vsel %vm5505, %v5504, 0
        %v5507 = vshrl.u32 %v5506, 5
        %v5508 = vand.u32 %v5506, 31
        %v5509 = vsub.s32 32, %v5508
        %v5510 = vshrl.u32 683565275, %v5509
        %v5511 = vshll.u32 683565275, %v5508
        %v5512 = vshrl.u32 2475754826, %v5509
        %v5513 = vor.u32 %v5511, %v5512
        %v5514 = vshll.u32 2475754826, %v5508
        %v5515 = vshrl.u32 2131351028, %v5509
        %v5516 = vor.u32 %v5514, %v5515
        %v5517 = vshll.u32 2131351028, %v5508
        %v5518 = vshrl.u32 2102212464, %v5509
        %v5519 = vor.u32 %v5517, %v5518
        %v5520 = vshll.u32 2102212464, %v5508
        %v5521 = vshrl.u32 920167782, %v5509
        %v5522 = vor.u32 %v5520, %v5521
        %v5523 = vshll.u32 920167782, %v5508
        %v5524 = vshrl.u32 1326507024, %v5509
        %v5525 = vor.u32 %v5523, %v5524
        %vm5526 = vcmp.lt.s32.totalorder %v5507, 1
        %vm5527 = vcmp.lt.s32.totalorder %v5507, 2
        %vm5528 = vcmp.lt.s32.totalorder %v5507, 3
        %vm5529 = vcmp.lt.s32.totalorder %v5507, 4
        %v5530 = vsel %vm5526, %v5510, %v5513
        %v5531 = vsel %vm5529, %v5519, 2102212464
        %v5532 = vsel %vm5528, %v5516, %v5531
        %v5533 = vsel %vm5527, %v5530, %v5532
        %v5534 = vsel %vm5526, %v5513, %v5516
        %v5535 = vsel %vm5529, %v5522, 920167782
        %v5536 = vsel %vm5528, %v5519, %v5535
        %v5537 = vsel %vm5527, %v5534, %v5536
        %v5538 = vsel %vm5526, %v5516, %v5519
        %v5539 = vsel %vm5529, %v5525, 1326507024
        %v5540 = vsel %vm5528, %v5522, %v5539
        %v5541 = vsel %vm5527, %v5538, %v5540
        %v5542 = vshll.u32 %v5502, 8
        %v5543 = vmul.u32.u64.compose %v5542, %v5541
        %v5544 = vextract.low.u32 %v5543
        %v5545 = vextract.high.u32 %v5543
        %v5546 = vmul.u32.u64.compose %v5542, %v5537
        %v5547 = vextract.low.u32 %v5546
        %v5548 = vextract.high.u32 %v5546
        %v5549 = vmul.u32 %v5542, %v5533
        %v5550 = vadd.s32 %v5545, %v5547
        %vm5551 = vc.u32 %v5545, %v5547
        %v5552 = vadd.s32 %v5548, 1
        %v5553 = vsel %vm5551, %v5552, %v5548
        %v5554 = vadd.s32 %v5549, %v5553
        %v5555 = vadd.s32 %v5554, 536870912
        %v5556 = vshrl.u32 %v5555, 30
        %v5557 = vshll.u32 %v5556, 30
        %v5558 = vsub.s32 %v5554, %v5557
        %vm5559 = vcmp.lt.s32.totalorder %v5558, 0
        %v5560 = vsub.s32 0, %v5558
        %v5561 = vsel %vm5559, %v5560, %v5558
        %v5562 = vclz %v5561
        %v5563 = vsub.s32 %v5562, 2
        %vm5564 = vcmp.gt.s32.totalorder 0, %v5563
        %v5565 = vsel %vm5564, 0, %v5563
        %v5566 = vsub.s32 32, %v5565
        %v5567 = vshll.u32 %v5558, %v5565
        %v5568 = vshrl.u32 %v5550, %v5566
        %v5569 = vor.u32 %v5567, %v5568
        %v5570 = vsub.s32 4294967266, %v5565
        %v5571 = vadd.s32 %v5570, 127
        %v5572 = vshll.u32 %v5571, 23
        %v5573 = vor.u32 4788187, %v5572
        %v5574 = vand.u32 2147483647, %v5573
        %v5576 = vcvt.s32.f32 %v5569
        %v5577 = vmul.f32 %v5576, %v5574
        %v5578 = vxor.u32 %v5577, 2147483648
        %v5579 = vsel %vm5496, %v5578, %v5577
        %v5580 = vsub.s32 4, %v5556
        %v5581 = vsel %vm5496, %v5580, %v5556
        %v5582 = vsel %vm5495, %v5040, %v5579
        %v5583 = vsel %vm5495, 0, %v5581
        %v5584 = vcosq.f32.pop %v5582
        %v5585 = vsinq.f32.pop %v5582
        %vm5586 = vweird.f32 %v5040
        %v5587 = vadd.s32 %v5583, 3
        %v5588 = vand.u32 %v5587, 3
        %vm5589 = vcmp.lt.s32.totalorder %v5588, 2
        %vm5590 = vcmp.eq.s32.totalorder %v5588, 0
        %v5591 = vxor.u32 %v5585, 2147483648
        %v5592 = vsel %vm5590, %v5584, %v5591
        %vm5593 = vcmp.eq.s32.totalorder %v5588, 2
        %v5594 = vxor.u32 %v5584, 2147483648
        %v5595 = vsel %vm5593, %v5594, %v5585
        %v5596 = vsel %vm5589, %v5592, %v5595
        %v5597 = vsel %vm5586, nan, %v5596
        %v5598 = vand.u32 2147483647, %v5045
        %vm5599 = vcmp.le.f32.partialorder %v5598, 0.7853982
        %vm5600 = vcmp.lt.s32.totalorder %v5045, 0
        %v5601 = vand.u32 %v5045, 2139095040
        %v5602 = vshrl.u32 %v5601, 23
        %v5603 = vsub.s32 %v5602, 127
        %v5604 = vand.u32 2147483647, %v5045
        %v5605 = vand.u32 %v5604, 8388607
        %v5606 = vor.u32 %v5605, 8388608
        %v5607 = vsub.s32 0, %v5606
        %v5608 = vadd.s32 %v5603, 1
        %vm5609 = vcmp.gt.s32.totalorder %v5608, 0
        %v5610 = vsel %vm5609, %v5608, 0
        %v5611 = vshrl.u32 %v5610, 5
        %v5612 = vand.u32 %v5610, 31
        %v5613 = vsub.s32 32, %v5612
        %v5614 = vshrl.u32 683565275, %v5613
        %v5615 = vshll.u32 683565275, %v5612
        %v5616 = vshrl.u32 2475754826, %v5613
        %v5617 = vor.u32 %v5615, %v5616
        %v5618 = vshll.u32 2475754826, %v5612
        %v5619 = vshrl.u32 2131351028, %v5613
        %v5620 = vor.u32 %v5618, %v5619
        %v5621 = vshll.u32 2131351028, %v5612
        %v5622 = vshrl.u32 2102212464, %v5613
        %v5623 = vor.u32 %v5621, %v5622
        %v5624 = vshll.u32 2102212464, %v5612
        %v5625 = vshrl.u32 920167782, %v5613
        %v5626 = vor.u32 %v5624, %v5625
        %v5627 = vshll.u32 920167782, %v5612
        %v5628 = vshrl.u32 1326507024, %v5613
        %v5629 = vor.u32 %v5627, %v5628
        %vm5630 = vcmp.lt.s32.totalorder %v5611, 1
        %vm5631 = vcmp.lt.s32.totalorder %v5611, 2
        %vm5632 = vcmp.lt.s32.totalorder %v5611, 3
        %vm5633 = vcmp.lt.s32.totalorder %v5611, 4
        %v5634 = vsel %vm5630, %v5614, %v5617
        %v5635 = vsel %vm5633, %v5623, 2102212464
        %v5636 = vsel %vm5632, %v5620, %v5635
        %v5637 = vsel %vm5631, %v5634, %v5636
        %v5638 = vsel %vm5630, %v5617, %v5620
        %v5639 = vsel %vm5633, %v5626, 920167782
        %v5640 = vsel %vm5632, %v5623, %v5639
        %v5641 = vsel %vm5631, %v5638, %v5640
        %v5642 = vsel %vm5630, %v5620, %v5623
        %v5643 = vsel %vm5633, %v5629, 1326507024
        %v5644 = vsel %vm5632, %v5626, %v5643
        %v5645 = vsel %vm5631, %v5642, %v5644
        %v5646 = vshll.u32 %v5606, 8
        %v5647 = vmul.u32.u64.compose %v5646, %v5645
        %v5648 = vextract.low.u32 %v5647
        %v5649 = vextract.high.u32 %v5647
        %v5650 = vmul.u32.u64.compose %v5646, %v5641
        %v5651 = vextract.low.u32 %v5650
        %v5652 = vextract.high.u32 %v5650
        %v5653 = vmul.u32 %v5646, %v5637
        %v5654 = vadd.s32 %v5649, %v5651
        %vm5655 = vc.u32 %v5649, %v5651
        %v5656 = vadd.s32 %v5652, 1
        %v5657 = vsel %vm5655, %v5656, %v5652
        %v5658 = vadd.s32 %v5653, %v5657
        %v5659 = vadd.s32 %v5658, 536870912
        %v5660 = vshrl.u32 %v5659, 30
        %v5661 = vshll.u32 %v5660, 30
        %v5662 = vsub.s32 %v5658, %v5661
        %vm5663 = vcmp.lt.s32.totalorder %v5662, 0
        %v5664 = vsub.s32 0, %v5662
        %v5665 = vsel %vm5663, %v5664, %v5662
        %v5666 = vclz %v5665
        %v5667 = vsub.s32 %v5666, 2
        %vm5668 = vcmp.gt.s32.totalorder 0, %v5667
        %v5669 = vsel %vm5668, 0, %v5667
        %v5670 = vsub.s32 32, %v5669
        %v5671 = vshll.u32 %v5662, %v5669
        %v5672 = vshrl.u32 %v5654, %v5670
        %v5673 = vor.u32 %v5671, %v5672
        %v5674 = vsub.s32 4294967266, %v5669
        %v5675 = vadd.s32 %v5674, 127
        %v5676 = vshll.u32 %v5675, 23
        %v5677 = vor.u32 4788187, %v5676
        %v5678 = vand.u32 2147483647, %v5677
        %v5680 = vcvt.s32.f32 %v5673
        %v5681 = vmul.f32 %v5680, %v5678
        %v5682 = vxor.u32 %v5681, 2147483648
        %v5683 = vsel %vm5600, %v5682, %v5681
        %v5684 = vsub.s32 4, %v5660
        %v5685 = vsel %vm5600, %v5684, %v5660
        %v5686 = vsel %vm5599, %v5045, %v5683
        %v5687 = vsel %vm5599, 0, %v5685
        %v5688 = vcosq.f32.pop %v5686
        %v5689 = vsinq.f32.pop %v5686
        %vm5690 = vweird.f32 %v5045
        %v5691 = vadd.s32 %v5687, 3
        %v5692 = vand.u32 %v5691, 3
        %vm5693 = vcmp.lt.s32.totalorder %v5692, 2
        %vm5694 = vcmp.eq.s32.totalorder %v5692, 0
        %v5695 = vxor.u32 %v5689, 2147483648
        %v5696 = vsel %vm5694, %v5688, %v5695
        %vm5697 = vcmp.eq.s32.totalorder %v5692, 2
        %v5698 = vxor.u32 %v5688, 2147483648
        %v5699 = vsel %vm5697, %v5698, %v5689
        %v5700 = vsel %vm5693, %v5696, %v5699
        %v5701 = vsel %vm5690, nan, %v5700
        %v5702 = vand.u32 2147483647, %v5050
        %vm5703 = vcmp.le.f32.partialorder %v5702, 0.7853982
        %vm5704 = vcmp.lt.s32.totalorder %v5050, 0
        %v5705 = vand.u32 %v5050, 2139095040
        %v5706 = vshrl.u32 %v5705, 23
        %v5707 = vsub.s32 %v5706, 127
        %v5708 = vand.u32 2147483647, %v5050
        %v5709 = vand.u32 %v5708, 8388607
        %v5710 = vor.u32 %v5709, 8388608
        %v5711 = vsub.s32 0, %v5710
        %v5712 = vadd.s32 %v5707, 1
        %vm5713 = vcmp.gt.s32.totalorder %v5712, 0
        %v5714 = vsel %vm5713, %v5712, 0
        %v5715 = vshrl.u32 %v5714, 5
        %v5716 = vand.u32 %v5714, 31
        %v5717 = vsub.s32 32, %v5716
        %v5718 = vshrl.u32 683565275, %v5717
        %v5719 = vshll.u32 683565275, %v5716
        %v5720 = vshrl.u32 2475754826, %v5717
        %v5721 = vor.u32 %v5719, %v5720
        %v5722 = vshll.u32 2475754826, %v5716
        %v5723 = vshrl.u32 2131351028, %v5717
        %v5724 = vor.u32 %v5722, %v5723
        %v5725 = vshll.u32 2131351028, %v5716
        %v5726 = vshrl.u32 2102212464, %v5717
        %v5727 = vor.u32 %v5725, %v5726
        %v5728 = vshll.u32 2102212464, %v5716
        %v5729 = vshrl.u32 920167782, %v5717
        %v5730 = vor.u32 %v5728, %v5729
        %v5731 = vshll.u32 920167782, %v5716
        %v5732 = vshrl.u32 1326507024, %v5717
        %v5733 = vor.u32 %v5731, %v5732
        %vm5734 = vcmp.lt.s32.totalorder %v5715, 1
        %vm5735 = vcmp.lt.s32.totalorder %v5715, 2
        %vm5736 = vcmp.lt.s32.totalorder %v5715, 3
        %vm5737 = vcmp.lt.s32.totalorder %v5715, 4
        %v5738 = vsel %vm5734, %v5718, %v5721
        %v5739 = vsel %vm5737, %v5727, 2102212464
        %v5740 = vsel %vm5736, %v5724, %v5739
        %v5741 = vsel %vm5735, %v5738, %v5740
        %v5742 = vsel %vm5734, %v5721, %v5724
        %v5743 = vsel %vm5737, %v5730, 920167782
        %v5744 = vsel %vm5736, %v5727, %v5743
        %v5745 = vsel %vm5735, %v5742, %v5744
        %v5746 = vsel %vm5734, %v5724, %v5727
        %v5747 = vsel %vm5737, %v5733, 1326507024
        %v5748 = vsel %vm5736, %v5730, %v5747
        %v5749 = vsel %vm5735, %v5746, %v5748
        %v5750 = vshll.u32 %v5710, 8
        %v5751 = vmul.u32.u64.compose %v5750, %v5749
        %v5752 = vextract.low.u32 %v5751
        %v5753 = vextract.high.u32 %v5751
        %v5754 = vmul.u32.u64.compose %v5750, %v5745
        %v5755 = vextract.low.u32 %v5754
        %v5756 = vextract.high.u32 %v5754
        %v5757 = vmul.u32 %v5750, %v5741
        %v5758 = vadd.s32 %v5753, %v5755
        %vm5759 = vc.u32 %v5753, %v5755
        %v5760 = vadd.s32 %v5756, 1
        %v5761 = vsel %vm5759, %v5760, %v5756
        %v5762 = vadd.s32 %v5757, %v5761
        %v5763 = vadd.s32 %v5762, 536870912
        %v5764 = vshrl.u32 %v5763, 30
        %v5765 = vshll.u32 %v5764, 30
        %v5766 = vsub.s32 %v5762, %v5765
        %vm5767 = vcmp.lt.s32.totalorder %v5766, 0
        %v5768 = vsub.s32 0, %v5766
        %v5769 = vsel %vm5767, %v5768, %v5766
        %v5770 = vclz %v5769
        %v5771 = vsub.s32 %v5770, 2
        %vm5772 = vcmp.gt.s32.totalorder 0, %v5771
        %v5773 = vsel %vm5772, 0, %v5771
        %v5774 = vsub.s32 32, %v5773
        %v5775 = vshll.u32 %v5766, %v5773
        %v5776 = vshrl.u32 %v5758, %v5774
        %v5777 = vor.u32 %v5775, %v5776
        %v5778 = vsub.s32 4294967266, %v5773
        %v5779 = vadd.s32 %v5778, 127
        %v5780 = vshll.u32 %v5779, 23
        %v5781 = vor.u32 4788187, %v5780
        %v5782 = vand.u32 2147483647, %v5781
        %v5784 = vcvt.s32.f32 %v5777
        %v5785 = vmul.f32 %v5784, %v5782
        %v5786 = vxor.u32 %v5785, 2147483648
        %v5787 = vsel %vm5704, %v5786, %v5785
        %v5788 = vsub.s32 4, %v5764
        %v5789 = vsel %vm5704, %v5788, %v5764
        %v5790 = vsel %vm5703, %v5050, %v5787
        %v5791 = vsel %vm5703, 0, %v5789
        %v5792 = vcosq.f32.pop %v5790
        %v5793 = vsinq.f32.pop %v5790
        %vm5794 = vweird.f32 %v5050
        %v5795 = vadd.s32 %v5791, 3
        %v5796 = vand.u32 %v5795, 3
        %vm5797 = vcmp.lt.s32.totalorder %v5796, 2
        %vm5798 = vcmp.eq.s32.totalorder %v5796, 0
        %v5799 = vxor.u32 %v5793, 2147483648
        %v5800 = vsel %vm5798, %v5792, %v5799
        %vm5801 = vcmp.eq.s32.totalorder %v5796, 2
        %v5802 = vxor.u32 %v5792, 2147483648
        %v5803 = vsel %vm5801, %v5802, %v5793
        %v5804 = vsel %vm5797, %v5800, %v5803
        %v5805 = vsel %vm5794, nan, %v5804
        %v5806 = vand.u32 2147483647, %v5055
        %vm5807 = vcmp.le.f32.partialorder %v5806, 0.7853982
        %vm5808 = vcmp.lt.s32.totalorder %v5055, 0
        %v5809 = vand.u32 %v5055, 2139095040
        %v5810 = vshrl.u32 %v5809, 23
        %v5811 = vsub.s32 %v5810, 127
        %v5812 = vand.u32 2147483647, %v5055
        %v5813 = vand.u32 %v5812, 8388607
        %v5814 = vor.u32 %v5813, 8388608
        %v5815 = vsub.s32 0, %v5814
        %v5816 = vadd.s32 %v5811, 1
        %vm5817 = vcmp.gt.s32.totalorder %v5816, 0
        %v5818 = vsel %vm5817, %v5816, 0
        %v5819 = vshrl.u32 %v5818, 5
        %v5820 = vand.u32 %v5818, 31
        %v5821 = vsub.s32 32, %v5820
        %v5822 = vshrl.u32 683565275, %v5821
        %v5823 = vshll.u32 683565275, %v5820
        %v5824 = vshrl.u32 2475754826, %v5821
        %v5825 = vor.u32 %v5823, %v5824
        %v5826 = vshll.u32 2475754826, %v5820
        %v5827 = vshrl.u32 2131351028, %v5821
        %v5828 = vor.u32 %v5826, %v5827
        %v5829 = vshll.u32 2131351028, %v5820
        %v5830 = vshrl.u32 2102212464, %v5821
        %v5831 = vor.u32 %v5829, %v5830
        %v5832 = vshll.u32 2102212464, %v5820
        %v5833 = vshrl.u32 920167782, %v5821
        %v5834 = vor.u32 %v5832, %v5833
        %v5835 = vshll.u32 920167782, %v5820
        %v5836 = vshrl.u32 1326507024, %v5821
        %v5837 = vor.u32 %v5835, %v5836
        %vm5838 = vcmp.lt.s32.totalorder %v5819, 1
        %vm5839 = vcmp.lt.s32.totalorder %v5819, 2
        %vm5840 = vcmp.lt.s32.totalorder %v5819, 3
        %vm5841 = vcmp.lt.s32.totalorder %v5819, 4
        %v5842 = vsel %vm5838, %v5822, %v5825
        %v5843 = vsel %vm5841, %v5831, 2102212464
        %v5844 = vsel %vm5840, %v5828, %v5843
        %v5845 = vsel %vm5839, %v5842, %v5844
        %v5846 = vsel %vm5838, %v5825, %v5828
        %v5847 = vsel %vm5841, %v5834, 920167782
        %v5848 = vsel %vm5840, %v5831, %v5847
        %v5849 = vsel %vm5839, %v5846, %v5848
        %v5850 = vsel %vm5838, %v5828, %v5831
        %v5851 = vsel %vm5841, %v5837, 1326507024
        %v5852 = vsel %vm5840, %v5834, %v5851
        %v5853 = vsel %vm5839, %v5850, %v5852
        %v5854 = vshll.u32 %v5814, 8
        %v5855 = vmul.u32.u64.compose %v5854, %v5853
        %v5856 = vextract.low.u32 %v5855
        %v5857 = vextract.high.u32 %v5855
        %v5858 = vmul.u32.u64.compose %v5854, %v5849
        %v5859 = vextract.low.u32 %v5858
        %v5860 = vextract.high.u32 %v5858
        %v5861 = vmul.u32 %v5854, %v5845
        %v5862 = vadd.s32 %v5857, %v5859
        %vm5863 = vc.u32 %v5857, %v5859
        %v5864 = vadd.s32 %v5860, 1
        %v5865 = vsel %vm5863, %v5864, %v5860
        %v5866 = vadd.s32 %v5861, %v5865
        %v5867 = vadd.s32 %v5866, 536870912
        %v5868 = vshrl.u32 %v5867, 30
        %v5869 = vshll.u32 %v5868, 30
        %v5870 = vsub.s32 %v5866, %v5869
        %vm5871 = vcmp.lt.s32.totalorder %v5870, 0
        %v5872 = vsub.s32 0, %v5870
        %v5873 = vsel %vm5871, %v5872, %v5870
        %v5874 = vclz %v5873
        %v5875 = vsub.s32 %v5874, 2
        %vm5876 = vcmp.gt.s32.totalorder 0, %v5875
        %v5877 = vsel %vm5876, 0, %v5875
        %v5878 = vsub.s32 32, %v5877
        %v5879 = vshll.u32 %v5870, %v5877
        %v5880 = vshrl.u32 %v5862, %v5878
        %v5881 = vor.u32 %v5879, %v5880
        %v5882 = vsub.s32 4294967266, %v5877
        %v5883 = vadd.s32 %v5882, 127
        %v5884 = vshll.u32 %v5883, 23
        %v5885 = vor.u32 4788187, %v5884
        %v5886 = vand.u32 2147483647, %v5885
        %v5888 = vcvt.s32.f32 %v5881
        %v5889 = vmul.f32 %v5888, %v5886
        %v5890 = vxor.u32 %v5889, 2147483648
        %v5891 = vsel %vm5808, %v5890, %v5889
        %v5892 = vsub.s32 4, %v5868
        %v5893 = vsel %vm5808, %v5892, %v5868
        %v5894 = vsel %vm5807, %v5055, %v5891
        %v5895 = vsel %vm5807, 0, %v5893
        %v5896 = vcosq.f32.pop %v5894
        %v5897 = vsinq.f32.pop %v5894
        %vm5898 = vweird.f32 %v5055
        %v5899 = vadd.s32 %v5895, 3
        %v5900 = vand.u32 %v5899, 3
        %vm5901 = vcmp.lt.s32.totalorder %v5900, 2
        %vm5902 = vcmp.eq.s32.totalorder %v5900, 0
        %v5903 = vxor.u32 %v5897, 2147483648
        %v5904 = vsel %vm5902, %v5896, %v5903
        %vm5905 = vcmp.eq.s32.totalorder %v5900, 2
        %v5906 = vxor.u32 %v5896, 2147483648
        %v5907 = vsel %vm5905, %v5906, %v5897
        %v5908 = vsel %vm5901, %v5904, %v5907
        %v5909 = vsel %vm5898, nan, %v5908
        %v5910 = vand.u32 2147483647, %v5060
        %vm5911 = vcmp.le.f32.partialorder %v5910, 0.7853982
        %vm5912 = vcmp.lt.s32.totalorder %v5060, 0
        %v5913 = vand.u32 %v5060, 2139095040
        %v5914 = vshrl.u32 %v5913, 23
        %v5915 = vsub.s32 %v5914, 127
        %v5916 = vand.u32 2147483647, %v5060
        %v5917 = vand.u32 %v5916, 8388607
        %v5918 = vor.u32 %v5917, 8388608
        %v5919 = vsub.s32 0, %v5918
        %v5920 = vadd.s32 %v5915, 1
        %vm5921 = vcmp.gt.s32.totalorder %v5920, 0
        %v5922 = vsel %vm5921, %v5920, 0
        %v5923 = vshrl.u32 %v5922, 5
        %v5924 = vand.u32 %v5922, 31
        %v5925 = vsub.s32 32, %v5924
        %v5926 = vshrl.u32 683565275, %v5925
        %v5927 = vshll.u32 683565275, %v5924
        %v5928 = vshrl.u32 2475754826, %v5925
        %v5929 = vor.u32 %v5927, %v5928
        %v5930 = vshll.u32 2475754826, %v5924
        %v5931 = vshrl.u32 2131351028, %v5925
        %v5932 = vor.u32 %v5930, %v5931
        %v5933 = vshll.u32 2131351028, %v5924
        %v5934 = vshrl.u32 2102212464, %v5925
        %v5935 = vor.u32 %v5933, %v5934
        %v5936 = vshll.u32 2102212464, %v5924
        %v5937 = vshrl.u32 920167782, %v5925
        %v5938 = vor.u32 %v5936, %v5937
        %v5939 = vshll.u32 920167782, %v5924
        %v5940 = vshrl.u32 1326507024, %v5925
        %v5941 = vor.u32 %v5939, %v5940
        %vm5942 = vcmp.lt.s32.totalorder %v5923, 1
        %vm5943 = vcmp.lt.s32.totalorder %v5923, 2
        %vm5944 = vcmp.lt.s32.totalorder %v5923, 3
        %vm5945 = vcmp.lt.s32.totalorder %v5923, 4
        %v5946 = vsel %vm5942, %v5926, %v5929
        %v5947 = vsel %vm5945, %v5935, 2102212464
        %v5948 = vsel %vm5944, %v5932, %v5947
        %v5949 = vsel %vm5943, %v5946, %v5948
        %v5950 = vsel %vm5942, %v5929, %v5932
        %v5951 = vsel %vm5945, %v5938, 920167782
        %v5952 = vsel %vm5944, %v5935, %v5951
        %v5953 = vsel %vm5943, %v5950, %v5952
        %v5954 = vsel %vm5942, %v5932, %v5935
        %v5955 = vsel %vm5945, %v5941, 1326507024
        %v5956 = vsel %vm5944, %v5938, %v5955
        %v5957 = vsel %vm5943, %v5954, %v5956
        %v5958 = vshll.u32 %v5918, 8
        %v5959 = vmul.u32.u64.compose %v5958, %v5957
        %v5960 = vextract.low.u32 %v5959
        %v5961 = vextract.high.u32 %v5959
        %v5962 = vmul.u32.u64.compose %v5958, %v5953
        %v5963 = vextract.low.u32 %v5962
        %v5964 = vextract.high.u32 %v5962
        %v5965 = vmul.u32 %v5958, %v5949
        %v5966 = vadd.s32 %v5961, %v5963
        %vm5967 = vc.u32 %v5961, %v5963
        %v5968 = vadd.s32 %v5964, 1
        %v5969 = vsel %vm5967, %v5968, %v5964
        %v5970 = vadd.s32 %v5965, %v5969
        %v5971 = vadd.s32 %v5970, 536870912
        %v5972 = vshrl.u32 %v5971, 30
        %v5973 = vshll.u32 %v5972, 30
        %v5974 = vsub.s32 %v5970, %v5973
        %vm5975 = vcmp.lt.s32.totalorder %v5974, 0
        %v5976 = vsub.s32 0, %v5974
        %v5977 = vsel %vm5975, %v5976, %v5974
        %v5978 = vclz %v5977
        %v5979 = vsub.s32 %v5978, 2
        %vm5980 = vcmp.gt.s32.totalorder 0, %v5979
        %v5981 = vsel %vm5980, 0, %v5979
        %v5982 = vsub.s32 32, %v5981
        %v5983 = vshll.u32 %v5974, %v5981
        %v5984 = vshrl.u32 %v5966, %v5982
        %v5985 = vor.u32 %v5983, %v5984
        %v5986 = vsub.s32 4294967266, %v5981
        %v5987 = vadd.s32 %v5986, 127
        %v5988 = vshll.u32 %v5987, 23
        %v5989 = vor.u32 4788187, %v5988
        %v5990 = vand.u32 2147483647, %v5989
        %v5992 = vcvt.s32.f32 %v5985
        %v5993 = vmul.f32 %v5992, %v5990
        %v5994 = vxor.u32 %v5993, 2147483648
        %v5995 = vsel %vm5912, %v5994, %v5993
        %v5996 = vsub.s32 4, %v5972
        %v5997 = vsel %vm5912, %v5996, %v5972
        %v5998 = vsel %vm5911, %v5060, %v5995
        %v5999 = vsel %vm5911, 0, %v5997
        %v6000 = vcosq.f32.pop %v5998
        %v6001 = vsinq.f32.pop %v5998
        %vm6002 = vweird.f32 %v5060
        %v6003 = vadd.s32 %v5999, 3
        %v6004 = vand.u32 %v6003, 3
        %vm6005 = vcmp.lt.s32.totalorder %v6004, 2
        %vm6006 = vcmp.eq.s32.totalorder %v6004, 0
        %v6007 = vxor.u32 %v6001, 2147483648
        %v6008 = vsel %vm6006, %v6000, %v6007
        %vm6009 = vcmp.eq.s32.totalorder %v6004, 2
        %v6010 = vxor.u32 %v6000, 2147483648
        %v6011 = vsel %vm6009, %v6010, %v6001
        %v6012 = vsel %vm6005, %v6008, %v6011
        %v6013 = vsel %vm6002, nan, %v6012
        %v6014 = vand.u32 2147483647, %v5065
        %vm6015 = vcmp.le.f32.partialorder %v6014, 0.7853982
        %vm6016 = vcmp.lt.s32.totalorder %v5065, 0
        %v6017 = vand.u32 %v5065, 2139095040
        %v6018 = vshrl.u32 %v6017, 23
        %v6019 = vsub.s32 %v6018, 127
        %v6020 = vand.u32 2147483647, %v5065
        %v6021 = vand.u32 %v6020, 8388607
        %v6022 = vor.u32 %v6021, 8388608
        %v6023 = vsub.s32 0, %v6022
        %v6024 = vadd.s32 %v6019, 1
        %vm6025 = vcmp.gt.s32.totalorder %v6024, 0
        %v6026 = vsel %vm6025, %v6024, 0
        %v6027 = vshrl.u32 %v6026, 5
        %v6028 = vand.u32 %v6026, 31
        %v6029 = vsub.s32 32, %v6028
        %v6030 = vshrl.u32 683565275, %v6029
        %v6031 = vshll.u32 683565275, %v6028
        %v6032 = vshrl.u32 2475754826, %v6029
        %v6033 = vor.u32 %v6031, %v6032
        %v6034 = vshll.u32 2475754826, %v6028
        %v6035 = vshrl.u32 2131351028, %v6029
        %v6036 = vor.u32 %v6034, %v6035
        %v6037 = vshll.u32 2131351028, %v6028
        %v6038 = vshrl.u32 2102212464, %v6029
        %v6039 = vor.u32 %v6037, %v6038
        %v6040 = vshll.u32 2102212464, %v6028
        %v6041 = vshrl.u32 920167782, %v6029
        %v6042 = vor.u32 %v6040, %v6041
        %v6043 = vshll.u32 920167782, %v6028
        %v6044 = vshrl.u32 1326507024, %v6029
        %v6045 = vor.u32 %v6043, %v6044
        %vm6046 = vcmp.lt.s32.totalorder %v6027, 1
        %vm6047 = vcmp.lt.s32.totalorder %v6027, 2
        %vm6048 = vcmp.lt.s32.totalorder %v6027, 3
        %vm6049 = vcmp.lt.s32.totalorder %v6027, 4
        %v6050 = vsel %vm6046, %v6030, %v6033
        %v6051 = vsel %vm6049, %v6039, 2102212464
        %v6052 = vsel %vm6048, %v6036, %v6051
        %v6053 = vsel %vm6047, %v6050, %v6052
        %v6054 = vsel %vm6046, %v6033, %v6036
        %v6055 = vsel %vm6049, %v6042, 920167782
        %v6056 = vsel %vm6048, %v6039, %v6055
        %v6057 = vsel %vm6047, %v6054, %v6056
        %v6058 = vsel %vm6046, %v6036, %v6039
        %v6059 = vsel %vm6049, %v6045, 1326507024
        %v6060 = vsel %vm6048, %v6042, %v6059
        %v6061 = vsel %vm6047, %v6058, %v6060
        %v6062 = vshll.u32 %v6022, 8
        %v6063 = vmul.u32.u64.compose %v6062, %v6061
        %v6064 = vextract.low.u32 %v6063
        %v6065 = vextract.high.u32 %v6063
        %v6066 = vmul.u32.u64.compose %v6062, %v6057
        %v6067 = vextract.low.u32 %v6066
        %v6068 = vextract.high.u32 %v6066
        %v6069 = vmul.u32 %v6062, %v6053
        %v6070 = vadd.s32 %v6065, %v6067
        %vm6071 = vc.u32 %v6065, %v6067
        %v6072 = vadd.s32 %v6068, 1
        %v6073 = vsel %vm6071, %v6072, %v6068
        %v6074 = vadd.s32 %v6069, %v6073
        %v6075 = vadd.s32 %v6074, 536870912
        %v6076 = vshrl.u32 %v6075, 30
        %v6077 = vshll.u32 %v6076, 30
        %v6078 = vsub.s32 %v6074, %v6077
        %vm6079 = vcmp.lt.s32.totalorder %v6078, 0
        %v6080 = vsub.s32 0, %v6078
        %v6081 = vsel %vm6079, %v6080, %v6078
        %v6082 = vclz %v6081
        %v6083 = vsub.s32 %v6082, 2
        %vm6084 = vcmp.gt.s32.totalorder 0, %v6083
        %v6085 = vsel %vm6084, 0, %v6083
        %v6086 = vsub.s32 32, %v6085
        %v6087 = vshll.u32 %v6078, %v6085
        %v6088 = vshrl.u32 %v6070, %v6086
        %v6089 = vor.u32 %v6087, %v6088
        %v6090 = vsub.s32 4294967266, %v6085
        %v6091 = vadd.s32 %v6090, 127
        %v6092 = vshll.u32 %v6091, 23
        %v6093 = vor.u32 4788187, %v6092
        %v6094 = vand.u32 2147483647, %v6093
        %v6096 = vcvt.s32.f32 %v6089
        %v6097 = vmul.f32 %v6096, %v6094
        %v6098 = vxor.u32 %v6097, 2147483648
        %v6099 = vsel %vm6016, %v6098, %v6097
        %v6100 = vsub.s32 4, %v6076
        %v6101 = vsel %vm6016, %v6100, %v6076
        %v6102 = vsel %vm6015, %v5065, %v6099
        %v6103 = vsel %vm6015, 0, %v6101
        %v6104 = vcosq.f32.pop %v6102
        %v6105 = vsinq.f32.pop %v6102
        %vm6106 = vweird.f32 %v5065
        %v6107 = vadd.s32 %v6103, 3
        %v6108 = vand.u32 %v6107, 3
        %vm6109 = vcmp.lt.s32.totalorder %v6108, 2
        %vm6110 = vcmp.eq.s32.totalorder %v6108, 0
        %v6111 = vxor.u32 %v6105, 2147483648
        %v6112 = vsel %vm6110, %v6104, %v6111
        %vm6113 = vcmp.eq.s32.totalorder %v6108, 2
        %v6114 = vxor.u32 %v6104, 2147483648
        %v6115 = vsel %vm6113, %v6114, %v6105
        %v6116 = vsel %vm6109, %v6112, %v6115
        %v6117 = vsel %vm6106, nan, %v6116
        %v6118 = vand.u32 2147483647, %v5070
        %vm6119 = vcmp.le.f32.partialorder %v6118, 0.7853982
        %vm6120 = vcmp.lt.s32.totalorder %v5070, 0
        %v6121 = vand.u32 %v5070, 2139095040
        %v6122 = vshrl.u32 %v6121, 23
        %v6123 = vsub.s32 %v6122, 127
        %v6124 = vand.u32 2147483647, %v5070
        %v6125 = vand.u32 %v6124, 8388607
        %v6126 = vor.u32 %v6125, 8388608
        %v6127 = vsub.s32 0, %v6126
        %v6128 = vadd.s32 %v6123, 1
        %vm6129 = vcmp.gt.s32.totalorder %v6128, 0
        %v6130 = vsel %vm6129, %v6128, 0
        %v6131 = vshrl.u32 %v6130, 5
        %v6132 = vand.u32 %v6130, 31
        %v6133 = vsub.s32 32, %v6132
        %v6134 = vshrl.u32 683565275, %v6133
        %v6135 = vshll.u32 683565275, %v6132
        %v6136 = vshrl.u32 2475754826, %v6133
        %v6137 = vor.u32 %v6135, %v6136
        %v6138 = vshll.u32 2475754826, %v6132
        %v6139 = vshrl.u32 2131351028, %v6133
        %v6140 = vor.u32 %v6138, %v6139
        %v6141 = vshll.u32 2131351028, %v6132
        %v6142 = vshrl.u32 2102212464, %v6133
        %v6143 = vor.u32 %v6141, %v6142
        %v6144 = vshll.u32 2102212464, %v6132
        %v6145 = vshrl.u32 920167782, %v6133
        %v6146 = vor.u32 %v6144, %v6145
        %v6147 = vshll.u32 920167782, %v6132
        %v6148 = vshrl.u32 1326507024, %v6133
        %v6149 = vor.u32 %v6147, %v6148
        %vm6150 = vcmp.lt.s32.totalorder %v6131, 1
        %vm6151 = vcmp.lt.s32.totalorder %v6131, 2
        %vm6152 = vcmp.lt.s32.totalorder %v6131, 3
        %vm6153 = vcmp.lt.s32.totalorder %v6131, 4
        %v6154 = vsel %vm6150, %v6134, %v6137
        %v6155 = vsel %vm6153, %v6143, 2102212464
        %v6156 = vsel %vm6152, %v6140, %v6155
        %v6157 = vsel %vm6151, %v6154, %v6156
        %v6158 = vsel %vm6150, %v6137, %v6140
        %v6159 = vsel %vm6153, %v6146, 920167782
        %v6160 = vsel %vm6152, %v6143, %v6159
        %v6161 = vsel %vm6151, %v6158, %v6160
        %v6162 = vsel %vm6150, %v6140, %v6143
        %v6163 = vsel %vm6153, %v6149, 1326507024
        %v6164 = vsel %vm6152, %v6146, %v6163
        %v6165 = vsel %vm6151, %v6162, %v6164
        %v6166 = vshll.u32 %v6126, 8
        %v6167 = vmul.u32.u64.compose %v6166, %v6165
        %v6168 = vextract.low.u32 %v6167
        %v6169 = vextract.high.u32 %v6167
        %v6170 = vmul.u32.u64.compose %v6166, %v6161
        %v6171 = vextract.low.u32 %v6170
        %v6172 = vextract.high.u32 %v6170
        %v6173 = vmul.u32 %v6166, %v6157
        %v6174 = vadd.s32 %v6169, %v6171
        %vm6175 = vc.u32 %v6169, %v6171
        %v6176 = vadd.s32 %v6172, 1
        %v6177 = vsel %vm6175, %v6176, %v6172
        %v6178 = vadd.s32 %v6173, %v6177
        %v6179 = vadd.s32 %v6178, 536870912
        %v6180 = vshrl.u32 %v6179, 30
        %v6181 = vshll.u32 %v6180, 30
        %v6182 = vsub.s32 %v6178, %v6181
        %vm6183 = vcmp.lt.s32.totalorder %v6182, 0
        %v6184 = vsub.s32 0, %v6182
        %v6185 = vsel %vm6183, %v6184, %v6182
        %v6186 = vclz %v6185
        %v6187 = vsub.s32 %v6186, 2
        %vm6188 = vcmp.gt.s32.totalorder 0, %v6187
        %v6189 = vsel %vm6188, 0, %v6187
        %v6190 = vsub.s32 32, %v6189
        %v6191 = vshll.u32 %v6182, %v6189
        %v6192 = vshrl.u32 %v6174, %v6190
        %v6193 = vor.u32 %v6191, %v6192
        %v6194 = vsub.s32 4294967266, %v6189
        %v6195 = vadd.s32 %v6194, 127
        %v6196 = vshll.u32 %v6195, 23
        %v6197 = vor.u32 4788187, %v6196
        %v6198 = vand.u32 2147483647, %v6197
        %v6200 = vcvt.s32.f32 %v6193
        %v6201 = vmul.f32 %v6200, %v6198
        %v6202 = vxor.u32 %v6201, 2147483648
        %v6203 = vsel %vm6120, %v6202, %v6201
        %v6204 = vsub.s32 4, %v6180
        %v6205 = vsel %vm6120, %v6204, %v6180
        %v6206 = vsel %vm6119, %v5070, %v6203
        %v6207 = vsel %vm6119, 0, %v6205
        %v6208 = vcosq.f32.pop %v6206
        %v6209 = vsinq.f32.pop %v6206
        %vm6210 = vweird.f32 %v5070
        %v6211 = vadd.s32 %v6207, 3
        %v6212 = vand.u32 %v6211, 3
        %vm6213 = vcmp.lt.s32.totalorder %v6212, 2
        %vm6214 = vcmp.eq.s32.totalorder %v6212, 0
        %v6215 = vxor.u32 %v6209, 2147483648
        %v6216 = vsel %vm6214, %v6208, %v6215
        %vm6217 = vcmp.eq.s32.totalorder %v6212, 2
        %v6218 = vxor.u32 %v6208, 2147483648
        %v6219 = vsel %vm6217, %v6218, %v6209
        %v6220 = vsel %vm6213, %v6216, %v6219
        %v6221 = vsel %vm6210, nan, %v6220
        %v6222 = vand.u32 2147483647, %v5075
        %vm6223 = vcmp.le.f32.partialorder %v6222, 0.7853982
        %vm6224 = vcmp.lt.s32.totalorder %v5075, 0
        %v6225 = vand.u32 %v5075, 2139095040
        %v6226 = vshrl.u32 %v6225, 23
        %v6227 = vsub.s32 %v6226, 127
        %v6228 = vand.u32 2147483647, %v5075
        %v6229 = vand.u32 %v6228, 8388607
        %v6230 = vor.u32 %v6229, 8388608
        %v6231 = vsub.s32 0, %v6230
        %v6232 = vadd.s32 %v6227, 1
        %vm6233 = vcmp.gt.s32.totalorder %v6232, 0
        %v6234 = vsel %vm6233, %v6232, 0
        %v6235 = vshrl.u32 %v6234, 5
        %v6236 = vand.u32 %v6234, 31
        %v6237 = vsub.s32 32, %v6236
        %v6238 = vshrl.u32 683565275, %v6237
        %v6239 = vshll.u32 683565275, %v6236
        %v6240 = vshrl.u32 2475754826, %v6237
        %v6241 = vor.u32 %v6239, %v6240
        %v6242 = vshll.u32 2475754826, %v6236
        %v6243 = vshrl.u32 2131351028, %v6237
        %v6244 = vor.u32 %v6242, %v6243
        %v6245 = vshll.u32 2131351028, %v6236
        %v6246 = vshrl.u32 2102212464, %v6237
        %v6247 = vor.u32 %v6245, %v6246
        %v6248 = vshll.u32 2102212464, %v6236
        %v6249 = vshrl.u32 920167782, %v6237
        %v6250 = vor.u32 %v6248, %v6249
        %v6251 = vshll.u32 920167782, %v6236
        %v6252 = vshrl.u32 1326507024, %v6237
        %v6253 = vor.u32 %v6251, %v6252
        %vm6254 = vcmp.lt.s32.totalorder %v6235, 1
        %vm6255 = vcmp.lt.s32.totalorder %v6235, 2
        %vm6256 = vcmp.lt.s32.totalorder %v6235, 3
        %vm6257 = vcmp.lt.s32.totalorder %v6235, 4
        %v6258 = vsel %vm6254, %v6238, %v6241
        %v6259 = vsel %vm6257, %v6247, 2102212464
        %v6260 = vsel %vm6256, %v6244, %v6259
        %v6261 = vsel %vm6255, %v6258, %v6260
        %v6262 = vsel %vm6254, %v6241, %v6244
        %v6263 = vsel %vm6257, %v6250, 920167782
        %v6264 = vsel %vm6256, %v6247, %v6263
        %v6265 = vsel %vm6255, %v6262, %v6264
        %v6266 = vsel %vm6254, %v6244, %v6247
        %v6267 = vsel %vm6257, %v6253, 1326507024
        %v6268 = vsel %vm6256, %v6250, %v6267
        %v6269 = vsel %vm6255, %v6266, %v6268
        %v6270 = vshll.u32 %v6230, 8
        %v6271 = vmul.u32.u64.compose %v6270, %v6269
        %v6272 = vextract.low.u32 %v6271
        %v6273 = vextract.high.u32 %v6271
        %v6274 = vmul.u32.u64.compose %v6270, %v6265
        %v6275 = vextract.low.u32 %v6274
        %v6276 = vextract.high.u32 %v6274
        %v6277 = vmul.u32 %v6270, %v6261
        %v6278 = vadd.s32 %v6273, %v6275
        %vm6279 = vc.u32 %v6273, %v6275
        %v6280 = vadd.s32 %v6276, 1
        %v6281 = vsel %vm6279, %v6280, %v6276
        %v6282 = vadd.s32 %v6277, %v6281
        %v6283 = vadd.s32 %v6282, 536870912
        %v6284 = vshrl.u32 %v6283, 30
        %v6285 = vshll.u32 %v6284, 30
        %v6286 = vsub.s32 %v6282, %v6285
        %vm6287 = vcmp.lt.s32.totalorder %v6286, 0
        %v6288 = vsub.s32 0, %v6286
        %v6289 = vsel %vm6287, %v6288, %v6286
        %v6290 = vclz %v6289
        %v6291 = vsub.s32 %v6290, 2
        %vm6292 = vcmp.gt.s32.totalorder 0, %v6291
        %v6293 = vsel %vm6292, 0, %v6291
        %v6294 = vsub.s32 32, %v6293
        %v6295 = vshll.u32 %v6286, %v6293
        %v6296 = vshrl.u32 %v6278, %v6294
        %v6297 = vor.u32 %v6295, %v6296
        %v6298 = vsub.s32 4294967266, %v6293
        %v6299 = vadd.s32 %v6298, 127
        %v6300 = vshll.u32 %v6299, 23
        %v6301 = vor.u32 4788187, %v6300
        %v6302 = vand.u32 2147483647, %v6301
        %v6304 = vcvt.s32.f32 %v6297
        %v6305 = vmul.f32 %v6304, %v6302
        %v6306 = vxor.u32 %v6305, 2147483648
        %v6307 = vsel %vm6224, %v6306, %v6305
        %v6308 = vsub.s32 4, %v6284
        %v6309 = vsel %vm6224, %v6308, %v6284
        %v6310 = vsel %vm6223, %v5075, %v6307
        %v6311 = vsel %vm6223, 0, %v6309
        %v6312 = vcosq.f32.pop %v6310
        %v6313 = vsinq.f32.pop %v6310
        %vm6314 = vweird.f32 %v5075
        %v6315 = vadd.s32 %v6311, 3
        %v6316 = vand.u32 %v6315, 3
        %vm6317 = vcmp.lt.s32.totalorder %v6316, 2
        %vm6318 = vcmp.eq.s32.totalorder %v6316, 0
        %v6319 = vxor.u32 %v6313, 2147483648
        %v6320 = vsel %vm6318, %v6312, %v6319
        %vm6321 = vcmp.eq.s32.totalorder %v6316, 2
        %v6322 = vxor.u32 %v6312, 2147483648
        %v6323 = vsel %vm6321, %v6322, %v6313
        %v6324 = vsel %vm6317, %v6320, %v6323
        %v6325 = vsel %vm6314, nan, %v6324
        %v6326 = vmul.f32 %v5181, %v5181
        %v6327 = vmul.f32 %v5285, %v5285
        %v6328 = vmul.f32 %v5389, %v5389
        %v6329 = vmul.f32 %v5493, %v5493
        %v6330 = vmul.f32 %v5597, %v5597
        %v6331 = vmul.f32 %v5701, %v5701
        %v6332 = vmul.f32 %v5805, %v5805
        %v6333 = vmul.f32 %v5909, %v5909
        %v6334 = vmul.f32 %v6013, %v6013
        %v6335 = vmul.f32 %v6117, %v6117
        %v6336 = vmul.f32 %v6221, %v6221
        %v6337 = vmul.f32 %v6325, %v6325
        %v6338 = vadd.f32 %v5020, %v6326
        %v6339 = vadd.f32 %v5025, %v6327
        %v6340 = vadd.f32 %v5030, %v6328
        %v6341 = vadd.f32 %v5035, %v6329
        %v6342 = vadd.f32 %v5040, %v6330
        %v6343 = vadd.f32 %v5045, %v6331
        %v6344 = vadd.f32 %v5050, %v6332
        %v6345 = vadd.f32 %v5055, %v6333
        %v6346 = vadd.f32 %v5060, %v6334
        %v6347 = vadd.f32 %v5065, %v6335
        %v6348 = vadd.f32 %v5070, %v6336
        %v6349 = vadd.f32 %v5075, %v6337
        %s6350 = scalar_lea.vmem %s3, 288
        %v6351 = vld [vmem:[%s6350] sm:$0xff]
        %v6352 = vld [vmem:[%s6350 + $0x8] sm:$0xff]
        %v6353 = vld [vmem:[%s6350 + $0x10] sm:$0xff]
        %v6354 = vld [vmem:[%s6350 + $0x18] sm:$0xff]
        %v6355 = vld [vmem:[%s6350 + $0x20] sm:$0xff]
        %v6356 = vld [vmem:[%s6350 + $0x28] sm:$0xff]
        %v6357 = vld [vmem:[%s6350 + $0x30] sm:$0xff]
        %v6358 = vld [vmem:[%s6350 + $0x38] sm:$0xff]
        %v6359 = vld [vmem:[%s6350 + $0x40] sm:$0xff]
        %v6360 = vld [vmem:[%s6350 + $0x48] sm:$0xff]
        %v6361 = vld [vmem:[%s6350 + $0x50] sm:$0xff]
        %v6362 = vld [vmem:[%s6350 + $0x58] sm:$0xff]
        %s6363 = scalar_lea.vmem %s4, 288
        %v6364 = vld [vmem:[%s6363] sm:$0xff]
        %v6365 = vld [vmem:[%s6363 + $0x8] sm:$0xff]
        %v6366 = vld [vmem:[%s6363 + $0x10] sm:$0xff]
        %v6367 = vld [vmem:[%s6363 + $0x18] sm:$0xff]
        %v6368 = vld [vmem:[%s6363 + $0x20] sm:$0xff]
        %v6369 = vld [vmem:[%s6363 + $0x28] sm:$0xff]
        %v6370 = vld [vmem:[%s6363 + $0x30] sm:$0xff]
        %v6371 = vld [vmem:[%s6363 + $0x38] sm:$0xff]
        %v6372 = vld [vmem:[%s6363 + $0x40] sm:$0xff]
        %v6373 = vld [vmem:[%s6363 + $0x48] sm:$0xff]
        %v6374 = vld [vmem:[%s6363 + $0x50] sm:$0xff]
        %v6375 = vld [vmem:[%s6363 + $0x58] sm:$0xff]
        %6377 = vset.pattern.permute.xlu0 0
        %6378 = vperm.xlu0 %6377, %v6364
        %v6379 = vpop.permute.xlu0 %6378
        %6382 = vset.pattern.permute.xlu0 0
        %6383 = vperm.xlu0 %6382, %v6365
        %v6384 = vpop.permute.xlu0 %6383
        %6387 = vset.pattern.permute.xlu0 0
        %6388 = vperm.xlu0 %6387, %v6366
        %v6389 = vpop.permute.xlu0 %6388
        %6392 = vset.pattern.permute.xlu0 0
        %6393 = vperm.xlu0 %6392, %v6367
        %v6394 = vpop.permute.xlu0 %6393
        %6397 = vset.pattern.permute.xlu0 0
        %6398 = vperm.xlu0 %6397, %v6368
        %v6399 = vpop.permute.xlu0 %6398
        %6402 = vset.pattern.permute.xlu0 0
        %6403 = vperm.xlu0 %6402, %v6369
        %v6404 = vpop.permute.xlu0 %6403
        %6407 = vset.pattern.permute.xlu0 0
        %6408 = vperm.xlu0 %6407, %v6370
        %v6409 = vpop.permute.xlu0 %6408
        %6412 = vset.pattern.permute.xlu0 0
        %6413 = vperm.xlu0 %6412, %v6371
        %v6414 = vpop.permute.xlu0 %6413
        %6417 = vset.pattern.permute.xlu0 0
        %6418 = vperm.xlu0 %6417, %v6372
        %v6419 = vpop.permute.xlu0 %6418
        %6422 = vset.pattern.permute.xlu0 0
        %6423 = vperm.xlu0 %6422, %v6373
        %v6424 = vpop.permute.xlu0 %6423
        %6427 = vset.pattern.permute.xlu0 0
        %6428 = vperm.xlu0 %6427, %v6374
        %v6429 = vpop.permute.xlu0 %6428
        %6432 = vset.pattern.permute.xlu0 0
        %6433 = vperm.xlu0 %6432, %v6375
        %v6434 = vpop.permute.xlu0 %6433
        %v6437 = vsel %vm1878, %v6351, 0
        %v6440 = vsel %vm1878, %v6352, 0
        %v6443 = vsel %vm1878, %v6353, 0
        %v6446 = vsel %vm1878, %v6354, 0
        %v6449 = vsel %vm1878, %v6355, 0
        %v6452 = vsel %vm1878, %v6356, 0
        %v6455 = vsel %vm1878, %v6357, 0
        %v6458 = vsel %vm1878, %v6358, 0
        %v6461 = vsel %vm1878, %v6359, 0
        %v6464 = vsel %vm1878, %v6360, 0
        %v6467 = vsel %vm1878, %v6361, 0
        %v6470 = vsel %vm1878, %v6362, 0
        %6472 = vmatprep.subr.mxu0 0.0
        %6473 = vmatpush1.msra.mxu0 %v6338
        %6474 = vmatprep.subr.mxu0 0.0
        %6475 = vmatpush1.msra.mxu0 %v6339
        %6476 = vmatprep.subr.mxu0 0.0
        %6477 = vmatpush1.msra.mxu0 %v6340
        %6478 = vmatprep.subr.mxu0 0.0
        %6479 = vmatpush1.msra.mxu0 %v6341
        %6480 = vmatprep.subr.mxu0 0.0
        %6481 = vmatpush1.msra.mxu0 %v6342
        %6482 = vmatprep.subr.mxu0 0.0
        %6483 = vmatpush1.msra.mxu0 %v6343
        %6484 = vmatprep.subr.mxu0 0.0
        %6485 = vmatpush1.msra.mxu0 %v6344
        %6486 = vmatprep.subr.mxu0 0.0
        %6487 = vmatpush1.msra.mxu0 %v6345
        %6488 = vmatprep.subr.mxu0 0.0
        %6489 = vmatpush1.msra.mxu0 %v6346
        %6490 = vmatprep.subr.mxu0 0.0
        %6491 = vmatpush1.msra.mxu0 %v6347
        %6492 = vmatprep.subr.mxu0 0.0
        %6493 = vmatpush1.msra.mxu0 %v6348
        %6494 = vmatprep.subr.mxu0 0.0
        %6495 = vmatpush1.msra.mxu0 %v6349
        %6496 = vmatprep.subr.mxu0 0.0
        %6497 = vmatpush1.msra.mxu0 0.0
        %6498 = vmatprep.subr.mxu0 0.0
        %6499 = vmatpush1.msra.mxu0 0.0
        %6500 = vmatprep.subr.mxu0 0.0
        %6501 = vmatpush1.msra.mxu0 0.0
        %6502 = vmatprep.subr.mxu0 0.0
        %6503 = vmatpush1.msra.mxu0 0.0
        %6504 = vmatprep.subr.mxu0 0.0
        %6505 = vmatpush1.msra.mxu0 0.0
        %6506 = vmatprep.subr.mxu0 0.0
        %6507 = vmatpush1.msra.mxu0 0.0
        %6508 = vmatprep.subr.mxu0 0.0
        %6509 = vmatpush1.msra.mxu0 0.0
        %6510 = vmatprep.subr.mxu0 0.0
        %6511 = vmatpush1.msra.mxu0 0.0
        %6512 = vmatprep.subr.mxu0 0.0
        %6513 = vmatpush1.msra.mxu0 0.0
        %6514 = vmatprep.subr.mxu0 0.0
        %6515 = vmatpush1.msra.mxu0 0.0
        %6516 = vmatprep.subr.mxu0 0.0
        %6517 = vmatpush1.msra.mxu0 0.0
        %6518 = vmatprep.subr.mxu0 0.0
        %6519 = vmatpush1.msra.mxu0 0.0
        %6520 = vmatprep.subr.mxu0 0.0
        %6521 = vmatpush1.msra.mxu0 0.0
        %6522 = vmatprep.subr.mxu0 0.0
        %6523 = vmatpush1.msra.mxu0 0.0
        %6524 = vmatprep.subr.mxu0 0.0
        %6525 = vmatpush1.msra.mxu0 0.0
        %6526 = vmatprep.subr.mxu0 0.0
        %6527 = vmatpush1.msra.mxu0 0.0
        %6528 = vmatprep.subr.mxu0 0.0
        %6529 = vmatpush1.msra.mxu0 0.0
        %6530 = vmatprep.subr.mxu0 0.0
        %6531 = vmatpush1.msra.mxu0 0.0
        %6532 = vmatprep.subr.mxu0 0.0
        %6533 = vmatpush1.msra.mxu0 0.0
        %6534 = vmatprep.subr.mxu0 0.0
        %6535 = vmatpush1.msra.mxu0 0.0
        %6536 = vmatprep.mubr.f32.mxu0 0.0
        %6537 = vmatmul.mubr.f32.gmra.mrb[0].mxu0 %v6437
        %v6538 = vpop.f32.mrb[0].mxu0
        %v6539 = vadd.f32 %v6379, %v6538
        %v6540 = vpop.f32.mrb[0].mxu0
        %6541 = vmatprep.mubr.f32.mxu0 0.0
        %6542 = vmatmul.mubr.f32.gmra.mrb[0].mxu0 %v6440
        %v6543 = vpop.f32.mrb[0].mxu0
        %v6544 = vadd.f32 %v6384, %v6543
        %v6545 = vpop.f32.mrb[0].mxu0
        %6546 = vmatprep.mubr.f32.mxu0 0.0
        %6547 = vmatmul.mubr.f32.gmra.mrb[0].mxu0 %v6443
        %v6548 = vpop.f32.mrb[0].mxu0
        %v6549 = vadd.f32 %v6389, %v6548
        %v6550 = vpop.f32.mrb[0].mxu0
        %6551 = vmatprep.mubr.f32.mxu0 0.0
        %6552 = vmatmul.mubr.f32.gmra.mrb[0].mxu0 %v6446
        %v6553 = vpop.f32.mrb[0].mxu0
        %v6554 = vadd.f32 %v6394, %v6553
        %v6555 = vpop.f32.mrb[0].mxu0
        %6556 = vmatprep.mubr.f32.mxu0 0.0
        %6557 = vmatmul.mubr.f32.gmra.mrb[0].mxu0 %v6449
        %v6558 = vpop.f32.mrb[0].mxu0
        %v6559 = vadd.f32 %v6399, %v6558
        %v6560 = vpop.f32.mrb[0].mxu0
        %6561 = vmatprep.mubr.f32.mxu0 0.0
        %6562 = vmatmul.mubr.f32.gmra.mrb[0].mxu0 %v6452
        %v6563 = vpop.f32.mrb[0].mxu0
        %v6564 = vadd.f32 %v6404, %v6563
        %v6565 = vpop.f32.mrb[0].mxu0
        %6566 = vmatprep.mubr.f32.mxu0 0.0
        %6567 = vmatmul.mubr.f32.gmra.mrb[0].mxu0 %v6455
        %v6568 = vpop.f32.mrb[0].mxu0
        %v6569 = vadd.f32 %v6409, %v6568
        %v6570 = vpop.f32.mrb[0].mxu0
        %6571 = vmatprep.mubr.f32.mxu0 0.0
        %6572 = vmatmul.mubr.f32.gmra.mrb[0].mxu0 %v6458
        %v6573 = vpop.f32.mrb[0].mxu0
        %v6574 = vadd.f32 %v6414, %v6573
        %v6575 = vpop.f32.mrb[0].mxu0
        %6576 = vmatprep.mubr.f32.mxu0 0.0
        %6577 = vmatmul.mubr.f32.gmra.mrb[0].mxu0 %v6461
        %v6578 = vpop.f32.mrb[0].mxu0
        %v6579 = vadd.f32 %v6419, %v6578
        %v6580 = vpop.f32.mrb[0].mxu0
        %6581 = vmatprep.mubr.f32.mxu0 0.0
        %6582 = vmatmul.mubr.f32.gmra.mrb[0].mxu0 %v6464
        %v6583 = vpop.f32.mrb[0].mxu0
        %v6584 = vadd.f32 %v6424, %v6583
        %v6585 = vpop.f32.mrb[0].mxu0
        %6586 = vmatprep.mubr.f32.mxu0 0.0
        %6587 = vmatmul.mubr.f32.gmra.mrb[0].mxu0 %v6467
        %v6588 = vpop.f32.mrb[0].mxu0
        %v6589 = vadd.f32 %v6429, %v6588
        %v6590 = vpop.f32.mrb[0].mxu0
        %6591 = vmatprep.mubr.f32.mxu0 0.0
        %6592 = vmatmul.mubr.f32.gmra.mrb[0].mxu0 %v6470
        %v6593 = vpop.f32.mrb[0].mxu0
        %v6594 = vadd.f32 %v6434, %v6593
        %v6595 = vpop.f32.mrb[0].mxu0
        %6596 = vdwg.mxu0
        %v6597 = vand.u32 2147483647, %v6539
        %vm6598 = vcmp.le.f32.partialorder %v6597, 0.7853982
        %vm6599 = vcmp.lt.s32.totalorder %v6539, 0
        %v6600 = vand.u32 %v6539, 2139095040
        %v6601 = vshrl.u32 %v6600, 23
        %v6602 = vsub.s32 %v6601, 127
        %v6603 = vand.u32 2147483647, %v6539
        %v6604 = vand.u32 %v6603, 8388607
        %v6605 = vor.u32 %v6604, 8388608
        %v6606 = vsub.s32 0, %v6605
        %v6607 = vadd.s32 %v6602, 1
        %vm6608 = vcmp.gt.s32.totalorder %v6607, 0
        %v6609 = vsel %vm6608, %v6607, 0
        %v6610 = vshrl.u32 %v6609, 5
        %v6611 = vand.u32 %v6609, 31
        %v6612 = vsub.s32 32, %v6611
        %v6613 = vshrl.u32 683565275, %v6612
        %v6614 = vshll.u32 683565275, %v6611
        %v6615 = vshrl.u32 2475754826, %v6612
        %v6616 = vor.u32 %v6614, %v6615
        %v6617 = vshll.u32 2475754826, %v6611
        %v6618 = vshrl.u32 2131351028, %v6612
        %v6619 = vor.u32 %v6617, %v6618
        %v6620 = vshll.u32 2131351028, %v6611
        %v6621 = vshrl.u32 2102212464, %v6612
        %v6622 = vor.u32 %v6620, %v6621
        %v6623 = vshll.u32 2102212464, %v6611
        %v6624 = vshrl.u32 920167782, %v6612
        %v6625 = vor.u32 %v6623, %v6624
        %v6626 = vshll.u32 920167782, %v6611
        %v6627 = vshrl.u32 1326507024, %v6612
        %v6628 = vor.u32 %v6626, %v6627
        %vm6629 = vcmp.lt.s32.totalorder %v6610, 1
        %vm6630 = vcmp.lt.s32.totalorder %v6610, 2
        %vm6631 = vcmp.lt.s32.totalorder %v6610, 3
        %vm6632 = vcmp.lt.s32.totalorder %v6610, 4
        %v6633 = vsel %vm6629, %v6613, %v6616
        %v6634 = vsel %vm6632, %v6622, 2102212464
        %v6635 = vsel %vm6631, %v6619, %v6634
        %v6636 = vsel %vm6630, %v6633, %v6635
        %v6637 = vsel %vm6629, %v6616, %v6619
        %v6638 = vsel %vm6632, %v6625, 920167782
        %v6639 = vsel %vm6631, %v6622, %v6638
        %v6640 = vsel %vm6630, %v6637, %v6639
        %v6641 = vsel %vm6629, %v6619, %v6622
        %v6642 = vsel %vm6632, %v6628, 1326507024
        %v6643 = vsel %vm6631, %v6625, %v6642
        %v6644 = vsel %vm6630, %v6641, %v6643
        %v6645 = vshll.u32 %v6605, 8
        %v6646 = vmul.u32.u64.compose %v6645, %v6644
        %v6647 = vextract.low.u32 %v6646
        %v6648 = vextract.high.u32 %v6646
        %v6649 = vmul.u32.u64.compose %v6645, %v6640
        %v6650 = vextract.low.u32 %v6649
        %v6651 = vextract.high.u32 %v6649
        %v6652 = vmul.u32 %v6645, %v6636
        %v6653 = vadd.s32 %v6648, %v6650
        %vm6654 = vc.u32 %v6648, %v6650
        %v6655 = vadd.s32 %v6651, 1
        %v6656 = vsel %vm6654, %v6655, %v6651
        %v6657 = vadd.s32 %v6652, %v6656
        %v6658 = vadd.s32 %v6657, 536870912
        %v6659 = vshrl.u32 %v6658, 30
        %v6660 = vshll.u32 %v6659, 30
        %v6661 = vsub.s32 %v6657, %v6660
        %vm6662 = vcmp.lt.s32.totalorder %v6661, 0
        %v6663 = vsub.s32 0, %v6661
        %v6664 = vsel %vm6662, %v6663, %v6661
        %v6665 = vclz %v6664
        %v6666 = vsub.s32 %v6665, 2
        %vm6667 = vcmp.gt.s32.totalorder 0, %v6666
        %v6668 = vsel %vm6667, 0, %v6666
        %v6669 = vsub.s32 32, %v6668
        %v6670 = vshll.u32 %v6661, %v6668
        %v6671 = vshrl.u32 %v6653, %v6669
        %v6672 = vor.u32 %v6670, %v6671
        %v6673 = vsub.s32 4294967266, %v6668
        %v6674 = vadd.s32 %v6673, 127
        %v6675 = vshll.u32 %v6674, 23
        %v6676 = vor.u32 4788187, %v6675
        %v6677 = vand.u32 2147483647, %v6676
        %v6679 = vcvt.s32.f32 %v6672
        %v6680 = vmul.f32 %v6679, %v6677
        %v6681 = vxor.u32 %v6680, 2147483648
        %v6682 = vsel %vm6599, %v6681, %v6680
        %v6683 = vsub.s32 4, %v6659
        %v6684 = vsel %vm6599, %v6683, %v6659
        %v6685 = vsel %vm6598, %v6539, %v6682
        %v6686 = vsel %vm6598, 0, %v6684
        %v6687 = vcosq.f32.pop %v6685
        %v6688 = vsinq.f32.pop %v6685
        %vm6689 = vweird.f32 %v6539
        %v6690 = vadd.s32 %v6686, 3
        %v6691 = vand.u32 %v6690, 3
        %vm6692 = vcmp.lt.s32.totalorder %v6691, 2
        %vm6693 = vcmp.eq.s32.totalorder %v6691, 0
        %v6694 = vxor.u32 %v6688, 2147483648
        %v6695 = vsel %vm6693, %v6687, %v6694
        %vm6696 = vcmp.eq.s32.totalorder %v6691, 2
        %v6697 = vxor.u32 %v6687, 2147483648
        %v6698 = vsel %vm6696, %v6697, %v6688
        %v6699 = vsel %vm6692, %v6695, %v6698
        %v6700 = vsel %vm6689, nan, %v6699
        %v6701 = vand.u32 2147483647, %v6544
        %vm6702 = vcmp.le.f32.partialorder %v6701, 0.7853982
        %vm6703 = vcmp.lt.s32.totalorder %v6544, 0
        %v6704 = vand.u32 %v6544, 2139095040
        %v6705 = vshrl.u32 %v6704, 23
        %v6706 = vsub.s32 %v6705, 127
        %v6707 = vand.u32 2147483647, %v6544
        %v6708 = vand.u32 %v6707, 8388607
        %v6709 = vor.u32 %v6708, 8388608
        %v6710 = vsub.s32 0, %v6709
        %v6711 = vadd.s32 %v6706, 1
        %vm6712 = vcmp.gt.s32.totalorder %v6711, 0
        %v6713 = vsel %vm6712, %v6711, 0
        %v6714 = vshrl.u32 %v6713, 5
        %v6715 = vand.u32 %v6713, 31
        %v6716 = vsub.s32 32, %v6715
        %v6717 = vshrl.u32 683565275, %v6716
        %v6718 = vshll.u32 683565275, %v6715
        %v6719 = vshrl.u32 2475754826, %v6716
        %v6720 = vor.u32 %v6718, %v6719
        %v6721 = vshll.u32 2475754826, %v6715
        %v6722 = vshrl.u32 2131351028, %v6716
        %v6723 = vor.u32 %v6721, %v6722
        %v6724 = vshll.u32 2131351028, %v6715
        %v6725 = vshrl.u32 2102212464, %v6716
        %v6726 = vor.u32 %v6724, %v6725
        %v6727 = vshll.u32 2102212464, %v6715
        %v6728 = vshrl.u32 920167782, %v6716
        %v6729 = vor.u32 %v6727, %v6728
        %v6730 = vshll.u32 920167782, %v6715
        %v6731 = vshrl.u32 1326507024, %v6716
        %v6732 = vor.u32 %v6730, %v6731
        %vm6733 = vcmp.lt.s32.totalorder %v6714, 1
        %vm6734 = vcmp.lt.s32.totalorder %v6714, 2
        %vm6735 = vcmp.lt.s32.totalorder %v6714, 3
        %vm6736 = vcmp.lt.s32.totalorder %v6714, 4
        %v6737 = vsel %vm6733, %v6717, %v6720
        %v6738 = vsel %vm6736, %v6726, 2102212464
        %v6739 = vsel %vm6735, %v6723, %v6738
        %v6740 = vsel %vm6734, %v6737, %v6739
        %v6741 = vsel %vm6733, %v6720, %v6723
        %v6742 = vsel %vm6736, %v6729, 920167782
        %v6743 = vsel %vm6735, %v6726, %v6742
        %v6744 = vsel %vm6734, %v6741, %v6743
        %v6745 = vsel %vm6733, %v6723, %v6726
        %v6746 = vsel %vm6736, %v6732, 1326507024
        %v6747 = vsel %vm6735, %v6729, %v6746
        %v6748 = vsel %vm6734, %v6745, %v6747
        %v6749 = vshll.u32 %v6709, 8
        %v6750 = vmul.u32.u64.compose %v6749, %v6748
        %v6751 = vextract.low.u32 %v6750
        %v6752 = vextract.high.u32 %v6750
        %v6753 = vmul.u32.u64.compose %v6749, %v6744
        %v6754 = vextract.low.u32 %v6753
        %v6755 = vextract.high.u32 %v6753
        %v6756 = vmul.u32 %v6749, %v6740
        %v6757 = vadd.s32 %v6752, %v6754
        %vm6758 = vc.u32 %v6752, %v6754
        %v6759 = vadd.s32 %v6755, 1
        %v6760 = vsel %vm6758, %v6759, %v6755
        %v6761 = vadd.s32 %v6756, %v6760
        %v6762 = vadd.s32 %v6761, 536870912
        %v6763 = vshrl.u32 %v6762, 30
        %v6764 = vshll.u32 %v6763, 30
        %v6765 = vsub.s32 %v6761, %v6764
        %vm6766 = vcmp.lt.s32.totalorder %v6765, 0
        %v6767 = vsub.s32 0, %v6765
        %v6768 = vsel %vm6766, %v6767, %v6765
        %v6769 = vclz %v6768
        %v6770 = vsub.s32 %v6769, 2
        %vm6771 = vcmp.gt.s32.totalorder 0, %v6770
        %v6772 = vsel %vm6771, 0, %v6770
        %v6773 = vsub.s32 32, %v6772
        %v6774 = vshll.u32 %v6765, %v6772
        %v6775 = vshrl.u32 %v6757, %v6773
        %v6776 = vor.u32 %v6774, %v6775
        %v6777 = vsub.s32 4294967266, %v6772
        %v6778 = vadd.s32 %v6777, 127
        %v6779 = vshll.u32 %v6778, 23
        %v6780 = vor.u32 4788187, %v6779
        %v6781 = vand.u32 2147483647, %v6780
        %v6783 = vcvt.s32.f32 %v6776
        %v6784 = vmul.f32 %v6783, %v6781
        %v6785 = vxor.u32 %v6784, 2147483648
        %v6786 = vsel %vm6703, %v6785, %v6784
        %v6787 = vsub.s32 4, %v6763
        %v6788 = vsel %vm6703, %v6787, %v6763
        %v6789 = vsel %vm6702, %v6544, %v6786
        %v6790 = vsel %vm6702, 0, %v6788
        %v6791 = vcosq.f32.pop %v6789
        %v6792 = vsinq.f32.pop %v6789
        %vm6793 = vweird.f32 %v6544
        %v6794 = vadd.s32 %v6790, 3
        %v6795 = vand.u32 %v6794, 3
        %vm6796 = vcmp.lt.s32.totalorder %v6795, 2
        %vm6797 = vcmp.eq.s32.totalorder %v6795, 0
        %v6798 = vxor.u32 %v6792, 2147483648
        %v6799 = vsel %vm6797, %v6791, %v6798
        %vm6800 = vcmp.eq.s32.totalorder %v6795, 2
        %v6801 = vxor.u32 %v6791, 2147483648
        %v6802 = vsel %vm6800, %v6801, %v6792
        %v6803 = vsel %vm6796, %v6799, %v6802
        %v6804 = vsel %vm6793, nan, %v6803
        %v6805 = vand.u32 2147483647, %v6549
        %vm6806 = vcmp.le.f32.partialorder %v6805, 0.7853982
        %vm6807 = vcmp.lt.s32.totalorder %v6549, 0
        %v6808 = vand.u32 %v6549, 2139095040
        %v6809 = vshrl.u32 %v6808, 23
        %v6810 = vsub.s32 %v6809, 127
        %v6811 = vand.u32 2147483647, %v6549
        %v6812 = vand.u32 %v6811, 8388607
        %v6813 = vor.u32 %v6812, 8388608
        %v6814 = vsub.s32 0, %v6813
        %v6815 = vadd.s32 %v6810, 1
        %vm6816 = vcmp.gt.s32.totalorder %v6815, 0
        %v6817 = vsel %vm6816, %v6815, 0
        %v6818 = vshrl.u32 %v6817, 5
        %v6819 = vand.u32 %v6817, 31
        %v6820 = vsub.s32 32, %v6819
        %v6821 = vshrl.u32 683565275, %v6820
        %v6822 = vshll.u32 683565275, %v6819
        %v6823 = vshrl.u32 2475754826, %v6820
        %v6824 = vor.u32 %v6822, %v6823
        %v6825 = vshll.u32 2475754826, %v6819
        %v6826 = vshrl.u32 2131351028, %v6820
        %v6827 = vor.u32 %v6825, %v6826
        %v6828 = vshll.u32 2131351028, %v6819
        %v6829 = vshrl.u32 2102212464, %v6820
        %v6830 = vor.u32 %v6828, %v6829
        %v6831 = vshll.u32 2102212464, %v6819
        %v6832 = vshrl.u32 920167782, %v6820
        %v6833 = vor.u32 %v6831, %v6832
        %v6834 = vshll.u32 920167782, %v6819
        %v6835 = vshrl.u32 1326507024, %v6820
        %v6836 = vor.u32 %v6834, %v6835
        %vm6837 = vcmp.lt.s32.totalorder %v6818, 1
        %vm6838 = vcmp.lt.s32.totalorder %v6818, 2
        %vm6839 = vcmp.lt.s32.totalorder %v6818, 3
        %vm6840 = vcmp.lt.s32.totalorder %v6818, 4
        %v6841 = vsel %vm6837, %v6821, %v6824
        %v6842 = vsel %vm6840, %v6830, 2102212464
        %v6843 = vsel %vm6839, %v6827, %v6842
        %v6844 = vsel %vm6838, %v6841, %v6843
        %v6845 = vsel %vm6837, %v6824, %v6827
        %v6846 = vsel %vm6840, %v6833, 920167782
        %v6847 = vsel %vm6839, %v6830, %v6846
        %v6848 = vsel %vm6838, %v6845, %v6847
        %v6849 = vsel %vm6837, %v6827, %v6830
        %v6850 = vsel %vm6840, %v6836, 1326507024
        %v6851 = vsel %vm6839, %v6833, %v6850
        %v6852 = vsel %vm6838, %v6849, %v6851
        %v6853 = vshll.u32 %v6813, 8
        %v6854 = vmul.u32.u64.compose %v6853, %v6852
        %v6855 = vextract.low.u32 %v6854
        %v6856 = vextract.high.u32 %v6854
        %v6857 = vmul.u32.u64.compose %v6853, %v6848
        %v6858 = vextract.low.u32 %v6857
        %v6859 = vextract.high.u32 %v6857
        %v6860 = vmul.u32 %v6853, %v6844
        %v6861 = vadd.s32 %v6856, %v6858
        %vm6862 = vc.u32 %v6856, %v6858
        %v6863 = vadd.s32 %v6859, 1
        %v6864 = vsel %vm6862, %v6863, %v6859
        %v6865 = vadd.s32 %v6860, %v6864
        %v6866 = vadd.s32 %v6865, 536870912
        %v6867 = vshrl.u32 %v6866, 30
        %v6868 = vshll.u32 %v6867, 30
        %v6869 = vsub.s32 %v6865, %v6868
        %vm6870 = vcmp.lt.s32.totalorder %v6869, 0
        %v6871 = vsub.s32 0, %v6869
        %v6872 = vsel %vm6870, %v6871, %v6869
        %v6873 = vclz %v6872
        %v6874 = vsub.s32 %v6873, 2
        %vm6875 = vcmp.gt.s32.totalorder 0, %v6874
        %v6876 = vsel %vm6875, 0, %v6874
        %v6877 = vsub.s32 32, %v6876
        %v6878 = vshll.u32 %v6869, %v6876
        %v6879 = vshrl.u32 %v6861, %v6877
        %v6880 = vor.u32 %v6878, %v6879
        %v6881 = vsub.s32 4294967266, %v6876
        %v6882 = vadd.s32 %v6881, 127
        %v6883 = vshll.u32 %v6882, 23
        %v6884 = vor.u32 4788187, %v6883
        %v6885 = vand.u32 2147483647, %v6884
        %v6887 = vcvt.s32.f32 %v6880
        %v6888 = vmul.f32 %v6887, %v6885
        %v6889 = vxor.u32 %v6888, 2147483648
        %v6890 = vsel %vm6807, %v6889, %v6888
        %v6891 = vsub.s32 4, %v6867
        %v6892 = vsel %vm6807, %v6891, %v6867
        %v6893 = vsel %vm6806, %v6549, %v6890
        %v6894 = vsel %vm6806, 0, %v6892
        %v6895 = vcosq.f32.pop %v6893
        %v6896 = vsinq.f32.pop %v6893
        %vm6897 = vweird.f32 %v6549
        %v6898 = vadd.s32 %v6894, 3
        %v6899 = vand.u32 %v6898, 3
        %vm6900 = vcmp.lt.s32.totalorder %v6899, 2
        %vm6901 = vcmp.eq.s32.totalorder %v6899, 0
        %v6902 = vxor.u32 %v6896, 2147483648
        %v6903 = vsel %vm6901, %v6895, %v6902
        %vm6904 = vcmp.eq.s32.totalorder %v6899, 2
        %v6905 = vxor.u32 %v6895, 2147483648
        %v6906 = vsel %vm6904, %v6905, %v6896
        %v6907 = vsel %vm6900, %v6903, %v6906
        %v6908 = vsel %vm6897, nan, %v6907
        %v6909 = vand.u32 2147483647, %v6554
        %vm6910 = vcmp.le.f32.partialorder %v6909, 0.7853982
        %vm6911 = vcmp.lt.s32.totalorder %v6554, 0
        %v6912 = vand.u32 %v6554, 2139095040
        %v6913 = vshrl.u32 %v6912, 23
        %v6914 = vsub.s32 %v6913, 127
        %v6915 = vand.u32 2147483647, %v6554
        %v6916 = vand.u32 %v6915, 8388607
        %v6917 = vor.u32 %v6916, 8388608
        %v6918 = vsub.s32 0, %v6917
        %v6919 = vadd.s32 %v6914, 1
        %vm6920 = vcmp.gt.s32.totalorder %v6919, 0
        %v6921 = vsel %vm6920, %v6919, 0
        %v6922 = vshrl.u32 %v6921, 5
        %v6923 = vand.u32 %v6921, 31
        %v6924 = vsub.s32 32, %v6923
        %v6925 = vshrl.u32 683565275, %v6924
        %v6926 = vshll.u32 683565275, %v6923
        %v6927 = vshrl.u32 2475754826, %v6924
        %v6928 = vor.u32 %v6926, %v6927
        %v6929 = vshll.u32 2475754826, %v6923
        %v6930 = vshrl.u32 2131351028, %v6924
        %v6931 = vor.u32 %v6929, %v6930
        %v6932 = vshll.u32 2131351028, %v6923
        %v6933 = vshrl.u32 2102212464, %v6924
        %v6934 = vor.u32 %v6932, %v6933
        %v6935 = vshll.u32 2102212464, %v6923
        %v6936 = vshrl.u32 920167782, %v6924
        %v6937 = vor.u32 %v6935, %v6936
        %v6938 = vshll.u32 920167782, %v6923
        %v6939 = vshrl.u32 1326507024, %v6924
        %v6940 = vor.u32 %v6938, %v6939
        %vm6941 = vcmp.lt.s32.totalorder %v6922, 1
        %vm6942 = vcmp.lt.s32.totalorder %v6922, 2
        %vm6943 = vcmp.lt.s32.totalorder %v6922, 3
        %vm6944 = vcmp.lt.s32.totalorder %v6922, 4
        %v6945 = vsel %vm6941, %v6925, %v6928
        %v6946 = vsel %vm6944, %v6934, 2102212464
        %v6947 = vsel %vm6943, %v6931, %v6946
        %v6948 = vsel %vm6942, %v6945, %v6947
        %v6949 = vsel %vm6941, %v6928, %v6931
        %v6950 = vsel %vm6944, %v6937, 920167782
        %v6951 = vsel %vm6943, %v6934, %v6950
        %v6952 = vsel %vm6942, %v6949, %v6951
        %v6953 = vsel %vm6941, %v6931, %v6934
        %v6954 = vsel %vm6944, %v6940, 1326507024
        %v6955 = vsel %vm6943, %v6937, %v6954
        %v6956 = vsel %vm6942, %v6953, %v6955
        %v6957 = vshll.u32 %v6917, 8
        %v6958 = vmul.u32.u64.compose %v6957, %v6956
        %v6959 = vextract.low.u32 %v6958
        %v6960 = vextract.high.u32 %v6958
        %v6961 = vmul.u32.u64.compose %v6957, %v6952
        %v6962 = vextract.low.u32 %v6961
        %v6963 = vextract.high.u32 %v6961
        %v6964 = vmul.u32 %v6957, %v6948
        %v6965 = vadd.s32 %v6960, %v6962
        %vm6966 = vc.u32 %v6960, %v6962
        %v6967 = vadd.s32 %v6963, 1
        %v6968 = vsel %vm6966, %v6967, %v6963
        %v6969 = vadd.s32 %v6964, %v6968
        %v6970 = vadd.s32 %v6969, 536870912
        %v6971 = vshrl.u32 %v6970, 30
        %v6972 = vshll.u32 %v6971, 30
        %v6973 = vsub.s32 %v6969, %v6972
        %vm6974 = vcmp.lt.s32.totalorder %v6973, 0
        %v6975 = vsub.s32 0, %v6973
        %v6976 = vsel %vm6974, %v6975, %v6973
        %v6977 = vclz %v6976
        %v6978 = vsub.s32 %v6977, 2
        %vm6979 = vcmp.gt.s32.totalorder 0, %v6978
        %v6980 = vsel %vm6979, 0, %v6978
        %v6981 = vsub.s32 32, %v6980
        %v6982 = vshll.u32 %v6973, %v6980
        %v6983 = vshrl.u32 %v6965, %v6981
        %v6984 = vor.u32 %v6982, %v6983
        %v6985 = vsub.s32 4294967266, %v6980
        %v6986 = vadd.s32 %v6985, 127
        %v6987 = vshll.u32 %v6986, 23
        %v6988 = vor.u32 4788187, %v6987
        %v6989 = vand.u32 2147483647, %v6988
        %v6991 = vcvt.s32.f32 %v6984
        %v6992 = vmul.f32 %v6991, %v6989
        %v6993 = vxor.u32 %v6992, 2147483648
        %v6994 = vsel %vm6911, %v6993, %v6992
        %v6995 = vsub.s32 4, %v6971
        %v6996 = vsel %vm6911, %v6995, %v6971
        %v6997 = vsel %vm6910, %v6554, %v6994
        %v6998 = vsel %vm6910, 0, %v6996
        %v6999 = vcosq.f32.pop %v6997
        %v7000 = vsinq.f32.pop %v6997
        %vm7001 = vweird.f32 %v6554
        %v7002 = vadd.s32 %v6998, 3
        %v7003 = vand.u32 %v7002, 3
        %vm7004 = vcmp.lt.s32.totalorder %v7003, 2
        %vm7005 = vcmp.eq.s32.totalorder %v7003, 0
        %v7006 = vxor.u32 %v7000, 2147483648
        %v7007 = vsel %vm7005, %v6999, %v7006
        %vm7008 = vcmp.eq.s32.totalorder %v7003, 2
        %v7009 = vxor.u32 %v6999, 2147483648
        %v7010 = vsel %vm7008, %v7009, %v7000
        %v7011 = vsel %vm7004, %v7007, %v7010
        %v7012 = vsel %vm7001, nan, %v7011
        %v7013 = vand.u32 2147483647, %v6559
        %vm7014 = vcmp.le.f32.partialorder %v7013, 0.7853982
        %vm7015 = vcmp.lt.s32.totalorder %v6559, 0
        %v7016 = vand.u32 %v6559, 2139095040
        %v7017 = vshrl.u32 %v7016, 23
        %v7018 = vsub.s32 %v7017, 127
        %v7019 = vand.u32 2147483647, %v6559
        %v7020 = vand.u32 %v7019, 8388607
        %v7021 = vor.u32 %v7020, 8388608
        %v7022 = vsub.s32 0, %v7021
        %v7023 = vadd.s32 %v7018, 1
        %vm7024 = vcmp.gt.s32.totalorder %v7023, 0
        %v7025 = vsel %vm7024, %v7023, 0
        %v7026 = vshrl.u32 %v7025, 5
        %v7027 = vand.u32 %v7025, 31
        %v7028 = vsub.s32 32, %v7027
        %v7029 = vshrl.u32 683565275, %v7028
        %v7030 = vshll.u32 683565275, %v7027
        %v7031 = vshrl.u32 2475754826, %v7028
        %v7032 = vor.u32 %v7030, %v7031
        %v7033 = vshll.u32 2475754826, %v7027
        %v7034 = vshrl.u32 2131351028, %v7028
        %v7035 = vor.u32 %v7033, %v7034
        %v7036 = vshll.u32 2131351028, %v7027
        %v7037 = vshrl.u32 2102212464, %v7028
        %v7038 = vor.u32 %v7036, %v7037
        %v7039 = vshll.u32 2102212464, %v7027
        %v7040 = vshrl.u32 920167782, %v7028
        %v7041 = vor.u32 %v7039, %v7040
        %v7042 = vshll.u32 920167782, %v7027
        %v7043 = vshrl.u32 1326507024, %v7028
        %v7044 = vor.u32 %v7042, %v7043
        %vm7045 = vcmp.lt.s32.totalorder %v7026, 1
        %vm7046 = vcmp.lt.s32.totalorder %v7026, 2
        %vm7047 = vcmp.lt.s32.totalorder %v7026, 3
        %vm7048 = vcmp.lt.s32.totalorder %v7026, 4
        %v7049 = vsel %vm7045, %v7029, %v7032
        %v7050 = vsel %vm7048, %v7038, 2102212464
        %v7051 = vsel %vm7047, %v7035, %v7050
        %v7052 = vsel %vm7046, %v7049, %v7051
        %v7053 = vsel %vm7045, %v7032, %v7035
        %v7054 = vsel %vm7048, %v7041, 920167782
        %v7055 = vsel %vm7047, %v7038, %v7054
        %v7056 = vsel %vm7046, %v7053, %v7055
        %v7057 = vsel %vm7045, %v7035, %v7038
        %v7058 = vsel %vm7048, %v7044, 1326507024
        %v7059 = vsel %vm7047, %v7041, %v7058
        %v7060 = vsel %vm7046, %v7057, %v7059
        %v7061 = vshll.u32 %v7021, 8
        %v7062 = vmul.u32.u64.compose %v7061, %v7060
        %v7063 = vextract.low.u32 %v7062
        %v7064 = vextract.high.u32 %v7062
        %v7065 = vmul.u32.u64.compose %v7061, %v7056
        %v7066 = vextract.low.u32 %v7065
        %v7067 = vextract.high.u32 %v7065
        %v7068 = vmul.u32 %v7061, %v7052
        %v7069 = vadd.s32 %v7064, %v7066
        %vm7070 = vc.u32 %v7064, %v7066
        %v7071 = vadd.s32 %v7067, 1
        %v7072 = vsel %vm7070, %v7071, %v7067
        %v7073 = vadd.s32 %v7068, %v7072
        %v7074 = vadd.s32 %v7073, 536870912
        %v7075 = vshrl.u32 %v7074, 30
        %v7076 = vshll.u32 %v7075, 30
        %v7077 = vsub.s32 %v7073, %v7076
        %vm7078 = vcmp.lt.s32.totalorder %v7077, 0
        %v7079 = vsub.s32 0, %v7077
        %v7080 = vsel %vm7078, %v7079, %v7077
        %v7081 = vclz %v7080
        %v7082 = vsub.s32 %v7081, 2
        %vm7083 = vcmp.gt.s32.totalorder 0, %v7082
        %v7084 = vsel %vm7083, 0, %v7082
        %v7085 = vsub.s32 32, %v7084
        %v7086 = vshll.u32 %v7077, %v7084
        %v7087 = vshrl.u32 %v7069, %v7085
        %v7088 = vor.u32 %v7086, %v7087
        %v7089 = vsub.s32 4294967266, %v7084
        %v7090 = vadd.s32 %v7089, 127
        %v7091 = vshll.u32 %v7090, 23
        %v7092 = vor.u32 4788187, %v7091
        %v7093 = vand.u32 2147483647, %v7092
        %v7095 = vcvt.s32.f32 %v7088
        %v7096 = vmul.f32 %v7095, %v7093
        %v7097 = vxor.u32 %v7096, 2147483648
        %v7098 = vsel %vm7015, %v7097, %v7096
        %v7099 = vsub.s32 4, %v7075
        %v7100 = vsel %vm7015, %v7099, %v7075
        %v7101 = vsel %vm7014, %v6559, %v7098
        %v7102 = vsel %vm7014, 0, %v7100
        %v7103 = vcosq.f32.pop %v7101
        %v7104 = vsinq.f32.pop %v7101
        %vm7105 = vweird.f32 %v6559
        %v7106 = vadd.s32 %v7102, 3
        %v7107 = vand.u32 %v7106, 3
        %vm7108 = vcmp.lt.s32.totalorder %v7107, 2
        %vm7109 = vcmp.eq.s32.totalorder %v7107, 0
        %v7110 = vxor.u32 %v7104, 2147483648
        %v7111 = vsel %vm7109, %v7103, %v7110
        %vm7112 = vcmp.eq.s32.totalorder %v7107, 2
        %v7113 = vxor.u32 %v7103, 2147483648
        %v7114 = vsel %vm7112, %v7113, %v7104
        %v7115 = vsel %vm7108, %v7111, %v7114
        %v7116 = vsel %vm7105, nan, %v7115
        %v7117 = vand.u32 2147483647, %v6564
        %vm7118 = vcmp.le.f32.partialorder %v7117, 0.7853982
        %vm7119 = vcmp.lt.s32.totalorder %v6564, 0
        %v7120 = vand.u32 %v6564, 2139095040
        %v7121 = vshrl.u32 %v7120, 23
        %v7122 = vsub.s32 %v7121, 127
        %v7123 = vand.u32 2147483647, %v6564
        %v7124 = vand.u32 %v7123, 8388607
        %v7125 = vor.u32 %v7124, 8388608
        %v7126 = vsub.s32 0, %v7125
        %v7127 = vadd.s32 %v7122, 1
        %vm7128 = vcmp.gt.s32.totalorder %v7127, 0
        %v7129 = vsel %vm7128, %v7127, 0
        %v7130 = vshrl.u32 %v7129, 5
        %v7131 = vand.u32 %v7129, 31
        %v7132 = vsub.s32 32, %v7131
        %v7133 = vshrl.u32 683565275, %v7132
        %v7134 = vshll.u32 683565275, %v7131
        %v7135 = vshrl.u32 2475754826, %v7132
        %v7136 = vor.u32 %v7134, %v7135
        %v7137 = vshll.u32 2475754826, %v7131
        %v7138 = vshrl.u32 2131351028, %v7132
        %v7139 = vor.u32 %v7137, %v7138
        %v7140 = vshll.u32 2131351028, %v7131
        %v7141 = vshrl.u32 2102212464, %v7132
        %v7142 = vor.u32 %v7140, %v7141
        %v7143 = vshll.u32 2102212464, %v7131
        %v7144 = vshrl.u32 920167782, %v7132
        %v7145 = vor.u32 %v7143, %v7144
        %v7146 = vshll.u32 920167782, %v7131
        %v7147 = vshrl.u32 1326507024, %v7132
        %v7148 = vor.u32 %v7146, %v7147
        %vm7149 = vcmp.lt.s32.totalorder %v7130, 1
        %vm7150 = vcmp.lt.s32.totalorder %v7130, 2
        %vm7151 = vcmp.lt.s32.totalorder %v7130, 3
        %vm7152 = vcmp.lt.s32.totalorder %v7130, 4
        %v7153 = vsel %vm7149, %v7133, %v7136
        %v7154 = vsel %vm7152, %v7142, 2102212464
        %v7155 = vsel %vm7151, %v7139, %v7154
        %v7156 = vsel %vm7150, %v7153, %v7155
        %v7157 = vsel %vm7149, %v7136, %v7139
        %v7158 = vsel %vm7152, %v7145, 920167782
        %v7159 = vsel %vm7151, %v7142, %v7158
        %v7160 = vsel %vm7150, %v7157, %v7159
        %v7161 = vsel %vm7149, %v7139, %v7142
        %v7162 = vsel %vm7152, %v7148, 1326507024
        %v7163 = vsel %vm7151, %v7145, %v7162
        %v7164 = vsel %vm7150, %v7161, %v7163
        %v7165 = vshll.u32 %v7125, 8
        %v7166 = vmul.u32.u64.compose %v7165, %v7164
        %v7167 = vextract.low.u32 %v7166
        %v7168 = vextract.high.u32 %v7166
        %v7169 = vmul.u32.u64.compose %v7165, %v7160
        %v7170 = vextract.low.u32 %v7169
        %v7171 = vextract.high.u32 %v7169
        %v7172 = vmul.u32 %v7165, %v7156
        %v7173 = vadd.s32 %v7168, %v7170
        %vm7174 = vc.u32 %v7168, %v7170
        %v7175 = vadd.s32 %v7171, 1
        %v7176 = vsel %vm7174, %v7175, %v7171
        %v7177 = vadd.s32 %v7172, %v7176
        %v7178 = vadd.s32 %v7177, 536870912
        %v7179 = vshrl.u32 %v7178, 30
        %v7180 = vshll.u32 %v7179, 30
        %v7181 = vsub.s32 %v7177, %v7180
        %vm7182 = vcmp.lt.s32.totalorder %v7181, 0
        %v7183 = vsub.s32 0, %v7181
        %v7184 = vsel %vm7182, %v7183, %v7181
        %v7185 = vclz %v7184
        %v7186 = vsub.s32 %v7185, 2
        %vm7187 = vcmp.gt.s32.totalorder 0, %v7186
        %v7188 = vsel %vm7187, 0, %v7186
        %v7189 = vsub.s32 32, %v7188
        %v7190 = vshll.u32 %v7181, %v7188
        %v7191 = vshrl.u32 %v7173, %v7189
        %v7192 = vor.u32 %v7190, %v7191
        %v7193 = vsub.s32 4294967266, %v7188
        %v7194 = vadd.s32 %v7193, 127
        %v7195 = vshll.u32 %v7194, 23
        %v7196 = vor.u32 4788187, %v7195
        %v7197 = vand.u32 2147483647, %v7196
        %v7199 = vcvt.s32.f32 %v7192
        %v7200 = vmul.f32 %v7199, %v7197
        %v7201 = vxor.u32 %v7200, 2147483648
        %v7202 = vsel %vm7119, %v7201, %v7200
        %v7203 = vsub.s32 4, %v7179
        %v7204 = vsel %vm7119, %v7203, %v7179
        %v7205 = vsel %vm7118, %v6564, %v7202
        %v7206 = vsel %vm7118, 0, %v7204
        %v7207 = vcosq.f32.pop %v7205
        %v7208 = vsinq.f32.pop %v7205
        %vm7209 = vweird.f32 %v6564
        %v7210 = vadd.s32 %v7206, 3
        %v7211 = vand.u32 %v7210, 3
        %vm7212 = vcmp.lt.s32.totalorder %v7211, 2
        %vm7213 = vcmp.eq.s32.totalorder %v7211, 0
        %v7214 = vxor.u32 %v7208, 2147483648
        %v7215 = vsel %vm7213, %v7207, %v7214
        %vm7216 = vcmp.eq.s32.totalorder %v7211, 2
        %v7217 = vxor.u32 %v7207, 2147483648
        %v7218 = vsel %vm7216, %v7217, %v7208
        %v7219 = vsel %vm7212, %v7215, %v7218
        %v7220 = vsel %vm7209, nan, %v7219
        %v7221 = vand.u32 2147483647, %v6569
        %vm7222 = vcmp.le.f32.partialorder %v7221, 0.7853982
        %vm7223 = vcmp.lt.s32.totalorder %v6569, 0
        %v7224 = vand.u32 %v6569, 2139095040
        %v7225 = vshrl.u32 %v7224, 23
        %v7226 = vsub.s32 %v7225, 127
        %v7227 = vand.u32 2147483647, %v6569
        %v7228 = vand.u32 %v7227, 8388607
        %v7229 = vor.u32 %v7228, 8388608
        %v7230 = vsub.s32 0, %v7229
        %v7231 = vadd.s32 %v7226, 1
        %vm7232 = vcmp.gt.s32.totalorder %v7231, 0
        %v7233 = vsel %vm7232, %v7231, 0
        %v7234 = vshrl.u32 %v7233, 5
        %v7235 = vand.u32 %v7233, 31
        %v7236 = vsub.s32 32, %v7235
        %v7237 = vshrl.u32 683565275, %v7236
        %v7238 = vshll.u32 683565275, %v7235
        %v7239 = vshrl.u32 2475754826, %v7236
        %v7240 = vor.u32 %v7238, %v7239
        %v7241 = vshll.u32 2475754826, %v7235
        %v7242 = vshrl.u32 2131351028, %v7236
        %v7243 = vor.u32 %v7241, %v7242
        %v7244 = vshll.u32 2131351028, %v7235
        %v7245 = vshrl.u32 2102212464, %v7236
        %v7246 = vor.u32 %v7244, %v7245
        %v7247 = vshll.u32 2102212464, %v7235
        %v7248 = vshrl.u32 920167782, %v7236
        %v7249 = vor.u32 %v7247, %v7248
        %v7250 = vshll.u32 920167782, %v7235
        %v7251 = vshrl.u32 1326507024, %v7236
        %v7252 = vor.u32 %v7250, %v7251
        %vm7253 = vcmp.lt.s32.totalorder %v7234, 1
        %vm7254 = vcmp.lt.s32.totalorder %v7234, 2
        %vm7255 = vcmp.lt.s32.totalorder %v7234, 3
        %vm7256 = vcmp.lt.s32.totalorder %v7234, 4
        %v7257 = vsel %vm7253, %v7237, %v7240
        %v7258 = vsel %vm7256, %v7246, 2102212464
        %v7259 = vsel %vm7255, %v7243, %v7258
        %v7260 = vsel %vm7254, %v7257, %v7259
        %v7261 = vsel %vm7253, %v7240, %v7243
        %v7262 = vsel %vm7256, %v7249, 920167782
        %v7263 = vsel %vm7255, %v7246, %v7262
        %v7264 = vsel %vm7254, %v7261, %v7263
        %v7265 = vsel %vm7253, %v7243, %v7246
        %v7266 = vsel %vm7256, %v7252, 1326507024
        %v7267 = vsel %vm7255, %v7249, %v7266
        %v7268 = vsel %vm7254, %v7265, %v7267
        %v7269 = vshll.u32 %v7229, 8
        %v7270 = vmul.u32.u64.compose %v7269, %v7268
        %v7271 = vextract.low.u32 %v7270
        %v7272 = vextract.high.u32 %v7270
        %v7273 = vmul.u32.u64.compose %v7269, %v7264
        %v7274 = vextract.low.u32 %v7273
        %v7275 = vextract.high.u32 %v7273
        %v7276 = vmul.u32 %v7269, %v7260
        %v7277 = vadd.s32 %v7272, %v7274
        %vm7278 = vc.u32 %v7272, %v7274
        %v7279 = vadd.s32 %v7275, 1
        %v7280 = vsel %vm7278, %v7279, %v7275
        %v7281 = vadd.s32 %v7276, %v7280
        %v7282 = vadd.s32 %v7281, 536870912
        %v7283 = vshrl.u32 %v7282, 30
        %v7284 = vshll.u32 %v7283, 30
        %v7285 = vsub.s32 %v7281, %v7284
        %vm7286 = vcmp.lt.s32.totalorder %v7285, 0
        %v7287 = vsub.s32 0, %v7285
        %v7288 = vsel %vm7286, %v7287, %v7285
        %v7289 = vclz %v7288
        %v7290 = vsub.s32 %v7289, 2
        %vm7291 = vcmp.gt.s32.totalorder 0, %v7290
        %v7292 = vsel %vm7291, 0, %v7290
        %v7293 = vsub.s32 32, %v7292
        %v7294 = vshll.u32 %v7285, %v7292
        %v7295 = vshrl.u32 %v7277, %v7293
        %v7296 = vor.u32 %v7294, %v7295
        %v7297 = vsub.s32 4294967266, %v7292
        %v7298 = vadd.s32 %v7297, 127
        %v7299 = vshll.u32 %v7298, 23
        %v7300 = vor.u32 4788187, %v7299
        %v7301 = vand.u32 2147483647, %v7300
        %v7303 = vcvt.s32.f32 %v7296
        %v7304 = vmul.f32 %v7303, %v7301
        %v7305 = vxor.u32 %v7304, 2147483648
        %v7306 = vsel %vm7223, %v7305, %v7304
        %v7307 = vsub.s32 4, %v7283
        %v7308 = vsel %vm7223, %v7307, %v7283
        %v7309 = vsel %vm7222, %v6569, %v7306
        %v7310 = vsel %vm7222, 0, %v7308
        %v7311 = vcosq.f32.pop %v7309
        %v7312 = vsinq.f32.pop %v7309
        %vm7313 = vweird.f32 %v6569
        %v7314 = vadd.s32 %v7310, 3
        %v7315 = vand.u32 %v7314, 3
        %vm7316 = vcmp.lt.s32.totalorder %v7315, 2
        %vm7317 = vcmp.eq.s32.totalorder %v7315, 0
        %v7318 = vxor.u32 %v7312, 2147483648
        %v7319 = vsel %vm7317, %v7311, %v7318
        %vm7320 = vcmp.eq.s32.totalorder %v7315, 2
        %v7321 = vxor.u32 %v7311, 2147483648
        %v7322 = vsel %vm7320, %v7321, %v7312
        %v7323 = vsel %vm7316, %v7319, %v7322
        %v7324 = vsel %vm7313, nan, %v7323
        %v7325 = vand.u32 2147483647, %v6574
        %vm7326 = vcmp.le.f32.partialorder %v7325, 0.7853982
        %vm7327 = vcmp.lt.s32.totalorder %v6574, 0
        %v7328 = vand.u32 %v6574, 2139095040
        %v7329 = vshrl.u32 %v7328, 23
        %v7330 = vsub.s32 %v7329, 127
        %v7331 = vand.u32 2147483647, %v6574
        %v7332 = vand.u32 %v7331, 8388607
        %v7333 = vor.u32 %v7332, 8388608
        %v7334 = vsub.s32 0, %v7333
        %v7335 = vadd.s32 %v7330, 1
        %vm7336 = vcmp.gt.s32.totalorder %v7335, 0
        %v7337 = vsel %vm7336, %v7335, 0
        %v7338 = vshrl.u32 %v7337, 5
        %v7339 = vand.u32 %v7337, 31
        %v7340 = vsub.s32 32, %v7339
        %v7341 = vshrl.u32 683565275, %v7340
        %v7342 = vshll.u32 683565275, %v7339
        %v7343 = vshrl.u32 2475754826, %v7340
        %v7344 = vor.u32 %v7342, %v7343
        %v7345 = vshll.u32 2475754826, %v7339
        %v7346 = vshrl.u32 2131351028, %v7340
        %v7347 = vor.u32 %v7345, %v7346
        %v7348 = vshll.u32 2131351028, %v7339
        %v7349 = vshrl.u32 2102212464, %v7340
        %v7350 = vor.u32 %v7348, %v7349
        %v7351 = vshll.u32 2102212464, %v7339
        %v7352 = vshrl.u32 920167782, %v7340
        %v7353 = vor.u32 %v7351, %v7352
        %v7354 = vshll.u32 920167782, %v7339
        %v7355 = vshrl.u32 1326507024, %v7340
        %v7356 = vor.u32 %v7354, %v7355
        %vm7357 = vcmp.lt.s32.totalorder %v7338, 1
        %vm7358 = vcmp.lt.s32.totalorder %v7338, 2
        %vm7359 = vcmp.lt.s32.totalorder %v7338, 3
        %vm7360 = vcmp.lt.s32.totalorder %v7338, 4
        %v7361 = vsel %vm7357, %v7341, %v7344
        %v7362 = vsel %vm7360, %v7350, 2102212464
        %v7363 = vsel %vm7359, %v7347, %v7362
        %v7364 = vsel %vm7358, %v7361, %v7363
        %v7365 = vsel %vm7357, %v7344, %v7347
        %v7366 = vsel %vm7360, %v7353, 920167782
        %v7367 = vsel %vm7359, %v7350, %v7366
        %v7368 = vsel %vm7358, %v7365, %v7367
        %v7369 = vsel %vm7357, %v7347, %v7350
        %v7370 = vsel %vm7360, %v7356, 1326507024
        %v7371 = vsel %vm7359, %v7353, %v7370
        %v7372 = vsel %vm7358, %v7369, %v7371
        %v7373 = vshll.u32 %v7333, 8
        %v7374 = vmul.u32.u64.compose %v7373, %v7372
        %v7375 = vextract.low.u32 %v7374
        %v7376 = vextract.high.u32 %v7374
        %v7377 = vmul.u32.u64.compose %v7373, %v7368
        %v7378 = vextract.low.u32 %v7377
        %v7379 = vextract.high.u32 %v7377
        %v7380 = vmul.u32 %v7373, %v7364
        %v7381 = vadd.s32 %v7376, %v7378
        %vm7382 = vc.u32 %v7376, %v7378
        %v7383 = vadd.s32 %v7379, 1
        %v7384 = vsel %vm7382, %v7383, %v7379
        %v7385 = vadd.s32 %v7380, %v7384
        %v7386 = vadd.s32 %v7385, 536870912
        %v7387 = vshrl.u32 %v7386, 30
        %v7388 = vshll.u32 %v7387, 30
        %v7389 = vsub.s32 %v7385, %v7388
        %vm7390 = vcmp.lt.s32.totalorder %v7389, 0
        %v7391 = vsub.s32 0, %v7389
        %v7392 = vsel %vm7390, %v7391, %v7389
        %v7393 = vclz %v7392
        %v7394 = vsub.s32 %v7393, 2
        %vm7395 = vcmp.gt.s32.totalorder 0, %v7394
        %v7396 = vsel %vm7395, 0, %v7394
        %v7397 = vsub.s32 32, %v7396
        %v7398 = vshll.u32 %v7389, %v7396
        %v7399 = vshrl.u32 %v7381, %v7397
        %v7400 = vor.u32 %v7398, %v7399
        %v7401 = vsub.s32 4294967266, %v7396
        %v7402 = vadd.s32 %v7401, 127
        %v7403 = vshll.u32 %v7402, 23
        %v7404 = vor.u32 4788187, %v7403
        %v7405 = vand.u32 2147483647, %v7404
        %v7407 = vcvt.s32.f32 %v7400
        %v7408 = vmul.f32 %v7407, %v7405
        %v7409 = vxor.u32 %v7408, 2147483648
        %v7410 = vsel %vm7327, %v7409, %v7408
        %v7411 = vsub.s32 4, %v7387
        %v7412 = vsel %vm7327, %v7411, %v7387
        %v7413 = vsel %vm7326, %v6574, %v7410
        %v7414 = vsel %vm7326, 0, %v7412
        %v7415 = vcosq.f32.pop %v7413
        %v7416 = vsinq.f32.pop %v7413
        %vm7417 = vweird.f32 %v6574
        %v7418 = vadd.s32 %v7414, 3
        %v7419 = vand.u32 %v7418, 3
        %vm7420 = vcmp.lt.s32.totalorder %v7419, 2
        %vm7421 = vcmp.eq.s32.totalorder %v7419, 0
        %v7422 = vxor.u32 %v7416, 2147483648
        %v7423 = vsel %vm7421, %v7415, %v7422
        %vm7424 = vcmp.eq.s32.totalorder %v7419, 2
        %v7425 = vxor.u32 %v7415, 2147483648
        %v7426 = vsel %vm7424, %v7425, %v7416
        %v7427 = vsel %vm7420, %v7423, %v7426
        %v7428 = vsel %vm7417, nan, %v7427
        %v7429 = vand.u32 2147483647, %v6579
        %vm7430 = vcmp.le.f32.partialorder %v7429, 0.7853982
        %vm7431 = vcmp.lt.s32.totalorder %v6579, 0
        %v7432 = vand.u32 %v6579, 2139095040
        %v7433 = vshrl.u32 %v7432, 23
        %v7434 = vsub.s32 %v7433, 127
        %v7435 = vand.u32 2147483647, %v6579
        %v7436 = vand.u32 %v7435, 8388607
        %v7437 = vor.u32 %v7436, 8388608
        %v7438 = vsub.s32 0, %v7437
        %v7439 = vadd.s32 %v7434, 1
        %vm7440 = vcmp.gt.s32.totalorder %v7439, 0
        %v7441 = vsel %vm7440, %v7439, 0
        %v7442 = vshrl.u32 %v7441, 5
        %v7443 = vand.u32 %v7441, 31
        %v7444 = vsub.s32 32, %v7443
        %v7445 = vshrl.u32 683565275, %v7444
        %v7446 = vshll.u32 683565275, %v7443
        %v7447 = vshrl.u32 2475754826, %v7444
        %v7448 = vor.u32 %v7446, %v7447
        %v7449 = vshll.u32 2475754826, %v7443
        %v7450 = vshrl.u32 2131351028, %v7444
        %v7451 = vor.u32 %v7449, %v7450
        %v7452 = vshll.u32 2131351028, %v7443
        %v7453 = vshrl.u32 2102212464, %v7444
        %v7454 = vor.u32 %v7452, %v7453
        %v7455 = vshll.u32 2102212464, %v7443
        %v7456 = vshrl.u32 920167782, %v7444
        %v7457 = vor.u32 %v7455, %v7456
        %v7458 = vshll.u32 920167782, %v7443
        %v7459 = vshrl.u32 1326507024, %v7444
        %v7460 = vor.u32 %v7458, %v7459
        %vm7461 = vcmp.lt.s32.totalorder %v7442, 1
        %vm7462 = vcmp.lt.s32.totalorder %v7442, 2
        %vm7463 = vcmp.lt.s32.totalorder %v7442, 3
        %vm7464 = vcmp.lt.s32.totalorder %v7442, 4
        %v7465 = vsel %vm7461, %v7445, %v7448
        %v7466 = vsel %vm7464, %v7454, 2102212464
        %v7467 = vsel %vm7463, %v7451, %v7466
        %v7468 = vsel %vm7462, %v7465, %v7467
        %v7469 = vsel %vm7461, %v7448, %v7451
        %v7470 = vsel %vm7464, %v7457, 920167782
        %v7471 = vsel %vm7463, %v7454, %v7470
        %v7472 = vsel %vm7462, %v7469, %v7471
        %v7473 = vsel %vm7461, %v7451, %v7454
        %v7474 = vsel %vm7464, %v7460, 1326507024
        %v7475 = vsel %vm7463, %v7457, %v7474
        %v7476 = vsel %vm7462, %v7473, %v7475
        %v7477 = vshll.u32 %v7437, 8
        %v7478 = vmul.u32.u64.compose %v7477, %v7476
        %v7479 = vextract.low.u32 %v7478
        %v7480 = vextract.high.u32 %v7478
        %v7481 = vmul.u32.u64.compose %v7477, %v7472
        %v7482 = vextract.low.u32 %v7481
        %v7483 = vextract.high.u32 %v7481
        %v7484 = vmul.u32 %v7477, %v7468
        %v7485 = vadd.s32 %v7480, %v7482
        %vm7486 = vc.u32 %v7480, %v7482
        %v7487 = vadd.s32 %v7483, 1
        %v7488 = vsel %vm7486, %v7487, %v7483
        %v7489 = vadd.s32 %v7484, %v7488
        %v7490 = vadd.s32 %v7489, 536870912
        %v7491 = vshrl.u32 %v7490, 30
        %v7492 = vshll.u32 %v7491, 30
        %v7493 = vsub.s32 %v7489, %v7492
        %vm7494 = vcmp.lt.s32.totalorder %v7493, 0
        %v7495 = vsub.s32 0, %v7493
        %v7496 = vsel %vm7494, %v7495, %v7493
        %v7497 = vclz %v7496
        %v7498 = vsub.s32 %v7497, 2
        %vm7499 = vcmp.gt.s32.totalorder 0, %v7498
        %v7500 = vsel %vm7499, 0, %v7498
        %v7501 = vsub.s32 32, %v7500
        %v7502 = vshll.u32 %v7493, %v7500
        %v7503 = vshrl.u32 %v7485, %v7501
        %v7504 = vor.u32 %v7502, %v7503
        %v7505 = vsub.s32 4294967266, %v7500
        %v7506 = vadd.s32 %v7505, 127
        %v7507 = vshll.u32 %v7506, 23
        %v7508 = vor.u32 4788187, %v7507
        %v7509 = vand.u32 2147483647, %v7508
        %v7511 = vcvt.s32.f32 %v7504
        %v7512 = vmul.f32 %v7511, %v7509
        %v7513 = vxor.u32 %v7512, 2147483648
        %v7514 = vsel %vm7431, %v7513, %v7512
        %v7515 = vsub.s32 4, %v7491
        %v7516 = vsel %vm7431, %v7515, %v7491
        %v7517 = vsel %vm7430, %v6579, %v7514
        %v7518 = vsel %vm7430, 0, %v7516
        %v7519 = vcosq.f32.pop %v7517
        %v7520 = vsinq.f32.pop %v7517
        %vm7521 = vweird.f32 %v6579
        %v7522 = vadd.s32 %v7518, 3
        %v7523 = vand.u32 %v7522, 3
        %vm7524 = vcmp.lt.s32.totalorder %v7523, 2
        %vm7525 = vcmp.eq.s32.totalorder %v7523, 0
        %v7526 = vxor.u32 %v7520, 2147483648
        %v7527 = vsel %vm7525, %v7519, %v7526
        %vm7528 = vcmp.eq.s32.totalorder %v7523, 2
        %v7529 = vxor.u32 %v7519, 2147483648
        %v7530 = vsel %vm7528, %v7529, %v7520
        %v7531 = vsel %vm7524, %v7527, %v7530
        %v7532 = vsel %vm7521, nan, %v7531
        %v7533 = vand.u32 2147483647, %v6584
        %vm7534 = vcmp.le.f32.partialorder %v7533, 0.7853982
        %vm7535 = vcmp.lt.s32.totalorder %v6584, 0
        %v7536 = vand.u32 %v6584, 2139095040
        %v7537 = vshrl.u32 %v7536, 23
        %v7538 = vsub.s32 %v7537, 127
        %v7539 = vand.u32 2147483647, %v6584
        %v7540 = vand.u32 %v7539, 8388607
        %v7541 = vor.u32 %v7540, 8388608
        %v7542 = vsub.s32 0, %v7541
        %v7543 = vadd.s32 %v7538, 1
        %vm7544 = vcmp.gt.s32.totalorder %v7543, 0
        %v7545 = vsel %vm7544, %v7543, 0
        %v7546 = vshrl.u32 %v7545, 5
        %v7547 = vand.u32 %v7545, 31
        %v7548 = vsub.s32 32, %v7547
        %v7549 = vshrl.u32 683565275, %v7548
        %v7550 = vshll.u32 683565275, %v7547
        %v7551 = vshrl.u32 2475754826, %v7548
        %v7552 = vor.u32 %v7550, %v7551
        %v7553 = vshll.u32 2475754826, %v7547
        %v7554 = vshrl.u32 2131351028, %v7548
        %v7555 = vor.u32 %v7553, %v7554
        %v7556 = vshll.u32 2131351028, %v7547
        %v7557 = vshrl.u32 2102212464, %v7548
        %v7558 = vor.u32 %v7556, %v7557
        %v7559 = vshll.u32 2102212464, %v7547
        %v7560 = vshrl.u32 920167782, %v7548
        %v7561 = vor.u32 %v7559, %v7560
        %v7562 = vshll.u32 920167782, %v7547
        %v7563 = vshrl.u32 1326507024, %v7548
        %v7564 = vor.u32 %v7562, %v7563
        %vm7565 = vcmp.lt.s32.totalorder %v7546, 1
        %vm7566 = vcmp.lt.s32.totalorder %v7546, 2
        %vm7567 = vcmp.lt.s32.totalorder %v7546, 3
        %vm7568 = vcmp.lt.s32.totalorder %v7546, 4
        %v7569 = vsel %vm7565, %v7549, %v7552
        %v7570 = vsel %vm7568, %v7558, 2102212464
        %v7571 = vsel %vm7567, %v7555, %v7570
        %v7572 = vsel %vm7566, %v7569, %v7571
        %v7573 = vsel %vm7565, %v7552, %v7555
        %v7574 = vsel %vm7568, %v7561, 920167782
        %v7575 = vsel %vm7567, %v7558, %v7574
        %v7576 = vsel %vm7566, %v7573, %v7575
        %v7577 = vsel %vm7565, %v7555, %v7558
        %v7578 = vsel %vm7568, %v7564, 1326507024
        %v7579 = vsel %vm7567, %v7561, %v7578
        %v7580 = vsel %vm7566, %v7577, %v7579
        %v7581 = vshll.u32 %v7541, 8
        %v7582 = vmul.u32.u64.compose %v7581, %v7580
        %v7583 = vextract.low.u32 %v7582
        %v7584 = vextract.high.u32 %v7582
        %v7585 = vmul.u32.u64.compose %v7581, %v7576
        %v7586 = vextract.low.u32 %v7585
        %v7587 = vextract.high.u32 %v7585
        %v7588 = vmul.u32 %v7581, %v7572
        %v7589 = vadd.s32 %v7584, %v7586
        %vm7590 = vc.u32 %v7584, %v7586
        %v7591 = vadd.s32 %v7587, 1
        %v7592 = vsel %vm7590, %v7591, %v7587
        %v7593 = vadd.s32 %v7588, %v7592
        %v7594 = vadd.s32 %v7593, 536870912
        %v7595 = vshrl.u32 %v7594, 30
        %v7596 = vshll.u32 %v7595, 30
        %v7597 = vsub.s32 %v7593, %v7596
        %vm7598 = vcmp.lt.s32.totalorder %v7597, 0
        %v7599 = vsub.s32 0, %v7597
        %v7600 = vsel %vm7598, %v7599, %v7597
        %v7601 = vclz %v7600
        %v7602 = vsub.s32 %v7601, 2
        %vm7603 = vcmp.gt.s32.totalorder 0, %v7602
        %v7604 = vsel %vm7603, 0, %v7602
        %v7605 = vsub.s32 32, %v7604
        %v7606 = vshll.u32 %v7597, %v7604
        %v7607 = vshrl.u32 %v7589, %v7605
        %v7608 = vor.u32 %v7606, %v7607
        %v7609 = vsub.s32 4294967266, %v7604
        %v7610 = vadd.s32 %v7609, 127
        %v7611 = vshll.u32 %v7610, 23
        %v7612 = vor.u32 4788187, %v7611
        %v7613 = vand.u32 2147483647, %v7612
        %v7615 = vcvt.s32.f32 %v7608
        %v7616 = vmul.f32 %v7615, %v7613
        %v7617 = vxor.u32 %v7616, 2147483648
        %v7618 = vsel %vm7535, %v7617, %v7616
        %v7619 = vsub.s32 4, %v7595
        %v7620 = vsel %vm7535, %v7619, %v7595
        %v7621 = vsel %vm7534, %v6584, %v7618
        %v7622 = vsel %vm7534, 0, %v7620
        %v7623 = vcosq.f32.pop %v7621
        %v7624 = vsinq.f32.pop %v7621
        %vm7625 = vweird.f32 %v6584
        %v7626 = vadd.s32 %v7622, 3
        %v7627 = vand.u32 %v7626, 3
        %vm7628 = vcmp.lt.s32.totalorder %v7627, 2
        %vm7629 = vcmp.eq.s32.totalorder %v7627, 0
        %v7630 = vxor.u32 %v7624, 2147483648
        %v7631 = vsel %vm7629, %v7623, %v7630
        %vm7632 = vcmp.eq.s32.totalorder %v7627, 2
        %v7633 = vxor.u32 %v7623, 2147483648
        %v7634 = vsel %vm7632, %v7633, %v7624
        %v7635 = vsel %vm7628, %v7631, %v7634
        %v7636 = vsel %vm7625, nan, %v7635
        %v7637 = vand.u32 2147483647, %v6589
        %vm7638 = vcmp.le.f32.partialorder %v7637, 0.7853982
        %vm7639 = vcmp.lt.s32.totalorder %v6589, 0
        %v7640 = vand.u32 %v6589, 2139095040
        %v7641 = vshrl.u32 %v7640, 23
        %v7642 = vsub.s32 %v7641, 127
        %v7643 = vand.u32 2147483647, %v6589
        %v7644 = vand.u32 %v7643, 8388607
        %v7645 = vor.u32 %v7644, 8388608
        %v7646 = vsub.s32 0, %v7645
        %v7647 = vadd.s32 %v7642, 1
        %vm7648 = vcmp.gt.s32.totalorder %v7647, 0
        %v7649 = vsel %vm7648, %v7647, 0
        %v7650 = vshrl.u32 %v7649, 5
        %v7651 = vand.u32 %v7649, 31
        %v7652 = vsub.s32 32, %v7651
        %v7653 = vshrl.u32 683565275, %v7652
        %v7654 = vshll.u32 683565275, %v7651
        %v7655 = vshrl.u32 2475754826, %v7652
        %v7656 = vor.u32 %v7654, %v7655
        %v7657 = vshll.u32 2475754826, %v7651
        %v7658 = vshrl.u32 2131351028, %v7652
        %v7659 = vor.u32 %v7657, %v7658
        %v7660 = vshll.u32 2131351028, %v7651
        %v7661 = vshrl.u32 2102212464, %v7652
        %v7662 = vor.u32 %v7660, %v7661
        %v7663 = vshll.u32 2102212464, %v7651
        %v7664 = vshrl.u32 920167782, %v7652
        %v7665 = vor.u32 %v7663, %v7664
        %v7666 = vshll.u32 920167782, %v7651
        %v7667 = vshrl.u32 1326507024, %v7652
        %v7668 = vor.u32 %v7666, %v7667
        %vm7669 = vcmp.lt.s32.totalorder %v7650, 1
        %vm7670 = vcmp.lt.s32.totalorder %v7650, 2
        %vm7671 = vcmp.lt.s32.totalorder %v7650, 3
        %vm7672 = vcmp.lt.s32.totalorder %v7650, 4
        %v7673 = vsel %vm7669, %v7653, %v7656
        %v7674 = vsel %vm7672, %v7662, 2102212464
        %v7675 = vsel %vm7671, %v7659, %v7674
        %v7676 = vsel %vm7670, %v7673, %v7675
        %v7677 = vsel %vm7669, %v7656, %v7659
        %v7678 = vsel %vm7672, %v7665, 920167782
        %v7679 = vsel %vm7671, %v7662, %v7678
        %v7680 = vsel %vm7670, %v7677, %v7679
        %v7681 = vsel %vm7669, %v7659, %v7662
        %v7682 = vsel %vm7672, %v7668, 1326507024
        %v7683 = vsel %vm7671, %v7665, %v7682
        %v7684 = vsel %vm7670, %v7681, %v7683
        %v7685 = vshll.u32 %v7645, 8
        %v7686 = vmul.u32.u64.compose %v7685, %v7684
        %v7687 = vextract.low.u32 %v7686
        %v7688 = vextract.high.u32 %v7686
        %v7689 = vmul.u32.u64.compose %v7685, %v7680
        %v7690 = vextract.low.u32 %v7689
        %v7691 = vextract.high.u32 %v7689
        %v7692 = vmul.u32 %v7685, %v7676
        %v7693 = vadd.s32 %v7688, %v7690
        %vm7694 = vc.u32 %v7688, %v7690
        %v7695 = vadd.s32 %v7691, 1
        %v7696 = vsel %vm7694, %v7695, %v7691
        %v7697 = vadd.s32 %v7692, %v7696
        %v7698 = vadd.s32 %v7697, 536870912
        %v7699 = vshrl.u32 %v7698, 30
        %v7700 = vshll.u32 %v7699, 30
        %v7701 = vsub.s32 %v7697, %v7700
        %vm7702 = vcmp.lt.s32.totalorder %v7701, 0
        %v7703 = vsub.s32 0, %v7701
        %v7704 = vsel %vm7702, %v7703, %v7701
        %v7705 = vclz %v7704
        %v7706 = vsub.s32 %v7705, 2
        %vm7707 = vcmp.gt.s32.totalorder 0, %v7706
        %v7708 = vsel %vm7707, 0, %v7706
        %v7709 = vsub.s32 32, %v7708
        %v7710 = vshll.u32 %v7701, %v7708
        %v7711 = vshrl.u32 %v7693, %v7709
        %v7712 = vor.u32 %v7710, %v7711
        %v7713 = vsub.s32 4294967266, %v7708
        %v7714 = vadd.s32 %v7713, 127
        %v7715 = vshll.u32 %v7714, 23
        %v7716 = vor.u32 4788187, %v7715
        %v7717 = vand.u32 2147483647, %v7716
        %v7719 = vcvt.s32.f32 %v7712
        %v7720 = vmul.f32 %v7719, %v7717
        %v7721 = vxor.u32 %v7720, 2147483648
        %v7722 = vsel %vm7639, %v7721, %v7720
        %v7723 = vsub.s32 4, %v7699
        %v7724 = vsel %vm7639, %v7723, %v7699
        %v7725 = vsel %vm7638, %v6589, %v7722
        %v7726 = vsel %vm7638, 0, %v7724
        %v7727 = vcosq.f32.pop %v7725
        %v7728 = vsinq.f32.pop %v7725
        %vm7729 = vweird.f32 %v6589
        %v7730 = vadd.s32 %v7726, 3
        %v7731 = vand.u32 %v7730, 3
        %vm7732 = vcmp.lt.s32.totalorder %v7731, 2
        %vm7733 = vcmp.eq.s32.totalorder %v7731, 0
        %v7734 = vxor.u32 %v7728, 2147483648
        %v7735 = vsel %vm7733, %v7727, %v7734
        %vm7736 = vcmp.eq.s32.totalorder %v7731, 2
        %v7737 = vxor.u32 %v7727, 2147483648
        %v7738 = vsel %vm7736, %v7737, %v7728
        %v7739 = vsel %vm7732, %v7735, %v7738
        %v7740 = vsel %vm7729, nan, %v7739
        %v7741 = vand.u32 2147483647, %v6594
        %vm7742 = vcmp.le.f32.partialorder %v7741, 0.7853982
        %vm7743 = vcmp.lt.s32.totalorder %v6594, 0
        %v7744 = vand.u32 %v6594, 2139095040
        %v7745 = vshrl.u32 %v7744, 23
        %v7746 = vsub.s32 %v7745, 127
        %v7747 = vand.u32 2147483647, %v6594
        %v7748 = vand.u32 %v7747, 8388607
        %v7749 = vor.u32 %v7748, 8388608
        %v7750 = vsub.s32 0, %v7749
        %v7751 = vadd.s32 %v7746, 1
        %vm7752 = vcmp.gt.s32.totalorder %v7751, 0
        %v7753 = vsel %vm7752, %v7751, 0
        %v7754 = vshrl.u32 %v7753, 5
        %v7755 = vand.u32 %v7753, 31
        %v7756 = vsub.s32 32, %v7755
        %v7757 = vshrl.u32 683565275, %v7756
        %v7758 = vshll.u32 683565275, %v7755
        %v7759 = vshrl.u32 2475754826, %v7756
        %v7760 = vor.u32 %v7758, %v7759
        %v7761 = vshll.u32 2475754826, %v7755
        %v7762 = vshrl.u32 2131351028, %v7756
        %v7763 = vor.u32 %v7761, %v7762
        %v7764 = vshll.u32 2131351028, %v7755
        %v7765 = vshrl.u32 2102212464, %v7756
        %v7766 = vor.u32 %v7764, %v7765
        %v7767 = vshll.u32 2102212464, %v7755
        %v7768 = vshrl.u32 920167782, %v7756
        %v7769 = vor.u32 %v7767, %v7768
        %v7770 = vshll.u32 920167782, %v7755
        %v7771 = vshrl.u32 1326507024, %v7756
        %v7772 = vor.u32 %v7770, %v7771
        %vm7773 = vcmp.lt.s32.totalorder %v7754, 1
        %vm7774 = vcmp.lt.s32.totalorder %v7754, 2
        %vm7775 = vcmp.lt.s32.totalorder %v7754, 3
        %vm7776 = vcmp.lt.s32.totalorder %v7754, 4
        %v7777 = vsel %vm7773, %v7757, %v7760
        %v7778 = vsel %vm7776, %v7766, 2102212464
        %v7779 = vsel %vm7775, %v7763, %v7778
        %v7780 = vsel %vm7774, %v7777, %v7779
        %v7781 = vsel %vm7773, %v7760, %v7763
        %v7782 = vsel %vm7776, %v7769, 920167782
        %v7783 = vsel %vm7775, %v7766, %v7782
        %v7784 = vsel %vm7774, %v7781, %v7783
        %v7785 = vsel %vm7773, %v7763, %v7766
        %v7786 = vsel %vm7776, %v7772, 1326507024
        %v7787 = vsel %vm7775, %v7769, %v7786
        %v7788 = vsel %vm7774, %v7785, %v7787
        %v7789 = vshll.u32 %v7749, 8
        %v7790 = vmul.u32.u64.compose %v7789, %v7788
        %v7791 = vextract.low.u32 %v7790
        %v7792 = vextract.high.u32 %v7790
        %v7793 = vmul.u32.u64.compose %v7789, %v7784
        %v7794 = vextract.low.u32 %v7793
        %v7795 = vextract.high.u32 %v7793
        %v7796 = vmul.u32 %v7789, %v7780
        %v7797 = vadd.s32 %v7792, %v7794
        %vm7798 = vc.u32 %v7792, %v7794
        %v7799 = vadd.s32 %v7795, 1
        %v7800 = vsel %vm7798, %v7799, %v7795
        %v7801 = vadd.s32 %v7796, %v7800
        %v7802 = vadd.s32 %v7801, 536870912
        %v7803 = vshrl.u32 %v7802, 30
        %v7804 = vshll.u32 %v7803, 30
        %v7805 = vsub.s32 %v7801, %v7804
        %vm7806 = vcmp.lt.s32.totalorder %v7805, 0
        %v7807 = vsub.s32 0, %v7805
        %v7808 = vsel %vm7806, %v7807, %v7805
        %v7809 = vclz %v7808
        %v7810 = vsub.s32 %v7809, 2
        %vm7811 = vcmp.gt.s32.totalorder 0, %v7810
        %v7812 = vsel %vm7811, 0, %v7810
        %v7813 = vsub.s32 32, %v7812
        %v7814 = vshll.u32 %v7805, %v7812
        %v7815 = vshrl.u32 %v7797, %v7813
        %v7816 = vor.u32 %v7814, %v7815
        %v7817 = vsub.s32 4294967266, %v7812
        %v7818 = vadd.s32 %v7817, 127
        %v7819 = vshll.u32 %v7818, 23
        %v7820 = vor.u32 4788187, %v7819
        %v7821 = vand.u32 2147483647, %v7820
        %v7823 = vcvt.s32.f32 %v7816
        %v7824 = vmul.f32 %v7823, %v7821
        %v7825 = vxor.u32 %v7824, 2147483648
        %v7826 = vsel %vm7743, %v7825, %v7824
        %v7827 = vsub.s32 4, %v7803
        %v7828 = vsel %vm7743, %v7827, %v7803
        %v7829 = vsel %vm7742, %v6594, %v7826
        %v7830 = vsel %vm7742, 0, %v7828
        %v7831 = vcosq.f32.pop %v7829
        %v7832 = vsinq.f32.pop %v7829
        %vm7833 = vweird.f32 %v6594
        %v7834 = vadd.s32 %v7830, 3
        %v7835 = vand.u32 %v7834, 3
        %vm7836 = vcmp.lt.s32.totalorder %v7835, 2
        %vm7837 = vcmp.eq.s32.totalorder %v7835, 0
        %v7838 = vxor.u32 %v7832, 2147483648
        %v7839 = vsel %vm7837, %v7831, %v7838
        %vm7840 = vcmp.eq.s32.totalorder %v7835, 2
        %v7841 = vxor.u32 %v7831, 2147483648
        %v7842 = vsel %vm7840, %v7841, %v7832
        %v7843 = vsel %vm7836, %v7839, %v7842
        %v7844 = vsel %vm7833, nan, %v7843
        %v7845 = vmul.f32 %v6700, %v6700
        %v7846 = vmul.f32 %v6804, %v6804
        %v7847 = vmul.f32 %v6908, %v6908
        %v7848 = vmul.f32 %v7012, %v7012
        %v7849 = vmul.f32 %v7116, %v7116
        %v7850 = vmul.f32 %v7220, %v7220
        %v7851 = vmul.f32 %v7324, %v7324
        %v7852 = vmul.f32 %v7428, %v7428
        %v7853 = vmul.f32 %v7532, %v7532
        %v7854 = vmul.f32 %v7636, %v7636
        %v7855 = vmul.f32 %v7740, %v7740
        %v7856 = vmul.f32 %v7844, %v7844
        %v7857 = vadd.f32 %v6539, %v7845
        %v7858 = vadd.f32 %v6544, %v7846
        %v7859 = vadd.f32 %v6549, %v7847
        %v7860 = vadd.f32 %v6554, %v7848
        %v7861 = vadd.f32 %v6559, %v7849
        %v7862 = vadd.f32 %v6564, %v7850
        %v7863 = vadd.f32 %v6569, %v7851
        %v7864 = vadd.f32 %v6574, %v7852
        %v7865 = vadd.f32 %v6579, %v7853
        %v7866 = vadd.f32 %v6584, %v7854
        %v7867 = vadd.f32 %v6589, %v7855
        %v7868 = vadd.f32 %v6594, %v7856
        %v7869 = vld [vmem:[%s5] sm:$0x1]
        %v7870 = vld [vmem:[#allocation2] sm:$0x1]
        %7872 = vset.pattern.permute.xlu0 0
        %7873 = vperm.xlu0 %7872, %v7870
        %v7874 = vpop.permute.xlu0 %7873
        %v7876 = vlaneseq
        %v7877 = vshrl.u32 %v7876, 7
        %v7878 = vsub.s32 0, %v7877
        %v7879 = vrot.slane %v7874, %v7878
        %v7881 = vsel %vm1878, %v7869, 0
        %7883 = vmatprep.subr.mxu0 0.0
        %7884 = vmatpush1.msra.mxu0 %v7857
        %7885 = vmatprep.subr.mxu0 0.0
        %7886 = vmatpush1.msra.mxu0 %v7858
        %7887 = vmatprep.subr.mxu0 0.0
        %7888 = vmatpush1.msra.mxu0 %v7859
        %7889 = vmatprep.subr.mxu0 0.0
        %7890 = vmatpush1.msra.mxu0 %v7860
        %7891 = vmatprep.subr.mxu0 0.0
        %7892 = vmatpush1.msra.mxu0 %v7861
        %7893 = vmatprep.subr.mxu0 0.0
        %7894 = vmatpush1.msra.mxu0 %v7862
        %7895 = vmatprep.subr.mxu0 0.0
        %7896 = vmatpush1.msra.mxu0 %v7863
        %7897 = vmatprep.subr.mxu0 0.0
        %7898 = vmatpush1.msra.mxu0 %v7864
        %7899 = vmatprep.subr.mxu0 0.0
        %7900 = vmatpush1.msra.mxu0 %v7865
        %7901 = vmatprep.subr.mxu0 0.0
        %7902 = vmatpush1.msra.mxu0 %v7866
        %7903 = vmatprep.subr.mxu0 0.0
        %7904 = vmatpush1.msra.mxu0 %v7867
        %7905 = vmatprep.subr.mxu0 0.0
        %7906 = vmatpush1.msra.mxu0 %v7868
        %7907 = vmatprep.subr.mxu0 0.0
        %7908 = vmatpush1.msra.mxu0 0.0
        %7909 = vmatprep.subr.mxu0 0.0
        %7910 = vmatpush1.msra.mxu0 0.0
        %7911 = vmatprep.subr.mxu0 0.0
        %7912 = vmatpush1.msra.mxu0 0.0
        %7913 = vmatprep.subr.mxu0 0.0
        %7914 = vmatpush1.msra.mxu0 0.0
        %7915 = vmatprep.subr.mxu0 0.0
        %7916 = vmatpush1.msra.mxu0 0.0
        %7917 = vmatprep.subr.mxu0 0.0
        %7918 = vmatpush1.msra.mxu0 0.0
        %7919 = vmatprep.subr.mxu0 0.0
        %7920 = vmatpush1.msra.mxu0 0.0
        %7921 = vmatprep.subr.mxu0 0.0
        %7922 = vmatpush1.msra.mxu0 0.0
        %7923 = vmatprep.subr.mxu0 0.0
        %7924 = vmatpush1.msra.mxu0 0.0
        %7925 = vmatprep.subr.mxu0 0.0
        %7926 = vmatpush1.msra.mxu0 0.0
        %7927 = vmatprep.subr.mxu0 0.0
        %7928 = vmatpush1.msra.mxu0 0.0
        %7929 = vmatprep.subr.mxu0 0.0
        %7930 = vmatpush1.msra.mxu0 0.0
        %7931 = vmatprep.subr.mxu0 0.0
        %7932 = vmatpush1.msra.mxu0 0.0
        %7933 = vmatprep.subr.mxu0 0.0
        %7934 = vmatpush1.msra.mxu0 0.0
        %7935 = vmatprep.subr.mxu0 0.0
        %7936 = vmatpush1.msra.mxu0 0.0
        %7937 = vmatprep.subr.mxu0 0.0
        %7938 = vmatpush1.msra.mxu0 0.0
        %7939 = vmatprep.subr.mxu0 0.0
        %7940 = vmatpush1.msra.mxu0 0.0
        %7941 = vmatprep.subr.mxu0 0.0
        %7942 = vmatpush1.msra.mxu0 0.0
        %7943 = vmatprep.subr.mxu0 0.0
        %7944 = vmatpush1.msra.mxu0 0.0
        %7945 = vmatprep.subr.mxu0 0.0
        %7946 = vmatpush1.msra.mxu0 0.0
        %7947 = vmatprep.mubr.f32.mxu0 0.0
        %7948 = vmatmul.mubr.f32.gmra.mrb[0].mxu0 %v7881
        %v7949 = vpop.f32.mrb[0].mxu0
        %v7950 = vadd.f32 %v7879, %v7949
        %v7951 = vpop.f32.mrb[0].mxu0
        %7952 = vdwg.mxu0
        %7953 = vst [vmem:[%s270] sm:$0x1] %v7950
        %s7954 = sand.u32 %s183, 1
        %s7955 = scalar_lea.sflag [#allocation4], %s7954
        %s7956 = sand.u32 %s183, 1
        %s7957 = scalar_lea.vmem [#allocation3], %s7956
        // Predicated region
        $region49: #{tpu_custom_call.1} parent=47 // pred_check
          %p7958 = pneg %p193
        $region50: #{tpu_custom_call.1} parent=47 // pred_check_branch
          %7960 = sbr.rel (%p7958) target = $region52
        $region51: #{tpu_custom_call.1} parent=47 // pred_region
          %s7962 = ssub.s32 16, 16
          %7963 = vsyncadd %s7955, %s7962
          %s7964 = smul.addr %s23, 16
          %s7965 = scalar_lea.hbm %s7, %s7964
          %s7967 = sshll.u32 %s7957, 4
          %s7968 = int_to_ptr.vmem [resolvable:$true] %s7967
          %7970 = dma.vmem_to_hbm [thread:$0]  %s7968, 16, %s7965, %s7955
        $region52: #{tpu_custom_call.1} parent=47 // pred_fallthru
          _
      $region48: #{tpu_custom_call.1} parent=5 // pred_fallthru
        _
      %p7971 = scmp.le.s32.totalorder 2, %s18
      // Predicated region
      $region53: #{tpu_custom_call.1} parent=5 // pred_check
        %p7972 = pneg %p7971
      $region54: #{tpu_custom_call.1} parent=5 // pred_check_branch
        %7974 = sbr.rel (%p7972) target = $region56
      $region55: #{tpu_custom_call.1} parent=5 // pred_region
        %s7975 = ssub.s32 %s18, 2
        // Predicated region
        $region57: #{tpu_custom_call.1} parent=55 // pred_check
          %p7976 = pneg %p199
        $region58: #{tpu_custom_call.1} parent=55 // pred_check_branch
          %7978 = sbr.rel (%p7976) target = $region60
        $region59: #{tpu_custom_call.1} parent=55 // pred_region
          %s7979 = sand.u32 %s184, 1
          %s7980 = scalar_lea.sflag [#allocation4], %s7979
          %s7981 = sand.u32 %s184, 1
          %s7982 = scalar_lea.vmem [#allocation3], %s7981
          %7983 = dma.done %s7980, 16
        $region60: #{tpu_custom_call.1} parent=55 // pred_fallthru
          _
      $region56: #{tpu_custom_call.1} parent=5 // pred_fallthru
        _
    $region6: #{tpu_custom_call.1} parent=1 // loop_footer
      %s22 = sadd.s32 1, %s18
    $region7: #{tpu_custom_call.1} parent=1 // loop_footer_branch
      %17 = sbr.rel target = $region3
    $region8: #{tpu_custom_call.1} parent=1 // loop_exit
      _
    %7984 = vsyncpa [#allocation4], 1
    %s7985 = scalar_lea.sflag [#allocation4], 1
    %7986 = vsyncpa %s7985, 1

</llo_original>
